<compile_context>
chip_gen: v7x
topology: tpu7x:2x2x1
jax: 0.10.0
libtpu: 0.0.40
codegen_flags: <defaults>
</compile_context>

<pallas_src>
import functools

import numpy as np

import jax
import jax.numpy as jnp
from jax.experimental import pallas as pl
from jax.experimental.pallas import tpu as pltpu

_VMEM_SPEC = pl.BlockSpec(memory_space=pltpu.MemorySpace.VMEM)
_SMEM_SPEC = pl.BlockSpec(memory_space=pltpu.MemorySpace.SMEM)
_HBM_SPEC = pl.BlockSpec(memory_space=pl.ANY)
_CPARAMS = pltpu.CompilerParams(vmem_limit_bytes=32 * 1024 * 1024)

_N_FC1_ROWS = 9      # conv3 output height = per-image rows accumulated into fc1
_HIDDEN = 1024
_OUT_PAD = 128


# ------------------------------- fused kernel --------------------------------

def _bombnet_kernel(step_ref,                                    # SMEM  (B, 1) f32
                    x_ref, bw1_ref, bw2_ref, bw3_ref, bias_ref,  # VMEM inputs
                    wfa_hbm, wf2_hbm, wf3_hbm,                   # HBM (pl.ANY) inputs
                    o_ref,                                       # VMEM output (B, 128)
                    wfa_vmem, wf2_vmem, wf3_vmem, sem,           # scratch
                    *, batch, img_rows):
    f32 = jnp.float32
    bf16 = jnp.bfloat16

    # ---- issue every big-weight DMA up front (in consumption order) ----
    wfa_cp = []
    for i in range(_N_FC1_ROWS):
        cp = pltpu.make_async_copy(wfa_hbm.at[i], wfa_vmem.at[i], sem.at[i])
        cp.start()
        wfa_cp.append(cp)
    wf2_cp = pltpu.make_async_copy(wf2_hbm, wf2_vmem, sem.at[_N_FC1_ROWS])
    wf2_cp.start()
    wf3_cp = pltpu.make_async_copy(wf3_hbm, wf3_vmem, sem.at[_N_FC1_ROWS + 1])
    wf3_cp.start()

    # ---- packed per-layer bias vectors (static lane-0 slices of one (8,1024) buffer) ----
    cb1 = bias_ref[0:1, 0:bw1_ref.shape[-1]]
    cb2 = bias_ref[1:2, 0:bw2_ref.shape[-1]]
    cb3 = bias_ref[2:3, 0:bw3_ref.shape[-1]]
    wfb = bias_ref[3:4, :]
    bf1 = bias_ref[4:5, :]
    bf2 = bias_ref[5:6, :]
    bf3 = bias_ref[6:7, 0:_OUT_PAD]

    def conv_band(x, w_ref, bias):
        # x: (rows_in, W_in*Cin) on a rows=(batch,height), lanes=(width,channel) grid.
        # w_ref: (3, W_in*Cin, W_out*Cout) banded weights (one matrix per kernel row kh);
        # a VALID 3x3 conv is then 3 MXU matmuls.  Cross-image "garbage" rows are never
        # read by any valid output position (see prepare_kernel_params band layout).
        # TODO(synk): bw2/bw3 are ~70% structural zeros (banded); accepted for now.
        rows_out = x.shape[0] - 2
        x16 = x.astype(bf16)
        acc = None
        for kh in range(3):
            p = jnp.dot(x16[kh:kh + rows_out, :], w_ref[kh],
                        preferred_element_type=f32)
            acc = p if acc is None else acc + p
        return jnp.maximum(acc + bias, 0.0)

    # Convs run while the fc-weight DMAs are still in flight.
    y1 = conv_band(x_ref[...], bw1_ref, cb1)     # (B*15-2, 13*16)
    y2 = conv_band(y1, bw2_ref, cb2)             # (B*15-4, 11*32)
    y3 = conv_band(y2, bw3_ref, cb3)             # (B*15-6,  9*32)
    y3_16 = y3.astype(bf16)

    # fc1: flattened features of image b live in rows b*img_rows + i (i < 9) of y3,
    # 288 lanes each; h1[b] = sum_i y3[b*img_rows + i] @ Wfa[i].  Slice the LHS *before*
    # each dot (only `span` rows are ever used) and accumulate with an i-row shift so
    # every image's partial sum lands at row b*img_rows of s.
    span = img_rows * (batch - 1) + 1
    s = None
    for i in range(_N_FC1_ROWS):
        wfa_cp[i].wait()                         # block only on the slice consumed now
        q = jnp.dot(y3_16[i:i + span, :], wfa_vmem[i], preferred_element_type=f32)
        s = q if s is None else s + q            # (span, 1024)

    # cat(feat, step) @ Wfc1  ==  feat @ Wfa + step * Wfb   (exact split); step is a
    # per-image SMEM scalar, folded in while extracting the B wanted rows of s.
    rows = []
    for b in range(batch):
        r = s[img_rows * b:img_rows * b + 1, :] + step_ref[b, 0] * wfb + bf1
        rows.append(r)
    h1 = jnp.maximum(jnp.concatenate(rows, axis=0), 0.0)            # (B, 1024)

    wf2_cp.wait()
    h2 = jnp.dot(h1.astype(bf16), wf2_vmem[...], preferred_element_type=f32) + bf2
    h2 = jnp.maximum(h2, 0.0)

    wf3_cp.wait()
    out = jnp.dot(h2.astype(bf16), wf3_vmem[...], preferred_element_type=f32) + bf3
    o_ref[...] = out.astype(o_ref.dtype)         # (B, 128) lane-dense store


# ---------------------- one-time parameter preparation -----------------------

def _banded_conv_weight(w, w_in):
    """(3,3,Cin,Cout) conv kernel -> (3, w_in*Cin, (w_in-2)*Cout) banded matrices.

    bw[kh, (j+kw)*Cin + c, j*Cout + o] = w[kh, kw, c, o], so a VALID 3x3 conv on a
    row-major (width, channel) lane layout is: out_row = sum_kh x_row(+kh) @ bw[kh].
    """
    wnp = np.array(jax.device_get(w)).astype(np.float32)
    _, _, cin, cout = wnp.shape
    w_out = w_in - 2
    bw = np.zeros((3, w_in * cin, w_out * cout), np.float32)
    for kh in range(3):
        for kw in range(3):
            for j in range(w_out):
                bw[kh, (j + kw) * cin:(j + kw + 1) * cin,
                   j * cout:(j + 1) * cout] = wnp[kh, kw]
    return jnp.asarray(bw).astype(jnp.bfloat16)


def prepare_kernel_params(params):
    """One-time (offline) repack of canonical weights into the kernel layout."""
    (w1, b1, w2, b2, w3, b3, wfa, wfb, bf1, wf2, bf2, wf3, bf3) = params
    cout3 = w3.shape[-1]                       # 32
    n_hidden = wfa.shape[1]                    # 1024
    assert n_hidden == _HIDDEN
    assert wfa.shape[0] == cout3 * 9 * 9       # 2592  (Linear(2593) constraint)

    bw1 = _banded_conv_weight(w1, 15)
    bw2 = _banded_conv_weight(w2, 13)
    bw3 = _banded_conv_weight(w3, 11)

    # Pack every small f32 bias-like vector into one (8, 1024) buffer (one DMA, one tile):
    # rows: conv1 bias tiled over 13 width positions, conv2 (x11), conv3 (x9),
    #       wfb (fc1 column for `step`), fc1 bias, fc2 bias, fc3 bias (pad), zeros.
    def padrow(v):
        v = jnp.asarray(v, jnp.float32).reshape(1, -1)
        return jnp.pad(v, ((0, 0), (0, _HIDDEN - v.shape[1])))

    bias_pack = jnp.concatenate([
        padrow(jnp.tile(b1.astype(jnp.float32), (1, 13))),
        padrow(jnp.tile(b2.astype(jnp.float32), (1, 11))),
        padrow(jnp.tile(b3.astype(jnp.float32), (1, 9))),
        padrow(wfb),
        padrow(bf1),
        padrow(bf2),
        padrow(bf3),
        jnp.zeros((1, _HIDDEN), jnp.float32),
    ], axis=0)

    # fc1 rows are NCHW-flatten ordered (c*81 + i*9 + j); regroup them (exact permutation)
    # to (i, j*Cout3 + c) so they match the conv output layout produced by the kernel.
    wfa_k = (jnp.asarray(wfa, jnp.bfloat16)
             .reshape(cout3, 9, 9, n_hidden)
             .transpose(1, 2, 0, 3)
             .reshape(9, 9 * cout3, n_hidden))

    out_dim = wf3.shape[-1]
    assert out_dim <= _OUT_PAD
    wf3p = jnp.pad(jnp.asarray(wf3, jnp.bfloat16), ((0, 0), (0, _OUT_PAD - out_dim)))

    return (bw1, bw2, bw3, bias_pack, wfa_k,
            jnp.asarray(wf2, jnp.bfloat16), wf3p)


# --------------------------------- wrapper ------------------------------------

@functools.partial(jax.jit, static_argnames=("out_dim",))
def bombnet_forward(state_nchw, step, kparams, *, out_dim):
    (bw1, bw2, bw3, bias_pack, wfa_k, wf2, wf3p) = kparams
    bsz, c_in, h, w = state_nchw.shape
    assert h == 15 and w == 15, "BombNet requires 15x15 input (Linear(2593) constraint)"

    # rows = (batch, height), lanes = (width, channel)
    x = jnp.transpose(state_nchw.astype(jnp.float32), (0, 2, 3, 1)).reshape(bsz * h, w * c_in)

    out = pl.pallas_call(
        functools.partial(_bombnet_kernel, batch=bsz, img_rows=h),
        out_shape=jax.ShapeDtypeStruct((bsz, _OUT_PAD), jnp.float32),
        in_specs=[_SMEM_SPEC,                                        # step (scalars)
                  _VMEM_SPEC, _VMEM_SPEC, _VMEM_SPEC, _VMEM_SPEC, _VMEM_SPEC,
                  _HBM_SPEC, _HBM_SPEC, _HBM_SPEC],                  # streamed fc weights
        out_specs=_VMEM_SPEC,
        scratch_shapes=[
            pltpu.VMEM(wfa_k.shape, jnp.bfloat16),                   # (9, 288, 1024)
            pltpu.VMEM(wf2.shape, jnp.bfloat16),                     # (1024, 1024)
            pltpu.VMEM(wf3p.shape, jnp.bfloat16),                    # (1024, 128)
            pltpu.SemaphoreType.DMA((_N_FC1_ROWS + 2,)),
        ],
        compiler_params=_CPARAMS,
    )(step.astype(jnp.float32), x, bw1, bw2, bw3, bias_pack, wfa_k, wf2, wf3p)

    return out[:, :out_dim]


# --------------------------- parameters / reference ---------------------------

def init_params(key, c_in, out_dim):
    ks = jax.random.split(key, 12)

    def rnd(k, shape, scale):
        return jax.random.normal(k, shape, jnp.float32) * scale

    # Weight matrices are stored in bf16 (deployment-style); biases stay f32.
    w1 = rnd(ks[0], (3, 3, c_in, 16), 0.10).astype(jnp.bfloat16); b1 = rnd(ks[1], (1, 16), 0.01)
    w2 = rnd(ks[2], (3, 3, 16, 32), 0.05).astype(jnp.bfloat16);   b2 = rnd(ks[3], (1, 32), 0.01)
    w3 = rnd(ks[4], (3, 3, 32, 32), 0.05).astype(jnp.bfloat16);   b3 = rnd(ks[5], (1, 32), 0.01)
    wfc1 = rnd(ks[6], (2593, 1024), 0.02).astype(jnp.bfloat16)
    wfa, wfb = wfc1[:2592, :], wfc1[2592:2593, :].astype(jnp.float32)
    bf1 = rnd(ks[7], (1, 1024), 0.01)
    wf2 = rnd(ks[8], (1024, 1024), 0.02).astype(jnp.bfloat16);    bf2 = rnd(ks[9], (1, 1024), 0.01)
    wf3 = rnd(ks[10], (1024, out_dim), 0.02).astype(jnp.bfloat16); bf3 = rnd(ks[11], (1, out_dim), 0.01)
    return (w1, b1, w2, b2, w3, b3, wfa, wfb, bf1, wf2, bf2, wf3, bf3)


def reference_forward(state_nchw, step, params):
    """Pure-JAX f32 reference matching the PyTorch forward (NCHW, OIHW convs)."""
    (w1, b1, w2, b2, w3, b3, wfa, wfb, bf1, wf2, bf2, wf3, bf3) = params

    def conv(x, w, b):
        wk = jnp.transpose(w.astype(jnp.float32), (3, 2, 0, 1))  # (3,3,Cin,Cout) -> OIHW
        y = jax.lax.conv_general_dilated(
            x, wk, window_strides=(1, 1), padding='VALID',
            dimension_numbers=('NCHW', 'OIHW', 'NCHW'))
        return jax.nn.relu(y + b.reshape(1, -1, 1, 1))

    x = conv(state_nchw.astype(jnp.float32), w1, b1)
    x = conv(x, w2, b2)
    x = conv(x, w3, b3)
    feat = x.reshape(x.shape[0], -1)                      # torch Flatten (NCHW, channel-major)
    h = jax.nn.relu(feat @ wfa.astype(jnp.float32) + step * wfb + bf1)
    h = jax.nn.relu(h @ wf2.astype(jnp.float32) + bf2)
    return h @ wf3.astype(jnp.float32) + bf3


# ------------------------------------ main ------------------------------------

if __name__ == "__main__":
    B, C, H, W = 2, 4, 15, 15          # spatial must be 15x15 (Linear(2593) constraint)
    OUT_DIM = 6

    key = jax.random.PRNGKey(0)
    k_state, k_step, k_par = jax.random.split(key, 3)
    state = jax.random.normal(k_state, (B, C, H, W), jnp.float32)
    step = jax.random.normal(k_step, (B, 1), jnp.float32)

    params = init_params(k_par, C, OUT_DIM)
    kparams = prepare_kernel_params(params)    # one-time weight repack (offline)

    out = jax.block_until_ready(bombnet_forward(state, step, kparams, out_dim=OUT_DIM))
    ref = jax.block_until_ready(reference_forward(state, step, params))

    assert out.shape == (B, OUT_DIM)
    assert jnp.allclose(out, ref, rtol=2e-3, atol=2e-3), "mismatch vs JAX reference"

    print("KERNEL_OK")
</pallas_src>

<mosaic_0001>
module attributes {stable_mosaic.version = 11 : i64} {
  func.func @_bombnet_kernel(%arg0: memref<2x1xf32, #tpu.memory_space<smem>>, %arg1: memref<30x60xf32, #tpu.memory_space<vmem>>, %arg2: memref<3x60x208xbf16, #tpu.memory_space<vmem>>, %arg3: memref<3x208x352xbf16, #tpu.memory_space<vmem>>, %arg4: memref<3x352x288xbf16, #tpu.memory_space<vmem>>, %arg5: memref<8x1024xf32, #tpu.memory_space<vmem>>, %arg6: memref<9x288x1024xbf16, #tpu.memory_space<any>>, %arg7: memref<1024x1024xbf16, #tpu.memory_space<any>>, %arg8: memref<1024x128xbf16, #tpu.memory_space<any>>, %arg9: memref<2x128xf32, #tpu.memory_space<vmem>>, %arg10: memref<9x288x1024xbf16, #tpu.memory_space<vmem>>, %arg11: memref<1024x1024xbf16, #tpu.memory_space<vmem>>, %arg12: memref<1024x128xbf16, #tpu.memory_space<vmem>>, %arg13: memref<11x!tpu.dma_semaphore, #tpu.memory_space<semaphore_mem>>) attributes {dimension_semantics = [], scalar_prefetch = 0 : i64, scratch_operands = 4 : i64, tpu.core_type = #tpu.core_type<tc>} {
    %c0_i32 = arith.constant 0 : i32
    %c0_i32_0 = arith.constant 0 : i32
    %c0_i32_1 = arith.constant 0 : i32
    %c0_i32_2 = arith.constant 0 : i32
    %c0_i32_3 = arith.constant 0 : i32
    %0 = tpu.memref_slice %arg6[%c0_i32, %c0_i32_2, %c0_i32_3] : memref<9x288x1024xbf16, #tpu.memory_space<any>> -> memref<1x288x1024xbf16, #tpu.memory_space<any>>
    %1 = tpu.memref_squeeze %0 : memref<1x288x1024xbf16, #tpu.memory_space<any>> -> memref<288x1024xbf16, #tpu.memory_space<any>>
    %c0_i32_4 = arith.constant 0 : i32
    %c0_i32_5 = arith.constant 0 : i32
    %2 = tpu.memref_slice %arg10[%c0_i32_0, %c0_i32_4, %c0_i32_5] : memref<9x288x1024xbf16, #tpu.memory_space<vmem>> -> memref<1x288x1024xbf16, #tpu.memory_space<vmem>>
    %3 = tpu.memref_squeeze %2 : memref<1x288x1024xbf16, #tpu.memory_space<vmem>> -> memref<288x1024xbf16, #tpu.memory_space<vmem>>
    %4 = tpu.memref_slice %arg13[%c0_i32_1] : memref<11x!tpu.dma_semaphore, #tpu.memory_space<semaphore_mem>> -> memref<1x!tpu.dma_semaphore, #tpu.memory_space<semaphore_mem>>
    %5 = tpu.memref_squeeze %4 : memref<1x!tpu.dma_semaphore, #tpu.memory_space<semaphore_mem>> -> memref<!tpu.dma_semaphore, #tpu.memory_space<semaphore_mem>>
    tpu.enqueue_dma source(%1 : memref<288x1024xbf16, #tpu.memory_space<any>>) target(%3 : memref<288x1024xbf16, #tpu.memory_space<vmem>>) target_semaphore(%5 : memref<!tpu.dma_semaphore, #tpu.memory_space<semaphore_mem>>)
    %c1_i32 = arith.constant 1 : i32
    %c1_i32_6 = arith.constant 1 : i32
    %c1_i32_7 = arith.constant 1 : i32
    %c0_i32_8 = arith.constant 0 : i32
    %c0_i32_9 = arith.constant 0 : i32
    %6 = tpu.memref_slice %arg6[%c1_i32, %c0_i32_8, %c0_i32_9] : memref<9x288x1024xbf16, #tpu.memory_space<any>> -> memref<1x288x1024xbf16, #tpu.memory_space<any>>
    %7 = tpu.memref_squeeze %6 : memref<1x288x1024xbf16, #tpu.memory_space<any>> -> memref<288x1024xbf16, #tpu.memory_space<any>>
    %c0_i32_10 = arith.constant 0 : i32
    %c0_i32_11 = arith.constant 0 : i32
    %8 = tpu.memref_slice %arg10[%c1_i32_6, %c0_i32_10, %c0_i32_11] : memref<9x288x1024xbf16, #tpu.memory_space<vmem>> -> memref<1x288x1024xbf16, #tpu.memory_space<vmem>>
    %9 = tpu.memref_squeeze %8 : memref<1x288x1024xbf16, #tpu.memory_space<vmem>> -> memref<288x1024xbf16, #tpu.memory_space<vmem>>
    %10 = tpu.memref_slice %arg13[%c1_i32_7] : memref<11x!tpu.dma_semaphore, #tpu.memory_space<semaphore_mem>> -> memref<1x!tpu.dma_semaphore, #tpu.memory_space<semaphore_mem>>
    %11 = tpu.memref_squeeze %10 : memref<1x!tpu.dma_semaphore, #tpu.memory_space<semaphore_mem>> -> memref<!tpu.dma_semaphore, #tpu.memory_space<semaphore_mem>>
    tpu.enqueue_dma source(%7 : memref<288x1024xbf16, #tpu.memory_space<any>>) target(%9 : memref<288x1024xbf16, #tpu.memory_space<vmem>>) target_semaphore(%11 : memref<!tpu.dma_semaphore, #tpu.memory_space<semaphore_mem>>)
    %c2_i32 = arith.constant 2 : i32
    %c2_i32_12 = arith.constant 2 : i32
    %c2_i32_13 = arith.constant 2 : i32
    %c0_i32_14 = arith.constant 0 : i32
    %c0_i32_15 = arith.constant 0 : i32
    %12 = tpu.memref_slice %arg6[%c2_i32, %c0_i32_14, %c0_i32_15] : memref<9x288x1024xbf16, #tpu.memory_space<any>> -> memref<1x288x1024xbf16, #tpu.memory_space<any>>
    %13 = tpu.memref_squeeze %12 : memref<1x288x1024xbf16, #tpu.memory_space<any>> -> memref<288x1024xbf16, #tpu.memory_space<any>>
    %c0_i32_16 = arith.constant 0 : i32
    %c0_i32_17 = arith.constant 0 : i32
    %14 = tpu.memref_slice %arg10[%c2_i32_12, %c0_i32_16, %c0_i32_17] : memref<9x288x1024xbf16, #tpu.memory_space<vmem>> -> memref<1x288x1024xbf16, #tpu.memory_space<vmem>>
    %15 = tpu.memref_squeeze %14 : memref<1x288x1024xbf16, #tpu.memory_space<vmem>> -> memref<288x1024xbf16, #tpu.memory_space<vmem>>
    %16 = tpu.memref_slice %arg13[%c2_i32_13] : memref<11x!tpu.dma_semaphore, #tpu.memory_space<semaphore_mem>> -> memref<1x!tpu.dma_semaphore, #tpu.memory_space<semaphore_mem>>
    %17 = tpu.memref_squeeze %16 : memref<1x!tpu.dma_semaphore, #tpu.memory_space<semaphore_mem>> -> memref<!tpu.dma_semaphore, #tpu.memory_space<semaphore_mem>>
    tpu.enqueue_dma source(%13 : memref<288x1024xbf16, #tpu.memory_space<any>>) target(%15 : memref<288x1024xbf16, #tpu.memory_space<vmem>>) target_semaphore(%17 : memref<!tpu.dma_semaphore, #tpu.memory_space<semaphore_mem>>)
    %c3_i32 = arith.constant 3 : i32
    %c3_i32_18 = arith.constant 3 : i32
    %c3_i32_19 = arith.constant 3 : i32
    %c0_i32_20 = arith.constant 0 : i32
    %c0_i32_21 = arith.constant 0 : i32
    %18 = tpu.memref_slice %arg6[%c3_i32, %c0_i32_20, %c0_i32_21] : memref<9x288x1024xbf16, #tpu.memory_space<any>> -> memref<1x288x1024xbf16, #tpu.memory_space<any>>
    %19 = tpu.memref_squeeze %18 : memref<1x288x1024xbf16, #tpu.memory_space<any>> -> memref<288x1024xbf16, #tpu.memory_space<any>>
    %c0_i32_22 = arith.constant 0 : i32
    %c0_i32_23 = arith.constant 0 : i32
    %20 = tpu.memref_slice %arg10[%c3_i32_18, %c0_i32_22, %c0_i32_23] : memref<9x288x1024xbf16, #tpu.memory_space<vmem>> -> memref<1x288x1024xbf16, #tpu.memory_space<vmem>>
    %21 = tpu.memref_squeeze %20 : memref<1x288x1024xbf16, #tpu.memory_space<vmem>> -> memref<288x1024xbf16, #tpu.memory_space<vmem>>
    %22 = tpu.memref_slice %arg13[%c3_i32_19] : memref<11x!tpu.dma_semaphore, #tpu.memory_space<semaphore_mem>> -> memref<1x!tpu.dma_semaphore, #tpu.memory_space<semaphore_mem>>
    %23 = tpu.memref_squeeze %22 : memref<1x!tpu.dma_semaphore, #tpu.memory_space<semaphore_mem>> -> memref<!tpu.dma_semaphore, #tpu.memory_space<semaphore_mem>>
    tpu.enqueue_dma source(%19 : memref<288x1024xbf16, #tpu.memory_space<any>>) target(%21 : memref<288x1024xbf16, #tpu.memory_space<vmem>>) target_semaphore(%23 : memref<!tpu.dma_semaphore, #tpu.memory_space<semaphore_mem>>)
    %c4_i32 = arith.constant 4 : i32
    %c4_i32_24 = arith.constant 4 : i32
    %c4_i32_25 = arith.constant 4 : i32
    %c0_i32_26 = arith.constant 0 : i32
    %c0_i32_27 = arith.constant 0 : i32
    %24 = tpu.memref_slice %arg6[%c4_i32, %c0_i32_26, %c0_i32_27] : memref<9x288x1024xbf16, #tpu.memory_space<any>> -> memref<1x288x1024xbf16, #tpu.memory_space<any>>
    %25 = tpu.memref_squeeze %24 : memref<1x288x1024xbf16, #tpu.memory_space<any>> -> memref<288x1024xbf16, #tpu.memory_space<any>>
    %c0_i32_28 = arith.constant 0 : i32
    %c0_i32_29 = arith.constant 0 : i32
    %26 = tpu.memref_slice %arg10[%c4_i32_24, %c0_i32_28, %c0_i32_29] : memref<9x288x1024xbf16, #tpu.memory_space<vmem>> -> memref<1x288x1024xbf16, #tpu.memory_space<vmem>>
    %27 = tpu.memref_squeeze %26 : memref<1x288x1024xbf16, #tpu.memory_space<vmem>> -> memref<288x1024xbf16, #tpu.memory_space<vmem>>
    %28 = tpu.memref_slice %arg13[%c4_i32_25] : memref<11x!tpu.dma_semaphore, #tpu.memory_space<semaphore_mem>> -> memref<1x!tpu.dma_semaphore, #tpu.memory_space<semaphore_mem>>
    %29 = tpu.memref_squeeze %28 : memref<1x!tpu.dma_semaphore, #tpu.memory_space<semaphore_mem>> -> memref<!tpu.dma_semaphore, #tpu.memory_space<semaphore_mem>>
    tpu.enqueue_dma source(%25 : memref<288x1024xbf16, #tpu.memory_space<any>>) target(%27 : memref<288x1024xbf16, #tpu.memory_space<vmem>>) target_semaphore(%29 : memref<!tpu.dma_semaphore, #tpu.memory_space<semaphore_mem>>)
    %c5_i32 = arith.constant 5 : i32
    %c5_i32_30 = arith.constant 5 : i32
    %c5_i32_31 = arith.constant 5 : i32
    %c0_i32_32 = arith.constant 0 : i32
    %c0_i32_33 = arith.constant 0 : i32
    %30 = tpu.memref_slice %arg6[%c5_i32, %c0_i32_32, %c0_i32_33] : memref<9x288x1024xbf16, #tpu.memory_space<any>> -> memref<1x288x1024xbf16, #tpu.memory_space<any>>
    %31 = tpu.memref_squeeze %30 : memref<1x288x1024xbf16, #tpu.memory_space<any>> -> memref<288x1024xbf16, #tpu.memory_space<any>>
    %c0_i32_34 = arith.constant 0 : i32
    %c0_i32_35 = arith.constant 0 : i32
    %32 = tpu.memref_slice %arg10[%c5_i32_30, %c0_i32_34, %c0_i32_35] : memref<9x288x1024xbf16, #tpu.memory_space<vmem>> -> memref<1x288x1024xbf16, #tpu.memory_space<vmem>>
    %33 = tpu.memref_squeeze %32 : memref<1x288x1024xbf16, #tpu.memory_space<vmem>> -> memref<288x1024xbf16, #tpu.memory_space<vmem>>
    %34 = tpu.memref_slice %arg13[%c5_i32_31] : memref<11x!tpu.dma_semaphore, #tpu.memory_space<semaphore_mem>> -> memref<1x!tpu.dma_semaphore, #tpu.memory_space<semaphore_mem>>
    %35 = tpu.memref_squeeze %34 : memref<1x!tpu.dma_semaphore, #tpu.memory_space<semaphore_mem>> -> memref<!tpu.dma_semaphore, #tpu.memory_space<semaphore_mem>>
    tpu.enqueue_dma source(%31 : memref<288x1024xbf16, #tpu.memory_space<any>>) target(%33 : memref<288x1024xbf16, #tpu.memory_space<vmem>>) target_semaphore(%35 : memref<!tpu.dma_semaphore, #tpu.memory_space<semaphore_mem>>)
    %c6_i32 = arith.constant 6 : i32
    %c6_i32_36 = arith.constant 6 : i32
    %c6_i32_37 = arith.constant 6 : i32
    %c0_i32_38 = arith.constant 0 : i32
    %c0_i32_39 = arith.constant 0 : i32
    %36 = tpu.memref_slice %arg6[%c6_i32, %c0_i32_38, %c0_i32_39] : memref<9x288x1024xbf16, #tpu.memory_space<any>> -> memref<1x288x1024xbf16, #tpu.memory_space<any>>
    %37 = tpu.memref_squeeze %36 : memref<1x288x1024xbf16, #tpu.memory_space<any>> -> memref<288x1024xbf16, #tpu.memory_space<any>>
    %c0_i32_40 = arith.constant 0 : i32
    %c0_i32_41 = arith.constant 0 : i32
    %38 = tpu.memref_slice %arg10[%c6_i32_36, %c0_i32_40, %c0_i32_41] : memref<9x288x1024xbf16, #tpu.memory_space<vmem>> -> memref<1x288x1024xbf16, #tpu.memory_space<vmem>>
    %39 = tpu.memref_squeeze %38 : memref<1x288x1024xbf16, #tpu.memory_space<vmem>> -> memref<288x1024xbf16, #tpu.memory_space<vmem>>
    %40 = tpu.memref_slice %arg13[%c6_i32_37] : memref<11x!tpu.dma_semaphore, #tpu.memory_space<semaphore_mem>> -> memref<1x!tpu.dma_semaphore, #tpu.memory_space<semaphore_mem>>
    %41 = tpu.memref_squeeze %40 : memref<1x!tpu.dma_semaphore, #tpu.memory_space<semaphore_mem>> -> memref<!tpu.dma_semaphore, #tpu.memory_space<semaphore_mem>>
    tpu.enqueue_dma source(%37 : memref<288x1024xbf16, #tpu.memory_space<any>>) target(%39 : memref<288x1024xbf16, #tpu.memory_space<vmem>>) target_semaphore(%41 : memref<!tpu.dma_semaphore, #tpu.memory_space<semaphore_mem>>)
    %c7_i32 = arith.constant 7 : i32
    %c7_i32_42 = arith.constant 7 : i32
    %c7_i32_43 = arith.constant 7 : i32
    %c0_i32_44 = arith.constant 0 : i32
    %c0_i32_45 = arith.constant 0 : i32
    %42 = tpu.memref_slice %arg6[%c7_i32, %c0_i32_44, %c0_i32_45] : memref<9x288x1024xbf16, #tpu.memory_space<any>> -> memref<1x288x1024xbf16, #tpu.memory_space<any>>
    %43 = tpu.memref_squeeze %42 : memref<1x288x1024xbf16, #tpu.memory_space<any>> -> memref<288x1024xbf16, #tpu.memory_space<any>>
    %c0_i32_46 = arith.constant 0 : i32
    %c0_i32_47 = arith.constant 0 : i32
    %44 = tpu.memref_slice %arg10[%c7_i32_42, %c0_i32_46, %c0_i32_47] : memref<9x288x1024xbf16, #tpu.memory_space<vmem>> -> memref<1x288x1024xbf16, #tpu.memory_space<vmem>>
    %45 = tpu.memref_squeeze %44 : memref<1x288x1024xbf16, #tpu.memory_space<vmem>> -> memref<288x1024xbf16, #tpu.memory_space<vmem>>
    %46 = tpu.memref_slice %arg13[%c7_i32_43] : memref<11x!tpu.dma_semaphore, #tpu.memory_space<semaphore_mem>> -> memref<1x!tpu.dma_semaphore, #tpu.memory_space<semaphore_mem>>
    %47 = tpu.memref_squeeze %46 : memref<1x!tpu.dma_semaphore, #tpu.memory_space<semaphore_mem>> -> memref<!tpu.dma_semaphore, #tpu.memory_space<semaphore_mem>>
    tpu.enqueue_dma source(%43 : memref<288x1024xbf16, #tpu.memory_space<any>>) target(%45 : memref<288x1024xbf16, #tpu.memory_space<vmem>>) target_semaphore(%47 : memref<!tpu.dma_semaphore, #tpu.memory_space<semaphore_mem>>)
    %c8_i32 = arith.constant 8 : i32
    %c8_i32_48 = arith.constant 8 : i32
    %c8_i32_49 = arith.constant 8 : i32
    %c0_i32_50 = arith.constant 0 : i32
    %c0_i32_51 = arith.constant 0 : i32
    %48 = tpu.memref_slice %arg6[%c8_i32, %c0_i32_50, %c0_i32_51] : memref<9x288x1024xbf16, #tpu.memory_space<any>> -> memref<1x288x1024xbf16, #tpu.memory_space<any>>
    %49 = tpu.memref_squeeze %48 : memref<1x288x1024xbf16, #tpu.memory_space<any>> -> memref<288x1024xbf16, #tpu.memory_space<any>>
    %c0_i32_52 = arith.constant 0 : i32
    %c0_i32_53 = arith.constant 0 : i32
    %50 = tpu.memref_slice %arg10[%c8_i32_48, %c0_i32_52, %c0_i32_53] : memref<9x288x1024xbf16, #tpu.memory_space<vmem>> -> memref<1x288x1024xbf16, #tpu.memory_space<vmem>>
    %51 = tpu.memref_squeeze %50 : memref<1x288x1024xbf16, #tpu.memory_space<vmem>> -> memref<288x1024xbf16, #tpu.memory_space<vmem>>
    %52 = tpu.memref_slice %arg13[%c8_i32_49] : memref<11x!tpu.dma_semaphore, #tpu.memory_space<semaphore_mem>> -> memref<1x!tpu.dma_semaphore, #tpu.memory_space<semaphore_mem>>
    %53 = tpu.memref_squeeze %52 : memref<1x!tpu.dma_semaphore, #tpu.memory_space<semaphore_mem>> -> memref<!tpu.dma_semaphore, #tpu.memory_space<semaphore_mem>>
    tpu.enqueue_dma source(%49 : memref<288x1024xbf16, #tpu.memory_space<any>>) target(%51 : memref<288x1024xbf16, #tpu.memory_space<vmem>>) target_semaphore(%53 : memref<!tpu.dma_semaphore, #tpu.memory_space<semaphore_mem>>)
    %c9_i32 = arith.constant 9 : i32
    %54 = tpu.memref_slice %arg13[%c9_i32] : memref<11x!tpu.dma_semaphore, #tpu.memory_space<semaphore_mem>> -> memref<1x!tpu.dma_semaphore, #tpu.memory_space<semaphore_mem>>
    %55 = tpu.memref_squeeze %54 : memref<1x!tpu.dma_semaphore, #tpu.memory_space<semaphore_mem>> -> memref<!tpu.dma_semaphore, #tpu.memory_space<semaphore_mem>>
    tpu.enqueue_dma source(%arg7 : memref<1024x1024xbf16, #tpu.memory_space<any>>) target(%arg11 : memref<1024x1024xbf16, #tpu.memory_space<vmem>>) target_semaphore(%55 : memref<!tpu.dma_semaphore, #tpu.memory_space<semaphore_mem>>)
    %c10_i32 = arith.constant 10 : i32
    %56 = tpu.memref_slice %arg13[%c10_i32] : memref<11x!tpu.dma_semaphore, #tpu.memory_space<semaphore_mem>> -> memref<1x!tpu.dma_semaphore, #tpu.memory_space<semaphore_mem>>
    %57 = tpu.memref_squeeze %56 : memref<1x!tpu.dma_semaphore, #tpu.memory_space<semaphore_mem>> -> memref<!tpu.dma_semaphore, #tpu.memory_space<semaphore_mem>>
    tpu.enqueue_dma source(%arg8 : memref<1024x128xbf16, #tpu.memory_space<any>>) target(%arg12 : memref<1024x128xbf16, #tpu.memory_space<vmem>>) target_semaphore(%57 : memref<!tpu.dma_semaphore, #tpu.memory_space<semaphore_mem>>)
    %c0 = arith.constant 0 : index
    %c0_54 = arith.constant 0 : index
    %58 = vector.load %arg5[%c0, %c0_54] : memref<8x1024xf32, #tpu.memory_space<vmem>>, vector<1x208xf32>
    %c1 = arith.constant 1 : index
    %c0_55 = arith.constant 0 : index
    %59 = vector.load %arg5[%c1, %c0_55] : memref<8x1024xf32, #tpu.memory_space<vmem>>, vector<1x352xf32>
    %c2 = arith.constant 2 : index
    %c0_56 = arith.constant 0 : index
    %60 = vector.load %arg5[%c2, %c0_56] : memref<8x1024xf32, #tpu.memory_space<vmem>>, vector<1x288xf32>
    %c3 = arith.constant 3 : index
    %c0_57 = arith.constant 0 : index
    %61 = vector.load %arg5[%c3, %c0_57] : memref<8x1024xf32, #tpu.memory_space<vmem>>, vector<1x1024xf32>
    %c4 = arith.constant 4 : index
    %c0_58 = arith.constant 0 : index
    %62 = vector.load %arg5[%c4, %c0_58] : memref<8x1024xf32, #tpu.memory_space<vmem>>, vector<1x1024xf32>
    %c5 = arith.constant 5 : index
    %c0_59 = arith.constant 0 : index
    %63 = vector.load %arg5[%c5, %c0_59] : memref<8x1024xf32, #tpu.memory_space<vmem>>, vector<1x1024xf32>
    %c6 = arith.constant 6 : index
    %c0_60 = arith.constant 0 : index
    %64 = vector.load %arg5[%c6, %c0_60] : memref<8x1024xf32, #tpu.memory_space<vmem>>, vector<1x128xf32>
    %c0_61 = arith.constant 0 : index
    %c0_62 = arith.constant 0 : index
    %65 = vector.load %arg1[%c0_61, %c0_62] : memref<30x60xf32, #tpu.memory_space<vmem>>, vector<30x60xf32>
    %66 = arith.truncf %65 : vector<30x60xf32> to vector<30x60xbf16>
    %67 = vector.extract_strided_slice %66 {offsets = [0, 0], sizes = [28, 60], strides = [1, 1]} : vector<30x60xbf16> to vector<28x60xbf16>
    %c0_63 = arith.constant 0 : index
    %c0_64 = arith.constant 0 : index
    %c0_65 = arith.constant 0 : index
    %68 = vector.load %arg2[%c0_63, %c0_64, %c0_65] : memref<3x60x208xbf16, #tpu.memory_space<vmem>>, vector<1x60x208xbf16>
    %69 = vector.shape_cast %68 : vector<1x60x208xbf16> to vector<60x208xbf16>
    %cst = arith.constant dense<0.000000e+00> : vector<28x208xf32>
    %70 = tpu.matmul %67, %69, %cst {dimension_numbers = #tpu.dot_dimension_numbers<[1], [0], [0], [1], [0, 0, 1, 1], [], []>} : vector<28x60xbf16>, vector<60x208xbf16>, vector<28x208xf32> -> vector<28x208xf32>
    %71 = vector.extract_strided_slice %66 {offsets = [1, 0], sizes = [28, 60], strides = [1, 1]} : vector<30x60xbf16> to vector<28x60xbf16>
    %c1_66 = arith.constant 1 : index
    %c0_67 = arith.constant 0 : index
    %c0_68 = arith.constant 0 : index
    %72 = vector.load %arg2[%c1_66, %c0_67, %c0_68] : memref<3x60x208xbf16, #tpu.memory_space<vmem>>, vector<1x60x208xbf16>
    %73 = vector.shape_cast %72 : vector<1x60x208xbf16> to vector<60x208xbf16>
    %cst_69 = arith.constant dense<0.000000e+00> : vector<28x208xf32>
    %74 = tpu.matmul %71, %73, %cst_69 {dimension_numbers = #tpu.dot_dimension_numbers<[1], [0], [0], [1], [0, 0, 1, 1], [], []>} : vector<28x60xbf16>, vector<60x208xbf16>, vector<28x208xf32> -> vector<28x208xf32>
    %75 = arith.addf %70, %74 : vector<28x208xf32>
    %76 = vector.extract_strided_slice %66 {offsets = [2, 0], sizes = [28, 60], strides = [1, 1]} : vector<30x60xbf16> to vector<28x60xbf16>
    %c2_70 = arith.constant 2 : index
    %c0_71 = arith.constant 0 : index
    %c0_72 = arith.constant 0 : index
    %77 = vector.load %arg2[%c2_70, %c0_71, %c0_72] : memref<3x60x208xbf16, #tpu.memory_space<vmem>>, vector<1x60x208xbf16>
    %78 = vector.shape_cast %77 : vector<1x60x208xbf16> to vector<60x208xbf16>
    %cst_73 = arith.constant dense<0.000000e+00> : vector<28x208xf32>
    %79 = tpu.matmul %76, %78, %cst_73 {dimension_numbers = #tpu.dot_dimension_numbers<[1], [0], [0], [1], [0, 0, 1, 1], [], []>} : vector<28x60xbf16>, vector<60x208xbf16>, vector<28x208xf32> -> vector<28x208xf32>
    %80 = arith.addf %75, %79 : vector<28x208xf32>
    %81 = vector.broadcast %58 : vector<1x208xf32> to vector<28x208xf32>
    %82 = arith.addf %80, %81 : vector<28x208xf32>
    %cst_74 = arith.constant 0.000000e+00 : f32
    %83 = vector.broadcast %cst_74 : f32 to vector<28x208xf32>
    %84 = arith.maximumf %82, %83 : vector<28x208xf32>
    %85 = arith.truncf %84 : vector<28x208xf32> to vector<28x208xbf16>
    %86 = vector.extract_strided_slice %85 {offsets = [0, 0], sizes = [26, 208], strides = [1, 1]} : vector<28x208xbf16> to vector<26x208xbf16>
    %c0_75 = arith.constant 0 : index
    %c0_76 = arith.constant 0 : index
    %c0_77 = arith.constant 0 : index
    %87 = vector.load %arg3[%c0_75, %c0_76, %c0_77] : memref<3x208x352xbf16, #tpu.memory_space<vmem>>, vector<1x208x352xbf16>
    %88 = vector.shape_cast %87 : vector<1x208x352xbf16> to vector<208x352xbf16>
    %cst_78 = arith.constant dense<0.000000e+00> : vector<26x352xf32>
    %89 = tpu.matmul %86, %88, %cst_78 {dimension_numbers = #tpu.dot_dimension_numbers<[1], [0], [0], [1], [0, 0, 1, 1], [], []>} : vector<26x208xbf16>, vector<208x352xbf16>, vector<26x352xf32> -> vector<26x352xf32>
    %90 = vector.extract_strided_slice %85 {offsets = [1, 0], sizes = [26, 208], strides = [1, 1]} : vector<28x208xbf16> to vector<26x208xbf16>
    %c1_79 = arith.constant 1 : index
    %c0_80 = arith.constant 0 : index
    %c0_81 = arith.constant 0 : index
    %91 = vector.load %arg3[%c1_79, %c0_80, %c0_81] : memref<3x208x352xbf16, #tpu.memory_space<vmem>>, vector<1x208x352xbf16>
    %92 = vector.shape_cast %91 : vector<1x208x352xbf16> to vector<208x352xbf16>
    %cst_82 = arith.constant dense<0.000000e+00> : vector<26x352xf32>
    %93 = tpu.matmul %90, %92, %cst_82 {dimension_numbers = #tpu.dot_dimension_numbers<[1], [0], [0], [1], [0, 0, 1, 1], [], []>} : vector<26x208xbf16>, vector<208x352xbf16>, vector<26x352xf32> -> vector<26x352xf32>
    %94 = arith.addf %89, %93 : vector<26x352xf32>
    %95 = vector.extract_strided_slice %85 {offsets = [2, 0], sizes = [26, 208], strides = [1, 1]} : vector<28x208xbf16> to vector<26x208xbf16>
    %c2_83 = arith.constant 2 : index
    %c0_84 = arith.constant 0 : index
    %c0_85 = arith.constant 0 : index
    %96 = vector.load %arg3[%c2_83, %c0_84, %c0_85] : memref<3x208x352xbf16, #tpu.memory_space<vmem>>, vector<1x208x352xbf16>
    %97 = vector.shape_cast %96 : vector<1x208x352xbf16> to vector<208x352xbf16>
    %cst_86 = arith.constant dense<0.000000e+00> : vector<26x352xf32>
    %98 = tpu.matmul %95, %97, %cst_86 {dimension_numbers = #tpu.dot_dimension_numbers<[1], [0], [0], [1], [0, 0, 1, 1], [], []>} : vector<26x208xbf16>, vector<208x352xbf16>, vector<26x352xf32> -> vector<26x352xf32>
    %99 = arith.addf %94, %98 : vector<26x352xf32>
    %100 = vector.broadcast %59 : vector<1x352xf32> to vector<26x352xf32>
    %101 = arith.addf %99, %100 : vector<26x352xf32>
    %cst_87 = arith.constant 0.000000e+00 : f32
    %102 = vector.broadcast %cst_87 : f32 to vector<26x352xf32>
    %103 = arith.maximumf %101, %102 : vector<26x352xf32>
    %104 = arith.truncf %103 : vector<26x352xf32> to vector<26x352xbf16>
    %105 = vector.extract_strided_slice %104 {offsets = [0, 0], sizes = [24, 352], strides = [1, 1]} : vector<26x352xbf16> to vector<24x352xbf16>
    %c0_88 = arith.constant 0 : index
    %c0_89 = arith.constant 0 : index
    %c0_90 = arith.constant 0 : index
    %106 = vector.load %arg4[%c0_88, %c0_89, %c0_90] : memref<3x352x288xbf16, #tpu.memory_space<vmem>>, vector<1x352x288xbf16>
    %107 = vector.shape_cast %106 : vector<1x352x288xbf16> to vector<352x288xbf16>
    %cst_91 = arith.constant dense<0.000000e+00> : vector<24x288xf32>
    %108 = tpu.matmul %105, %107, %cst_91 {dimension_numbers = #tpu.dot_dimension_numbers<[1], [0], [0], [1], [0, 0, 1, 1], [], []>} : vector<24x352xbf16>, vector<352x288xbf16>, vector<24x288xf32> -> vector<24x288xf32>
    %109 = vector.extract_strided_slice %104 {offsets = [1, 0], sizes = [24, 352], strides = [1, 1]} : vector<26x352xbf16> to vector<24x352xbf16>
    %c1_92 = arith.constant 1 : index
    %c0_93 = arith.constant 0 : index
    %c0_94 = arith.constant 0 : index
    %110 = vector.load %arg4[%c1_92, %c0_93, %c0_94] : memref<3x352x288xbf16, #tpu.memory_space<vmem>>, vector<1x352x288xbf16>
    %111 = vector.shape_cast %110 : vector<1x352x288xbf16> to vector<352x288xbf16>
    %cst_95 = arith.constant dense<0.000000e+00> : vector<24x288xf32>
    %112 = tpu.matmul %109, %111, %cst_95 {dimension_numbers = #tpu.dot_dimension_numbers<[1], [0], [0], [1], [0, 0, 1, 1], [], []>} : vector<24x352xbf16>, vector<352x288xbf16>, vector<24x288xf32> -> vector<24x288xf32>
    %113 = arith.addf %108, %112 : vector<24x288xf32>
    %114 = vector.extract_strided_slice %104 {offsets = [2, 0], sizes = [24, 352], strides = [1, 1]} : vector<26x352xbf16> to vector<24x352xbf16>
    %c2_96 = arith.constant 2 : index
    %c0_97 = arith.constant 0 : index
    %c0_98 = arith.constant 0 : index
    %115 = vector.load %arg4[%c2_96, %c0_97, %c0_98] : memref<3x352x288xbf16, #tpu.memory_space<vmem>>, vector<1x352x288xbf16>
    %116 = vector.shape_cast %115 : vector<1x352x288xbf16> to vector<352x288xbf16>
    %cst_99 = arith.constant dense<0.000000e+00> : vector<24x288xf32>
    %117 = tpu.matmul %114, %116, %cst_99 {dimension_numbers = #tpu.dot_dimension_numbers<[1], [0], [0], [1], [0, 0, 1, 1], [], []>} : vector<24x352xbf16>, vector<352x288xbf16>, vector<24x288xf32> -> vector<24x288xf32>
    %118 = arith.addf %113, %117 : vector<24x288xf32>
    %119 = vector.broadcast %60 : vector<1x288xf32> to vector<24x288xf32>
    %120 = arith.addf %118, %119 : vector<24x288xf32>
    %cst_100 = arith.constant 0.000000e+00 : f32
    %121 = vector.broadcast %cst_100 : f32 to vector<24x288xf32>
    %122 = arith.maximumf %120, %121 : vector<24x288xf32>
    %123 = arith.truncf %122 : vector<24x288xf32> to vector<24x288xbf16>
    %c0_i32_101 = arith.constant 0 : i32
    %c0_i32_102 = arith.constant 0 : i32
    %c0_i32_103 = arith.constant 0 : i32
    %c0_i32_104 = arith.constant 0 : i32
    %c0_i32_105 = arith.constant 0 : i32
    %124 = tpu.memref_slice %arg6[%c0_i32_101, %c0_i32_104, %c0_i32_105] : memref<9x288x1024xbf16, #tpu.memory_space<any>> -> memref<1x288x1024xbf16, #tpu.memory_space<any>>
    %125 = tpu.memref_squeeze %124 : memref<1x288x1024xbf16, #tpu.memory_space<any>> -> memref<288x1024xbf16, #tpu.memory_space<any>>
    %c0_i32_106 = arith.constant 0 : i32
    %c0_i32_107 = arith.constant 0 : i32
    %126 = tpu.memref_slice %arg10[%c0_i32_102, %c0_i32_106, %c0_i32_107] : memref<9x288x1024xbf16, #tpu.memory_space<vmem>> -> memref<1x288x1024xbf16, #tpu.memory_space<vmem>>
    %127 = tpu.memref_squeeze %126 : memref<1x288x1024xbf16, #tpu.memory_space<vmem>> -> memref<288x1024xbf16, #tpu.memory_space<vmem>>
    %128 = tpu.memref_slice %arg13[%c0_i32_103] : memref<11x!tpu.dma_semaphore, #tpu.memory_space<semaphore_mem>> -> memref<1x!tpu.dma_semaphore, #tpu.memory_space<semaphore_mem>>
    %129 = tpu.memref_squeeze %128 : memref<1x!tpu.dma_semaphore, #tpu.memory_space<semaphore_mem>> -> memref<!tpu.dma_semaphore, #tpu.memory_space<semaphore_mem>>
    tpu.wait_dma2 semaphore(%129 : memref<!tpu.dma_semaphore, #tpu.memory_space<semaphore_mem>>) src(%125 : memref<288x1024xbf16, #tpu.memory_space<any>>) dst(%127 : memref<288x1024xbf16, #tpu.memory_space<vmem>>)
    %130 = vector.extract_strided_slice %123 {offsets = [0, 0], sizes = [16, 288], strides = [1, 1]} : vector<24x288xbf16> to vector<16x288xbf16>
    %c0_108 = arith.constant 0 : index
    %c0_109 = arith.constant 0 : index
    %c0_110 = arith.constant 0 : index
    %131 = vector.load %arg10[%c0_108, %c0_109, %c0_110] : memref<9x288x1024xbf16, #tpu.memory_space<vmem>>, vector<1x288x1024xbf16>
    %132 = vector.shape_cast %131 : vector<1x288x1024xbf16> to vector<288x1024xbf16>
    %cst_111 = arith.constant dense<0.000000e+00> : vector<16x1024xf32>
    %133 = tpu.matmul %130, %132, %cst_111 {dimension_numbers = #tpu.dot_dimension_numbers<[1], [0], [0], [1], [0, 0, 1, 1], [], []>} : vector<16x288xbf16>, vector<288x1024xbf16>, vector<16x1024xf32> -> vector<16x1024xf32>
    %c1_i32_112 = arith.constant 1 : i32
    %c1_i32_113 = arith.constant 1 : i32
    %c1_i32_114 = arith.constant 1 : i32
    %c0_i32_115 = arith.constant 0 : i32
    %c0_i32_116 = arith.constant 0 : i32
    %134 = tpu.memref_slice %arg6[%c1_i32_112, %c0_i32_115, %c0_i32_116] : memref<9x288x1024xbf16, #tpu.memory_space<any>> -> memref<1x288x1024xbf16, #tpu.memory_space<any>>
    %135 = tpu.memref_squeeze %134 : memref<1x288x1024xbf16, #tpu.memory_space<any>> -> memref<288x1024xbf16, #tpu.memory_space<any>>
    %c0_i32_117 = arith.constant 0 : i32
    %c0_i32_118 = arith.constant 0 : i32
    %136 = tpu.memref_slice %arg10[%c1_i32_113, %c0_i32_117, %c0_i32_118] : memref<9x288x1024xbf16, #tpu.memory_space<vmem>> -> memref<1x288x1024xbf16, #tpu.memory_space<vmem>>
    %137 = tpu.memref_squeeze %136 : memref<1x288x1024xbf16, #tpu.memory_space<vmem>> -> memref<288x1024xbf16, #tpu.memory_space<vmem>>
    %138 = tpu.memref_slice %arg13[%c1_i32_114] : memref<11x!tpu.dma_semaphore, #tpu.memory_space<semaphore_mem>> -> memref<1x!tpu.dma_semaphore, #tpu.memory_space<semaphore_mem>>
    %139 = tpu.memref_squeeze %138 : memref<1x!tpu.dma_semaphore, #tpu.memory_space<semaphore_mem>> -> memref<!tpu.dma_semaphore, #tpu.memory_space<semaphore_mem>>
    tpu.wait_dma2 semaphore(%139 : memref<!tpu.dma_semaphore, #tpu.memory_space<semaphore_mem>>) src(%135 : memref<288x1024xbf16, #tpu.memory_space<any>>) dst(%137 : memref<288x1024xbf16, #tpu.memory_space<vmem>>)
    %140 = vector.extract_strided_slice %123 {offsets = [1, 0], sizes = [16, 288], strides = [1, 1]} : vector<24x288xbf16> to vector<16x288xbf16>
    %c1_119 = arith.constant 1 : index
    %c0_120 = arith.constant 0 : index
    %c0_121 = arith.constant 0 : index
    %141 = vector.load %arg10[%c1_119, %c0_120, %c0_121] : memref<9x288x1024xbf16, #tpu.memory_space<vmem>>, vector<1x288x1024xbf16>
    %142 = vector.shape_cast %141 : vector<1x288x1024xbf16> to vector<288x1024xbf16>
    %cst_122 = arith.constant dense<0.000000e+00> : vector<16x1024xf32>
    %143 = tpu.matmul %140, %142, %cst_122 {dimension_numbers = #tpu.dot_dimension_numbers<[1], [0], [0], [1], [0, 0, 1, 1], [], []>} : vector<16x288xbf16>, vector<288x1024xbf16>, vector<16x1024xf32> -> vector<16x1024xf32>
    %144 = arith.addf %133, %143 : vector<16x1024xf32>
    %c2_i32_123 = arith.constant 2 : i32
    %c2_i32_124 = arith.constant 2 : i32
    %c2_i32_125 = arith.constant 2 : i32
    %c0_i32_126 = arith.constant 0 : i32
    %c0_i32_127 = arith.constant 0 : i32
    %145 = tpu.memref_slice %arg6[%c2_i32_123, %c0_i32_126, %c0_i32_127] : memref<9x288x1024xbf16, #tpu.memory_space<any>> -> memref<1x288x1024xbf16, #tpu.memory_space<any>>
    %146 = tpu.memref_squeeze %145 : memref<1x288x1024xbf16, #tpu.memory_space<any>> -> memref<288x1024xbf16, #tpu.memory_space<any>>
    %c0_i32_128 = arith.constant 0 : i32
    %c0_i32_129 = arith.constant 0 : i32
    %147 = tpu.memref_slice %arg10[%c2_i32_124, %c0_i32_128, %c0_i32_129] : memref<9x288x1024xbf16, #tpu.memory_space<vmem>> -> memref<1x288x1024xbf16, #tpu.memory_space<vmem>>
    %148 = tpu.memref_squeeze %147 : memref<1x288x1024xbf16, #tpu.memory_space<vmem>> -> memref<288x1024xbf16, #tpu.memory_space<vmem>>
    %149 = tpu.memref_slice %arg13[%c2_i32_125] : memref<11x!tpu.dma_semaphore, #tpu.memory_space<semaphore_mem>> -> memref<1x!tpu.dma_semaphore, #tpu.memory_space<semaphore_mem>>
    %150 = tpu.memref_squeeze %149 : memref<1x!tpu.dma_semaphore, #tpu.memory_space<semaphore_mem>> -> memref<!tpu.dma_semaphore, #tpu.memory_space<semaphore_mem>>
    tpu.wait_dma2 semaphore(%150 : memref<!tpu.dma_semaphore, #tpu.memory_space<semaphore_mem>>) src(%146 : memref<288x1024xbf16, #tpu.memory_space<any>>) dst(%148 : memref<288x1024xbf16, #tpu.memory_space<vmem>>)
    %151 = vector.extract_strided_slice %123 {offsets = [2, 0], sizes = [16, 288], strides = [1, 1]} : vector<24x288xbf16> to vector<16x288xbf16>
    %c2_130 = arith.constant 2 : index
    %c0_131 = arith.constant 0 : index
    %c0_132 = arith.constant 0 : index
    %152 = vector.load %arg10[%c2_130, %c0_131, %c0_132] : memref<9x288x1024xbf16, #tpu.memory_space<vmem>>, vector<1x288x1024xbf16>
    %153 = vector.shape_cast %152 : vector<1x288x1024xbf16> to vector<288x1024xbf16>
    %cst_133 = arith.constant dense<0.000000e+00> : vector<16x1024xf32>
    %154 = tpu.matmul %151, %153, %cst_133 {dimension_numbers = #tpu.dot_dimension_numbers<[1], [0], [0], [1], [0, 0, 1, 1], [], []>} : vector<16x288xbf16>, vector<288x1024xbf16>, vector<16x1024xf32> -> vector<16x1024xf32>
    %155 = arith.addf %144, %154 : vector<16x1024xf32>
    %c3_i32_134 = arith.constant 3 : i32
    %c3_i32_135 = arith.constant 3 : i32
    %c3_i32_136 = arith.constant 3 : i32
    %c0_i32_137 = arith.constant 0 : i32
    %c0_i32_138 = arith.constant 0 : i32
    %156 = tpu.memref_slice %arg6[%c3_i32_134, %c0_i32_137, %c0_i32_138] : memref<9x288x1024xbf16, #tpu.memory_space<any>> -> memref<1x288x1024xbf16, #tpu.memory_space<any>>
    %157 = tpu.memref_squeeze %156 : memref<1x288x1024xbf16, #tpu.memory_space<any>> -> memref<288x1024xbf16, #tpu.memory_space<any>>
    %c0_i32_139 = arith.constant 0 : i32
    %c0_i32_140 = arith.constant 0 : i32
    %158 = tpu.memref_slice %arg10[%c3_i32_135, %c0_i32_139, %c0_i32_140] : memref<9x288x1024xbf16, #tpu.memory_space<vmem>> -> memref<1x288x1024xbf16, #tpu.memory_space<vmem>>
    %159 = tpu.memref_squeeze %158 : memref<1x288x1024xbf16, #tpu.memory_space<vmem>> -> memref<288x1024xbf16, #tpu.memory_space<vmem>>
    %160 = tpu.memref_slice %arg13[%c3_i32_136] : memref<11x!tpu.dma_semaphore, #tpu.memory_space<semaphore_mem>> -> memref<1x!tpu.dma_semaphore, #tpu.memory_space<semaphore_mem>>
    %161 = tpu.memref_squeeze %160 : memref<1x!tpu.dma_semaphore, #tpu.memory_space<semaphore_mem>> -> memref<!tpu.dma_semaphore, #tpu.memory_space<semaphore_mem>>
    tpu.wait_dma2 semaphore(%161 : memref<!tpu.dma_semaphore, #tpu.memory_space<semaphore_mem>>) src(%157 : memref<288x1024xbf16, #tpu.memory_space<any>>) dst(%159 : memref<288x1024xbf16, #tpu.memory_space<vmem>>)
    %162 = vector.extract_strided_slice %123 {offsets = [3, 0], sizes = [16, 288], strides = [1, 1]} : vector<24x288xbf16> to vector<16x288xbf16>
    %c3_141 = arith.constant 3 : index
    %c0_142 = arith.constant 0 : index
    %c0_143 = arith.constant 0 : index
    %163 = vector.load %arg10[%c3_141, %c0_142, %c0_143] : memref<9x288x1024xbf16, #tpu.memory_space<vmem>>, vector<1x288x1024xbf16>
    %164 = vector.shape_cast %163 : vector<1x288x1024xbf16> to vector<288x1024xbf16>
    %cst_144 = arith.constant dense<0.000000e+00> : vector<16x1024xf32>
    %165 = tpu.matmul %162, %164, %cst_144 {dimension_numbers = #tpu.dot_dimension_numbers<[1], [0], [0], [1], [0, 0, 1, 1], [], []>} : vector<16x288xbf16>, vector<288x1024xbf16>, vector<16x1024xf32> -> vector<16x1024xf32>
    %166 = arith.addf %155, %165 : vector<16x1024xf32>
    %c4_i32_145 = arith.constant 4 : i32
    %c4_i32_146 = arith.constant 4 : i32
    %c4_i32_147 = arith.constant 4 : i32
    %c0_i32_148 = arith.constant 0 : i32
    %c0_i32_149 = arith.constant 0 : i32
    %167 = tpu.memref_slice %arg6[%c4_i32_145, %c0_i32_148, %c0_i32_149] : memref<9x288x1024xbf16, #tpu.memory_space<any>> -> memref<1x288x1024xbf16, #tpu.memory_space<any>>
    %168 = tpu.memref_squeeze %167 : memref<1x288x1024xbf16, #tpu.memory_space<any>> -> memref<288x1024xbf16, #tpu.memory_space<any>>
    %c0_i32_150 = arith.constant 0 : i32
    %c0_i32_151 = arith.constant 0 : i32
    %169 = tpu.memref_slice %arg10[%c4_i32_146, %c0_i32_150, %c0_i32_151] : memref<9x288x1024xbf16, #tpu.memory_space<vmem>> -> memref<1x288x1024xbf16, #tpu.memory_space<vmem>>
    %170 = tpu.memref_squeeze %169 : memref<1x288x1024xbf16, #tpu.memory_space<vmem>> -> memref<288x1024xbf16, #tpu.memory_space<vmem>>
    %171 = tpu.memref_slice %arg13[%c4_i32_147] : memref<11x!tpu.dma_semaphore, #tpu.memory_space<semaphore_mem>> -> memref<1x!tpu.dma_semaphore, #tpu.memory_space<semaphore_mem>>
    %172 = tpu.memref_squeeze %171 : memref<1x!tpu.dma_semaphore, #tpu.memory_space<semaphore_mem>> -> memref<!tpu.dma_semaphore, #tpu.memory_space<semaphore_mem>>
    tpu.wait_dma2 semaphore(%172 : memref<!tpu.dma_semaphore, #tpu.memory_space<semaphore_mem>>) src(%168 : memref<288x1024xbf16, #tpu.memory_space<any>>) dst(%170 : memref<288x1024xbf16, #tpu.memory_space<vmem>>)
    %173 = vector.extract_strided_slice %123 {offsets = [4, 0], sizes = [16, 288], strides = [1, 1]} : vector<24x288xbf16> to vector<16x288xbf16>
    %c4_152 = arith.constant 4 : index
    %c0_153 = arith.constant 0 : index
    %c0_154 = arith.constant 0 : index
    %174 = vector.load %arg10[%c4_152, %c0_153, %c0_154] : memref<9x288x1024xbf16, #tpu.memory_space<vmem>>, vector<1x288x1024xbf16>
    %175 = vector.shape_cast %174 : vector<1x288x1024xbf16> to vector<288x1024xbf16>
    %cst_155 = arith.constant dense<0.000000e+00> : vector<16x1024xf32>
    %176 = tpu.matmul %173, %175, %cst_155 {dimension_numbers = #tpu.dot_dimension_numbers<[1], [0], [0], [1], [0, 0, 1, 1], [], []>} : vector<16x288xbf16>, vector<288x1024xbf16>, vector<16x1024xf32> -> vector<16x1024xf32>
    %177 = arith.addf %166, %176 : vector<16x1024xf32>
    %c5_i32_156 = arith.constant 5 : i32
    %c5_i32_157 = arith.constant 5 : i32
    %c5_i32_158 = arith.constant 5 : i32
    %c0_i32_159 = arith.constant 0 : i32
    %c0_i32_160 = arith.constant 0 : i32
    %178 = tpu.memref_slice %arg6[%c5_i32_156, %c0_i32_159, %c0_i32_160] : memref<9x288x1024xbf16, #tpu.memory_space<any>> -> memref<1x288x1024xbf16, #tpu.memory_space<any>>
    %179 = tpu.memref_squeeze %178 : memref<1x288x1024xbf16, #tpu.memory_space<any>> -> memref<288x1024xbf16, #tpu.memory_space<any>>
    %c0_i32_161 = arith.constant 0 : i32
    %c0_i32_162 = arith.constant 0 : i32
    %180 = tpu.memref_slice %arg10[%c5_i32_157, %c0_i32_161, %c0_i32_162] : memref<9x288x1024xbf16, #tpu.memory_space<vmem>> -> memref<1x288x1024xbf16, #tpu.memory_space<vmem>>
    %181 = tpu.memref_squeeze %180 : memref<1x288x1024xbf16, #tpu.memory_space<vmem>> -> memref<288x1024xbf16, #tpu.memory_space<vmem>>
    %182 = tpu.memref_slice %arg13[%c5_i32_158] : memref<11x!tpu.dma_semaphore, #tpu.memory_space<semaphore_mem>> -> memref<1x!tpu.dma_semaphore, #tpu.memory_space<semaphore_mem>>
    %183 = tpu.memref_squeeze %182 : memref<1x!tpu.dma_semaphore, #tpu.memory_space<semaphore_mem>> -> memref<!tpu.dma_semaphore, #tpu.memory_space<semaphore_mem>>
    tpu.wait_dma2 semaphore(%183 : memref<!tpu.dma_semaphore, #tpu.memory_space<semaphore_mem>>) src(%179 : memref<288x1024xbf16, #tpu.memory_space<any>>) dst(%181 : memref<288x1024xbf16, #tpu.memory_space<vmem>>)
    %184 = vector.extract_strided_slice %123 {offsets = [5, 0], sizes = [16, 288], strides = [1, 1]} : vector<24x288xbf16> to vector<16x288xbf16>
    %c5_163 = arith.constant 5 : index
    %c0_164 = arith.constant 0 : index
    %c0_165 = arith.constant 0 : index
    %185 = vector.load %arg10[%c5_163, %c0_164, %c0_165] : memref<9x288x1024xbf16, #tpu.memory_space<vmem>>, vector<1x288x1024xbf16>
    %186 = vector.shape_cast %185 : vector<1x288x1024xbf16> to vector<288x1024xbf16>
    %cst_166 = arith.constant dense<0.000000e+00> : vector<16x1024xf32>
    %187 = tpu.matmul %184, %186, %cst_166 {dimension_numbers = #tpu.dot_dimension_numbers<[1], [0], [0], [1], [0, 0, 1, 1], [], []>} : vector<16x288xbf16>, vector<288x1024xbf16>, vector<16x1024xf32> -> vector<16x1024xf32>
    %188 = arith.addf %177, %187 : vector<16x1024xf32>
    %c6_i32_167 = arith.constant 6 : i32
    %c6_i32_168 = arith.constant 6 : i32
    %c6_i32_169 = arith.constant 6 : i32
    %c0_i32_170 = arith.constant 0 : i32
    %c0_i32_171 = arith.constant 0 : i32
    %189 = tpu.memref_slice %arg6[%c6_i32_167, %c0_i32_170, %c0_i32_171] : memref<9x288x1024xbf16, #tpu.memory_space<any>> -> memref<1x288x1024xbf16, #tpu.memory_space<any>>
    %190 = tpu.memref_squeeze %189 : memref<1x288x1024xbf16, #tpu.memory_space<any>> -> memref<288x1024xbf16, #tpu.memory_space<any>>
    %c0_i32_172 = arith.constant 0 : i32
    %c0_i32_173 = arith.constant 0 : i32
    %191 = tpu.memref_slice %arg10[%c6_i32_168, %c0_i32_172, %c0_i32_173] : memref<9x288x1024xbf16, #tpu.memory_space<vmem>> -> memref<1x288x1024xbf16, #tpu.memory_space<vmem>>
    %192 = tpu.memref_squeeze %191 : memref<1x288x1024xbf16, #tpu.memory_space<vmem>> -> memref<288x1024xbf16, #tpu.memory_space<vmem>>
    %193 = tpu.memref_slice %arg13[%c6_i32_169] : memref<11x!tpu.dma_semaphore, #tpu.memory_space<semaphore_mem>> -> memref<1x!tpu.dma_semaphore, #tpu.memory_space<semaphore_mem>>
    %194 = tpu.memref_squeeze %193 : memref<1x!tpu.dma_semaphore, #tpu.memory_space<semaphore_mem>> -> memref<!tpu.dma_semaphore, #tpu.memory_space<semaphore_mem>>
    tpu.wait_dma2 semaphore(%194 : memref<!tpu.dma_semaphore, #tpu.memory_space<semaphore_mem>>) src(%190 : memref<288x1024xbf16, #tpu.memory_space<any>>) dst(%192 : memref<288x1024xbf16, #tpu.memory_space<vmem>>)
    %195 = vector.extract_strided_slice %123 {offsets = [6, 0], sizes = [16, 288], strides = [1, 1]} : vector<24x288xbf16> to vector<16x288xbf16>
    %c6_174 = arith.constant 6 : index
    %c0_175 = arith.constant 0 : index
    %c0_176 = arith.constant 0 : index
    %196 = vector.load %arg10[%c6_174, %c0_175, %c0_176] : memref<9x288x1024xbf16, #tpu.memory_space<vmem>>, vector<1x288x1024xbf16>
    %197 = vector.shape_cast %196 : vector<1x288x1024xbf16> to vector<288x1024xbf16>
    %cst_177 = arith.constant dense<0.000000e+00> : vector<16x1024xf32>
    %198 = tpu.matmul %195, %197, %cst_177 {dimension_numbers = #tpu.dot_dimension_numbers<[1], [0], [0], [1], [0, 0, 1, 1], [], []>} : vector<16x288xbf16>, vector<288x1024xbf16>, vector<16x1024xf32> -> vector<16x1024xf32>
    %199 = arith.addf %188, %198 : vector<16x1024xf32>
    %c7_i32_178 = arith.constant 7 : i32
    %c7_i32_179 = arith.constant 7 : i32
    %c7_i32_180 = arith.constant 7 : i32
    %c0_i32_181 = arith.constant 0 : i32
    %c0_i32_182 = arith.constant 0 : i32
    %200 = tpu.memref_slice %arg6[%c7_i32_178, %c0_i32_181, %c0_i32_182] : memref<9x288x1024xbf16, #tpu.memory_space<any>> -> memref<1x288x1024xbf16, #tpu.memory_space<any>>
    %201 = tpu.memref_squeeze %200 : memref<1x288x1024xbf16, #tpu.memory_space<any>> -> memref<288x1024xbf16, #tpu.memory_space<any>>
    %c0_i32_183 = arith.constant 0 : i32
    %c0_i32_184 = arith.constant 0 : i32
    %202 = tpu.memref_slice %arg10[%c7_i32_179, %c0_i32_183, %c0_i32_184] : memref<9x288x1024xbf16, #tpu.memory_space<vmem>> -> memref<1x288x1024xbf16, #tpu.memory_space<vmem>>
    %203 = tpu.memref_squeeze %202 : memref<1x288x1024xbf16, #tpu.memory_space<vmem>> -> memref<288x1024xbf16, #tpu.memory_space<vmem>>
    %204 = tpu.memref_slice %arg13[%c7_i32_180] : memref<11x!tpu.dma_semaphore, #tpu.memory_space<semaphore_mem>> -> memref<1x!tpu.dma_semaphore, #tpu.memory_space<semaphore_mem>>
    %205 = tpu.memref_squeeze %204 : memref<1x!tpu.dma_semaphore, #tpu.memory_space<semaphore_mem>> -> memref<!tpu.dma_semaphore, #tpu.memory_space<semaphore_mem>>
    tpu.wait_dma2 semaphore(%205 : memref<!tpu.dma_semaphore, #tpu.memory_space<semaphore_mem>>) src(%201 : memref<288x1024xbf16, #tpu.memory_space<any>>) dst(%203 : memref<288x1024xbf16, #tpu.memory_space<vmem>>)
    %206 = vector.extract_strided_slice %123 {offsets = [7, 0], sizes = [16, 288], strides = [1, 1]} : vector<24x288xbf16> to vector<16x288xbf16>
    %c7 = arith.constant 7 : index
    %c0_185 = arith.constant 0 : index
    %c0_186 = arith.constant 0 : index
    %207 = vector.load %arg10[%c7, %c0_185, %c0_186] : memref<9x288x1024xbf16, #tpu.memory_space<vmem>>, vector<1x288x1024xbf16>
    %208 = vector.shape_cast %207 : vector<1x288x1024xbf16> to vector<288x1024xbf16>
    %cst_187 = arith.constant dense<0.000000e+00> : vector<16x1024xf32>
    %209 = tpu.matmul %206, %208, %cst_187 {dimension_numbers = #tpu.dot_dimension_numbers<[1], [0], [0], [1], [0, 0, 1, 1], [], []>} : vector<16x288xbf16>, vector<288x1024xbf16>, vector<16x1024xf32> -> vector<16x1024xf32>
    %210 = arith.addf %199, %209 : vector<16x1024xf32>
    %c8_i32_188 = arith.constant 8 : i32
    %c8_i32_189 = arith.constant 8 : i32
    %c8_i32_190 = arith.constant 8 : i32
    %c0_i32_191 = arith.constant 0 : i32
    %c0_i32_192 = arith.constant 0 : i32
    %211 = tpu.memref_slice %arg6[%c8_i32_188, %c0_i32_191, %c0_i32_192] : memref<9x288x1024xbf16, #tpu.memory_space<any>> -> memref<1x288x1024xbf16, #tpu.memory_space<any>>
    %212 = tpu.memref_squeeze %211 : memref<1x288x1024xbf16, #tpu.memory_space<any>> -> memref<288x1024xbf16, #tpu.memory_space<any>>
    %c0_i32_193 = arith.constant 0 : i32
    %c0_i32_194 = arith.constant 0 : i32
    %213 = tpu.memref_slice %arg10[%c8_i32_189, %c0_i32_193, %c0_i32_194] : memref<9x288x1024xbf16, #tpu.memory_space<vmem>> -> memref<1x288x1024xbf16, #tpu.memory_space<vmem>>
    %214 = tpu.memref_squeeze %213 : memref<1x288x1024xbf16, #tpu.memory_space<vmem>> -> memref<288x1024xbf16, #tpu.memory_space<vmem>>
    %215 = tpu.memref_slice %arg13[%c8_i32_190] : memref<11x!tpu.dma_semaphore, #tpu.memory_space<semaphore_mem>> -> memref<1x!tpu.dma_semaphore, #tpu.memory_space<semaphore_mem>>
    %216 = tpu.memref_squeeze %215 : memref<1x!tpu.dma_semaphore, #tpu.memory_space<semaphore_mem>> -> memref<!tpu.dma_semaphore, #tpu.memory_space<semaphore_mem>>
    tpu.wait_dma2 semaphore(%216 : memref<!tpu.dma_semaphore, #tpu.memory_space<semaphore_mem>>) src(%212 : memref<288x1024xbf16, #tpu.memory_space<any>>) dst(%214 : memref<288x1024xbf16, #tpu.memory_space<vmem>>)
    %217 = vector.extract_strided_slice %123 {offsets = [8, 0], sizes = [16, 288], strides = [1, 1]} : vector<24x288xbf16> to vector<16x288xbf16>
    %c8 = arith.constant 8 : index
    %c0_195 = arith.constant 0 : index
    %c0_196 = arith.constant 0 : index
    %218 = vector.load %arg10[%c8, %c0_195, %c0_196] : memref<9x288x1024xbf16, #tpu.memory_space<vmem>>, vector<1x288x1024xbf16>
    %219 = vector.shape_cast %218 : vector<1x288x1024xbf16> to vector<288x1024xbf16>
    %cst_197 = arith.constant dense<0.000000e+00> : vector<16x1024xf32>
    %220 = tpu.matmul %217, %219, %cst_197 {dimension_numbers = #tpu.dot_dimension_numbers<[1], [0], [0], [1], [0, 0, 1, 1], [], []>} : vector<16x288xbf16>, vector<288x1024xbf16>, vector<16x1024xf32> -> vector<16x1024xf32>
    %221 = arith.addf %210, %220 : vector<16x1024xf32>
    %222 = vector.extract_strided_slice %221 {offsets = [0, 0], sizes = [1, 1024], strides = [1, 1]} : vector<16x1024xf32> to vector<1x1024xf32>
    %c0_198 = arith.constant 0 : index
    %c0_199 = arith.constant 0 : index
    %223 = memref.load %arg0[%c0_198, %c0_199] : memref<2x1xf32, #tpu.memory_space<smem>>
    %224 = vector.broadcast %223 : f32 to vector<1x1024xf32>
    %225 = arith.mulf %224, %61 : vector<1x1024xf32>
    %226 = arith.addf %222, %225 : vector<1x1024xf32>
    %227 = arith.addf %226, %62 : vector<1x1024xf32>
    %228 = vector.extract_strided_slice %221 {offsets = [15, 0], sizes = [1, 1024], strides = [1, 1]} : vector<16x1024xf32> to vector<1x1024xf32>
    %c1_200 = arith.constant 1 : index
    %c0_201 = arith.constant 0 : index
    %229 = memref.load %arg0[%c1_200, %c0_201] : memref<2x1xf32, #tpu.memory_space<smem>>
    %230 = vector.broadcast %229 : f32 to vector<1x1024xf32>
    %231 = arith.mulf %230, %61 : vector<1x1024xf32>
    %232 = arith.addf %228, %231 : vector<1x1024xf32>
    %233 = arith.addf %232, %62 : vector<1x1024xf32>
    %234 = tpu.concatenate %227, %233 in 0 : vector<1x1024xf32>, vector<1x1024xf32> -> vector<2x1024xf32>
    %cst_202 = arith.constant 0.000000e+00 : f32
    %235 = vector.broadcast %cst_202 : f32 to vector<2x1024xf32>
    %236 = arith.maximumf %234, %235 : vector<2x1024xf32>
    %c9_i32_203 = arith.constant 9 : i32
    %237 = tpu.memref_slice %arg13[%c9_i32_203] : memref<11x!tpu.dma_semaphore, #tpu.memory_space<semaphore_mem>> -> memref<1x!tpu.dma_semaphore, #tpu.memory_space<semaphore_mem>>
    %238 = tpu.memref_squeeze %237 : memref<1x!tpu.dma_semaphore, #tpu.memory_space<semaphore_mem>> -> memref<!tpu.dma_semaphore, #tpu.memory_space<semaphore_mem>>
    tpu.wait_dma2 semaphore(%238 : memref<!tpu.dma_semaphore, #tpu.memory_space<semaphore_mem>>) src(%arg7 : memref<1024x1024xbf16, #tpu.memory_space<any>>) dst(%arg11 : memref<1024x1024xbf16, #tpu.memory_space<vmem>>)
    %239 = arith.truncf %236 : vector<2x1024xf32> to vector<2x1024xbf16>
    %c0_204 = arith.constant 0 : index
    %c0_205 = arith.constant 0 : index
    %240 = vector.load %arg11[%c0_204, %c0_205] : memref<1024x1024xbf16, #tpu.memory_space<vmem>>, vector<1024x1024xbf16>
    %cst_206 = arith.constant dense<0.000000e+00> : vector<2x1024xf32>
    %241 = tpu.matmul %239, %240, %cst_206 {dimension_numbers = #tpu.dot_dimension_numbers<[1], [0], [0], [1], [0, 0, 1, 1], [], []>} : vector<2x1024xbf16>, vector<1024x1024xbf16>, vector<2x1024xf32> -> vector<2x1024xf32>
    %242 = vector.broadcast %63 : vector<1x1024xf32> to vector<2x1024xf32>
    %243 = arith.addf %241, %242 : vector<2x1024xf32>
    %cst_207 = arith.constant 0.000000e+00 : f32
    %244 = vector.broadcast %cst_207 : f32 to vector<2x1024xf32>
    %245 = arith.maximumf %243, %244 : vector<2x1024xf32>
    %c10_i32_208 = arith.constant 10 : i32
    %246 = tpu.memref_slice %arg13[%c10_i32_208] : memref<11x!tpu.dma_semaphore, #tpu.memory_space<semaphore_mem>> -> memref<1x!tpu.dma_semaphore, #tpu.memory_space<semaphore_mem>>
    %247 = tpu.memref_squeeze %246 : memref<1x!tpu.dma_semaphore, #tpu.memory_space<semaphore_mem>> -> memref<!tpu.dma_semaphore, #tpu.memory_space<semaphore_mem>>
    tpu.wait_dma2 semaphore(%247 : memref<!tpu.dma_semaphore, #tpu.memory_space<semaphore_mem>>) src(%arg8 : memref<1024x128xbf16, #tpu.memory_space<any>>) dst(%arg12 : memref<1024x128xbf16, #tpu.memory_space<vmem>>)
    %248 = arith.truncf %245 : vector<2x1024xf32> to vector<2x1024xbf16>
    %c0_209 = arith.constant 0 : index
    %c0_210 = arith.constant 0 : index
    %249 = vector.load %arg12[%c0_209, %c0_210] : memref<1024x128xbf16, #tpu.memory_space<vmem>>, vector<1024x128xbf16>
    %cst_211 = arith.constant dense<0.000000e+00> : vector<2x128xf32>
    %250 = tpu.matmul %248, %249, %cst_211 {dimension_numbers = #tpu.dot_dimension_numbers<[1], [0], [0], [1], [0, 0, 1, 1], [], []>} : vector<2x1024xbf16>, vector<1024x128xbf16>, vector<2x128xf32> -> vector<2x128xf32>
    %251 = vector.broadcast %64 : vector<1x128xf32> to vector<2x128xf32>
    %252 = arith.addf %250, %251 : vector<2x128xf32>
    %c0_212 = arith.constant 0 : index
    %c0_213 = arith.constant 0 : index
    %253 = vector.load %arg9[%c0_212, %c0_213] : memref<2x128xf32, #tpu.memory_space<vmem>>, vector<2x128xf32>
    tpu.vector_store %arg9[%c0_212, %c0_213], %252 {strides = array<i32>} : memref<2x128xf32, #tpu.memory_space<vmem>>, vector<2x128xf32>,
    return
  }
}

</mosaic_0001>

<llo_original>
// kernel: bombnet_forward.1
$region0: #{bombnet_forward.1}
  #allocation0 [shape = 'u32[]', space=smem, size = 0x4, offset = 0x4, fixed_abs, tag = 'smem constant byte address 0x4 - core index']
  #allocation1 [shape = 'u32[144,128]{1,0:T(1,128)}', space=vmem, size = 0x12000, scoped, tag = 'internal scratch']
  #allocation2 [shape = 'bf16[9,288,1024]{2,1,0:T(16,128)(2,1)}', space=vmem, size = 0x510000, scoped, tag = 'scratch operand']
  #allocation3 [shape = 'bf16[1024,1024]{1,0:T(16,128)(2,1)}', space=vmem, size = 0x200000, scoped, tag = 'scratch operand']
  #allocation4 [shape = 'bf16[1024,128]{1,0:T(16,128)(2,1)}', space=vmem, size = 0x40000, scoped, tag = 'scratch operand']
  #allocation5 [shape = 's32[11]{0}', space=sflag, size = 0x2c, scoped, tag = 'scratch operand']
  #allocation15 [shape = 's32[]', space=sflag, size = 0x4, offset = 0, fixed_abs, tag = 'sflag constant byte address 0x0 - dummy sync flag']
  #allocation17 [shape = 's32[]', space=sflag, size = 0x4, offset = 0, fixed_abs, tag = 'sflag constant byte address 0x0 - dummy sync flag']
  #allocation19 [shape = 's32[]', space=sflag, size = 0x4, offset = 0, fixed_abs, tag = 'sflag constant byte address 0x0 - dummy sync flag']
  #allocation21 [shape = 's32[]', space=sflag, size = 0x4, offset = 0, fixed_abs, tag = 'sflag constant byte address 0x0 - dummy sync flag']
  #allocation23 [shape = 's32[]', space=sflag, size = 0x4, offset = 0, fixed_abs, tag = 'sflag constant byte address 0x0 - dummy sync flag']
  #allocation25 [shape = 's32[]', space=sflag, size = 0x4, offset = 0, fixed_abs, tag = 'sflag constant byte address 0x0 - dummy sync flag']
  #allocation27 [shape = 's32[]', space=sflag, size = 0x4, offset = 0, fixed_abs, tag = 'sflag constant byte address 0x0 - dummy sync flag']
  #allocation29 [shape = 's32[]', space=sflag, size = 0x4, offset = 0, fixed_abs, tag = 'sflag constant byte address 0x0 - dummy sync flag']
  #allocation31 [shape = 's32[]', space=sflag, size = 0x4, offset = 0, fixed_abs, tag = 'sflag constant byte address 0x0 - dummy sync flag']
  #allocation33 [shape = 's32[]', space=sflag, size = 0x4, offset = 0, fixed_abs, tag = 'sflag constant byte address 0x0 - dummy sync flag']
  #allocation35 [shape = 's32[]', space=sflag, size = 0x4, offset = 0, fixed_abs, tag = 'sflag constant byte address 0x0 - dummy sync flag']
  #allocation36 [shape = 's32[]', space=sflag, size = 0x4, offset = 0, fixed_abs, tag = 'sflag constant byte address 0x0 - dummy sync flag']
  #allocation37 [shape = 'u32[]', space=smem, size = 0x4, offset = 0x44, fixed_abs, tag = 'smem constant byte address 0x44 - assertion arg 0']
  #allocation38 [shape = 'u32[]', space=smem, size = 0x4, offset = 0x48, fixed_abs, tag = 'smem constant byte address 0x48 - assertion arg 1']
  %s0 = inlined_call_operand.vmem [shape: f32[2,1], index: 0, kind: input, shape index: {}]
  %s1 = inlined_call_operand.vmem [shape: f32[30,60], index: 1, kind: input, shape index: {}]
  %s2 = inlined_call_operand.hbm [shape: bf16[3,60,208], index: 2, kind: input, shape index: {}]
  %s3 = inlined_call_operand.hbm [shape: bf16[3,208,352], index: 3, kind: input, shape index: {}]
  %s4 = inlined_call_operand.vmem [shape: bf16[3,352,288], index: 4, kind: input, shape index: {}]
  %s5 = inlined_call_operand.hbm [shape: f32[8,1024], index: 5, kind: input, shape index: {}]
  %s6 = inlined_call_operand.hbm [shape: bf16[9,288,1024], index: 6, kind: input, shape index: {}]
  %s7 = inlined_call_operand.hbm [shape: bf16[1024,1024], index: 7, kind: input, shape index: {}]
  %s8 = inlined_call_operand.hbm [shape: bf16[1024,128], index: 8, kind: input, shape index: {}]
  %s9 = inlined_call_operand.hbm [shape: f32[2,128], index: 9, kind: output, shape index: {}]
  %s10 = sld [smem:[#allocation0]]
  $region54: #{bombnet_forward.1} parent=0
    _
  %s12 = ssub.s32 1, %s10
  %s13 = scalar_select 0, %s12, %s10
  $region1: #{bombnet_forward.1} parent=0
    #allocation6 [shape = 'u8[1024]{0}', space=smem, size = 0x400, scoped, tag = 'input window, operand 0, single buffered']
    #allocation7 [shape = 's32[1]{0}', space=sflag, size = 0x4, scoped, tag = 'scoped memory for bombnet_forward.1']
    #allocation8 [shape = 's32[1]{0}', space=sflag, size = 0x4, scoped, tag = 'scoped memory for bombnet_forward.1']
    #allocation9 [shape = 's32[1]{0}', space=sflag, size = 0x4, scoped, tag = 'scoped memory for bombnet_forward.1']
    #allocation10 [shape = 'u8[98304]{0}', space=vmem, size = 0x18000, scoped, tag = 'input window, operand 2, single buffered']
    #allocation11 [shape = 'u8[479232]{0}', space=vmem, size = 0x75000, scoped, tag = 'input window, operand 3, single buffered']
    #allocation12 [shape = 's32[1]{0}', space=sflag, size = 0x4, scoped, tag = 'scoped memory for bombnet_forward.1']
    #allocation13 [shape = 'u8[32768]{0}', space=vmem, size = 0x8000, scoped, tag = 'input window, operand 5, single buffered']
    #allocation14 [shape = 'u8[1024]{0}', space=vmem, size = 0x400, scoped, tag = 'output window, operand 0, single buffered']
    #allocation16 [shape = 'u32[9]{0}', space=smem, size = 0x24, scoped, tag = 'DMA stride descriptor']
    #allocation18 [shape = 'u32[9]{0}', space=smem, size = 0x24, scoped, tag = 'DMA stride descriptor']
    #allocation20 [shape = 'u32[9]{0}', space=smem, size = 0x24, scoped, tag = 'DMA stride descriptor']
    #allocation22 [shape = 'u32[9]{0}', space=smem, size = 0x24, scoped, tag = 'DMA stride descriptor']
    #allocation24 [shape = 'u32[9]{0}', space=smem, size = 0x24, scoped, tag = 'DMA stride descriptor']
    #allocation26 [shape = 'u32[9]{0}', space=smem, size = 0x24, scoped, tag = 'DMA stride descriptor']
    #allocation28 [shape = 'u32[9]{0}', space=smem, size = 0x24, scoped, tag = 'DMA stride descriptor']
    #allocation30 [shape = 'u32[9]{0}', space=smem, size = 0x24, scoped, tag = 'DMA stride descriptor']
    #allocation32 [shape = 'u32[9]{0}', space=smem, size = 0x24, scoped, tag = 'DMA stride descriptor']
    #allocation34 [shape = 'u32[9]{0}', space=smem, size = 0x24, scoped, tag = 'DMA stride descriptor']
    %14 = vsyncpa [#allocation9], 0
    %15 = vsyncpa [#allocation7], 0
    %16 = vsyncpa [#allocation12], 0
    %17 = vsyncpa [#allocation8], 0
    // Predicated region
    $region2: #{bombnet_forward.1} parent=1 // pred_check
      _
    $region3: #{bombnet_forward.1} parent=1 // pred_check_branch
      %19 = sbr.rel (0) target = $region5
    $region4: #{bombnet_forward.1} parent=1 // pred_region
      %s21 = ssub.s32 32, 32
      %22 = vsyncadd [#allocation9], %s21
      %s24 = sshll.u32 %s0, 4
      %s25 = int_to_ptr.vmem [resolvable:$true] %s24
      %27 = dma.vmem_to_smem %s25, 32, [#allocation6], [#allocation9]
    $region5: #{bombnet_forward.1} parent=1 // pred_fallthru
      _
    // Predicated region
    $region6: #{bombnet_forward.1} parent=1 // pred_check
      _
    $region7: #{bombnet_forward.1} parent=1 // pred_check_branch
      %29 = sbr.rel (0) target = $region9
    $region8: #{bombnet_forward.1} parent=1 // pred_region
      _
    $region9: #{bombnet_forward.1} parent=1 // pred_fallthru
      _
    // Predicated region
    $region10: #{bombnet_forward.1} parent=1 // pred_check
      _
    $region11: #{bombnet_forward.1} parent=1 // pred_check_branch
      %31 = sbr.rel (0) target = $region13
    $region12: #{bombnet_forward.1} parent=1 // pred_region
      %s33 = ssub.s32 3072, 3072
      %34 = vsyncadd [#allocation7], %s33
      %s35 = sshll.u32 [#allocation10], 4
      %s36 = int_to_ptr.vmem [resolvable:$true] %s35
      %41 = dma.hbm_to_vmem [thread:$0]  %s2, 3072, %s36, [#allocation7], 128, 128, 8
    $region13: #{bombnet_forward.1} parent=1 // pred_fallthru
      _
    // Predicated region
    $region14: #{bombnet_forward.1} parent=1 // pred_check
      _
    $region15: #{bombnet_forward.1} parent=1 // pred_check_branch
      %43 = sbr.rel (0) target = $region17
    $region16: #{bombnet_forward.1} parent=1 // pred_region
      %s45 = ssub.s32 14976, 14976
      %46 = vsyncadd [#allocation12], %s45
      %s47 = sshll.u32 [#allocation11], 4
      %s48 = int_to_ptr.vmem [resolvable:$true] %s47
      %53 = dma.hbm_to_vmem [thread:$0]  %s3, 14976, %s48, [#allocation12], 192, 192, 12
    $region17: #{bombnet_forward.1} parent=1 // pred_fallthru
      _
    // Predicated region
    $region18: #{bombnet_forward.1} parent=1 // pred_check
      _
    $region19: #{bombnet_forward.1} parent=1 // pred_check_branch
      %55 = sbr.rel (0) target = $region21
    $region20: #{bombnet_forward.1} parent=1 // pred_region
      _
    $region21: #{bombnet_forward.1} parent=1 // pred_fallthru
      _
    // Predicated region
    $region22: #{bombnet_forward.1} parent=1 // pred_check
      _
    $region23: #{bombnet_forward.1} parent=1 // pred_check_branch
      %57 = sbr.rel (0) target = $region25
    $region24: #{bombnet_forward.1} parent=1 // pred_region
      %s59 = ssub.s32 1024, 1024
      %60 = vsyncadd [#allocation12], %s59
      %s62 = sshll.u32 [#allocation13], 4
      %s63 = int_to_ptr.vmem [resolvable:$true] %s62
      %65 = dma.hbm_to_vmem [thread:$0]  %s5, 1024, %s63, [#allocation12]
    $region25: #{bombnet_forward.1} parent=1 // pred_fallthru
      _
    // Predicated region
    $region26: #{bombnet_forward.1} parent=1 // pred_check
      _
    $region27: #{bombnet_forward.1} parent=1 // pred_check_branch
      %67 = sbr.rel (0) target = $region29
    $region28: #{bombnet_forward.1} parent=1 // pred_region
      %68 = dma.done [#allocation9], 32
    $region29: #{bombnet_forward.1} parent=1 // pred_fallthru
      _
    // Predicated region
    $region30: #{bombnet_forward.1} parent=1 // pred_check
      _
    $region31: #{bombnet_forward.1} parent=1 // pred_check_branch
      %70 = sbr.rel (0) target = $region33
    $region32: #{bombnet_forward.1} parent=1 // pred_region
      %71 = dma.done [#allocation7], 3072
    $region33: #{bombnet_forward.1} parent=1 // pred_fallthru
      _
    // Predicated region
    $region34: #{bombnet_forward.1} parent=1 // pred_check
      _
    $region35: #{bombnet_forward.1} parent=1 // pred_check_branch
      %73 = sbr.rel (0) target = $region37
    $region36: #{bombnet_forward.1} parent=1 // pred_region
      %74 = dma.done [#allocation12], 14976
    $region37: #{bombnet_forward.1} parent=1 // pred_fallthru
      _
    // Predicated region
    $region38: #{bombnet_forward.1} parent=1 // pred_check
      _
    $region39: #{bombnet_forward.1} parent=1 // pred_check_branch
      %76 = sbr.rel (0) target = $region41
    $region40: #{bombnet_forward.1} parent=1 // pred_region
      %77 = dma.done [#allocation12], 1024
    $region41: #{bombnet_forward.1} parent=1 // pred_fallthru
      _
    %78 = sfence
    %s81 = sshll.u32 1, 14
    %s82 = sxor.u32 4294967295, %s81
    %s84 = sld [smem:[#allocation0]]
    %s85 = sadd.s32 2, %s84
    %s87 = sshll.u32 7, 26
    %s88 = sxor.u32 4294967295, %s87
    %s89 = sand.u32 0, %s88
    %s90 = sshll.u32 %s85, 26
    %s91 = sor.u32 %s89, %s90
    %s92 = sshll.u32 [#allocation2], 4
    %s93 = int_to_ptr.vmem [resolvable:$true] %s92
    %96 = sst [smem:[#allocation16]] 1024
    %s97 = scalar_lea.smem [#allocation16], 1
    %98 = sst [smem:[%s97]] 1024
    %s99 = scalar_lea.smem [#allocation16], 2
    %100 = sst [smem:[%s99]] 8
    %s101 = scalar_lea.smem [#allocation16], 3
    %102 = sst [smem:[%s101]] 64
    %s103 = scalar_lea.smem [#allocation16], 4
    %104 = sst [smem:[%s103]] 128
    %s105 = scalar_lea.smem [#allocation16], 5
    %106 = sst [smem:[%s105]] 2
    %s107 = scalar_lea.smem [#allocation16], 6
    %108 = sst [smem:[%s107]] 512
    %s109 = scalar_lea.smem [#allocation16], 7
    %110 = sst [smem:[%s109]] 64
    %s111 = scalar_lea.smem [#allocation16], 8
    %112 = sst [smem:[%s111]] 4
    %114 = dma.general %s6, 18432, %s93, [#allocation5], [#allocation15], [#allocation16], %s91, 0
    %s115 = scalar_lea.hbm %s6, 18432
    %s116 = scalar_lea.vmem [#allocation2], 1152
    %s117 = scalar_lea.sflag [#allocation5], 1
    %s119 = sshll.u32 1, 14
    %s120 = sxor.u32 4294967295, %s119
    %s122 = sadd.s32 2, %s84
    %s124 = sshll.u32 7, 26
    %s125 = sxor.u32 4294967295, %s124
    %s126 = sand.u32 0, %s125
    %s127 = sshll.u32 %s122, 26
    %s128 = sor.u32 %s126, %s127
    %s129 = sshll.u32 %s116, 4
    %s130 = int_to_ptr.vmem [resolvable:$true] %s129
    %133 = sst [smem:[#allocation18]] 1024
    %s134 = scalar_lea.smem [#allocation18], 1
    %135 = sst [smem:[%s134]] 1024
    %s136 = scalar_lea.smem [#allocation18], 2
    %137 = sst [smem:[%s136]] 8
    %s138 = scalar_lea.smem [#allocation18], 3
    %139 = sst [smem:[%s138]] 64
    %s140 = scalar_lea.smem [#allocation18], 4
    %141 = sst [smem:[%s140]] 128
    %s142 = scalar_lea.smem [#allocation18], 5
    %143 = sst [smem:[%s142]] 2
    %s144 = scalar_lea.smem [#allocation18], 6
    %145 = sst [smem:[%s144]] 512
    %s146 = scalar_lea.smem [#allocation18], 7
    %147 = sst [smem:[%s146]] 64
    %s148 = scalar_lea.smem [#allocation18], 8
    %149 = sst [smem:[%s148]] 4
    %151 = dma.general %s115, 18432, %s130, %s117, [#allocation17], [#allocation18], %s128, 0
    %s152 = scalar_lea.hbm %s6, 36864
    %s153 = scalar_lea.vmem [#allocation2], 2304
    %s154 = scalar_lea.sflag [#allocation5], 2
    %s156 = sshll.u32 1, 14
    %s157 = sxor.u32 4294967295, %s156
    %s159 = sadd.s32 2, %s84
    %s161 = sshll.u32 7, 26
    %s162 = sxor.u32 4294967295, %s161
    %s163 = sand.u32 0, %s162
    %s164 = sshll.u32 %s159, 26
    %s165 = sor.u32 %s163, %s164
    %s166 = sshll.u32 %s153, 4
    %s167 = int_to_ptr.vmem [resolvable:$true] %s166
    %170 = sst [smem:[#allocation20]] 1024
    %s171 = scalar_lea.smem [#allocation20], 1
    %172 = sst [smem:[%s171]] 1024
    %s173 = scalar_lea.smem [#allocation20], 2
    %174 = sst [smem:[%s173]] 8
    %s175 = scalar_lea.smem [#allocation20], 3
    %176 = sst [smem:[%s175]] 64
    %s177 = scalar_lea.smem [#allocation20], 4
    %178 = sst [smem:[%s177]] 128
    %s179 = scalar_lea.smem [#allocation20], 5
    %180 = sst [smem:[%s179]] 2
    %s181 = scalar_lea.smem [#allocation20], 6
    %182 = sst [smem:[%s181]] 512
    %s183 = scalar_lea.smem [#allocation20], 7
    %184 = sst [smem:[%s183]] 64
    %s185 = scalar_lea.smem [#allocation20], 8
    %186 = sst [smem:[%s185]] 4
    %188 = dma.general %s152, 18432, %s167, %s154, [#allocation19], [#allocation20], %s165, 0
    %s189 = scalar_lea.hbm %s6, 55296
    %s190 = scalar_lea.vmem [#allocation2], 3456
    %s191 = scalar_lea.sflag [#allocation5], 3
    %s193 = sshll.u32 1, 14
    %s194 = sxor.u32 4294967295, %s193
    %s196 = sadd.s32 2, %s84
    %s198 = sshll.u32 7, 26
    %s199 = sxor.u32 4294967295, %s198
    %s200 = sand.u32 0, %s199
    %s201 = sshll.u32 %s196, 26
    %s202 = sor.u32 %s200, %s201
    %s203 = sshll.u32 %s190, 4
    %s204 = int_to_ptr.vmem [resolvable:$true] %s203
    %207 = sst [smem:[#allocation22]] 1024
    %s208 = scalar_lea.smem [#allocation22], 1
    %209 = sst [smem:[%s208]] 1024
    %s210 = scalar_lea.smem [#allocation22], 2
    %211 = sst [smem:[%s210]] 8
    %s212 = scalar_lea.smem [#allocation22], 3
    %213 = sst [smem:[%s212]] 64
    %s214 = scalar_lea.smem [#allocation22], 4
    %215 = sst [smem:[%s214]] 128
    %s216 = scalar_lea.smem [#allocation22], 5
    %217 = sst [smem:[%s216]] 2
    %s218 = scalar_lea.smem [#allocation22], 6
    %219 = sst [smem:[%s218]] 512
    %s220 = scalar_lea.smem [#allocation22], 7
    %221 = sst [smem:[%s220]] 64
    %s222 = scalar_lea.smem [#allocation22], 8
    %223 = sst [smem:[%s222]] 4
    %225 = dma.general %s189, 18432, %s204, %s191, [#allocation21], [#allocation22], %s202, 0
    %s226 = scalar_lea.hbm %s6, 73728
    %s227 = scalar_lea.vmem [#allocation2], 4608
    %s228 = scalar_lea.sflag [#allocation5], 4
    %s230 = sshll.u32 1, 14
    %s231 = sxor.u32 4294967295, %s230
    %s233 = sadd.s32 2, %s84
    %s235 = sshll.u32 7, 26
    %s236 = sxor.u32 4294967295, %s235
    %s237 = sand.u32 0, %s236
    %s238 = sshll.u32 %s233, 26
    %s239 = sor.u32 %s237, %s238
    %s240 = sshll.u32 %s227, 4
    %s241 = int_to_ptr.vmem [resolvable:$true] %s240
    %244 = sst [smem:[#allocation24]] 1024
    %s245 = scalar_lea.smem [#allocation24], 1
    %246 = sst [smem:[%s245]] 1024
    %s247 = scalar_lea.smem [#allocation24], 2
    %248 = sst [smem:[%s247]] 8
    %s249 = scalar_lea.smem [#allocation24], 3
    %250 = sst [smem:[%s249]] 64
    %s251 = scalar_lea.smem [#allocation24], 4
    %252 = sst [smem:[%s251]] 128
    %s253 = scalar_lea.smem [#allocation24], 5
    %254 = sst [smem:[%s253]] 2
    %s255 = scalar_lea.smem [#allocation24], 6
    %256 = sst [smem:[%s255]] 512
    %s257 = scalar_lea.smem [#allocation24], 7
    %258 = sst [smem:[%s257]] 64
    %s259 = scalar_lea.smem [#allocation24], 8
    %260 = sst [smem:[%s259]] 4
    %262 = dma.general %s226, 18432, %s241, %s228, [#allocation23], [#allocation24], %s239, 0
    %s263 = scalar_lea.hbm %s6, 92160
    %s264 = scalar_lea.vmem [#allocation2], 5760
    %s265 = scalar_lea.sflag [#allocation5], 5
    %s267 = sshll.u32 1, 14
    %s268 = sxor.u32 4294967295, %s267
    %s270 = sadd.s32 2, %s84
    %s272 = sshll.u32 7, 26
    %s273 = sxor.u32 4294967295, %s272
    %s274 = sand.u32 0, %s273
    %s275 = sshll.u32 %s270, 26
    %s276 = sor.u32 %s274, %s275
    %s277 = sshll.u32 %s264, 4
    %s278 = int_to_ptr.vmem [resolvable:$true] %s277
    %281 = sst [smem:[#allocation26]] 1024
    %s282 = scalar_lea.smem [#allocation26], 1
    %283 = sst [smem:[%s282]] 1024
    %s284 = scalar_lea.smem [#allocation26], 2
    %285 = sst [smem:[%s284]] 8
    %s286 = scalar_lea.smem [#allocation26], 3
    %287 = sst [smem:[%s286]] 64
    %s288 = scalar_lea.smem [#allocation26], 4
    %289 = sst [smem:[%s288]] 128
    %s290 = scalar_lea.smem [#allocation26], 5
    %291 = sst [smem:[%s290]] 2
    %s292 = scalar_lea.smem [#allocation26], 6
    %293 = sst [smem:[%s292]] 512
    %s294 = scalar_lea.smem [#allocation26], 7
    %295 = sst [smem:[%s294]] 64
    %s296 = scalar_lea.smem [#allocation26], 8
    %297 = sst [smem:[%s296]] 4
    %299 = dma.general %s263, 18432, %s278, %s265, [#allocation25], [#allocation26], %s276, 0
    %s300 = scalar_lea.hbm %s6, 110592
    %s301 = scalar_lea.vmem [#allocation2], 6912
    %s302 = scalar_lea.sflag [#allocation5], 6
    %s304 = sshll.u32 1, 14
    %s305 = sxor.u32 4294967295, %s304
    %s307 = sadd.s32 2, %s84
    %s309 = sshll.u32 7, 26
    %s310 = sxor.u32 4294967295, %s309
    %s311 = sand.u32 0, %s310
    %s312 = sshll.u32 %s307, 26
    %s313 = sor.u32 %s311, %s312
    %s314 = sshll.u32 %s301, 4
    %s315 = int_to_ptr.vmem [resolvable:$true] %s314
    %318 = sst [smem:[#allocation28]] 1024
    %s319 = scalar_lea.smem [#allocation28], 1
    %320 = sst [smem:[%s319]] 1024
    %s321 = scalar_lea.smem [#allocation28], 2
    %322 = sst [smem:[%s321]] 8
    %s323 = scalar_lea.smem [#allocation28], 3
    %324 = sst [smem:[%s323]] 64
    %s325 = scalar_lea.smem [#allocation28], 4
    %326 = sst [smem:[%s325]] 128
    %s327 = scalar_lea.smem [#allocation28], 5
    %328 = sst [smem:[%s327]] 2
    %s329 = scalar_lea.smem [#allocation28], 6
    %330 = sst [smem:[%s329]] 512
    %s331 = scalar_lea.smem [#allocation28], 7
    %332 = sst [smem:[%s331]] 64
    %s333 = scalar_lea.smem [#allocation28], 8
    %334 = sst [smem:[%s333]] 4
    %336 = dma.general %s300, 18432, %s315, %s302, [#allocation27], [#allocation28], %s313, 0
    %s337 = scalar_lea.hbm %s6, 129024
    %s338 = scalar_lea.vmem [#allocation2], 8064
    %s339 = scalar_lea.sflag [#allocation5], 7
    %s341 = sshll.u32 1, 14
    %s342 = sxor.u32 4294967295, %s341
    %s344 = sadd.s32 2, %s84
    %s346 = sshll.u32 7, 26
    %s347 = sxor.u32 4294967295, %s346
    %s348 = sand.u32 0, %s347
    %s349 = sshll.u32 %s344, 26
    %s350 = sor.u32 %s348, %s349
    %s351 = sshll.u32 %s338, 4
    %s352 = int_to_ptr.vmem [resolvable:$true] %s351
    %355 = sst [smem:[#allocation30]] 1024
    %s356 = scalar_lea.smem [#allocation30], 1
    %357 = sst [smem:[%s356]] 1024
    %s358 = scalar_lea.smem [#allocation30], 2
    %359 = sst [smem:[%s358]] 8
    %s360 = scalar_lea.smem [#allocation30], 3
    %361 = sst [smem:[%s360]] 64
    %s362 = scalar_lea.smem [#allocation30], 4
    %363 = sst [smem:[%s362]] 128
    %s364 = scalar_lea.smem [#allocation30], 5
    %365 = sst [smem:[%s364]] 2
    %s366 = scalar_lea.smem [#allocation30], 6
    %367 = sst [smem:[%s366]] 512
    %s368 = scalar_lea.smem [#allocation30], 7
    %369 = sst [smem:[%s368]] 64
    %s370 = scalar_lea.smem [#allocation30], 8
    %371 = sst [smem:[%s370]] 4
    %373 = dma.general %s337, 18432, %s352, %s339, [#allocation29], [#allocation30], %s350, 0
    %s374 = scalar_lea.hbm %s6, 147456
    %s375 = scalar_lea.vmem [#allocation2], 9216
    %s376 = scalar_lea.sflag [#allocation5], 8
    %s378 = sshll.u32 1, 14
    %s379 = sxor.u32 4294967295, %s378
    %s381 = sadd.s32 2, %s84
    %s383 = sshll.u32 7, 26
    %s384 = sxor.u32 4294967295, %s383
    %s385 = sand.u32 0, %s384
    %s386 = sshll.u32 %s381, 26
    %s387 = sor.u32 %s385, %s386
    %s388 = sshll.u32 %s375, 4
    %s389 = int_to_ptr.vmem [resolvable:$true] %s388
    %392 = sst [smem:[#allocation32]] 1024
    %s393 = scalar_lea.smem [#allocation32], 1
    %394 = sst [smem:[%s393]] 1024
    %s395 = scalar_lea.smem [#allocation32], 2
    %396 = sst [smem:[%s395]] 8
    %s397 = scalar_lea.smem [#allocation32], 3
    %398 = sst [smem:[%s397]] 64
    %s399 = scalar_lea.smem [#allocation32], 4
    %400 = sst [smem:[%s399]] 128
    %s401 = scalar_lea.smem [#allocation32], 5
    %402 = sst [smem:[%s401]] 2
    %s403 = scalar_lea.smem [#allocation32], 6
    %404 = sst [smem:[%s403]] 512
    %s405 = scalar_lea.smem [#allocation32], 7
    %406 = sst [smem:[%s405]] 64
    %s407 = scalar_lea.smem [#allocation32], 8
    %408 = sst [smem:[%s407]] 4
    %410 = dma.general %s374, 18432, %s389, %s376, [#allocation31], [#allocation32], %s387, 0
    %s411 = scalar_lea.sflag [#allocation5], 9
    %s413 = sshll.u32 1, 14
    %s414 = sxor.u32 4294967295, %s413
    %s416 = sadd.s32 2, %s84
    %s418 = sshll.u32 7, 26
    %s419 = sxor.u32 4294967295, %s418
    %s420 = sand.u32 0, %s419
    %s421 = sshll.u32 %s416, 26
    %s422 = sor.u32 %s420, %s421
    %s423 = sshll.u32 [#allocation3], 4
    %s424 = int_to_ptr.vmem [resolvable:$true] %s423
    %427 = sst [smem:[#allocation34]] 1024
    %s428 = scalar_lea.smem [#allocation34], 1
    %429 = sst [smem:[%s428]] 1024
    %s430 = scalar_lea.smem [#allocation34], 2
    %431 = sst [smem:[%s430]] 8
    %s432 = scalar_lea.smem [#allocation34], 3
    %433 = sst [smem:[%s432]] 64
    %s434 = scalar_lea.smem [#allocation34], 4
    %435 = sst [smem:[%s434]] 128
    %s436 = scalar_lea.smem [#allocation34], 5
    %437 = sst [smem:[%s436]] 2
    %s438 = scalar_lea.smem [#allocation34], 6
    %439 = sst [smem:[%s438]] 512
    %s440 = scalar_lea.smem [#allocation34], 7
    %441 = sst [smem:[%s440]] 64
    %s442 = scalar_lea.smem [#allocation34], 8
    %443 = sst [smem:[%s442]] 4
    %445 = dma.general %s7, 65536, %s424, %s411, [#allocation33], [#allocation34], %s422, 0
    %s446 = scalar_lea.sflag [#allocation5], 10
    // Predicated region
    $region42: #{bombnet_forward.1} parent=1 // pred_check
      _
    $region43: #{bombnet_forward.1} parent=1 // pred_check_branch
      %448 = sbr.rel target = $region45
    $region44: #{bombnet_forward.1} parent=1 // pred_region
      %449 = sst [smem:[#allocation37]] [#allocation36]
      %450 = sst [smem:[#allocation38]] [#allocation35]
    $region45: #{bombnet_forward.1} parent=1 // pred_fallthru
      _
    %452 = shalt.err (0)
    %s454 = sshll.u32 [#allocation4], 4
    %s455 = int_to_ptr.vmem [resolvable:$true] %s454
    %457 = dma.hbm_to_vmem [thread:$0]  %s8, 8192, %s455, %s446
    %v458 = vld [vmem:[#allocation13] ss:$8 sm:$0x3]
    %s459 = scalar_lea.vmem [#allocation13], 1
    %v460 = vld [vmem:[%s459] ss:$8 sm:$0x7]
    %s461 = scalar_lea.vmem [#allocation13], 2
    %v462 = vld [vmem:[%s461] ss:$8 sm:$0x7]
    %s463 = scalar_lea.vmem [#allocation13], 3
    %v464 = vld [vmem:[%s463] ss:$8 sm:$0xf]
    %v465 = vld [vmem:[%s463] ss:$8 sm:$0xf0]
    %v466 = vor.u32 %v464, %v465
    %s467 = scalar_lea.vmem [#allocation13], 4
    %v468 = vld [vmem:[%s467] ss:$8 sm:$0xf]
    %v469 = vld [vmem:[%s467] ss:$8 sm:$0xf0]
    %v470 = vor.u32 %v468, %v469
    %s471 = scalar_lea.vmem [#allocation13], 5
    %v472 = vld [vmem:[%s471] ss:$8 sm:$0xf]
    %v473 = vld [vmem:[%s471] ss:$8 sm:$0xf0]
    %v474 = vor.u32 %v472, %v473
    %v475 = vld [vmem:[#allocation13 + $0x6] ss:$0 sm:$0xff]
    %v476 = vld [vmem:[%s1] sm:$0xff]
    %v477 = vld [vmem:[%s1 + $0x8] sm:$0xff]
    %v478 = vld [vmem:[%s1 + $0x10] sm:$0xff]
    %v479 = vld [vmem:[%s1 + $0x18] sm:$0x3f]
    %v480 = vpack.c.bf16 %v477, %v476
    %v481 = vpack.c.bf16 %v479, %v478
    %v482 = vld [vmem:[#allocation10] sm:$0xff]
    %v483 = vld [vmem:[#allocation10 + $0x8] sm:$0xff]
    %v484 = vld [vmem:[#allocation10 + $0x10] sm:$0xff]
    %v485 = vld [vmem:[#allocation10 + $0x18] sm:$0xff]
    %v486 = vld [vmem:[#allocation10 + $0x20] sm:$0xff]
    %v487 = vld [vmem:[#allocation10 + $0x28] sm:$0xff]
    %v488 = vld [vmem:[#allocation10 + $0x30] sm:$0xff]
    %v489 = vld [vmem:[#allocation10 + $0x38] sm:$0x33]
    %s490 = scalar_lea.vmem [#allocation10], 64
    %v491 = vld [vmem:[%s490] sm:$0xff]
    %v492 = vld [vmem:[%s490 + $0x8] sm:$0xff]
    %v493 = vld [vmem:[%s490 + $0x10] sm:$0xff]
    %v494 = vld [vmem:[%s490 + $0x18] sm:$0xff]
    %v495 = vld [vmem:[%s490 + $0x20] sm:$0xff]
    %v496 = vld [vmem:[%s490 + $0x28] sm:$0xff]
    %v497 = vld [vmem:[%s490 + $0x30] sm:$0xff]
    %v498 = vld [vmem:[%s490 + $0x38] sm:$0x33]
    %vm499 = vsmask.f32 7424
    %v501 = vshrl.u32 %v480, 16
    %v503 = vshll.u32 %v480, 16
    %v505 = vrot.slane %v503, 1
    %v506 = vor.u32 %v501, %v505
    %v508 = vshll.u32 %v481, 16
    %v510 = vrot.slane %v508, 1
    %v511 = vsel %vm499, %v506, %v510
    %v512 = vshrl.u32 %v481, 16
    %v514 = vor.u32 %v512, %v510
    %v523 = vunpack.c.l.b16 %v491
    %v524 = vunpack.c.h.b16 %v491
    %v525 = vunpack.c.l.b16 %v492
    %v526 = vunpack.c.h.b16 %v492
    %v527 = vunpack.c.l.b16 %v493
    %v528 = vunpack.c.h.b16 %v493
    %v529 = vunpack.c.l.b16 %v494
    %v530 = vunpack.c.h.b16 %v494
    %v531 = vunpack.c.l.b16 %v495
    %v532 = vunpack.c.h.b16 %v495
    %v533 = vunpack.c.l.b16 %v496
    %v534 = vunpack.c.h.b16 %v496
    %v535 = vunpack.c.l.b16 %v497
    %v536 = vunpack.c.h.b16 %v497
    %v537 = vunpack.c.l.b16 %v498
    %v538 = vunpack.c.h.b16 %v498
    %v539 = vpack.c.b16 %v525, %v523
    %v540 = vpack.c.b16 %v526, %v524
    %v541 = vpack.c.b16 %v529, %v527
    %v542 = vpack.c.b16 %v530, %v528
    %v543 = vpack.c.b16 %v533, %v531
    %v544 = vpack.c.b16 %v534, %v532
    %v545 = vpack.c.b16 %v537, %v535
    %v546 = vpack.c.b16 %v538, %v536
    %vm553 = vcmask 490496
    %v555 = vsel %vm553, %v511, 0
    %v558 = vsel %vm553, %v514, 0
    %vm560 = vcmask 1045504
    %v562 = vsel %vm560, %v545, 0
    %v565 = vsel %vm560, %v546, 0
    %567 = vmatprep.subr.bf16.mxu0 %v540
    %568 = vmatpush1.bf16.msra.mxu0 %v539
    %569 = vmatprep.subr.bf16.mxu0 %v542
    %570 = vmatpush1.bf16.msra.mxu0 %v541
    %571 = vmatprep.subr.bf16.mxu0 %v544
    %572 = vmatpush1.bf16.msra.mxu0 %v543
    %573 = vmatprep.subr.bf16.mxu0 %v565
    %574 = vmatpush1.bf16.msra.mxu0 %v562
    %575 = vmatprep.subr.bf16.mxu0 0
    %576 = vmatpush1.bf16.msra.mxu0 0
    %577 = vmatprep.subr.bf16.mxu0 0
    %578 = vmatpush1.bf16.msra.mxu0 0
    %579 = vmatprep.subr.bf16.mxu0 0
    %580 = vmatpush1.bf16.msra.mxu0 0
    %581 = vmatprep.subr.bf16.mxu0 0
    %582 = vmatpush1.bf16.msra.mxu0 0
    %583 = vmatprep.subr.bf16.mxu0 0
    %584 = vmatpush1.bf16.msra.mxu0 0
    %585 = vmatprep.subr.bf16.mxu0 0
    %586 = vmatpush1.bf16.msra.mxu0 0
    %587 = vmatprep.subr.bf16.mxu0 0
    %588 = vmatpush1.bf16.msra.mxu0 0
    %589 = vmatprep.subr.bf16.mxu0 0
    %590 = vmatpush1.bf16.msra.mxu0 0
    %591 = vmatprep.subr.bf16.mxu0 0
    %592 = vmatpush1.bf16.msra.mxu0 0
    %593 = vmatprep.subr.bf16.mxu0 0
    %594 = vmatpush1.bf16.msra.mxu0 0
    %595 = vmatprep.subr.bf16.mxu0 0
    %596 = vmatpush1.bf16.msra.mxu0 0
    %597 = vmatprep.subr.bf16.mxu0 0
    %598 = vmatpush1.bf16.msra.mxu0 0
    %599 = vmatprep.mubr.bf16.mxu0 0
    %600 = vmatmul.mubr.bf16.gmra.mrb[0].mxu0 %v555
    %v601 = vpop.f32.mrb[0].mxu0
    %v602 = vadd.f32 0.0, %v601
    %v603 = vpop.f32.mrb[0].mxu0
    %v604 = vadd.f32 0.0, %v603
    %v605 = vpop.f32.mrb[0].mxu0
    %v606 = vadd.f32 0.0, %v605
    %v607 = vpop.f32.mrb[0].mxu0
    %v608 = vadd.f32 0.0, %v607
    %609 = vmatprep.mubr.bf16.mxu0 0
    %610 = vmatmul.mubr.bf16.gmra.mrb[0].mxu0 %v558
    %v611 = vpop.f32.mrb[0].mxu0
    %v612 = vadd.f32 0.0, %v611
    %v613 = vpop.f32.mrb[0].mxu0
    %v614 = vadd.f32 0.0, %v613
    %v615 = vpop.f32.mrb[0].mxu0
    %v616 = vadd.f32 0.0, %v615
    %v617 = vpop.f32.mrb[0].mxu0
    %v618 = vadd.f32 0.0, %v617
    %619 = vdwg.mxu0
    %v628 = vunpack.c.l.b16 %v482
    %v629 = vunpack.c.h.b16 %v482
    %v630 = vunpack.c.l.b16 %v483
    %v631 = vunpack.c.h.b16 %v483
    %v632 = vunpack.c.l.b16 %v484
    %v633 = vunpack.c.h.b16 %v484
    %v634 = vunpack.c.l.b16 %v485
    %v635 = vunpack.c.h.b16 %v485
    %v636 = vunpack.c.l.b16 %v486
    %v637 = vunpack.c.h.b16 %v486
    %v638 = vunpack.c.l.b16 %v487
    %v639 = vunpack.c.h.b16 %v487
    %v640 = vunpack.c.l.b16 %v488
    %v641 = vunpack.c.h.b16 %v488
    %v642 = vunpack.c.l.b16 %v489
    %v643 = vunpack.c.h.b16 %v489
    %v644 = vpack.c.b16 %v630, %v628
    %v645 = vpack.c.b16 %v631, %v629
    %v646 = vpack.c.b16 %v634, %v632
    %v647 = vpack.c.b16 %v635, %v633
    %v648 = vpack.c.b16 %v638, %v636
    %v649 = vpack.c.b16 %v639, %v637
    %v650 = vpack.c.b16 %v642, %v640
    %v651 = vpack.c.b16 %v643, %v641
    %v658 = vsel %vm553, %v480, 0
    %v660 = vsel %vm553, %v481, 0
    %v663 = vsel %vm560, %v650, 0
    %v666 = vsel %vm560, %v651, 0
    %668 = vmatprep.subr.bf16.mxu0 %v645
    %669 = vmatpush1.bf16.msra.mxu0 %v644
    %670 = vmatprep.subr.bf16.mxu0 %v647
    %671 = vmatpush1.bf16.msra.mxu0 %v646
    %672 = vmatprep.subr.bf16.mxu0 %v649
    %673 = vmatpush1.bf16.msra.mxu0 %v648
    %674 = vmatprep.subr.bf16.mxu0 %v666
    %675 = vmatpush1.bf16.msra.mxu0 %v663
    %676 = vmatprep.subr.bf16.mxu0 0
    %677 = vmatpush1.bf16.msra.mxu0 0
    %678 = vmatprep.subr.bf16.mxu0 0
    %679 = vmatpush1.bf16.msra.mxu0 0
    %680 = vmatprep.subr.bf16.mxu0 0
    %681 = vmatpush1.bf16.msra.mxu0 0
    %682 = vmatprep.subr.bf16.mxu0 0
    %683 = vmatpush1.bf16.msra.mxu0 0
    %684 = vmatprep.subr.bf16.mxu0 0
    %685 = vmatpush1.bf16.msra.mxu0 0
    %686 = vmatprep.subr.bf16.mxu0 0
    %687 = vmatpush1.bf16.msra.mxu0 0
    %688 = vmatprep.subr.bf16.mxu0 0
    %689 = vmatpush1.bf16.msra.mxu0 0
    %690 = vmatprep.subr.bf16.mxu0 0
    %691 = vmatpush1.bf16.msra.mxu0 0
    %692 = vmatprep.subr.bf16.mxu0 0
    %693 = vmatpush1.bf16.msra.mxu0 0
    %694 = vmatprep.subr.bf16.mxu0 0
    %695 = vmatpush1.bf16.msra.mxu0 0
    %696 = vmatprep.subr.bf16.mxu0 0
    %697 = vmatpush1.bf16.msra.mxu0 0
    %698 = vmatprep.subr.bf16.mxu0 0
    %699 = vmatpush1.bf16.msra.mxu0 0
    %700 = vmatprep.mubr.bf16.mxu0 0
    %701 = vmatmul.mubr.bf16.gmra.mrb[0].mxu0 %v658
    %v702 = vpop.f32.mrb[0].mxu0
    %v703 = vadd.f32 %v602, %v702
    %v704 = vpop.f32.mrb[0].mxu0
    %v705 = vadd.f32 %v604, %v704
    %v706 = vpop.f32.mrb[0].mxu0
    %v707 = vadd.f32 %v606, %v706
    %v708 = vpop.f32.mrb[0].mxu0
    %v709 = vadd.f32 %v608, %v708
    %710 = vmatprep.mubr.bf16.mxu0 0
    %711 = vmatmul.mubr.bf16.gmra.mrb[0].mxu0 %v660
    %v712 = vpop.f32.mrb[0].mxu0
    %v713 = vadd.f32 %v612, %v712
    %v714 = vpop.f32.mrb[0].mxu0
    %v715 = vadd.f32 %v614, %v714
    %v716 = vpop.f32.mrb[0].mxu0
    %v717 = vadd.f32 %v616, %v716
    %v718 = vpop.f32.mrb[0].mxu0
    %v719 = vadd.f32 %v618, %v718
    %720 = vdwg.mxu0
    %s721 = scalar_lea.vmem [#allocation10], 128
    %v722 = vld [vmem:[%s721] sm:$0xff]
    %v723 = vld [vmem:[%s721 + $0x8] sm:$0xff]
    %v724 = vld [vmem:[%s721 + $0x10] sm:$0xff]
    %v725 = vld [vmem:[%s721 + $0x18] sm:$0xff]
    %v726 = vld [vmem:[%s721 + $0x20] sm:$0xff]
    %v727 = vld [vmem:[%s721 + $0x28] sm:$0xff]
    %v728 = vld [vmem:[%s721 + $0x30] sm:$0xff]
    %v729 = vld [vmem:[%s721 + $0x38] sm:$0x33]
    %vm732 = vcmask 1046528
    %v733 = vrot.slane %v480, 1
    %v734 = vrot.slane %v481, 1
    %v735 = vsel %vm732, %v733, %v734
    %v744 = vunpack.c.l.b16 %v722
    %v745 = vunpack.c.h.b16 %v722
    %v746 = vunpack.c.l.b16 %v723
    %v747 = vunpack.c.h.b16 %v723
    %v748 = vunpack.c.l.b16 %v724
    %v749 = vunpack.c.h.b16 %v724
    %v750 = vunpack.c.l.b16 %v725
    %v751 = vunpack.c.h.b16 %v725
    %v752 = vunpack.c.l.b16 %v726
    %v753 = vunpack.c.h.b16 %v726
    %v754 = vunpack.c.l.b16 %v727
    %v755 = vunpack.c.h.b16 %v727
    %v756 = vunpack.c.l.b16 %v728
    %v757 = vunpack.c.h.b16 %v728
    %v758 = vunpack.c.l.b16 %v729
    %v759 = vunpack.c.h.b16 %v729
    %v760 = vpack.c.b16 %v746, %v744
    %v761 = vpack.c.b16 %v747, %v745
    %v762 = vpack.c.b16 %v750, %v748
    %v763 = vpack.c.b16 %v751, %v749
    %v764 = vpack.c.b16 %v754, %v752
    %v765 = vpack.c.b16 %v755, %v753
    %v766 = vpack.c.b16 %v758, %v756
    %v767 = vpack.c.b16 %v759, %v757
    %v775 = vsel %vm553, %v735, 0
    %v778 = vsel %vm553, %v734, 0
    %v781 = vsel %vm560, %v766, 0
    %v784 = vsel %vm560, %v767, 0
    %786 = vmatprep.subr.bf16.mxu0 %v761
    %787 = vmatpush1.bf16.msra.mxu0 %v760
    %788 = vmatprep.subr.bf16.mxu0 %v763
    %789 = vmatpush1.bf16.msra.mxu0 %v762
    %790 = vmatprep.subr.bf16.mxu0 %v765
    %791 = vmatpush1.bf16.msra.mxu0 %v764
    %792 = vmatprep.subr.bf16.mxu0 %v784
    %793 = vmatpush1.bf16.msra.mxu0 %v781
    %794 = vmatprep.subr.bf16.mxu0 0
    %795 = vmatpush1.bf16.msra.mxu0 0
    %796 = vmatprep.subr.bf16.mxu0 0
    %797 = vmatpush1.bf16.msra.mxu0 0
    %798 = vmatprep.subr.bf16.mxu0 0
    %799 = vmatpush1.bf16.msra.mxu0 0
    %800 = vmatprep.subr.bf16.mxu0 0
    %801 = vmatpush1.bf16.msra.mxu0 0
    %802 = vmatprep.subr.bf16.mxu0 0
    %803 = vmatpush1.bf16.msra.mxu0 0
    %804 = vmatprep.subr.bf16.mxu0 0
    %805 = vmatpush1.bf16.msra.mxu0 0
    %806 = vmatprep.subr.bf16.mxu0 0
    %807 = vmatpush1.bf16.msra.mxu0 0
    %808 = vmatprep.subr.bf16.mxu0 0
    %809 = vmatpush1.bf16.msra.mxu0 0
    %810 = vmatprep.subr.bf16.mxu0 0
    %811 = vmatpush1.bf16.msra.mxu0 0
    %812 = vmatprep.subr.bf16.mxu0 0
    %813 = vmatpush1.bf16.msra.mxu0 0
    %814 = vmatprep.subr.bf16.mxu0 0
    %815 = vmatpush1.bf16.msra.mxu0 0
    %816 = vmatprep.subr.bf16.mxu0 0
    %817 = vmatpush1.bf16.msra.mxu0 0
    %818 = vmatprep.mubr.bf16.mxu0 0
    %819 = vmatmul.mubr.bf16.gmra.mrb[0].mxu0 %v775
    %v820 = vpop.f32.mrb[0].mxu0
    %v821 = vadd.f32 0.0, %v820
    %v822 = vpop.f32.mrb[0].mxu0
    %v823 = vadd.f32 0.0, %v822
    %v824 = vpop.f32.mrb[0].mxu0
    %v825 = vadd.f32 0.0, %v824
    %v826 = vpop.f32.mrb[0].mxu0
    %v827 = vadd.f32 0.0, %v826
    %828 = vmatprep.mubr.bf16.mxu0 0
    %829 = vmatmul.mubr.bf16.gmra.mrb[0].mxu0 %v778
    %v830 = vpop.f32.mrb[0].mxu0
    %v831 = vadd.f32 0.0, %v830
    %v832 = vpop.f32.mrb[0].mxu0
    %v833 = vadd.f32 0.0, %v832
    %v834 = vpop.f32.mrb[0].mxu0
    %v835 = vadd.f32 0.0, %v834
    %v836 = vpop.f32.mrb[0].mxu0
    %v837 = vadd.f32 0.0, %v836
    %838 = vdwg.mxu0
    %v839 = vadd.f32 %v703, %v821
    %v840 = vadd.f32 %v705, %v823
    %v841 = vadd.f32 %v707, %v825
    %v842 = vadd.f32 %v709, %v827
    %v843 = vadd.f32 %v713, %v831
    %v844 = vadd.f32 %v715, %v833
    %v845 = vadd.f32 %v717, %v835
    %v846 = vadd.f32 %v719, %v837
    %v848 = vlaneseq
    %v849 = vshrl.u32 %v848, 7
    %v850 = vsub.s32 0, %v849
    %v851 = vrot.slane %v458, %v850
    %v852 = vlaneseq
    %v853 = vshrl.u32 %v852, 7
    %v854 = vsub.s32 1, %v853
    %v855 = vrot.slane %v458, %v854
    %v858 = vadd.f32 %v839, %v851
    %v859 = vadd.f32 %v840, %v855
    %v860 = vadd.f32 %v841, %v851
    %v861 = vadd.f32 %v842, %v855
    %v862 = vadd.f32 %v843, %v851
    %v863 = vadd.f32 %v844, %v855
    %v864 = vadd.f32 %v845, %v851
    %v865 = vadd.f32 %v846, %v855
    %v866 = vmax.f32 %v858, 0.0
    %v867 = vmax.f32 %v859, 0.0
    %v868 = vmax.f32 %v860, 0.0
    %v869 = vmax.f32 %v861, 0.0
    %v870 = vmax.f32 %v862, 0.0
    %v871 = vmax.f32 %v863, 0.0
    %v872 = vmax.f32 %v864, 0.0
    %v873 = vmax.f32 %v865, 0.0
    %v874 = vpack.c.bf16 %v868, %v866
    %v875 = vpack.c.bf16 %v869, %v867
    %v876 = vpack.c.bf16 %v872, %v870
    %v877 = vpack.c.bf16 %v873, %v871
    %v878 = vld [vmem:[#allocation11] sm:$0xff]
    %v879 = vld [vmem:[#allocation11 + $0x8] sm:$0xf]
    %v880 = vld [vmem:[#allocation11 + $0xc] sm:$0xff]
    %v881 = vld [vmem:[#allocation11 + $0x14] sm:$0xf]
    %v882 = vld [vmem:[#allocation11 + $0x18] sm:$0xff]
    %v883 = vld [vmem:[#allocation11 + $0x20] sm:$0xf]
    %v884 = vld [vmem:[#allocation11 + $0x24] sm:$0xff]
    %v885 = vld [vmem:[#allocation11 + $0x2c] sm:$0xf]
    %v886 = vld [vmem:[#allocation11 + $0x30] sm:$0xff]
    %v887 = vld [vmem:[#allocation11 + $0x38] sm:$0xf]
    %v888 = vld [vmem:[#allocation11 + $0x3c] sm:$0xff]
    %v889 = vld [vmem:[#allocation11 + $0x44] sm:$0xf]
    %v890 = vld [vmem:[#allocation11 + $0x48] sm:$0xff]
    %v891 = vld [vmem:[#allocation11 + $0x50] sm:$0xf]
    %v892 = vld [vmem:[#allocation11 + $0x54] sm:$0xff]
    %v893 = vld [vmem:[#allocation11 + $0x5c] sm:$0xf]
    %v894 = vld [vmem:[#allocation11 + $0x60] sm:$0xff]
    %v895 = vld [vmem:[#allocation11 + $0x68] sm:$0xf]
    %v896 = vld [vmem:[#allocation11 + $0x6c] sm:$0xff]
    %v897 = vld [vmem:[#allocation11 + $0x74] sm:$0xf]
    %v898 = vld [vmem:[#allocation11 + $0x78] sm:$0xff]
    %v899 = vld [vmem:[#allocation11 + $0x80] sm:$0xf]
    %v900 = vld [vmem:[#allocation11 + $0x84] sm:$0xff]
    %v901 = vld [vmem:[#allocation11 + $0x8c] sm:$0xf]
    %v902 = vld [vmem:[#allocation11 + $0x90] sm:$0xff]
    %v903 = vld [vmem:[#allocation11 + $0x98] sm:$0xf]
    %v904 = vld [vmem:[#allocation11 + $0x9c] sm:$0xff]
    %v905 = vld [vmem:[#allocation11 + $0xa4] sm:$0xf]
    %v906 = vld [vmem:[#allocation11 + $0xa8] sm:$0xff]
    %v907 = vld [vmem:[#allocation11 + $0xb0] sm:$0xf]
    %v908 = vld [vmem:[#allocation11 + $0xb4] sm:$0xff]
    %v909 = vld [vmem:[#allocation11 + $0xbc] sm:$0xf]
    %v910 = vld [vmem:[#allocation11 + $0xc0] sm:$0xff]
    %v911 = vld [vmem:[#allocation11 + $0xc8] sm:$0xf]
    %v912 = vld [vmem:[#allocation11 + $0xcc] sm:$0xff]
    %v913 = vld [vmem:[#allocation11 + $0xd4] sm:$0xf]
    %v914 = vld [vmem:[#allocation11 + $0xd8] sm:$0xff]
    %v915 = vld [vmem:[#allocation11 + $0xe0] sm:$0xf]
    %v916 = vld [vmem:[#allocation11 + $0xe4] sm:$0xff]
    %v917 = vld [vmem:[#allocation11 + $0xec] sm:$0xf]
    %v918 = vld [vmem:[#allocation11 + $0xf0] sm:$0xff]
    %v919 = vld [vmem:[#allocation11 + $0xf8] sm:$0xf]
    %v920 = vld [vmem:[#allocation11 + $0xfc] sm:$0xff]
    %v921 = vld [vmem:[#allocation11 + $0x104] sm:$0xf]
    %v922 = vld [vmem:[#allocation11 + $0x108] sm:$0xff]
    %v923 = vld [vmem:[#allocation11 + $0x110] sm:$0xf]
    %v924 = vld [vmem:[#allocation11 + $0x114] sm:$0xff]
    %v925 = vld [vmem:[#allocation11 + $0x11c] sm:$0xf]
    %v926 = vld [vmem:[#allocation11 + $0x120] sm:$0xff]
    %v927 = vld [vmem:[#allocation11 + $0x128] sm:$0xf]
    %v928 = vld [vmem:[#allocation11 + $0x12c] sm:$0xff]
    %v929 = vld [vmem:[#allocation11 + $0x134] sm:$0xf]
    %s930 = scalar_lea.vmem [#allocation11], 312
    %v931 = vld [vmem:[%s930] sm:$0xff]
    %v932 = vld [vmem:[%s930 + $0x8] sm:$0xf]
    %v933 = vld [vmem:[%s930 + $0xc] sm:$0xff]
    %v934 = vld [vmem:[%s930 + $0x14] sm:$0xf]
    %v935 = vld [vmem:[%s930 + $0x18] sm:$0xff]
    %v936 = vld [vmem:[%s930 + $0x20] sm:$0xf]
    %v937 = vld [vmem:[%s930 + $0x24] sm:$0xff]
    %v938 = vld [vmem:[%s930 + $0x2c] sm:$0xf]
    %v939 = vld [vmem:[%s930 + $0x30] sm:$0xff]
    %v940 = vld [vmem:[%s930 + $0x38] sm:$0xf]
    %v941 = vld [vmem:[%s930 + $0x3c] sm:$0xff]
    %v942 = vld [vmem:[%s930 + $0x44] sm:$0xf]
    %v943 = vld [vmem:[%s930 + $0x48] sm:$0xff]
    %v944 = vld [vmem:[%s930 + $0x50] sm:$0xf]
    %v945 = vld [vmem:[%s930 + $0x54] sm:$0xff]
    %v946 = vld [vmem:[%s930 + $0x5c] sm:$0xf]
    %v947 = vld [vmem:[%s930 + $0x60] sm:$0xff]
    %v948 = vld [vmem:[%s930 + $0x68] sm:$0xf]
    %v949 = vld [vmem:[%s930 + $0x6c] sm:$0xff]
    %v950 = vld [vmem:[%s930 + $0x74] sm:$0xf]
    %v951 = vld [vmem:[%s930 + $0x78] sm:$0xff]
    %v952 = vld [vmem:[%s930 + $0x80] sm:$0xf]
    %v953 = vld [vmem:[%s930 + $0x84] sm:$0xff]
    %v954 = vld [vmem:[%s930 + $0x8c] sm:$0xf]
    %v955 = vld [vmem:[%s930 + $0x90] sm:$0xff]
    %v956 = vld [vmem:[%s930 + $0x98] sm:$0xf]
    %v957 = vld [vmem:[%s930 + $0x9c] sm:$0xff]
    %v958 = vld [vmem:[%s930 + $0xa4] sm:$0xf]
    %v959 = vld [vmem:[%s930 + $0xa8] sm:$0xff]
    %v960 = vld [vmem:[%s930 + $0xb0] sm:$0xf]
    %v961 = vld [vmem:[%s930 + $0xb4] sm:$0xff]
    %v962 = vld [vmem:[%s930 + $0xbc] sm:$0xf]
    %v963 = vld [vmem:[%s930 + $0xc0] sm:$0xff]
    %v964 = vld [vmem:[%s930 + $0xc8] sm:$0xf]
    %v965 = vld [vmem:[%s930 + $0xcc] sm:$0xff]
    %v966 = vld [vmem:[%s930 + $0xd4] sm:$0xf]
    %v967 = vld [vmem:[%s930 + $0xd8] sm:$0xff]
    %v968 = vld [vmem:[%s930 + $0xe0] sm:$0xf]
    %v969 = vld [vmem:[%s930 + $0xe4] sm:$0xff]
    %v970 = vld [vmem:[%s930 + $0xec] sm:$0xf]
    %v971 = vld [vmem:[%s930 + $0xf0] sm:$0xff]
    %v972 = vld [vmem:[%s930 + $0xf8] sm:$0xf]
    %v973 = vld [vmem:[%s930 + $0xfc] sm:$0xff]
    %v974 = vld [vmem:[%s930 + $0x104] sm:$0xf]
    %v975 = vld [vmem:[%s930 + $0x108] sm:$0xff]
    %v976 = vld [vmem:[%s930 + $0x110] sm:$0xf]
    %v977 = vld [vmem:[%s930 + $0x114] sm:$0xff]
    %v978 = vld [vmem:[%s930 + $0x11c] sm:$0xf]
    %v979 = vld [vmem:[%s930 + $0x120] sm:$0xff]
    %v980 = vld [vmem:[%s930 + $0x128] sm:$0xf]
    %v981 = vld [vmem:[%s930 + $0x12c] sm:$0xff]
    %v982 = vld [vmem:[%s930 + $0x134] sm:$0xf]
    %v984 = vshrl.u32 %v874, 16
    %v986 = vshll.u32 %v874, 16
    %v988 = vrot.slane %v986, 1
    %v989 = vor.u32 %v984, %v988
    %v991 = vshll.u32 %v876, 16
    %v993 = vrot.slane %v991, 1
    %v994 = vsel %vm499, %v989, %v993
    %v996 = vshrl.u32 %v875, 16
    %v998 = vshll.u32 %v875, 16
    %v1000 = vrot.slane %v998, 1
    %v1001 = vor.u32 %v996, %v1000
    %v1003 = vshll.u32 %v877, 16
    %v1005 = vrot.slane %v1003, 1
    %v1006 = vsel %vm499, %v1001, %v1005
    %v1007 = vshrl.u32 %v876, 16
    %v1009 = vor.u32 %v1007, %v993
    %v1010 = vshrl.u32 %v877, 16
    %v1012 = vor.u32 %v1010, %v1005
    %v1067 = vunpack.c.l.b16 %v931
    %v1068 = vunpack.c.h.b16 %v931
    %v1069 = vunpack.c.l.b16 %v932
    %v1070 = vunpack.c.l.b16 %v933
    %v1071 = vunpack.c.h.b16 %v933
    %v1072 = vunpack.c.l.b16 %v934
    %v1073 = vunpack.c.l.b16 %v935
    %v1074 = vunpack.c.h.b16 %v935
    %v1075 = vunpack.c.l.b16 %v936
    %v1076 = vunpack.c.l.b16 %v937
    %v1077 = vunpack.c.h.b16 %v937
    %v1078 = vunpack.c.l.b16 %v938
    %v1079 = vunpack.c.l.b16 %v939
    %v1080 = vunpack.c.h.b16 %v939
    %v1081 = vunpack.c.l.b16 %v940
    %v1082 = vunpack.c.l.b16 %v941
    %v1083 = vunpack.c.h.b16 %v941
    %v1084 = vunpack.c.l.b16 %v942
    %v1085 = vunpack.c.l.b16 %v943
    %v1086 = vunpack.c.h.b16 %v943
    %v1087 = vunpack.c.l.b16 %v944
    %v1088 = vunpack.c.l.b16 %v945
    %v1089 = vunpack.c.h.b16 %v945
    %v1090 = vunpack.c.l.b16 %v946
    %v1091 = vunpack.c.l.b16 %v947
    %v1092 = vunpack.c.h.b16 %v947
    %v1093 = vunpack.c.l.b16 %v948
    %v1094 = vunpack.c.l.b16 %v949
    %v1095 = vunpack.c.h.b16 %v949
    %v1096 = vunpack.c.l.b16 %v950
    %v1097 = vunpack.c.l.b16 %v951
    %v1098 = vunpack.c.h.b16 %v951
    %v1099 = vunpack.c.l.b16 %v952
    %v1100 = vunpack.c.l.b16 %v953
    %v1101 = vunpack.c.h.b16 %v953
    %v1102 = vunpack.c.l.b16 %v954
    %v1103 = vunpack.c.l.b16 %v955
    %v1104 = vunpack.c.h.b16 %v955
    %v1105 = vunpack.c.l.b16 %v956
    %v1106 = vunpack.c.l.b16 %v957
    %v1107 = vunpack.c.h.b16 %v957
    %v1108 = vunpack.c.l.b16 %v958
    %v1109 = vunpack.c.l.b16 %v959
    %v1110 = vunpack.c.h.b16 %v959
    %v1111 = vunpack.c.l.b16 %v960
    %v1112 = vunpack.c.l.b16 %v961
    %v1113 = vunpack.c.h.b16 %v961
    %v1114 = vunpack.c.l.b16 %v962
    %v1115 = vunpack.c.l.b16 %v963
    %v1116 = vunpack.c.h.b16 %v963
    %v1117 = vunpack.c.l.b16 %v964
    %v1118 = vunpack.c.l.b16 %v965
    %v1119 = vunpack.c.h.b16 %v965
    %v1120 = vunpack.c.l.b16 %v966
    %v1121 = vunpack.c.l.b16 %v967
    %v1122 = vunpack.c.h.b16 %v967
    %v1123 = vunpack.c.l.b16 %v968
    %v1124 = vunpack.c.l.b16 %v969
    %v1125 = vunpack.c.h.b16 %v969
    %v1126 = vunpack.c.l.b16 %v970
    %v1127 = vunpack.c.l.b16 %v971
    %v1128 = vunpack.c.h.b16 %v971
    %v1129 = vunpack.c.l.b16 %v972
    %v1130 = vunpack.c.l.b16 %v973
    %v1131 = vunpack.c.h.b16 %v973
    %v1132 = vunpack.c.l.b16 %v974
    %v1133 = vunpack.c.l.b16 %v975
    %v1134 = vunpack.c.h.b16 %v975
    %v1135 = vunpack.c.l.b16 %v976
    %v1136 = vunpack.c.l.b16 %v977
    %v1137 = vunpack.c.h.b16 %v977
    %v1138 = vunpack.c.l.b16 %v978
    %v1139 = vunpack.c.l.b16 %v979
    %v1140 = vunpack.c.h.b16 %v979
    %v1141 = vunpack.c.l.b16 %v980
    %v1142 = vunpack.c.l.b16 %v981
    %v1143 = vunpack.c.h.b16 %v981
    %v1144 = vunpack.c.l.b16 %v982
    %v1145 = vpack.c.b16 %v1070, %v1067
    %v1146 = vpack.c.b16 %v1071, %v1068
    %v1147 = vpack.c.b16 %v1072, %v1069
    %v1148 = vpack.c.b16 %v1076, %v1073
    %v1149 = vpack.c.b16 %v1077, %v1074
    %v1150 = vpack.c.b16 %v1078, %v1075
    %v1151 = vpack.c.b16 %v1082, %v1079
    %v1152 = vpack.c.b16 %v1083, %v1080
    %v1153 = vpack.c.b16 %v1084, %v1081
    %v1154 = vpack.c.b16 %v1088, %v1085
    %v1155 = vpack.c.b16 %v1089, %v1086
    %v1156 = vpack.c.b16 %v1090, %v1087
    %v1157 = vpack.c.b16 %v1094, %v1091
    %v1158 = vpack.c.b16 %v1095, %v1092
    %v1159 = vpack.c.b16 %v1096, %v1093
    %v1160 = vpack.c.b16 %v1100, %v1097
    %v1161 = vpack.c.b16 %v1101, %v1098
    %v1162 = vpack.c.b16 %v1102, %v1099
    %v1163 = vpack.c.b16 %v1106, %v1103
    %v1164 = vpack.c.b16 %v1107, %v1104
    %v1165 = vpack.c.b16 %v1108, %v1105
    %v1166 = vpack.c.b16 %v1112, %v1109
    %v1167 = vpack.c.b16 %v1113, %v1110
    %v1168 = vpack.c.b16 %v1114, %v1111
    %v1169 = vpack.c.b16 %v1118, %v1115
    %v1170 = vpack.c.b16 %v1119, %v1116
    %v1171 = vpack.c.b16 %v1120, %v1117
    %v1172 = vpack.c.b16 %v1124, %v1121
    %v1173 = vpack.c.b16 %v1125, %v1122
    %v1174 = vpack.c.b16 %v1126, %v1123
    %v1175 = vpack.c.b16 %v1130, %v1127
    %v1176 = vpack.c.b16 %v1131, %v1128
    %v1177 = vpack.c.b16 %v1132, %v1129
    %v1178 = vpack.c.b16 %v1136, %v1133
    %v1179 = vpack.c.b16 %v1137, %v1134
    %v1180 = vpack.c.b16 %v1138, %v1135
    %v1181 = vpack.c.b16 %v1142, %v1139
    %v1182 = vpack.c.b16 %v1143, %v1140
    %v1183 = vpack.c.b16 %v1144, %v1141
    %vm1223 = vcmask 654336
    %v1225 = vsel %vm1223, %v1006, 0
    %v1228 = vsel %vm1223, %v1012, 0
    %1230 = vmatprep.subr.bf16.mxu0 %v1146
    %1231 = vmatpush1.bf16.msra.mxu0 %v1145
    %1232 = vmatprep.subr.bf16.mxu0 %v1149
    %1233 = vmatpush1.bf16.msra.mxu0 %v1148
    %1234 = vmatprep.subr.bf16.mxu0 %v1152
    %1235 = vmatpush1.bf16.msra.mxu0 %v1151
    %1236 = vmatprep.subr.bf16.mxu0 %v1155
    %1237 = vmatpush1.bf16.msra.mxu0 %v1154
    %1238 = vmatprep.subr.bf16.mxu0 %v1158
    %1239 = vmatpush1.bf16.msra.mxu0 %v1157
    %1240 = vmatprep.subr.bf16.mxu0 %v1161
    %1241 = vmatpush1.bf16.msra.mxu0 %v1160
    %1242 = vmatprep.subr.bf16.mxu0 %v1164
    %1243 = vmatpush1.bf16.msra.mxu0 %v1163
    %1244 = vmatprep.subr.bf16.mxu0 %v1167
    %1245 = vmatpush1.bf16.msra.mxu0 %v1166
    %1246 = vmatprep.subr.bf16.mxu0 %v1170
    %1247 = vmatpush1.bf16.msra.mxu0 %v1169
    %1248 = vmatprep.subr.bf16.mxu0 %v1173
    %1249 = vmatpush1.bf16.msra.mxu0 %v1172
    %1250 = vmatprep.subr.bf16.mxu0 %v1176
    %1251 = vmatpush1.bf16.msra.mxu0 %v1175
    %1252 = vmatprep.subr.bf16.mxu0 %v1179
    %1253 = vmatpush1.bf16.msra.mxu0 %v1178
    %1254 = vmatprep.subr.bf16.mxu0 %v1182
    %1255 = vmatpush1.bf16.msra.mxu0 %v1181
    %1256 = vmatprep.subr.bf16.mxu0 0
    %1257 = vmatpush1.bf16.msra.mxu0 0
    %1258 = vmatprep.subr.bf16.mxu0 0
    %1259 = vmatpush1.bf16.msra.mxu0 0
    %1260 = vmatprep.subr.bf16.mxu0 0
    %1261 = vmatpush1.bf16.msra.mxu0 0
    %1262 = vmatprep.mubr.bf16.mxu0 %v1225
    %1263 = vmatmul.mubr.bf16.gmra.mrb[0].mxu0 %v994
    %v1264 = vpop.f32.mrb[0].mxu0
    %v1265 = vadd.f32 0.0, %v1264
    %v1266 = vpop.f32.mrb[0].mxu0
    %v1267 = vadd.f32 0.0, %v1266
    %v1268 = vpop.f32.mrb[0].mxu0
    %v1269 = vadd.f32 0.0, %v1268
    %v1270 = vpop.f32.mrb[0].mxu0
    %v1271 = vadd.f32 0.0, %v1270
    %1272 = vmatprep.mubr.bf16.mxu0 %v1228
    %1273 = vmatmul.mubr.bf16.gmra.mrb[0].mxu0 %v1009
    %v1274 = vpop.f32.mrb[0].mxu0
    %v1275 = vadd.f32 0.0, %v1274
    %v1276 = vpop.f32.mrb[0].mxu0
    %v1277 = vadd.f32 0.0, %v1276
    %v1278 = vpop.f32.mrb[0].mxu0
    %v1279 = vadd.f32 0.0, %v1278
    %v1280 = vpop.f32.mrb[0].mxu0
    %v1281 = vadd.f32 0.0, %v1280
    %1282 = vdwg.mxu0
    %1283 = vmatprep.subr.bf16.mxu0 0
    %1284 = vmatpush1.bf16.msra.mxu0 %v1147
    %1285 = vmatprep.subr.bf16.mxu0 0
    %1286 = vmatpush1.bf16.msra.mxu0 %v1150
    %1287 = vmatprep.subr.bf16.mxu0 0
    %1288 = vmatpush1.bf16.msra.mxu0 %v1153
    %1289 = vmatprep.subr.bf16.mxu0 0
    %1290 = vmatpush1.bf16.msra.mxu0 %v1156
    %1291 = vmatprep.subr.bf16.mxu0 0
    %1292 = vmatpush1.bf16.msra.mxu0 %v1159
    %1293 = vmatprep.subr.bf16.mxu0 0
    %1294 = vmatpush1.bf16.msra.mxu0 %v1162
    %1295 = vmatprep.subr.bf16.mxu0 0
    %1296 = vmatpush1.bf16.msra.mxu0 %v1165
    %1297 = vmatprep.subr.bf16.mxu0 0
    %1298 = vmatpush1.bf16.msra.mxu0 %v1168
    %1299 = vmatprep.subr.bf16.mxu0 0
    %1300 = vmatpush1.bf16.msra.mxu0 %v1171
    %1301 = vmatprep.subr.bf16.mxu0 0
    %1302 = vmatpush1.bf16.msra.mxu0 %v1174
    %1303 = vmatprep.subr.bf16.mxu0 0
    %1304 = vmatpush1.bf16.msra.mxu0 %v1177
    %1305 = vmatprep.subr.bf16.mxu0 0
    %1306 = vmatpush1.bf16.msra.mxu0 %v1180
    %1307 = vmatprep.subr.bf16.mxu0 0
    %1308 = vmatpush1.bf16.msra.mxu0 %v1183
    %1309 = vmatprep.subr.bf16.mxu0 0
    %1310 = vmatpush1.bf16.msra.mxu0 0
    %1311 = vmatprep.subr.bf16.mxu0 0
    %1312 = vmatpush1.bf16.msra.mxu0 0
    %1313 = vmatprep.subr.bf16.mxu0 0
    %1314 = vmatpush1.bf16.msra.mxu0 0
    %1315 = vmatprep.mubr.bf16.mxu0 %v1225
    %1316 = vmatmul.mubr.bf16.gmra.mrb[0].mxu0 %v994
    %v1317 = vpop.f32.mrb[0].mxu0
    %v1318 = vadd.f32 0.0, %v1317
    %v1319 = vpop.f32.mrb[0].mxu0
    %v1320 = vpop.f32.mrb[0].mxu0
    %v1321 = vadd.f32 0.0, %v1320
    %v1322 = vpop.f32.mrb[0].mxu0
    %1323 = vmatprep.mubr.bf16.mxu0 %v1228
    %1324 = vmatmul.mubr.bf16.gmra.mrb[0].mxu0 %v1009
    %v1325 = vpop.f32.mrb[0].mxu0
    %v1326 = vadd.f32 0.0, %v1325
    %v1327 = vpop.f32.mrb[0].mxu0
    %v1328 = vpop.f32.mrb[0].mxu0
    %v1329 = vadd.f32 0.0, %v1328
    %v1330 = vpop.f32.mrb[0].mxu0
    %1331 = vdwg.mxu0
    %v1384 = vunpack.c.l.b16 %v878
    %v1385 = vunpack.c.h.b16 %v878
    %v1386 = vunpack.c.l.b16 %v879
    %v1387 = vunpack.c.l.b16 %v880
    %v1388 = vunpack.c.h.b16 %v880
    %v1389 = vunpack.c.l.b16 %v881
    %v1390 = vunpack.c.l.b16 %v882
    %v1391 = vunpack.c.h.b16 %v882
    %v1392 = vunpack.c.l.b16 %v883
    %v1393 = vunpack.c.l.b16 %v884
    %v1394 = vunpack.c.h.b16 %v884
    %v1395 = vunpack.c.l.b16 %v885
    %v1396 = vunpack.c.l.b16 %v886
    %v1397 = vunpack.c.h.b16 %v886
    %v1398 = vunpack.c.l.b16 %v887
    %v1399 = vunpack.c.l.b16 %v888
    %v1400 = vunpack.c.h.b16 %v888
    %v1401 = vunpack.c.l.b16 %v889
    %v1402 = vunpack.c.l.b16 %v890
    %v1403 = vunpack.c.h.b16 %v890
    %v1404 = vunpack.c.l.b16 %v891
    %v1405 = vunpack.c.l.b16 %v892
    %v1406 = vunpack.c.h.b16 %v892
    %v1407 = vunpack.c.l.b16 %v893
    %v1408 = vunpack.c.l.b16 %v894
    %v1409 = vunpack.c.h.b16 %v894
    %v1410 = vunpack.c.l.b16 %v895
    %v1411 = vunpack.c.l.b16 %v896
    %v1412 = vunpack.c.h.b16 %v896
    %v1413 = vunpack.c.l.b16 %v897
    %v1414 = vunpack.c.l.b16 %v898
    %v1415 = vunpack.c.h.b16 %v898
    %v1416 = vunpack.c.l.b16 %v899
    %v1417 = vunpack.c.l.b16 %v900
    %v1418 = vunpack.c.h.b16 %v900
    %v1419 = vunpack.c.l.b16 %v901
    %v1420 = vunpack.c.l.b16 %v902
    %v1421 = vunpack.c.h.b16 %v902
    %v1422 = vunpack.c.l.b16 %v903
    %v1423 = vunpack.c.l.b16 %v904
    %v1424 = vunpack.c.h.b16 %v904
    %v1425 = vunpack.c.l.b16 %v905
    %v1426 = vunpack.c.l.b16 %v906
    %v1427 = vunpack.c.h.b16 %v906
    %v1428 = vunpack.c.l.b16 %v907
    %v1429 = vunpack.c.l.b16 %v908
    %v1430 = vunpack.c.h.b16 %v908
    %v1431 = vunpack.c.l.b16 %v909
    %v1432 = vunpack.c.l.b16 %v910
    %v1433 = vunpack.c.h.b16 %v910
    %v1434 = vunpack.c.l.b16 %v911
    %v1435 = vunpack.c.l.b16 %v912
    %v1436 = vunpack.c.h.b16 %v912
    %v1437 = vunpack.c.l.b16 %v913
    %v1438 = vunpack.c.l.b16 %v914
    %v1439 = vunpack.c.h.b16 %v914
    %v1440 = vunpack.c.l.b16 %v915
    %v1441 = vunpack.c.l.b16 %v916
    %v1442 = vunpack.c.h.b16 %v916
    %v1443 = vunpack.c.l.b16 %v917
    %v1444 = vunpack.c.l.b16 %v918
    %v1445 = vunpack.c.h.b16 %v918
    %v1446 = vunpack.c.l.b16 %v919
    %v1447 = vunpack.c.l.b16 %v920
    %v1448 = vunpack.c.h.b16 %v920
    %v1449 = vunpack.c.l.b16 %v921
    %v1450 = vunpack.c.l.b16 %v922
    %v1451 = vunpack.c.h.b16 %v922
    %v1452 = vunpack.c.l.b16 %v923
    %v1453 = vunpack.c.l.b16 %v924
    %v1454 = vunpack.c.h.b16 %v924
    %v1455 = vunpack.c.l.b16 %v925
    %v1456 = vunpack.c.l.b16 %v926
    %v1457 = vunpack.c.h.b16 %v926
    %v1458 = vunpack.c.l.b16 %v927
    %v1459 = vunpack.c.l.b16 %v928
    %v1460 = vunpack.c.h.b16 %v928
    %v1461 = vunpack.c.l.b16 %v929
    %v1462 = vpack.c.b16 %v1387, %v1384
    %v1463 = vpack.c.b16 %v1388, %v1385
    %v1464 = vpack.c.b16 %v1389, %v1386
    %v1465 = vpack.c.b16 %v1393, %v1390
    %v1466 = vpack.c.b16 %v1394, %v1391
    %v1467 = vpack.c.b16 %v1395, %v1392
    %v1468 = vpack.c.b16 %v1399, %v1396
    %v1469 = vpack.c.b16 %v1400, %v1397
    %v1470 = vpack.c.b16 %v1401, %v1398
    %v1471 = vpack.c.b16 %v1405, %v1402
    %v1472 = vpack.c.b16 %v1406, %v1403
    %v1473 = vpack.c.b16 %v1407, %v1404
    %v1474 = vpack.c.b16 %v1411, %v1408
    %v1475 = vpack.c.b16 %v1412, %v1409
    %v1476 = vpack.c.b16 %v1413, %v1410
    %v1477 = vpack.c.b16 %v1417, %v1414
    %v1478 = vpack.c.b16 %v1418, %v1415
    %v1479 = vpack.c.b16 %v1419, %v1416
    %v1480 = vpack.c.b16 %v1423, %v1420
    %v1481 = vpack.c.b16 %v1424, %v1421
    %v1482 = vpack.c.b16 %v1425, %v1422
    %v1483 = vpack.c.b16 %v1429, %v1426
    %v1484 = vpack.c.b16 %v1430, %v1427
    %v1485 = vpack.c.b16 %v1431, %v1428
    %v1486 = vpack.c.b16 %v1435, %v1432
    %v1487 = vpack.c.b16 %v1436, %v1433
    %v1488 = vpack.c.b16 %v1437, %v1434
    %v1489 = vpack.c.b16 %v1441, %v1438
    %v1490 = vpack.c.b16 %v1442, %v1439
    %v1491 = vpack.c.b16 %v1443, %v1440
    %v1492 = vpack.c.b16 %v1447, %v1444
    %v1493 = vpack.c.b16 %v1448, %v1445
    %v1494 = vpack.c.b16 %v1449, %v1446
    %v1495 = vpack.c.b16 %v1453, %v1450
    %v1496 = vpack.c.b16 %v1454, %v1451
    %v1497 = vpack.c.b16 %v1455, %v1452
    %v1498 = vpack.c.b16 %v1459, %v1456
    %v1499 = vpack.c.b16 %v1460, %v1457
    %v1500 = vpack.c.b16 %v1461, %v1458
    %v1540 = vsel %vm1223, %v875, 0
    %v1542 = vsel %vm1223, %v877, 0
    %1544 = vmatprep.subr.bf16.mxu0 %v1463
    %1545 = vmatpush1.bf16.msra.mxu0 %v1462
    %1546 = vmatprep.subr.bf16.mxu0 %v1466
    %1547 = vmatpush1.bf16.msra.mxu0 %v1465
    %1548 = vmatprep.subr.bf16.mxu0 %v1469
    %1549 = vmatpush1.bf16.msra.mxu0 %v1468
    %1550 = vmatprep.subr.bf16.mxu0 %v1472
    %1551 = vmatpush1.bf16.msra.mxu0 %v1471
    %1552 = vmatprep.subr.bf16.mxu0 %v1475
    %1553 = vmatpush1.bf16.msra.mxu0 %v1474
    %1554 = vmatprep.subr.bf16.mxu0 %v1478
    %1555 = vmatpush1.bf16.msra.mxu0 %v1477
    %1556 = vmatprep.subr.bf16.mxu0 %v1481
    %1557 = vmatpush1.bf16.msra.mxu0 %v1480
    %1558 = vmatprep.subr.bf16.mxu0 %v1484
    %1559 = vmatpush1.bf16.msra.mxu0 %v1483
    %1560 = vmatprep.subr.bf16.mxu0 %v1487
    %1561 = vmatpush1.bf16.msra.mxu0 %v1486
    %1562 = vmatprep.subr.bf16.mxu0 %v1490
    %1563 = vmatpush1.bf16.msra.mxu0 %v1489
    %1564 = vmatprep.subr.bf16.mxu0 %v1493
    %1565 = vmatpush1.bf16.msra.mxu0 %v1492
    %1566 = vmatprep.subr.bf16.mxu0 %v1496
    %1567 = vmatpush1.bf16.msra.mxu0 %v1495
    %1568 = vmatprep.subr.bf16.mxu0 %v1499
    %1569 = vmatpush1.bf16.msra.mxu0 %v1498
    %1570 = vmatprep.subr.bf16.mxu0 0
    %1571 = vmatpush1.bf16.msra.mxu0 0
    %1572 = vmatprep.subr.bf16.mxu0 0
    %1573 = vmatpush1.bf16.msra.mxu0 0
    %1574 = vmatprep.subr.bf16.mxu0 0
    %1575 = vmatpush1.bf16.msra.mxu0 0
    %1576 = vmatprep.mubr.bf16.mxu0 %v1540
    %1577 = vmatmul.mubr.bf16.gmra.mrb[0].mxu0 %v874
    %v1578 = vpop.f32.mrb[0].mxu0
    %v1579 = vadd.f32 %v1265, %v1578
    %v1580 = vpop.f32.mrb[0].mxu0
    %v1581 = vadd.f32 %v1267, %v1580
    %v1582 = vpop.f32.mrb[0].mxu0
    %v1583 = vadd.f32 %v1269, %v1582
    %v1584 = vpop.f32.mrb[0].mxu0
    %v1585 = vadd.f32 %v1271, %v1584
    %1586 = vmatprep.mubr.bf16.mxu0 %v1542
    %1587 = vmatmul.mubr.bf16.gmra.mrb[0].mxu0 %v876
    %v1588 = vpop.f32.mrb[0].mxu0
    %v1589 = vadd.f32 %v1275, %v1588
    %v1590 = vpop.f32.mrb[0].mxu0
    %v1591 = vadd.f32 %v1277, %v1590
    %v1592 = vpop.f32.mrb[0].mxu0
    %v1593 = vadd.f32 %v1279, %v1592
    %v1594 = vpop.f32.mrb[0].mxu0
    %v1595 = vadd.f32 %v1281, %v1594
    %1596 = vdwg.mxu0
    %1597 = vmatprep.subr.bf16.mxu0 0
    %1598 = vmatpush1.bf16.msra.mxu0 %v1464
    %1599 = vmatprep.subr.bf16.mxu0 0
    %1600 = vmatpush1.bf16.msra.mxu0 %v1467
    %1601 = vmatprep.subr.bf16.mxu0 0
    %1602 = vmatpush1.bf16.msra.mxu0 %v1470
    %1603 = vmatprep.subr.bf16.mxu0 0
    %1604 = vmatpush1.bf16.msra.mxu0 %v1473
    %1605 = vmatprep.subr.bf16.mxu0 0
    %1606 = vmatpush1.bf16.msra.mxu0 %v1476
    %1607 = vmatprep.subr.bf16.mxu0 0
    %1608 = vmatpush1.bf16.msra.mxu0 %v1479
    %1609 = vmatprep.subr.bf16.mxu0 0
    %1610 = vmatpush1.bf16.msra.mxu0 %v1482
    %1611 = vmatprep.subr.bf16.mxu0 0
    %1612 = vmatpush1.bf16.msra.mxu0 %v1485
    %1613 = vmatprep.subr.bf16.mxu0 0
    %1614 = vmatpush1.bf16.msra.mxu0 %v1488
    %1615 = vmatprep.subr.bf16.mxu0 0
    %1616 = vmatpush1.bf16.msra.mxu0 %v1491
    %1617 = vmatprep.subr.bf16.mxu0 0
    %1618 = vmatpush1.bf16.msra.mxu0 %v1494
    %1619 = vmatprep.subr.bf16.mxu0 0
    %1620 = vmatpush1.bf16.msra.mxu0 %v1497
    %1621 = vmatprep.subr.bf16.mxu0 0
    %1622 = vmatpush1.bf16.msra.mxu0 %v1500
    %1623 = vmatprep.subr.bf16.mxu0 0
    %1624 = vmatpush1.bf16.msra.mxu0 0
    %1625 = vmatprep.subr.bf16.mxu0 0
    %1626 = vmatpush1.bf16.msra.mxu0 0
    %1627 = vmatprep.subr.bf16.mxu0 0
    %1628 = vmatpush1.bf16.msra.mxu0 0
    %1629 = vmatprep.mubr.bf16.mxu0 %v1540
    %1630 = vmatmul.mubr.bf16.gmra.mrb[0].mxu0 %v874
    %v1631 = vpop.f32.mrb[0].mxu0
    %v1632 = vadd.f32 %v1318, %v1631
    %v1633 = vpop.f32.mrb[0].mxu0
    %v1634 = vpop.f32.mrb[0].mxu0
    %v1635 = vadd.f32 %v1321, %v1634
    %v1636 = vpop.f32.mrb[0].mxu0
    %1637 = vmatprep.mubr.bf16.mxu0 %v1542
    %1638 = vmatmul.mubr.bf16.gmra.mrb[0].mxu0 %v876
    %v1639 = vpop.f32.mrb[0].mxu0
    %v1640 = vadd.f32 %v1326, %v1639
    %v1641 = vpop.f32.mrb[0].mxu0
    %v1642 = vpop.f32.mrb[0].mxu0
    %v1643 = vadd.f32 %v1329, %v1642
    %v1644 = vpop.f32.mrb[0].mxu0
    %1645 = vdwg.mxu0
    %s1646 = scalar_lea.vmem [#allocation11], 624
    %v1647 = vld [vmem:[%s1646] sm:$0xff]
    %v1648 = vld [vmem:[%s1646 + $0x8] sm:$0xf]
    %v1649 = vld [vmem:[%s1646 + $0xc] sm:$0xff]
    %v1650 = vld [vmem:[%s1646 + $0x14] sm:$0xf]
    %v1651 = vld [vmem:[%s1646 + $0x18] sm:$0xff]
    %v1652 = vld [vmem:[%s1646 + $0x20] sm:$0xf]
    %v1653 = vld [vmem:[%s1646 + $0x24] sm:$0xff]
    %v1654 = vld [vmem:[%s1646 + $0x2c] sm:$0xf]
    %v1655 = vld [vmem:[%s1646 + $0x30] sm:$0xff]
    %v1656 = vld [vmem:[%s1646 + $0x38] sm:$0xf]
    %v1657 = vld [vmem:[%s1646 + $0x3c] sm:$0xff]
    %v1658 = vld [vmem:[%s1646 + $0x44] sm:$0xf]
    %v1659 = vld [vmem:[%s1646 + $0x48] sm:$0xff]
    %v1660 = vld [vmem:[%s1646 + $0x50] sm:$0xf]
    %v1661 = vld [vmem:[%s1646 + $0x54] sm:$0xff]
    %v1662 = vld [vmem:[%s1646 + $0x5c] sm:$0xf]
    %v1663 = vld [vmem:[%s1646 + $0x60] sm:$0xff]
    %v1664 = vld [vmem:[%s1646 + $0x68] sm:$0xf]
    %v1665 = vld [vmem:[%s1646 + $0x6c] sm:$0xff]
    %v1666 = vld [vmem:[%s1646 + $0x74] sm:$0xf]
    %v1667 = vld [vmem:[%s1646 + $0x78] sm:$0xff]
    %v1668 = vld [vmem:[%s1646 + $0x80] sm:$0xf]
    %v1669 = vld [vmem:[%s1646 + $0x84] sm:$0xff]
    %v1670 = vld [vmem:[%s1646 + $0x8c] sm:$0xf]
    %v1671 = vld [vmem:[%s1646 + $0x90] sm:$0xff]
    %v1672 = vld [vmem:[%s1646 + $0x98] sm:$0xf]
    %v1673 = vld [vmem:[%s1646 + $0x9c] sm:$0xff]
    %v1674 = vld [vmem:[%s1646 + $0xa4] sm:$0xf]
    %v1675 = vld [vmem:[%s1646 + $0xa8] sm:$0xff]
    %v1676 = vld [vmem:[%s1646 + $0xb0] sm:$0xf]
    %v1677 = vld [vmem:[%s1646 + $0xb4] sm:$0xff]
    %v1678 = vld [vmem:[%s1646 + $0xbc] sm:$0xf]
    %v1679 = vld [vmem:[%s1646 + $0xc0] sm:$0xff]
    %v1680 = vld [vmem:[%s1646 + $0xc8] sm:$0xf]
    %v1681 = vld [vmem:[%s1646 + $0xcc] sm:$0xff]
    %v1682 = vld [vmem:[%s1646 + $0xd4] sm:$0xf]
    %v1683 = vld [vmem:[%s1646 + $0xd8] sm:$0xff]
    %v1684 = vld [vmem:[%s1646 + $0xe0] sm:$0xf]
    %v1685 = vld [vmem:[%s1646 + $0xe4] sm:$0xff]
    %v1686 = vld [vmem:[%s1646 + $0xec] sm:$0xf]
    %v1687 = vld [vmem:[%s1646 + $0xf0] sm:$0xff]
    %v1688 = vld [vmem:[%s1646 + $0xf8] sm:$0xf]
    %v1689 = vld [vmem:[%s1646 + $0xfc] sm:$0xff]
    %v1690 = vld [vmem:[%s1646 + $0x104] sm:$0xf]
    %v1691 = vld [vmem:[%s1646 + $0x108] sm:$0xff]
    %v1692 = vld [vmem:[%s1646 + $0x110] sm:$0xf]
    %v1693 = vld [vmem:[%s1646 + $0x114] sm:$0xff]
    %v1694 = vld [vmem:[%s1646 + $0x11c] sm:$0xf]
    %v1695 = vld [vmem:[%s1646 + $0x120] sm:$0xff]
    %v1696 = vld [vmem:[%s1646 + $0x128] sm:$0xf]
    %v1697 = vld [vmem:[%s1646 + $0x12c] sm:$0xff]
    %v1698 = vld [vmem:[%s1646 + $0x134] sm:$0xf]
    %v1703 = vrot.slane %v874, 1
    %v1704 = vrot.slane %v876, 1
    %v1705 = vsel %vm732, %v1703, %v1704
    %v1706 = vrot.slane %v875, 1
    %v1707 = vrot.slane %v877, 1
    %v1708 = vsel %vm732, %v1706, %v1707
    %v1763 = vunpack.c.l.b16 %v1647
    %v1764 = vunpack.c.h.b16 %v1647
    %v1765 = vunpack.c.l.b16 %v1648
    %v1766 = vunpack.c.l.b16 %v1649
    %v1767 = vunpack.c.h.b16 %v1649
    %v1768 = vunpack.c.l.b16 %v1650
    %v1769 = vunpack.c.l.b16 %v1651
    %v1770 = vunpack.c.h.b16 %v1651
    %v1771 = vunpack.c.l.b16 %v1652
    %v1772 = vunpack.c.l.b16 %v1653
    %v1773 = vunpack.c.h.b16 %v1653
    %v1774 = vunpack.c.l.b16 %v1654
    %v1775 = vunpack.c.l.b16 %v1655
    %v1776 = vunpack.c.h.b16 %v1655
    %v1777 = vunpack.c.l.b16 %v1656
    %v1778 = vunpack.c.l.b16 %v1657
    %v1779 = vunpack.c.h.b16 %v1657
    %v1780 = vunpack.c.l.b16 %v1658
    %v1781 = vunpack.c.l.b16 %v1659
    %v1782 = vunpack.c.h.b16 %v1659
    %v1783 = vunpack.c.l.b16 %v1660
    %v1784 = vunpack.c.l.b16 %v1661
    %v1785 = vunpack.c.h.b16 %v1661
    %v1786 = vunpack.c.l.b16 %v1662
    %v1787 = vunpack.c.l.b16 %v1663
    %v1788 = vunpack.c.h.b16 %v1663
    %v1789 = vunpack.c.l.b16 %v1664
    %v1790 = vunpack.c.l.b16 %v1665
    %v1791 = vunpack.c.h.b16 %v1665
    %v1792 = vunpack.c.l.b16 %v1666
    %v1793 = vunpack.c.l.b16 %v1667
    %v1794 = vunpack.c.h.b16 %v1667
    %v1795 = vunpack.c.l.b16 %v1668
    %v1796 = vunpack.c.l.b16 %v1669
    %v1797 = vunpack.c.h.b16 %v1669
    %v1798 = vunpack.c.l.b16 %v1670
    %v1799 = vunpack.c.l.b16 %v1671
    %v1800 = vunpack.c.h.b16 %v1671
    %v1801 = vunpack.c.l.b16 %v1672
    %v1802 = vunpack.c.l.b16 %v1673
    %v1803 = vunpack.c.h.b16 %v1673
    %v1804 = vunpack.c.l.b16 %v1674
    %v1805 = vunpack.c.l.b16 %v1675
    %v1806 = vunpack.c.h.b16 %v1675
    %v1807 = vunpack.c.l.b16 %v1676
    %v1808 = vunpack.c.l.b16 %v1677
    %v1809 = vunpack.c.h.b16 %v1677
    %v1810 = vunpack.c.l.b16 %v1678
    %v1811 = vunpack.c.l.b16 %v1679
    %v1812 = vunpack.c.h.b16 %v1679
    %v1813 = vunpack.c.l.b16 %v1680
    %v1814 = vunpack.c.l.b16 %v1681
    %v1815 = vunpack.c.h.b16 %v1681
    %v1816 = vunpack.c.l.b16 %v1682
    %v1817 = vunpack.c.l.b16 %v1683
    %v1818 = vunpack.c.h.b16 %v1683
    %v1819 = vunpack.c.l.b16 %v1684
    %v1820 = vunpack.c.l.b16 %v1685
    %v1821 = vunpack.c.h.b16 %v1685
    %v1822 = vunpack.c.l.b16 %v1686
    %v1823 = vunpack.c.l.b16 %v1687
    %v1824 = vunpack.c.h.b16 %v1687
    %v1825 = vunpack.c.l.b16 %v1688
    %v1826 = vunpack.c.l.b16 %v1689
    %v1827 = vunpack.c.h.b16 %v1689
    %v1828 = vunpack.c.l.b16 %v1690
    %v1829 = vunpack.c.l.b16 %v1691
    %v1830 = vunpack.c.h.b16 %v1691
    %v1831 = vunpack.c.l.b16 %v1692
    %v1832 = vunpack.c.l.b16 %v1693
    %v1833 = vunpack.c.h.b16 %v1693
    %v1834 = vunpack.c.l.b16 %v1694
    %v1835 = vunpack.c.l.b16 %v1695
    %v1836 = vunpack.c.h.b16 %v1695
    %v1837 = vunpack.c.l.b16 %v1696
    %v1838 = vunpack.c.l.b16 %v1697
    %v1839 = vunpack.c.h.b16 %v1697
    %v1840 = vunpack.c.l.b16 %v1698
    %v1841 = vpack.c.b16 %v1766, %v1763
    %v1842 = vpack.c.b16 %v1767, %v1764
    %v1843 = vpack.c.b16 %v1768, %v1765
    %v1844 = vpack.c.b16 %v1772, %v1769
    %v1845 = vpack.c.b16 %v1773, %v1770
    %v1846 = vpack.c.b16 %v1774, %v1771
    %v1847 = vpack.c.b16 %v1778, %v1775
    %v1848 = vpack.c.b16 %v1779, %v1776
    %v1849 = vpack.c.b16 %v1780, %v1777
    %v1850 = vpack.c.b16 %v1784, %v1781
    %v1851 = vpack.c.b16 %v1785, %v1782
    %v1852 = vpack.c.b16 %v1786, %v1783
    %v1853 = vpack.c.b16 %v1790, %v1787
    %v1854 = vpack.c.b16 %v1791, %v1788
    %v1855 = vpack.c.b16 %v1792, %v1789
    %v1856 = vpack.c.b16 %v1796, %v1793
    %v1857 = vpack.c.b16 %v1797, %v1794
    %v1858 = vpack.c.b16 %v1798, %v1795
    %v1859 = vpack.c.b16 %v1802, %v1799
    %v1860 = vpack.c.b16 %v1803, %v1800
    %v1861 = vpack.c.b16 %v1804, %v1801
    %v1862 = vpack.c.b16 %v1808, %v1805
    %v1863 = vpack.c.b16 %v1809, %v1806
    %v1864 = vpack.c.b16 %v1810, %v1807
    %v1865 = vpack.c.b16 %v1814, %v1811
    %v1866 = vpack.c.b16 %v1815, %v1812
    %v1867 = vpack.c.b16 %v1816, %v1813
    %v1868 = vpack.c.b16 %v1820, %v1817
    %v1869 = vpack.c.b16 %v1821, %v1818
    %v1870 = vpack.c.b16 %v1822, %v1819
    %v1871 = vpack.c.b16 %v1826, %v1823
    %v1872 = vpack.c.b16 %v1827, %v1824
    %v1873 = vpack.c.b16 %v1828, %v1825
    %v1874 = vpack.c.b16 %v1832, %v1829
    %v1875 = vpack.c.b16 %v1833, %v1830
    %v1876 = vpack.c.b16 %v1834, %v1831
    %v1877 = vpack.c.b16 %v1838, %v1835
    %v1878 = vpack.c.b16 %v1839, %v1836
    %v1879 = vpack.c.b16 %v1840, %v1837
    %v1920 = vsel %vm1223, %v1708, 0
    %v1923 = vsel %vm1223, %v1707, 0
    %1925 = vmatprep.subr.bf16.mxu0 %v1842
    %1926 = vmatpush1.bf16.msra.mxu0 %v1841
    %1927 = vmatprep.subr.bf16.mxu0 %v1845
    %1928 = vmatpush1.bf16.msra.mxu0 %v1844
    %1929 = vmatprep.subr.bf16.mxu0 %v1848
    %1930 = vmatpush1.bf16.msra.mxu0 %v1847
    %1931 = vmatprep.subr.bf16.mxu0 %v1851
    %1932 = vmatpush1.bf16.msra.mxu0 %v1850
    %1933 = vmatprep.subr.bf16.mxu0 %v1854
    %1934 = vmatpush1.bf16.msra.mxu0 %v1853
    %1935 = vmatprep.subr.bf16.mxu0 %v1857
    %1936 = vmatpush1.bf16.msra.mxu0 %v1856
    %1937 = vmatprep.subr.bf16.mxu0 %v1860
    %1938 = vmatpush1.bf16.msra.mxu0 %v1859
    %1939 = vmatprep.subr.bf16.mxu0 %v1863
    %1940 = vmatpush1.bf16.msra.mxu0 %v1862
    %1941 = vmatprep.subr.bf16.mxu0 %v1866
    %1942 = vmatpush1.bf16.msra.mxu0 %v1865
    %1943 = vmatprep.subr.bf16.mxu0 %v1869
    %1944 = vmatpush1.bf16.msra.mxu0 %v1868
    %1945 = vmatprep.subr.bf16.mxu0 %v1872
    %1946 = vmatpush1.bf16.msra.mxu0 %v1871
    %1947 = vmatprep.subr.bf16.mxu0 %v1875
    %1948 = vmatpush1.bf16.msra.mxu0 %v1874
    %1949 = vmatprep.subr.bf16.mxu0 %v1878
    %1950 = vmatpush1.bf16.msra.mxu0 %v1877
    %1951 = vmatprep.subr.bf16.mxu0 0
    %1952 = vmatpush1.bf16.msra.mxu0 0
    %1953 = vmatprep.subr.bf16.mxu0 0
    %1954 = vmatpush1.bf16.msra.mxu0 0
    %1955 = vmatprep.subr.bf16.mxu0 0
    %1956 = vmatpush1.bf16.msra.mxu0 0
    %1957 = vmatprep.mubr.bf16.mxu0 %v1920
    %1958 = vmatmul.mubr.bf16.gmra.mrb[0].mxu0 %v1705
    %v1959 = vpop.f32.mrb[0].mxu0
    %v1960 = vadd.f32 0.0, %v1959
    %v1961 = vpop.f32.mrb[0].mxu0
    %v1962 = vadd.f32 0.0, %v1961
    %v1963 = vpop.f32.mrb[0].mxu0
    %v1964 = vadd.f32 0.0, %v1963
    %v1965 = vpop.f32.mrb[0].mxu0
    %v1966 = vadd.f32 0.0, %v1965
    %1967 = vmatprep.mubr.bf16.mxu0 %v1923
    %1968 = vmatmul.mubr.bf16.gmra.mrb[0].mxu0 %v1704
    %v1969 = vpop.f32.mrb[0].mxu0
    %v1970 = vadd.f32 0.0, %v1969
    %v1971 = vpop.f32.mrb[0].mxu0
    %v1972 = vadd.f32 0.0, %v1971
    %v1973 = vpop.f32.mrb[0].mxu0
    %v1974 = vadd.f32 0.0, %v1973
    %v1975 = vpop.f32.mrb[0].mxu0
    %v1976 = vadd.f32 0.0, %v1975
    %1977 = vdwg.mxu0
    %1978 = vmatprep.subr.bf16.mxu0 0
    %1979 = vmatpush1.bf16.msra.mxu0 %v1843
    %1980 = vmatprep.subr.bf16.mxu0 0
    %1981 = vmatpush1.bf16.msra.mxu0 %v1846
    %1982 = vmatprep.subr.bf16.mxu0 0
    %1983 = vmatpush1.bf16.msra.mxu0 %v1849
    %1984 = vmatprep.subr.bf16.mxu0 0
    %1985 = vmatpush1.bf16.msra.mxu0 %v1852
    %1986 = vmatprep.subr.bf16.mxu0 0
    %1987 = vmatpush1.bf16.msra.mxu0 %v1855
    %1988 = vmatprep.subr.bf16.mxu0 0
    %1989 = vmatpush1.bf16.msra.mxu0 %v1858
    %1990 = vmatprep.subr.bf16.mxu0 0
    %1991 = vmatpush1.bf16.msra.mxu0 %v1861
    %1992 = vmatprep.subr.bf16.mxu0 0
    %1993 = vmatpush1.bf16.msra.mxu0 %v1864
    %1994 = vmatprep.subr.bf16.mxu0 0
    %1995 = vmatpush1.bf16.msra.mxu0 %v1867
    %1996 = vmatprep.subr.bf16.mxu0 0
    %1997 = vmatpush1.bf16.msra.mxu0 %v1870
    %1998 = vmatprep.subr.bf16.mxu0 0
    %1999 = vmatpush1.bf16.msra.mxu0 %v1873
    %2000 = vmatprep.subr.bf16.mxu0 0
    %2001 = vmatpush1.bf16.msra.mxu0 %v1876
    %2002 = vmatprep.subr.bf16.mxu0 0
    %2003 = vmatpush1.bf16.msra.mxu0 %v1879
    %2004 = vmatprep.subr.bf16.mxu0 0
    %2005 = vmatpush1.bf16.msra.mxu0 0
    %2006 = vmatprep.subr.bf16.mxu0 0
    %2007 = vmatpush1.bf16.msra.mxu0 0
    %2008 = vmatprep.subr.bf16.mxu0 0
    %2009 = vmatpush1.bf16.msra.mxu0 0
    %2010 = vmatprep.mubr.bf16.mxu0 %v1920
    %2011 = vmatmul.mubr.bf16.gmra.mrb[0].mxu0 %v1705
    %v2012 = vpop.f32.mrb[0].mxu0
    %v2013 = vadd.f32 0.0, %v2012
    %v2014 = vpop.f32.mrb[0].mxu0
    %v2015 = vpop.f32.mrb[0].mxu0
    %v2016 = vadd.f32 0.0, %v2015
    %v2017 = vpop.f32.mrb[0].mxu0
    %2018 = vmatprep.mubr.bf16.mxu0 %v1923
    %2019 = vmatmul.mubr.bf16.gmra.mrb[0].mxu0 %v1704
    %v2020 = vpop.f32.mrb[0].mxu0
    %v2021 = vadd.f32 0.0, %v2020
    %v2022 = vpop.f32.mrb[0].mxu0
    %v2023 = vpop.f32.mrb[0].mxu0
    %v2024 = vadd.f32 0.0, %v2023
    %v2025 = vpop.f32.mrb[0].mxu0
    %2026 = vdwg.mxu0
    %v2027 = vadd.f32 %v1579, %v1960
    %v2028 = vadd.f32 %v1581, %v1962
    %v2029 = vadd.f32 %v1632, %v2013
    %v2030 = vadd.f32 %v1583, %v1964
    %v2031 = vadd.f32 %v1585, %v1966
    %v2032 = vadd.f32 %v1635, %v2016
    %v2033 = vadd.f32 %v1589, %v1970
    %v2034 = vadd.f32 %v1591, %v1972
    %v2035 = vadd.f32 %v1640, %v2021
    %v2036 = vadd.f32 %v1593, %v1974
    %v2037 = vadd.f32 %v1595, %v1976
    %v2038 = vadd.f32 %v1643, %v2024
    %v2040 = vlaneseq
    %v2041 = vshrl.u32 %v2040, 7
    %v2042 = vsub.s32 0, %v2041
    %v2043 = vrot.slane %v460, %v2042
    %v2044 = vlaneseq
    %v2045 = vshrl.u32 %v2044, 7
    %v2046 = vsub.s32 1, %v2045
    %v2047 = vrot.slane %v460, %v2046
    %v2048 = vlaneseq
    %v2049 = vshrl.u32 %v2048, 7
    %v2050 = vsub.s32 2, %v2049
    %v2051 = vrot.slane %v460, %v2050
    %v2055 = vadd.f32 %v2027, %v2043
    %v2056 = vadd.f32 %v2028, %v2047
    %v2057 = vadd.f32 %v2029, %v2051
    %v2058 = vadd.f32 %v2030, %v2043
    %v2059 = vadd.f32 %v2031, %v2047
    %v2060 = vadd.f32 %v2032, %v2051
    %v2061 = vadd.f32 %v2033, %v2043
    %v2062 = vadd.f32 %v2034, %v2047
    %v2063 = vadd.f32 %v2035, %v2051
    %v2064 = vadd.f32 %v2036, %v2043
    %v2065 = vadd.f32 %v2037, %v2047
    %v2066 = vadd.f32 %v2038, %v2051
    %v2067 = vmax.f32 %v2055, 0.0
    %v2068 = vmax.f32 %v2056, 0.0
    %v2069 = vmax.f32 %v2057, 0.0
    %v2070 = vmax.f32 %v2058, 0.0
    %v2071 = vmax.f32 %v2059, 0.0
    %v2072 = vmax.f32 %v2060, 0.0
    %v2073 = vmax.f32 %v2061, 0.0
    %v2074 = vmax.f32 %v2062, 0.0
    %v2075 = vmax.f32 %v2063, 0.0
    %v2076 = vmax.f32 %v2064, 0.0
    %v2077 = vmax.f32 %v2065, 0.0
    %v2078 = vmax.f32 %v2066, 0.0
    %v2079 = vpack.c.bf16 %v2070, %v2067
    %v2080 = vpack.c.bf16 %v2071, %v2068
    %v2081 = vpack.c.bf16 %v2072, %v2069
    %v2082 = vpack.c.bf16 %v2076, %v2073
    %v2083 = vpack.c.bf16 %v2077, %v2074
    %v2084 = vpack.c.bf16 %v2078, %v2075
    %v2085 = vld [vmem:[%s4] sm:$0xff]
    %v2086 = vld [vmem:[%s4 + $0x8] sm:$0xf]
    %v2087 = vld [vmem:[%s4 + $0xc] sm:$0xff]
    %v2088 = vld [vmem:[%s4 + $0x14] sm:$0xf]
    %v2089 = vld [vmem:[%s4 + $0x18] sm:$0xff]
    %v2090 = vld [vmem:[%s4 + $0x20] sm:$0xf]
    %v2091 = vld [vmem:[%s4 + $0x24] sm:$0xff]
    %v2092 = vld [vmem:[%s4 + $0x2c] sm:$0xf]
    %v2093 = vld [vmem:[%s4 + $0x30] sm:$0xff]
    %v2094 = vld [vmem:[%s4 + $0x38] sm:$0xf]
    %v2095 = vld [vmem:[%s4 + $0x3c] sm:$0xff]
    %v2096 = vld [vmem:[%s4 + $0x44] sm:$0xf]
    %v2097 = vld [vmem:[%s4 + $0x48] sm:$0xff]
    %v2098 = vld [vmem:[%s4 + $0x50] sm:$0xf]
    %v2099 = vld [vmem:[%s4 + $0x54] sm:$0xff]
    %v2100 = vld [vmem:[%s4 + $0x5c] sm:$0xf]
    %v2101 = vld [vmem:[%s4 + $0x60] sm:$0xff]
    %v2102 = vld [vmem:[%s4 + $0x68] sm:$0xf]
    %v2103 = vld [vmem:[%s4 + $0x6c] sm:$0xff]
    %v2104 = vld [vmem:[%s4 + $0x74] sm:$0xf]
    %v2105 = vld [vmem:[%s4 + $0x78] sm:$0xff]
    %v2106 = vld [vmem:[%s4 + $0x80] sm:$0xf]
    %v2107 = vld [vmem:[%s4 + $0x84] sm:$0xff]
    %v2108 = vld [vmem:[%s4 + $0x8c] sm:$0xf]
    %v2109 = vld [vmem:[%s4 + $0x90] sm:$0xff]
    %v2110 = vld [vmem:[%s4 + $0x98] sm:$0xf]
    %v2111 = vld [vmem:[%s4 + $0x9c] sm:$0xff]
    %v2112 = vld [vmem:[%s4 + $0xa4] sm:$0xf]
    %v2113 = vld [vmem:[%s4 + $0xa8] sm:$0xff]
    %v2114 = vld [vmem:[%s4 + $0xb0] sm:$0xf]
    %v2115 = vld [vmem:[%s4 + $0xb4] sm:$0xff]
    %v2116 = vld [vmem:[%s4 + $0xbc] sm:$0xf]
    %v2117 = vld [vmem:[%s4 + $0xc0] sm:$0xff]
    %v2118 = vld [vmem:[%s4 + $0xc8] sm:$0xf]
    %v2119 = vld [vmem:[%s4 + $0xcc] sm:$0xff]
    %v2120 = vld [vmem:[%s4 + $0xd4] sm:$0xf]
    %v2121 = vld [vmem:[%s4 + $0xd8] sm:$0xff]
    %v2122 = vld [vmem:[%s4 + $0xe0] sm:$0xf]
    %v2123 = vld [vmem:[%s4 + $0xe4] sm:$0xff]
    %v2124 = vld [vmem:[%s4 + $0xec] sm:$0xf]
    %v2125 = vld [vmem:[%s4 + $0xf0] sm:$0xff]
    %v2126 = vld [vmem:[%s4 + $0xf8] sm:$0xf]
    %v2127 = vld [vmem:[%s4 + $0xfc] sm:$0xff]
    %v2128 = vld [vmem:[%s4 + $0x104] sm:$0xf]
    %v2129 = vld [vmem:[%s4 + $0x108] sm:$0xff]
    %v2130 = vld [vmem:[%s4 + $0x110] sm:$0xf]
    %v2131 = vld [vmem:[%s4 + $0x114] sm:$0xff]
    %v2132 = vld [vmem:[%s4 + $0x11c] sm:$0xf]
    %v2133 = vld [vmem:[%s4 + $0x120] sm:$0xff]
    %v2134 = vld [vmem:[%s4 + $0x128] sm:$0xf]
    %v2135 = vld [vmem:[%s4 + $0x12c] sm:$0xff]
    %v2136 = vld [vmem:[%s4 + $0x134] sm:$0xf]
    %v2137 = vld [vmem:[%s4 + $0x138] sm:$0xff]
    %v2138 = vld [vmem:[%s4 + $0x140] sm:$0xf]
    %v2139 = vld [vmem:[%s4 + $0x144] sm:$0xff]
    %v2140 = vld [vmem:[%s4 + $0x14c] sm:$0xf]
    %v2141 = vld [vmem:[%s4 + $0x150] sm:$0xff]
    %v2142 = vld [vmem:[%s4 + $0x158] sm:$0xf]
    %v2143 = vld [vmem:[%s4 + $0x15c] sm:$0xff]
    %v2144 = vld [vmem:[%s4 + $0x164] sm:$0xf]
    %v2145 = vld [vmem:[%s4 + $0x168] sm:$0xff]
    %v2146 = vld [vmem:[%s4 + $0x170] sm:$0xf]
    %v2147 = vld [vmem:[%s4 + $0x174] sm:$0xff]
    %v2148 = vld [vmem:[%s4 + $0x17c] sm:$0xf]
    %v2149 = vld [vmem:[%s4 + $0x180] sm:$0xff]
    %v2150 = vld [vmem:[%s4 + $0x188] sm:$0xf]
    %v2151 = vld [vmem:[%s4 + $0x18c] sm:$0xff]
    %v2152 = vld [vmem:[%s4 + $0x194] sm:$0xf]
    %v2153 = vld [vmem:[%s4 + $0x198] sm:$0xff]
    %v2154 = vld [vmem:[%s4 + $0x1a0] sm:$0xf]
    %v2155 = vld [vmem:[%s4 + $0x1a4] sm:$0xff]
    %v2156 = vld [vmem:[%s4 + $0x1ac] sm:$0xf]
    %v2157 = vld [vmem:[%s4 + $0x1b0] sm:$0xff]
    %v2158 = vld [vmem:[%s4 + $0x1b8] sm:$0xf]
    %v2159 = vld [vmem:[%s4 + $0x1bc] sm:$0xff]
    %v2160 = vld [vmem:[%s4 + $0x1c4] sm:$0xf]
    %v2161 = vld [vmem:[%s4 + $0x1c8] sm:$0xff]
    %v2162 = vld [vmem:[%s4 + $0x1d0] sm:$0xf]
    %v2163 = vld [vmem:[%s4 + $0x1d4] sm:$0xff]
    %v2164 = vld [vmem:[%s4 + $0x1dc] sm:$0xf]
    %v2165 = vld [vmem:[%s4 + $0x1e0] sm:$0xff]
    %v2166 = vld [vmem:[%s4 + $0x1e8] sm:$0xf]
    %v2167 = vld [vmem:[%s4 + $0x1ec] sm:$0xff]
    %v2168 = vld [vmem:[%s4 + $0x1f4] sm:$0xf]
    %v2169 = vld [vmem:[%s4 + $0x1f8] sm:$0xff]
    %v2170 = vld [vmem:[%s4 + $0x200] sm:$0xf]
    %v2171 = vld [vmem:[%s4 + $0x204] sm:$0xff]
    %v2172 = vld [vmem:[%s4 + $0x20c] sm:$0xf]
    %s2173 = scalar_lea.vmem %s4, 528
    %v2174 = vld [vmem:[%s2173] sm:$0xff]
    %v2175 = vld [vmem:[%s2173 + $0x8] sm:$0xf]
    %v2176 = vld [vmem:[%s2173 + $0xc] sm:$0xff]
    %v2177 = vld [vmem:[%s2173 + $0x14] sm:$0xf]
    %v2178 = vld [vmem:[%s2173 + $0x18] sm:$0xff]
    %v2179 = vld [vmem:[%s2173 + $0x20] sm:$0xf]
    %v2180 = vld [vmem:[%s2173 + $0x24] sm:$0xff]
    %v2181 = vld [vmem:[%s2173 + $0x2c] sm:$0xf]
    %v2182 = vld [vmem:[%s2173 + $0x30] sm:$0xff]
    %v2183 = vld [vmem:[%s2173 + $0x38] sm:$0xf]
    %v2184 = vld [vmem:[%s2173 + $0x3c] sm:$0xff]
    %v2185 = vld [vmem:[%s2173 + $0x44] sm:$0xf]
    %v2186 = vld [vmem:[%s2173 + $0x48] sm:$0xff]
    %v2187 = vld [vmem:[%s2173 + $0x50] sm:$0xf]
    %v2188 = vld [vmem:[%s2173 + $0x54] sm:$0xff]
    %v2189 = vld [vmem:[%s2173 + $0x5c] sm:$0xf]
    %v2190 = vld [vmem:[%s2173 + $0x60] sm:$0xff]
    %v2191 = vld [vmem:[%s2173 + $0x68] sm:$0xf]
    %v2192 = vld [vmem:[%s2173 + $0x6c] sm:$0xff]
    %v2193 = vld [vmem:[%s2173 + $0x74] sm:$0xf]
    %v2194 = vld [vmem:[%s2173 + $0x78] sm:$0xff]
    %v2195 = vld [vmem:[%s2173 + $0x80] sm:$0xf]
    %v2196 = vld [vmem:[%s2173 + $0x84] sm:$0xff]
    %v2197 = vld [vmem:[%s2173 + $0x8c] sm:$0xf]
    %v2198 = vld [vmem:[%s2173 + $0x90] sm:$0xff]
    %v2199 = vld [vmem:[%s2173 + $0x98] sm:$0xf]
    %v2200 = vld [vmem:[%s2173 + $0x9c] sm:$0xff]
    %v2201 = vld [vmem:[%s2173 + $0xa4] sm:$0xf]
    %v2202 = vld [vmem:[%s2173 + $0xa8] sm:$0xff]
    %v2203 = vld [vmem:[%s2173 + $0xb0] sm:$0xf]
    %v2204 = vld [vmem:[%s2173 + $0xb4] sm:$0xff]
    %v2205 = vld [vmem:[%s2173 + $0xbc] sm:$0xf]
    %v2206 = vld [vmem:[%s2173 + $0xc0] sm:$0xff]
    %v2207 = vld [vmem:[%s2173 + $0xc8] sm:$0xf]
    %v2208 = vld [vmem:[%s2173 + $0xcc] sm:$0xff]
    %v2209 = vld [vmem:[%s2173 + $0xd4] sm:$0xf]
    %v2210 = vld [vmem:[%s2173 + $0xd8] sm:$0xff]
    %v2211 = vld [vmem:[%s2173 + $0xe0] sm:$0xf]
    %v2212 = vld [vmem:[%s2173 + $0xe4] sm:$0xff]
    %v2213 = vld [vmem:[%s2173 + $0xec] sm:$0xf]
    %v2214 = vld [vmem:[%s2173 + $0xf0] sm:$0xff]
    %v2215 = vld [vmem:[%s2173 + $0xf8] sm:$0xf]
    %v2216 = vld [vmem:[%s2173 + $0xfc] sm:$0xff]
    %v2217 = vld [vmem:[%s2173 + $0x104] sm:$0xf]
    %v2218 = vld [vmem:[%s2173 + $0x108] sm:$0xff]
    %v2219 = vld [vmem:[%s2173 + $0x110] sm:$0xf]
    %v2220 = vld [vmem:[%s2173 + $0x114] sm:$0xff]
    %v2221 = vld [vmem:[%s2173 + $0x11c] sm:$0xf]
    %v2222 = vld [vmem:[%s2173 + $0x120] sm:$0xff]
    %v2223 = vld [vmem:[%s2173 + $0x128] sm:$0xf]
    %v2224 = vld [vmem:[%s2173 + $0x12c] sm:$0xff]
    %v2225 = vld [vmem:[%s2173 + $0x134] sm:$0xf]
    %v2226 = vld [vmem:[%s2173 + $0x138] sm:$0xff]
    %v2227 = vld [vmem:[%s2173 + $0x140] sm:$0xf]
    %v2228 = vld [vmem:[%s2173 + $0x144] sm:$0xff]
    %v2229 = vld [vmem:[%s2173 + $0x14c] sm:$0xf]
    %v2230 = vld [vmem:[%s2173 + $0x150] sm:$0xff]
    %v2231 = vld [vmem:[%s2173 + $0x158] sm:$0xf]
    %v2232 = vld [vmem:[%s2173 + $0x15c] sm:$0xff]
    %v2233 = vld [vmem:[%s2173 + $0x164] sm:$0xf]
    %v2234 = vld [vmem:[%s2173 + $0x168] sm:$0xff]
    %v2235 = vld [vmem:[%s2173 + $0x170] sm:$0xf]
    %v2236 = vld [vmem:[%s2173 + $0x174] sm:$0xff]
    %v2237 = vld [vmem:[%s2173 + $0x17c] sm:$0xf]
    %v2238 = vld [vmem:[%s2173 + $0x180] sm:$0xff]
    %v2239 = vld [vmem:[%s2173 + $0x188] sm:$0xf]
    %v2240 = vld [vmem:[%s2173 + $0x18c] sm:$0xff]
    %v2241 = vld [vmem:[%s2173 + $0x194] sm:$0xf]
    %v2242 = vld [vmem:[%s2173 + $0x198] sm:$0xff]
    %v2243 = vld [vmem:[%s2173 + $0x1a0] sm:$0xf]
    %v2244 = vld [vmem:[%s2173 + $0x1a4] sm:$0xff]
    %v2245 = vld [vmem:[%s2173 + $0x1ac] sm:$0xf]
    %v2246 = vld [vmem:[%s2173 + $0x1b0] sm:$0xff]
    %v2247 = vld [vmem:[%s2173 + $0x1b8] sm:$0xf]
    %v2248 = vld [vmem:[%s2173 + $0x1bc] sm:$0xff]
    %v2249 = vld [vmem:[%s2173 + $0x1c4] sm:$0xf]
    %v2250 = vld [vmem:[%s2173 + $0x1c8] sm:$0xff]
    %v2251 = vld [vmem:[%s2173 + $0x1d0] sm:$0xf]
    %v2252 = vld [vmem:[%s2173 + $0x1d4] sm:$0xff]
    %v2253 = vld [vmem:[%s2173 + $0x1dc] sm:$0xf]
    %v2254 = vld [vmem:[%s2173 + $0x1e0] sm:$0xff]
    %v2255 = vld [vmem:[%s2173 + $0x1e8] sm:$0xf]
    %v2256 = vld [vmem:[%s2173 + $0x1ec] sm:$0xff]
    %v2257 = vld [vmem:[%s2173 + $0x1f4] sm:$0xf]
    %v2258 = vld [vmem:[%s2173 + $0x1f8] sm:$0xff]
    %v2259 = vld [vmem:[%s2173 + $0x200] sm:$0xf]
    %v2260 = vld [vmem:[%s2173 + $0x204] sm:$0xff]
    %v2261 = vld [vmem:[%s2173 + $0x20c] sm:$0xf]
    %v2263 = vshrl.u32 %v2079, 16
    %v2265 = vshll.u32 %v2079, 16
    %v2267 = vrot.slane %v2265, 1
    %v2268 = vor.u32 %v2263, %v2267
    %v2270 = vshll.u32 %v2082, 16
    %v2272 = vrot.slane %v2270, 1
    %v2273 = vsel %vm499, %v2268, %v2272
    %v2275 = vshrl.u32 %v2080, 16
    %v2277 = vshll.u32 %v2080, 16
    %v2279 = vrot.slane %v2277, 1
    %v2280 = vor.u32 %v2275, %v2279
    %v2282 = vshll.u32 %v2083, 16
    %v2284 = vrot.slane %v2282, 1
    %v2285 = vsel %vm499, %v2280, %v2284
    %v2287 = vshrl.u32 %v2081, 16
    %v2289 = vshll.u32 %v2081, 16
    %v2291 = vrot.slane %v2289, 1
    %v2292 = vor.u32 %v2287, %v2291
    %v2294 = vshll.u32 %v2084, 16
    %v2296 = vrot.slane %v2294, 1
    %v2297 = vsel %vm499, %v2292, %v2296
    %v2298 = vshrl.u32 %v2082, 16
    %v2300 = vor.u32 %v2298, %v2272
    %v2301 = vshrl.u32 %v2083, 16
    %v2303 = vor.u32 %v2301, %v2284
    %v2304 = vshrl.u32 %v2084, 16
    %v2306 = vor.u32 %v2304, %v2296
    %v2399 = vunpack.c.l.b16 %v2174
    %v2400 = vunpack.c.h.b16 %v2174
    %v2401 = vunpack.c.l.b16 %v2175
    %v2402 = vunpack.c.l.b16 %v2176
    %v2403 = vunpack.c.h.b16 %v2176
    %v2404 = vunpack.c.l.b16 %v2177
    %v2405 = vunpack.c.l.b16 %v2178
    %v2406 = vunpack.c.h.b16 %v2178
    %v2407 = vunpack.c.l.b16 %v2179
    %v2408 = vunpack.c.l.b16 %v2180
    %v2409 = vunpack.c.h.b16 %v2180
    %v2410 = vunpack.c.l.b16 %v2181
    %v2411 = vunpack.c.l.b16 %v2182
    %v2412 = vunpack.c.h.b16 %v2182
    %v2413 = vunpack.c.l.b16 %v2183
    %v2414 = vunpack.c.l.b16 %v2184
    %v2415 = vunpack.c.h.b16 %v2184
    %v2416 = vunpack.c.l.b16 %v2185
    %v2417 = vunpack.c.l.b16 %v2186
    %v2418 = vunpack.c.h.b16 %v2186
    %v2419 = vunpack.c.l.b16 %v2187
    %v2420 = vunpack.c.l.b16 %v2188
    %v2421 = vunpack.c.h.b16 %v2188
    %v2422 = vunpack.c.l.b16 %v2189
    %v2423 = vunpack.c.l.b16 %v2190
    %v2424 = vunpack.c.h.b16 %v2190
    %v2425 = vunpack.c.l.b16 %v2191
    %v2426 = vunpack.c.l.b16 %v2192
    %v2427 = vunpack.c.h.b16 %v2192
    %v2428 = vunpack.c.l.b16 %v2193
    %v2429 = vunpack.c.l.b16 %v2194
    %v2430 = vunpack.c.h.b16 %v2194
    %v2431 = vunpack.c.l.b16 %v2195
    %v2432 = vunpack.c.l.b16 %v2196
    %v2433 = vunpack.c.h.b16 %v2196
    %v2434 = vunpack.c.l.b16 %v2197
    %v2435 = vunpack.c.l.b16 %v2198
    %v2436 = vunpack.c.h.b16 %v2198
    %v2437 = vunpack.c.l.b16 %v2199
    %v2438 = vunpack.c.l.b16 %v2200
    %v2439 = vunpack.c.h.b16 %v2200
    %v2440 = vunpack.c.l.b16 %v2201
    %v2441 = vunpack.c.l.b16 %v2202
    %v2442 = vunpack.c.h.b16 %v2202
    %v2443 = vunpack.c.l.b16 %v2203
    %v2444 = vunpack.c.l.b16 %v2204
    %v2445 = vunpack.c.h.b16 %v2204
    %v2446 = vunpack.c.l.b16 %v2205
    %v2447 = vunpack.c.l.b16 %v2206
    %v2448 = vunpack.c.h.b16 %v2206
    %v2449 = vunpack.c.l.b16 %v2207
    %v2450 = vunpack.c.l.b16 %v2208
    %v2451 = vunpack.c.h.b16 %v2208
    %v2452 = vunpack.c.l.b16 %v2209
    %v2453 = vunpack.c.l.b16 %v2210
    %v2454 = vunpack.c.h.b16 %v2210
    %v2455 = vunpack.c.l.b16 %v2211
    %v2456 = vunpack.c.l.b16 %v2212
    %v2457 = vunpack.c.h.b16 %v2212
    %v2458 = vunpack.c.l.b16 %v2213
    %v2459 = vunpack.c.l.b16 %v2214
    %v2460 = vunpack.c.h.b16 %v2214
    %v2461 = vunpack.c.l.b16 %v2215
    %v2462 = vunpack.c.l.b16 %v2216
    %v2463 = vunpack.c.h.b16 %v2216
    %v2464 = vunpack.c.l.b16 %v2217
    %v2465 = vunpack.c.l.b16 %v2218
    %v2466 = vunpack.c.h.b16 %v2218
    %v2467 = vunpack.c.l.b16 %v2219
    %v2468 = vunpack.c.l.b16 %v2220
    %v2469 = vunpack.c.h.b16 %v2220
    %v2470 = vunpack.c.l.b16 %v2221
    %v2471 = vunpack.c.l.b16 %v2222
    %v2472 = vunpack.c.h.b16 %v2222
    %v2473 = vunpack.c.l.b16 %v2223
    %v2474 = vunpack.c.l.b16 %v2224
    %v2475 = vunpack.c.h.b16 %v2224
    %v2476 = vunpack.c.l.b16 %v2225
    %v2477 = vunpack.c.l.b16 %v2226
    %v2478 = vunpack.c.h.b16 %v2226
    %v2479 = vunpack.c.l.b16 %v2227
    %v2480 = vunpack.c.l.b16 %v2228
    %v2481 = vunpack.c.h.b16 %v2228
    %v2482 = vunpack.c.l.b16 %v2229
    %v2483 = vunpack.c.l.b16 %v2230
    %v2484 = vunpack.c.h.b16 %v2230
    %v2485 = vunpack.c.l.b16 %v2231
    %v2486 = vunpack.c.l.b16 %v2232
    %v2487 = vunpack.c.h.b16 %v2232
    %v2488 = vunpack.c.l.b16 %v2233
    %v2489 = vunpack.c.l.b16 %v2234
    %v2490 = vunpack.c.h.b16 %v2234
    %v2491 = vunpack.c.l.b16 %v2235
    %v2492 = vunpack.c.l.b16 %v2236
    %v2493 = vunpack.c.h.b16 %v2236
    %v2494 = vunpack.c.l.b16 %v2237
    %v2495 = vunpack.c.l.b16 %v2238
    %v2496 = vunpack.c.h.b16 %v2238
    %v2497 = vunpack.c.l.b16 %v2239
    %v2498 = vunpack.c.l.b16 %v2240
    %v2499 = vunpack.c.h.b16 %v2240
    %v2500 = vunpack.c.l.b16 %v2241
    %v2501 = vunpack.c.l.b16 %v2242
    %v2502 = vunpack.c.h.b16 %v2242
    %v2503 = vunpack.c.l.b16 %v2243
    %v2504 = vunpack.c.l.b16 %v2244
    %v2505 = vunpack.c.h.b16 %v2244
    %v2506 = vunpack.c.l.b16 %v2245
    %v2507 = vunpack.c.l.b16 %v2246
    %v2508 = vunpack.c.h.b16 %v2246
    %v2509 = vunpack.c.l.b16 %v2247
    %v2510 = vunpack.c.l.b16 %v2248
    %v2511 = vunpack.c.h.b16 %v2248
    %v2512 = vunpack.c.l.b16 %v2249
    %v2513 = vunpack.c.l.b16 %v2250
    %v2514 = vunpack.c.h.b16 %v2250
    %v2515 = vunpack.c.l.b16 %v2251
    %v2516 = vunpack.c.l.b16 %v2252
    %v2517 = vunpack.c.h.b16 %v2252
    %v2518 = vunpack.c.l.b16 %v2253
    %v2519 = vunpack.c.l.b16 %v2254
    %v2520 = vunpack.c.h.b16 %v2254
    %v2521 = vunpack.c.l.b16 %v2255
    %v2522 = vunpack.c.l.b16 %v2256
    %v2523 = vunpack.c.h.b16 %v2256
    %v2524 = vunpack.c.l.b16 %v2257
    %v2525 = vunpack.c.l.b16 %v2258
    %v2526 = vunpack.c.h.b16 %v2258
    %v2527 = vunpack.c.l.b16 %v2259
    %v2528 = vunpack.c.l.b16 %v2260
    %v2529 = vunpack.c.h.b16 %v2260
    %v2530 = vunpack.c.l.b16 %v2261
    %v2531 = vpack.c.b16 %v2402, %v2399
    %v2532 = vpack.c.b16 %v2403, %v2400
    %v2533 = vpack.c.b16 %v2404, %v2401
    %v2534 = vpack.c.b16 %v2408, %v2405
    %v2535 = vpack.c.b16 %v2409, %v2406
    %v2536 = vpack.c.b16 %v2410, %v2407
    %v2537 = vpack.c.b16 %v2414, %v2411
    %v2538 = vpack.c.b16 %v2415, %v2412
    %v2539 = vpack.c.b16 %v2416, %v2413
    %v2540 = vpack.c.b16 %v2420, %v2417
    %v2541 = vpack.c.b16 %v2421, %v2418
    %v2542 = vpack.c.b16 %v2422, %v2419
    %v2543 = vpack.c.b16 %v2426, %v2423
    %v2544 = vpack.c.b16 %v2427, %v2424
    %v2545 = vpack.c.b16 %v2428, %v2425
    %v2546 = vpack.c.b16 %v2432, %v2429
    %v2547 = vpack.c.b16 %v2433, %v2430
    %v2548 = vpack.c.b16 %v2434, %v2431
    %v2549 = vpack.c.b16 %v2438, %v2435
    %v2550 = vpack.c.b16 %v2439, %v2436
    %v2551 = vpack.c.b16 %v2440, %v2437
    %v2552 = vpack.c.b16 %v2444, %v2441
    %v2553 = vpack.c.b16 %v2445, %v2442
    %v2554 = vpack.c.b16 %v2446, %v2443
    %v2555 = vpack.c.b16 %v2450, %v2447
    %v2556 = vpack.c.b16 %v2451, %v2448
    %v2557 = vpack.c.b16 %v2452, %v2449
    %v2558 = vpack.c.b16 %v2456, %v2453
    %v2559 = vpack.c.b16 %v2457, %v2454
    %v2560 = vpack.c.b16 %v2458, %v2455
    %v2561 = vpack.c.b16 %v2462, %v2459
    %v2562 = vpack.c.b16 %v2463, %v2460
    %v2563 = vpack.c.b16 %v2464, %v2461
    %v2564 = vpack.c.b16 %v2468, %v2465
    %v2565 = vpack.c.b16 %v2469, %v2466
    %v2566 = vpack.c.b16 %v2470, %v2467
    %v2567 = vpack.c.b16 %v2474, %v2471
    %v2568 = vpack.c.b16 %v2475, %v2472
    %v2569 = vpack.c.b16 %v2476, %v2473
    %v2570 = vpack.c.b16 %v2480, %v2477
    %v2571 = vpack.c.b16 %v2481, %v2478
    %v2572 = vpack.c.b16 %v2482, %v2479
    %v2573 = vpack.c.b16 %v2486, %v2483
    %v2574 = vpack.c.b16 %v2487, %v2484
    %v2575 = vpack.c.b16 %v2488, %v2485
    %v2576 = vpack.c.b16 %v2492, %v2489
    %v2577 = vpack.c.b16 %v2493, %v2490
    %v2578 = vpack.c.b16 %v2494, %v2491
    %v2579 = vpack.c.b16 %v2498, %v2495
    %v2580 = vpack.c.b16 %v2499, %v2496
    %v2581 = vpack.c.b16 %v2500, %v2497
    %v2582 = vpack.c.b16 %v2504, %v2501
    %v2583 = vpack.c.b16 %v2505, %v2502
    %v2584 = vpack.c.b16 %v2506, %v2503
    %v2585 = vpack.c.b16 %v2510, %v2507
    %v2586 = vpack.c.b16 %v2511, %v2508
    %v2587 = vpack.c.b16 %v2512, %v2509
    %v2588 = vpack.c.b16 %v2516, %v2513
    %v2589 = vpack.c.b16 %v2517, %v2514
    %v2590 = vpack.c.b16 %v2518, %v2515
    %v2591 = vpack.c.b16 %v2522, %v2519
    %v2592 = vpack.c.b16 %v2523, %v2520
    %v2593 = vpack.c.b16 %v2524, %v2521
    %v2594 = vpack.c.b16 %v2528, %v2525
    %v2595 = vpack.c.b16 %v2529, %v2526
    %v2596 = vpack.c.b16 %v2530, %v2527
    %vm2663 = vcmask 785408
    %v2665 = vsel %vm2663, %v2297, 0
    %v2668 = vsel %vm2663, %v2306, 0
    %2670 = vmatprep.subr.bf16.mxu0 %v2532
    %2671 = vmatpush1.bf16.msra.mxu0 %v2531
    %2672 = vmatprep.subr.bf16.mxu0 %v2535
    %2673 = vmatpush1.bf16.msra.mxu0 %v2534
    %2674 = vmatprep.subr.bf16.mxu0 %v2538
    %2675 = vmatpush1.bf16.msra.mxu0 %v2537
    %2676 = vmatprep.subr.bf16.mxu0 %v2541
    %2677 = vmatpush1.bf16.msra.mxu0 %v2540
    %2678 = vmatprep.subr.bf16.mxu0 %v2544
    %2679 = vmatpush1.bf16.msra.mxu0 %v2543
    %2680 = vmatprep.subr.bf16.mxu0 %v2547
    %2681 = vmatpush1.bf16.msra.mxu0 %v2546
    %2682 = vmatprep.subr.bf16.mxu0 %v2550
    %2683 = vmatpush1.bf16.msra.mxu0 %v2549
    %2684 = vmatprep.subr.bf16.mxu0 %v2553
    %2685 = vmatpush1.bf16.msra.mxu0 %v2552
    %2686 = vmatprep.subr.bf16.mxu0 %v2556
    %2687 = vmatpush1.bf16.msra.mxu0 %v2555
    %2688 = vmatprep.subr.bf16.mxu0 %v2559
    %2689 = vmatpush1.bf16.msra.mxu0 %v2558
    %2690 = vmatprep.subr.bf16.mxu0 %v2562
    %2691 = vmatpush1.bf16.msra.mxu0 %v2561
    %2692 = vmatprep.subr.bf16.mxu0 %v2565
    %2693 = vmatpush1.bf16.msra.mxu0 %v2564
    %2694 = vmatprep.subr.bf16.mxu0 %v2568
    %2695 = vmatpush1.bf16.msra.mxu0 %v2567
    %2696 = vmatprep.subr.bf16.mxu0 %v2571
    %2697 = vmatpush1.bf16.msra.mxu0 %v2570
    %2698 = vmatprep.subr.bf16.mxu0 %v2574
    %2699 = vmatpush1.bf16.msra.mxu0 %v2573
    %2700 = vmatprep.subr.bf16.mxu0 %v2577
    %2701 = vmatpush1.bf16.msra.mxu0 %v2576
    %2702 = vmatprep.mubr.bf16.mxu0 %v2285
    %2703 = vmatmul.mubr.bf16.gmra.mrb[0].mxu0 %v2273
    %v2704 = vpop.f32.mrb[0].mxu0
    %v2705 = vadd.f32 0.0, %v2704
    %v2706 = vpop.f32.mrb[0].mxu0
    %v2707 = vadd.f32 0.0, %v2706
    %v2708 = vpop.f32.mrb[0].mxu0
    %v2709 = vadd.f32 0.0, %v2708
    %v2710 = vpop.f32.mrb[0].mxu0
    %v2711 = vadd.f32 0.0, %v2710
    %2712 = vmatprep.mubr.bf16.mxu0 %v2303
    %2713 = vmatmul.mubr.bf16.gmra.mrb[0].mxu0 %v2300
    %v2714 = vpop.f32.mrb[0].mxu0
    %v2715 = vadd.f32 0.0, %v2714
    %v2716 = vpop.f32.mrb[0].mxu0
    %v2717 = vadd.f32 0.0, %v2716
    %v2718 = vpop.f32.mrb[0].mxu0
    %v2719 = vpop.f32.mrb[0].mxu0
    %2720 = vdwg.mxu0
    %2721 = vmatprep.subr.bf16.mxu0 %v2580
    %2722 = vmatpush1.bf16.msra.mxu0 %v2579
    %2723 = vmatprep.subr.bf16.mxu0 %v2583
    %2724 = vmatpush1.bf16.msra.mxu0 %v2582
    %2725 = vmatprep.subr.bf16.mxu0 %v2586
    %2726 = vmatpush1.bf16.msra.mxu0 %v2585
    %2727 = vmatprep.subr.bf16.mxu0 %v2589
    %2728 = vmatpush1.bf16.msra.mxu0 %v2588
    %2729 = vmatprep.subr.bf16.mxu0 %v2592
    %2730 = vmatpush1.bf16.msra.mxu0 %v2591
    %2731 = vmatprep.subr.bf16.mxu0 %v2595
    %2732 = vmatpush1.bf16.msra.mxu0 %v2594
    %2733 = vmatprep.subr.bf16.mxu0 0
    %2734 = vmatpush1.bf16.msra.mxu0 0
    %2735 = vmatprep.subr.bf16.mxu0 0
    %2736 = vmatpush1.bf16.msra.mxu0 0
    %2737 = vmatprep.subr.bf16.mxu0 0
    %2738 = vmatpush1.bf16.msra.mxu0 0
    %2739 = vmatprep.subr.bf16.mxu0 0
    %2740 = vmatpush1.bf16.msra.mxu0 0
    %2741 = vmatprep.subr.bf16.mxu0 0
    %2742 = vmatpush1.bf16.msra.mxu0 0
    %2743 = vmatprep.subr.bf16.mxu0 0
    %2744 = vmatpush1.bf16.msra.mxu0 0
    %2745 = vmatprep.subr.bf16.mxu0 0
    %2746 = vmatpush1.bf16.msra.mxu0 0
    %2747 = vmatprep.subr.bf16.mxu0 0
    %2748 = vmatpush1.bf16.msra.mxu0 0
    %2749 = vmatprep.subr.bf16.mxu0 0
    %2750 = vmatpush1.bf16.msra.mxu0 0
    %2751 = vmatprep.subr.bf16.mxu0 0
    %2752 = vmatpush1.bf16.msra.mxu0 0
    %2753 = vmatprep.mubr.bf16.mxu0 0
    %2754 = vmatmul.mubr.bf16.gmra.mrb[0].mxu0 %v2665
    %v2755 = vpop.f32.mrb[0].mxu0
    %v2756 = vadd.f32 %v2705, %v2755
    %v2757 = vpop.f32.mrb[0].mxu0
    %v2758 = vadd.f32 %v2707, %v2757
    %v2759 = vpop.f32.mrb[0].mxu0
    %v2760 = vadd.f32 %v2709, %v2759
    %v2761 = vpop.f32.mrb[0].mxu0
    %v2762 = vadd.f32 %v2711, %v2761
    %2763 = vmatprep.mubr.bf16.mxu0 0
    %2764 = vmatmul.mubr.bf16.gmra.mrb[0].mxu0 %v2668
    %v2765 = vpop.f32.mrb[0].mxu0
    %v2766 = vadd.f32 %v2715, %v2765
    %v2767 = vpop.f32.mrb[0].mxu0
    %v2768 = vadd.f32 %v2717, %v2767
    %v2769 = vpop.f32.mrb[0].mxu0
    %v2770 = vpop.f32.mrb[0].mxu0
    %2771 = vdwg.mxu0
    %2772 = vmatprep.subr.bf16.mxu0 0
    %2773 = vmatpush1.bf16.msra.mxu0 %v2533
    %2774 = vmatprep.subr.bf16.mxu0 0
    %2775 = vmatpush1.bf16.msra.mxu0 %v2536
    %2776 = vmatprep.subr.bf16.mxu0 0
    %2777 = vmatpush1.bf16.msra.mxu0 %v2539
    %2778 = vmatprep.subr.bf16.mxu0 0
    %2779 = vmatpush1.bf16.msra.mxu0 %v2542
    %2780 = vmatprep.subr.bf16.mxu0 0
    %2781 = vmatpush1.bf16.msra.mxu0 %v2545
    %2782 = vmatprep.subr.bf16.mxu0 0
    %2783 = vmatpush1.bf16.msra.mxu0 %v2548
    %2784 = vmatprep.subr.bf16.mxu0 0
    %2785 = vmatpush1.bf16.msra.mxu0 %v2551
    %2786 = vmatprep.subr.bf16.mxu0 0
    %2787 = vmatpush1.bf16.msra.mxu0 %v2554
    %2788 = vmatprep.subr.bf16.mxu0 0
    %2789 = vmatpush1.bf16.msra.mxu0 %v2557
    %2790 = vmatprep.subr.bf16.mxu0 0
    %2791 = vmatpush1.bf16.msra.mxu0 %v2560
    %2792 = vmatprep.subr.bf16.mxu0 0
    %2793 = vmatpush1.bf16.msra.mxu0 %v2563
    %2794 = vmatprep.subr.bf16.mxu0 0
    %2795 = vmatpush1.bf16.msra.mxu0 %v2566
    %2796 = vmatprep.subr.bf16.mxu0 0
    %2797 = vmatpush1.bf16.msra.mxu0 %v2569
    %2798 = vmatprep.subr.bf16.mxu0 0
    %2799 = vmatpush1.bf16.msra.mxu0 %v2572
    %2800 = vmatprep.subr.bf16.mxu0 0
    %2801 = vmatpush1.bf16.msra.mxu0 %v2575
    %2802 = vmatprep.subr.bf16.mxu0 0
    %2803 = vmatpush1.bf16.msra.mxu0 %v2578
    %2804 = vmatprep.mubr.bf16.mxu0 %v2285
    %2805 = vmatmul.mubr.bf16.gmra.mrb[0].mxu0 %v2273
    %v2806 = vpop.f32.mrb[0].mxu0
    %v2807 = vadd.f32 0.0, %v2806
    %v2808 = vpop.f32.mrb[0].mxu0
    %v2809 = vpop.f32.mrb[0].mxu0
    %v2810 = vadd.f32 0.0, %v2809
    %v2811 = vpop.f32.mrb[0].mxu0
    %2812 = vmatprep.mubr.bf16.mxu0 %v2303
    %2813 = vmatmul.mubr.bf16.gmra.mrb[0].mxu0 %v2300
    %v2814 = vpop.f32.mrb[0].mxu0
    %v2815 = vadd.f32 0.0, %v2814
    %v2816 = vpop.f32.mrb[0].mxu0
    %v2817 = vpop.f32.mrb[0].mxu0
    %v2818 = vpop.f32.mrb[0].mxu0
    %2819 = vdwg.mxu0
    %2820 = vmatprep.subr.bf16.mxu0 0
    %2821 = vmatpush1.bf16.msra.mxu0 %v2581
    %2822 = vmatprep.subr.bf16.mxu0 0
    %2823 = vmatpush1.bf16.msra.mxu0 %v2584
    %2824 = vmatprep.subr.bf16.mxu0 0
    %2825 = vmatpush1.bf16.msra.mxu0 %v2587
    %2826 = vmatprep.subr.bf16.mxu0 0
    %2827 = vmatpush1.bf16.msra.mxu0 %v2590
    %2828 = vmatprep.subr.bf16.mxu0 0
    %2829 = vmatpush1.bf16.msra.mxu0 %v2593
    %2830 = vmatprep.subr.bf16.mxu0 0
    %2831 = vmatpush1.bf16.msra.mxu0 %v2596
    %2832 = vmatprep.subr.bf16.mxu0 0
    %2833 = vmatpush1.bf16.msra.mxu0 0
    %2834 = vmatprep.subr.bf16.mxu0 0
    %2835 = vmatpush1.bf16.msra.mxu0 0
    %2836 = vmatprep.subr.bf16.mxu0 0
    %2837 = vmatpush1.bf16.msra.mxu0 0
    %2838 = vmatprep.subr.bf16.mxu0 0
    %2839 = vmatpush1.bf16.msra.mxu0 0
    %2840 = vmatprep.subr.bf16.mxu0 0
    %2841 = vmatpush1.bf16.msra.mxu0 0
    %2842 = vmatprep.subr.bf16.mxu0 0
    %2843 = vmatpush1.bf16.msra.mxu0 0
    %2844 = vmatprep.subr.bf16.mxu0 0
    %2845 = vmatpush1.bf16.msra.mxu0 0
    %2846 = vmatprep.subr.bf16.mxu0 0
    %2847 = vmatpush1.bf16.msra.mxu0 0
    %2848 = vmatprep.subr.bf16.mxu0 0
    %2849 = vmatpush1.bf16.msra.mxu0 0
    %2850 = vmatprep.subr.bf16.mxu0 0
    %2851 = vmatpush1.bf16.msra.mxu0 0
    %2852 = vmatprep.mubr.bf16.mxu0 0
    %2853 = vmatmul.mubr.bf16.gmra.mrb[0].mxu0 %v2665
    %v2854 = vpop.f32.mrb[0].mxu0
    %v2855 = vadd.f32 %v2807, %v2854
    %v2856 = vpop.f32.mrb[0].mxu0
    %v2857 = vpop.f32.mrb[0].mxu0
    %v2858 = vadd.f32 %v2810, %v2857
    %v2859 = vpop.f32.mrb[0].mxu0
    %2860 = vmatprep.mubr.bf16.mxu0 0
    %2861 = vmatmul.mubr.bf16.gmra.mrb[0].mxu0 %v2668
    %v2862 = vpop.f32.mrb[0].mxu0
    %v2863 = vadd.f32 %v2815, %v2862
    %v2864 = vpop.f32.mrb[0].mxu0
    %v2865 = vpop.f32.mrb[0].mxu0
    %v2866 = vpop.f32.mrb[0].mxu0
    %2867 = vdwg.mxu0
    %v2956 = vunpack.c.l.b16 %v2085
    %v2957 = vunpack.c.h.b16 %v2085
    %v2958 = vunpack.c.l.b16 %v2086
    %v2959 = vunpack.c.l.b16 %v2087
    %v2960 = vunpack.c.h.b16 %v2087
    %v2961 = vunpack.c.l.b16 %v2088
    %v2962 = vunpack.c.l.b16 %v2089
    %v2963 = vunpack.c.h.b16 %v2089
    %v2964 = vunpack.c.l.b16 %v2090
    %v2965 = vunpack.c.l.b16 %v2091
    %v2966 = vunpack.c.h.b16 %v2091
    %v2967 = vunpack.c.l.b16 %v2092
    %v2968 = vunpack.c.l.b16 %v2093
    %v2969 = vunpack.c.h.b16 %v2093
    %v2970 = vunpack.c.l.b16 %v2094
    %v2971 = vunpack.c.l.b16 %v2095
    %v2972 = vunpack.c.h.b16 %v2095
    %v2973 = vunpack.c.l.b16 %v2096
    %v2974 = vunpack.c.l.b16 %v2097
    %v2975 = vunpack.c.h.b16 %v2097
    %v2976 = vunpack.c.l.b16 %v2098
    %v2977 = vunpack.c.l.b16 %v2099
    %v2978 = vunpack.c.h.b16 %v2099
    %v2979 = vunpack.c.l.b16 %v2100
    %v2980 = vunpack.c.l.b16 %v2101
    %v2981 = vunpack.c.h.b16 %v2101
    %v2982 = vunpack.c.l.b16 %v2102
    %v2983 = vunpack.c.l.b16 %v2103
    %v2984 = vunpack.c.h.b16 %v2103
    %v2985 = vunpack.c.l.b16 %v2104
    %v2986 = vunpack.c.l.b16 %v2105
    %v2987 = vunpack.c.h.b16 %v2105
    %v2988 = vunpack.c.l.b16 %v2106
    %v2989 = vunpack.c.l.b16 %v2107
    %v2990 = vunpack.c.h.b16 %v2107
    %v2991 = vunpack.c.l.b16 %v2108
    %v2992 = vunpack.c.l.b16 %v2109
    %v2993 = vunpack.c.h.b16 %v2109
    %v2994 = vunpack.c.l.b16 %v2110
    %v2995 = vunpack.c.l.b16 %v2111
    %v2996 = vunpack.c.h.b16 %v2111
    %v2997 = vunpack.c.l.b16 %v2112
    %v2998 = vunpack.c.l.b16 %v2113
    %v2999 = vunpack.c.h.b16 %v2113
    %v3000 = vunpack.c.l.b16 %v2114
    %v3001 = vunpack.c.l.b16 %v2115
    %v3002 = vunpack.c.h.b16 %v2115
    %v3003 = vunpack.c.l.b16 %v2116
    %v3004 = vunpack.c.l.b16 %v2117
    %v3005 = vunpack.c.h.b16 %v2117
    %v3006 = vunpack.c.l.b16 %v2118
    %v3007 = vunpack.c.l.b16 %v2119
    %v3008 = vunpack.c.h.b16 %v2119
    %v3009 = vunpack.c.l.b16 %v2120
    %v3010 = vunpack.c.l.b16 %v2121
    %v3011 = vunpack.c.h.b16 %v2121
    %v3012 = vunpack.c.l.b16 %v2122
    %v3013 = vunpack.c.l.b16 %v2123
    %v3014 = vunpack.c.h.b16 %v2123
    %v3015 = vunpack.c.l.b16 %v2124
    %v3016 = vunpack.c.l.b16 %v2125
    %v3017 = vunpack.c.h.b16 %v2125
    %v3018 = vunpack.c.l.b16 %v2126
    %v3019 = vunpack.c.l.b16 %v2127
    %v3020 = vunpack.c.h.b16 %v2127
    %v3021 = vunpack.c.l.b16 %v2128
    %v3022 = vunpack.c.l.b16 %v2129
    %v3023 = vunpack.c.h.b16 %v2129
    %v3024 = vunpack.c.l.b16 %v2130
    %v3025 = vunpack.c.l.b16 %v2131
    %v3026 = vunpack.c.h.b16 %v2131
    %v3027 = vunpack.c.l.b16 %v2132
    %v3028 = vunpack.c.l.b16 %v2133
    %v3029 = vunpack.c.h.b16 %v2133
    %v3030 = vunpack.c.l.b16 %v2134
    %v3031 = vunpack.c.l.b16 %v2135
    %v3032 = vunpack.c.h.b16 %v2135
    %v3033 = vunpack.c.l.b16 %v2136
    %v3034 = vunpack.c.l.b16 %v2137
    %v3035 = vunpack.c.h.b16 %v2137
    %v3036 = vunpack.c.l.b16 %v2138
    %v3037 = vunpack.c.l.b16 %v2139
    %v3038 = vunpack.c.h.b16 %v2139
    %v3039 = vunpack.c.l.b16 %v2140
    %v3040 = vunpack.c.l.b16 %v2141
    %v3041 = vunpack.c.h.b16 %v2141
    %v3042 = vunpack.c.l.b16 %v2142
    %v3043 = vunpack.c.l.b16 %v2143
    %v3044 = vunpack.c.h.b16 %v2143
    %v3045 = vunpack.c.l.b16 %v2144
    %v3046 = vunpack.c.l.b16 %v2145
    %v3047 = vunpack.c.h.b16 %v2145
    %v3048 = vunpack.c.l.b16 %v2146
    %v3049 = vunpack.c.l.b16 %v2147
    %v3050 = vunpack.c.h.b16 %v2147
    %v3051 = vunpack.c.l.b16 %v2148
    %v3052 = vunpack.c.l.b16 %v2149
    %v3053 = vunpack.c.h.b16 %v2149
    %v3054 = vunpack.c.l.b16 %v2150
    %v3055 = vunpack.c.l.b16 %v2151
    %v3056 = vunpack.c.h.b16 %v2151
    %v3057 = vunpack.c.l.b16 %v2152
    %v3058 = vunpack.c.l.b16 %v2153
    %v3059 = vunpack.c.h.b16 %v2153
    %v3060 = vunpack.c.l.b16 %v2154
    %v3061 = vunpack.c.l.b16 %v2155
    %v3062 = vunpack.c.h.b16 %v2155
    %v3063 = vunpack.c.l.b16 %v2156
    %v3064 = vunpack.c.l.b16 %v2157
    %v3065 = vunpack.c.h.b16 %v2157
    %v3066 = vunpack.c.l.b16 %v2158
    %v3067 = vunpack.c.l.b16 %v2159
    %v3068 = vunpack.c.h.b16 %v2159
    %v3069 = vunpack.c.l.b16 %v2160
    %v3070 = vunpack.c.l.b16 %v2161
    %v3071 = vunpack.c.h.b16 %v2161
    %v3072 = vunpack.c.l.b16 %v2162
    %v3073 = vunpack.c.l.b16 %v2163
    %v3074 = vunpack.c.h.b16 %v2163
    %v3075 = vunpack.c.l.b16 %v2164
    %v3076 = vunpack.c.l.b16 %v2165
    %v3077 = vunpack.c.h.b16 %v2165
    %v3078 = vunpack.c.l.b16 %v2166
    %v3079 = vunpack.c.l.b16 %v2167
    %v3080 = vunpack.c.h.b16 %v2167
    %v3081 = vunpack.c.l.b16 %v2168
    %v3082 = vunpack.c.l.b16 %v2169
    %v3083 = vunpack.c.h.b16 %v2169
    %v3084 = vunpack.c.l.b16 %v2170
    %v3085 = vunpack.c.l.b16 %v2171
    %v3086 = vunpack.c.h.b16 %v2171
    %v3087 = vunpack.c.l.b16 %v2172
    %v3088 = vpack.c.b16 %v2959, %v2956
    %v3089 = vpack.c.b16 %v2960, %v2957
    %v3090 = vpack.c.b16 %v2961, %v2958
    %v3091 = vpack.c.b16 %v2965, %v2962
    %v3092 = vpack.c.b16 %v2966, %v2963
    %v3093 = vpack.c.b16 %v2967, %v2964
    %v3094 = vpack.c.b16 %v2971, %v2968
    %v3095 = vpack.c.b16 %v2972, %v2969
    %v3096 = vpack.c.b16 %v2973, %v2970
    %v3097 = vpack.c.b16 %v2977, %v2974
    %v3098 = vpack.c.b16 %v2978, %v2975
    %v3099 = vpack.c.b16 %v2979, %v2976
    %v3100 = vpack.c.b16 %v2983, %v2980
    %v3101 = vpack.c.b16 %v2984, %v2981
    %v3102 = vpack.c.b16 %v2985, %v2982
    %v3103 = vpack.c.b16 %v2989, %v2986
    %v3104 = vpack.c.b16 %v2990, %v2987
    %v3105 = vpack.c.b16 %v2991, %v2988
    %v3106 = vpack.c.b16 %v2995, %v2992
    %v3107 = vpack.c.b16 %v2996, %v2993
    %v3108 = vpack.c.b16 %v2997, %v2994
    %v3109 = vpack.c.b16 %v3001, %v2998
    %v3110 = vpack.c.b16 %v3002, %v2999
    %v3111 = vpack.c.b16 %v3003, %v3000
    %v3112 = vpack.c.b16 %v3007, %v3004
    %v3113 = vpack.c.b16 %v3008, %v3005
    %v3114 = vpack.c.b16 %v3009, %v3006
    %v3115 = vpack.c.b16 %v3013, %v3010
    %v3116 = vpack.c.b16 %v3014, %v3011
    %v3117 = vpack.c.b16 %v3015, %v3012
    %v3118 = vpack.c.b16 %v3019, %v3016
    %v3119 = vpack.c.b16 %v3020, %v3017
    %v3120 = vpack.c.b16 %v3021, %v3018
    %v3121 = vpack.c.b16 %v3025, %v3022
    %v3122 = vpack.c.b16 %v3026, %v3023
    %v3123 = vpack.c.b16 %v3027, %v3024
    %v3124 = vpack.c.b16 %v3031, %v3028
    %v3125 = vpack.c.b16 %v3032, %v3029
    %v3126 = vpack.c.b16 %v3033, %v3030
    %v3127 = vpack.c.b16 %v3037, %v3034
    %v3128 = vpack.c.b16 %v3038, %v3035
    %v3129 = vpack.c.b16 %v3039, %v3036
    %v3130 = vpack.c.b16 %v3043, %v3040
    %v3131 = vpack.c.b16 %v3044, %v3041
    %v3132 = vpack.c.b16 %v3045, %v3042
    %v3133 = vpack.c.b16 %v3049, %v3046
    %v3134 = vpack.c.b16 %v3050, %v3047
    %v3135 = vpack.c.b16 %v3051, %v3048
    %v3136 = vpack.c.b16 %v3055, %v3052
    %v3137 = vpack.c.b16 %v3056, %v3053
    %v3138 = vpack.c.b16 %v3057, %v3054
    %v3139 = vpack.c.b16 %v3061, %v3058
    %v3140 = vpack.c.b16 %v3062, %v3059
    %v3141 = vpack.c.b16 %v3063, %v3060
    %v3142 = vpack.c.b16 %v3067, %v3064
    %v3143 = vpack.c.b16 %v3068, %v3065
    %v3144 = vpack.c.b16 %v3069, %v3066
    %v3145 = vpack.c.b16 %v3073, %v3070
    %v3146 = vpack.c.b16 %v3074, %v3071
    %v3147 = vpack.c.b16 %v3075, %v3072
    %v3148 = vpack.c.b16 %v3079, %v3076
    %v3149 = vpack.c.b16 %v3080, %v3077
    %v3150 = vpack.c.b16 %v3081, %v3078
    %v3151 = vpack.c.b16 %v3085, %v3082
    %v3152 = vpack.c.b16 %v3086, %v3083
    %v3153 = vpack.c.b16 %v3087, %v3084
    %v3220 = vsel %vm2663, %v2081, 0
    %v3222 = vsel %vm2663, %v2084, 0
    %3224 = vmatprep.subr.bf16.mxu0 %v3089
    %3225 = vmatpush1.bf16.msra.mxu0 %v3088
    %3226 = vmatprep.subr.bf16.mxu0 %v3092
    %3227 = vmatpush1.bf16.msra.mxu0 %v3091
    %3228 = vmatprep.subr.bf16.mxu0 %v3095
    %3229 = vmatpush1.bf16.msra.mxu0 %v3094
    %3230 = vmatprep.subr.bf16.mxu0 %v3098
    %3231 = vmatpush1.bf16.msra.mxu0 %v3097
    %3232 = vmatprep.subr.bf16.mxu0 %v3101
    %3233 = vmatpush1.bf16.msra.mxu0 %v3100
    %3234 = vmatprep.subr.bf16.mxu0 %v3104
    %3235 = vmatpush1.bf16.msra.mxu0 %v3103
    %3236 = vmatprep.subr.bf16.mxu0 %v3107
    %3237 = vmatpush1.bf16.msra.mxu0 %v3106
    %3238 = vmatprep.subr.bf16.mxu0 %v3110
    %3239 = vmatpush1.bf16.msra.mxu0 %v3109
    %3240 = vmatprep.subr.bf16.mxu0 %v3113
    %3241 = vmatpush1.bf16.msra.mxu0 %v3112
    %3242 = vmatprep.subr.bf16.mxu0 %v3116
    %3243 = vmatpush1.bf16.msra.mxu0 %v3115
    %3244 = vmatprep.subr.bf16.mxu0 %v3119
    %3245 = vmatpush1.bf16.msra.mxu0 %v3118
    %3246 = vmatprep.subr.bf16.mxu0 %v3122
    %3247 = vmatpush1.bf16.msra.mxu0 %v3121
    %3248 = vmatprep.subr.bf16.mxu0 %v3125
    %3249 = vmatpush1.bf16.msra.mxu0 %v3124
    %3250 = vmatprep.subr.bf16.mxu0 %v3128
    %3251 = vmatpush1.bf16.msra.mxu0 %v3127
    %3252 = vmatprep.subr.bf16.mxu0 %v3131
    %3253 = vmatpush1.bf16.msra.mxu0 %v3130
    %3254 = vmatprep.subr.bf16.mxu0 %v3134
    %3255 = vmatpush1.bf16.msra.mxu0 %v3133
    %3256 = vmatprep.mubr.bf16.mxu0 %v2080
    %3257 = vmatmul.mubr.bf16.gmra.mrb[0].mxu0 %v2079
    %v3258 = vpop.f32.mrb[0].mxu0
    %v3259 = vadd.f32 %v2756, %v3258
    %v3260 = vpop.f32.mrb[0].mxu0
    %v3261 = vadd.f32 %v2758, %v3260
    %v3262 = vpop.f32.mrb[0].mxu0
    %v3263 = vadd.f32 %v2760, %v3262
    %v3264 = vpop.f32.mrb[0].mxu0
    %v3265 = vadd.f32 %v2762, %v3264
    %3266 = vmatprep.mubr.bf16.mxu0 %v2083
    %3267 = vmatmul.mubr.bf16.gmra.mrb[0].mxu0 %v2082
    %v3268 = vpop.f32.mrb[0].mxu0
    %v3269 = vadd.f32 %v2766, %v3268
    %v3270 = vpop.f32.mrb[0].mxu0
    %v3271 = vadd.f32 %v2768, %v3270
    %v3272 = vpop.f32.mrb[0].mxu0
    %v3273 = vpop.f32.mrb[0].mxu0
    %3274 = vdwg.mxu0
    %3275 = vmatprep.subr.bf16.mxu0 %v3137
    %3276 = vmatpush1.bf16.msra.mxu0 %v3136
    %3277 = vmatprep.subr.bf16.mxu0 %v3140
    %3278 = vmatpush1.bf16.msra.mxu0 %v3139
    %3279 = vmatprep.subr.bf16.mxu0 %v3143
    %3280 = vmatpush1.bf16.msra.mxu0 %v3142
    %3281 = vmatprep.subr.bf16.mxu0 %v3146
    %3282 = vmatpush1.bf16.msra.mxu0 %v3145
    %3283 = vmatprep.subr.bf16.mxu0 %v3149
    %3284 = vmatpush1.bf16.msra.mxu0 %v3148
    %3285 = vmatprep.subr.bf16.mxu0 %v3152
    %3286 = vmatpush1.bf16.msra.mxu0 %v3151
    %3287 = vmatprep.subr.bf16.mxu0 0
    %3288 = vmatpush1.bf16.msra.mxu0 0
    %3289 = vmatprep.subr.bf16.mxu0 0
    %3290 = vmatpush1.bf16.msra.mxu0 0
    %3291 = vmatprep.subr.bf16.mxu0 0
    %3292 = vmatpush1.bf16.msra.mxu0 0
    %3293 = vmatprep.subr.bf16.mxu0 0
    %3294 = vmatpush1.bf16.msra.mxu0 0
    %3295 = vmatprep.subr.bf16.mxu0 0
    %3296 = vmatpush1.bf16.msra.mxu0 0
    %3297 = vmatprep.subr.bf16.mxu0 0
    %3298 = vmatpush1.bf16.msra.mxu0 0
    %3299 = vmatprep.subr.bf16.mxu0 0
    %3300 = vmatpush1.bf16.msra.mxu0 0
    %3301 = vmatprep.subr.bf16.mxu0 0
    %3302 = vmatpush1.bf16.msra.mxu0 0
    %3303 = vmatprep.subr.bf16.mxu0 0
    %3304 = vmatpush1.bf16.msra.mxu0 0
    %3305 = vmatprep.subr.bf16.mxu0 0
    %3306 = vmatpush1.bf16.msra.mxu0 0
    %3307 = vmatprep.mubr.bf16.mxu0 0
    %3308 = vmatmul.mubr.bf16.gmra.mrb[0].mxu0 %v3220
    %v3309 = vpop.f32.mrb[0].mxu0
    %v3310 = vadd.f32 %v3259, %v3309
    %v3311 = vpop.f32.mrb[0].mxu0
    %v3312 = vadd.f32 %v3261, %v3311
    %v3313 = vpop.f32.mrb[0].mxu0
    %v3314 = vadd.f32 %v3263, %v3313
    %v3315 = vpop.f32.mrb[0].mxu0
    %v3316 = vadd.f32 %v3265, %v3315
    %3317 = vmatprep.mubr.bf16.mxu0 0
    %3318 = vmatmul.mubr.bf16.gmra.mrb[0].mxu0 %v3222
    %v3319 = vpop.f32.mrb[0].mxu0
    %v3320 = vadd.f32 %v3269, %v3319
    %v3321 = vpop.f32.mrb[0].mxu0
    %v3322 = vadd.f32 %v3271, %v3321
    %v3323 = vpop.f32.mrb[0].mxu0
    %v3324 = vpop.f32.mrb[0].mxu0
    %3325 = vdwg.mxu0
    %3326 = vmatprep.subr.bf16.mxu0 0
    %3327 = vmatpush1.bf16.msra.mxu0 %v3090
    %3328 = vmatprep.subr.bf16.mxu0 0
    %3329 = vmatpush1.bf16.msra.mxu0 %v3093
    %3330 = vmatprep.subr.bf16.mxu0 0
    %3331 = vmatpush1.bf16.msra.mxu0 %v3096
    %3332 = vmatprep.subr.bf16.mxu0 0
    %3333 = vmatpush1.bf16.msra.mxu0 %v3099
    %3334 = vmatprep.subr.bf16.mxu0 0
    %3335 = vmatpush1.bf16.msra.mxu0 %v3102
    %3336 = vmatprep.subr.bf16.mxu0 0
    %3337 = vmatpush1.bf16.msra.mxu0 %v3105
    %3338 = vmatprep.subr.bf16.mxu0 0
    %3339 = vmatpush1.bf16.msra.mxu0 %v3108
    %3340 = vmatprep.subr.bf16.mxu0 0
    %3341 = vmatpush1.bf16.msra.mxu0 %v3111
    %3342 = vmatprep.subr.bf16.mxu0 0
    %3343 = vmatpush1.bf16.msra.mxu0 %v3114
    %3344 = vmatprep.subr.bf16.mxu0 0
    %3345 = vmatpush1.bf16.msra.mxu0 %v3117
    %3346 = vmatprep.subr.bf16.mxu0 0
    %3347 = vmatpush1.bf16.msra.mxu0 %v3120
    %3348 = vmatprep.subr.bf16.mxu0 0
    %3349 = vmatpush1.bf16.msra.mxu0 %v3123
    %3350 = vmatprep.subr.bf16.mxu0 0
    %3351 = vmatpush1.bf16.msra.mxu0 %v3126
    %3352 = vmatprep.subr.bf16.mxu0 0
    %3353 = vmatpush1.bf16.msra.mxu0 %v3129
    %3354 = vmatprep.subr.bf16.mxu0 0
    %3355 = vmatpush1.bf16.msra.mxu0 %v3132
    %3356 = vmatprep.subr.bf16.mxu0 0
    %3357 = vmatpush1.bf16.msra.mxu0 %v3135
    %3358 = vmatprep.mubr.bf16.mxu0 %v2080
    %3359 = vmatmul.mubr.bf16.gmra.mrb[0].mxu0 %v2079
    %v3360 = vpop.f32.mrb[0].mxu0
    %v3361 = vadd.f32 %v2855, %v3360
    %v3362 = vpop.f32.mrb[0].mxu0
    %v3363 = vpop.f32.mrb[0].mxu0
    %v3364 = vadd.f32 %v2858, %v3363
    %v3365 = vpop.f32.mrb[0].mxu0
    %3366 = vmatprep.mubr.bf16.mxu0 %v2083
    %3367 = vmatmul.mubr.bf16.gmra.mrb[0].mxu0 %v2082
    %v3368 = vpop.f32.mrb[0].mxu0
    %v3369 = vadd.f32 %v2863, %v3368
    %v3370 = vpop.f32.mrb[0].mxu0
    %v3371 = vpop.f32.mrb[0].mxu0
    %v3372 = vpop.f32.mrb[0].mxu0
    %3373 = vdwg.mxu0
    %3374 = vmatprep.subr.bf16.mxu0 0
    %3375 = vmatpush1.bf16.msra.mxu0 %v3138
    %3376 = vmatprep.subr.bf16.mxu0 0
    %3377 = vmatpush1.bf16.msra.mxu0 %v3141
    %3378 = vmatprep.subr.bf16.mxu0 0
    %3379 = vmatpush1.bf16.msra.mxu0 %v3144
    %3380 = vmatprep.subr.bf16.mxu0 0
    %3381 = vmatpush1.bf16.msra.mxu0 %v3147
    %3382 = vmatprep.subr.bf16.mxu0 0
    %3383 = vmatpush1.bf16.msra.mxu0 %v3150
    %3384 = vmatprep.subr.bf16.mxu0 0
    %3385 = vmatpush1.bf16.msra.mxu0 %v3153
    %3386 = vmatprep.subr.bf16.mxu0 0
    %3387 = vmatpush1.bf16.msra.mxu0 0
    %3388 = vmatprep.subr.bf16.mxu0 0
    %3389 = vmatpush1.bf16.msra.mxu0 0
    %3390 = vmatprep.subr.bf16.mxu0 0
    %3391 = vmatpush1.bf16.msra.mxu0 0
    %3392 = vmatprep.subr.bf16.mxu0 0
    %3393 = vmatpush1.bf16.msra.mxu0 0
    %3394 = vmatprep.subr.bf16.mxu0 0
    %3395 = vmatpush1.bf16.msra.mxu0 0
    %3396 = vmatprep.subr.bf16.mxu0 0
    %3397 = vmatpush1.bf16.msra.mxu0 0
    %3398 = vmatprep.subr.bf16.mxu0 0
    %3399 = vmatpush1.bf16.msra.mxu0 0
    %3400 = vmatprep.subr.bf16.mxu0 0
    %3401 = vmatpush1.bf16.msra.mxu0 0
    %3402 = vmatprep.subr.bf16.mxu0 0
    %3403 = vmatpush1.bf16.msra.mxu0 0
    %3404 = vmatprep.subr.bf16.mxu0 0
    %3405 = vmatpush1.bf16.msra.mxu0 0
    %3406 = vmatprep.mubr.bf16.mxu0 0
    %3407 = vmatmul.mubr.bf16.gmra.mrb[0].mxu0 %v3220
    %v3408 = vpop.f32.mrb[0].mxu0
    %v3409 = vadd.f32 %v3361, %v3408
    %v3410 = vpop.f32.mrb[0].mxu0
    %v3411 = vpop.f32.mrb[0].mxu0
    %v3412 = vadd.f32 %v3364, %v3411
    %v3413 = vpop.f32.mrb[0].mxu0
    %3414 = vmatprep.mubr.bf16.mxu0 0
    %3415 = vmatmul.mubr.bf16.gmra.mrb[0].mxu0 %v3222
    %v3416 = vpop.f32.mrb[0].mxu0
    %v3417 = vadd.f32 %v3369, %v3416
    %v3418 = vpop.f32.mrb[0].mxu0
    %v3419 = vpop.f32.mrb[0].mxu0
    %v3420 = vpop.f32.mrb[0].mxu0
    %3421 = vdwg.mxu0
    %s3422 = scalar_lea.vmem %s4, 1056
    %v3423 = vld [vmem:[%s3422] sm:$0xff]
    %v3424 = vld [vmem:[%s3422 + $0x8] sm:$0xf]
    %v3425 = vld [vmem:[%s3422 + $0xc] sm:$0xff]
    %v3426 = vld [vmem:[%s3422 + $0x14] sm:$0xf]
    %v3427 = vld [vmem:[%s3422 + $0x18] sm:$0xff]
    %v3428 = vld [vmem:[%s3422 + $0x20] sm:$0xf]
    %v3429 = vld [vmem:[%s3422 + $0x24] sm:$0xff]
    %v3430 = vld [vmem:[%s3422 + $0x2c] sm:$0xf]
    %v3431 = vld [vmem:[%s3422 + $0x30] sm:$0xff]
    %v3432 = vld [vmem:[%s3422 + $0x38] sm:$0xf]
    %v3433 = vld [vmem:[%s3422 + $0x3c] sm:$0xff]
    %v3434 = vld [vmem:[%s3422 + $0x44] sm:$0xf]
    %v3435 = vld [vmem:[%s3422 + $0x48] sm:$0xff]
    %v3436 = vld [vmem:[%s3422 + $0x50] sm:$0xf]
    %v3437 = vld [vmem:[%s3422 + $0x54] sm:$0xff]
    %v3438 = vld [vmem:[%s3422 + $0x5c] sm:$0xf]
    %v3439 = vld [vmem:[%s3422 + $0x60] sm:$0xff]
    %v3440 = vld [vmem:[%s3422 + $0x68] sm:$0xf]
    %v3441 = vld [vmem:[%s3422 + $0x6c] sm:$0xff]
    %v3442 = vld [vmem:[%s3422 + $0x74] sm:$0xf]
    %v3443 = vld [vmem:[%s3422 + $0x78] sm:$0xff]
    %v3444 = vld [vmem:[%s3422 + $0x80] sm:$0xf]
    %v3445 = vld [vmem:[%s3422 + $0x84] sm:$0xff]
    %v3446 = vld [vmem:[%s3422 + $0x8c] sm:$0xf]
    %v3447 = vld [vmem:[%s3422 + $0x90] sm:$0xff]
    %v3448 = vld [vmem:[%s3422 + $0x98] sm:$0xf]
    %v3449 = vld [vmem:[%s3422 + $0x9c] sm:$0xff]
    %v3450 = vld [vmem:[%s3422 + $0xa4] sm:$0xf]
    %v3451 = vld [vmem:[%s3422 + $0xa8] sm:$0xff]
    %v3452 = vld [vmem:[%s3422 + $0xb0] sm:$0xf]
    %v3453 = vld [vmem:[%s3422 + $0xb4] sm:$0xff]
    %v3454 = vld [vmem:[%s3422 + $0xbc] sm:$0xf]
    %v3455 = vld [vmem:[%s3422 + $0xc0] sm:$0xff]
    %v3456 = vld [vmem:[%s3422 + $0xc8] sm:$0xf]
    %v3457 = vld [vmem:[%s3422 + $0xcc] sm:$0xff]
    %v3458 = vld [vmem:[%s3422 + $0xd4] sm:$0xf]
    %v3459 = vld [vmem:[%s3422 + $0xd8] sm:$0xff]
    %v3460 = vld [vmem:[%s3422 + $0xe0] sm:$0xf]
    %v3461 = vld [vmem:[%s3422 + $0xe4] sm:$0xff]
    %v3462 = vld [vmem:[%s3422 + $0xec] sm:$0xf]
    %v3463 = vld [vmem:[%s3422 + $0xf0] sm:$0xff]
    %v3464 = vld [vmem:[%s3422 + $0xf8] sm:$0xf]
    %v3465 = vld [vmem:[%s3422 + $0xfc] sm:$0xff]
    %v3466 = vld [vmem:[%s3422 + $0x104] sm:$0xf]
    %v3467 = vld [vmem:[%s3422 + $0x108] sm:$0xff]
    %v3468 = vld [vmem:[%s3422 + $0x110] sm:$0xf]
    %v3469 = vld [vmem:[%s3422 + $0x114] sm:$0xff]
    %v3470 = vld [vmem:[%s3422 + $0x11c] sm:$0xf]
    %v3471 = vld [vmem:[%s3422 + $0x120] sm:$0xff]
    %v3472 = vld [vmem:[%s3422 + $0x128] sm:$0xf]
    %v3473 = vld [vmem:[%s3422 + $0x12c] sm:$0xff]
    %v3474 = vld [vmem:[%s3422 + $0x134] sm:$0xf]
    %v3475 = vld [vmem:[%s3422 + $0x138] sm:$0xff]
    %v3476 = vld [vmem:[%s3422 + $0x140] sm:$0xf]
    %v3477 = vld [vmem:[%s3422 + $0x144] sm:$0xff]
    %v3478 = vld [vmem:[%s3422 + $0x14c] sm:$0xf]
    %v3479 = vld [vmem:[%s3422 + $0x150] sm:$0xff]
    %v3480 = vld [vmem:[%s3422 + $0x158] sm:$0xf]
    %v3481 = vld [vmem:[%s3422 + $0x15c] sm:$0xff]
    %v3482 = vld [vmem:[%s3422 + $0x164] sm:$0xf]
    %v3483 = vld [vmem:[%s3422 + $0x168] sm:$0xff]
    %v3484 = vld [vmem:[%s3422 + $0x170] sm:$0xf]
    %v3485 = vld [vmem:[%s3422 + $0x174] sm:$0xff]
    %v3486 = vld [vmem:[%s3422 + $0x17c] sm:$0xf]
    %v3487 = vld [vmem:[%s3422 + $0x180] sm:$0xff]
    %v3488 = vld [vmem:[%s3422 + $0x188] sm:$0xf]
    %v3489 = vld [vmem:[%s3422 + $0x18c] sm:$0xff]
    %v3490 = vld [vmem:[%s3422 + $0x194] sm:$0xf]
    %v3491 = vld [vmem:[%s3422 + $0x198] sm:$0xff]
    %v3492 = vld [vmem:[%s3422 + $0x1a0] sm:$0xf]
    %v3493 = vld [vmem:[%s3422 + $0x1a4] sm:$0xff]
    %v3494 = vld [vmem:[%s3422 + $0x1ac] sm:$0xf]
    %v3495 = vld [vmem:[%s3422 + $0x1b0] sm:$0xff]
    %v3496 = vld [vmem:[%s3422 + $0x1b8] sm:$0xf]
    %v3497 = vld [vmem:[%s3422 + $0x1bc] sm:$0xff]
    %v3498 = vld [vmem:[%s3422 + $0x1c4] sm:$0xf]
    %v3499 = vld [vmem:[%s3422 + $0x1c8] sm:$0xff]
    %v3500 = vld [vmem:[%s3422 + $0x1d0] sm:$0xf]
    %v3501 = vld [vmem:[%s3422 + $0x1d4] sm:$0xff]
    %v3502 = vld [vmem:[%s3422 + $0x1dc] sm:$0xf]
    %v3503 = vld [vmem:[%s3422 + $0x1e0] sm:$0xff]
    %v3504 = vld [vmem:[%s3422 + $0x1e8] sm:$0xf]
    %v3505 = vld [vmem:[%s3422 + $0x1ec] sm:$0xff]
    %v3506 = vld [vmem:[%s3422 + $0x1f4] sm:$0xf]
    %v3507 = vld [vmem:[%s3422 + $0x1f8] sm:$0xff]
    %v3508 = vld [vmem:[%s3422 + $0x200] sm:$0xf]
    %v3509 = vld [vmem:[%s3422 + $0x204] sm:$0xff]
    %v3510 = vld [vmem:[%s3422 + $0x20c] sm:$0xf]
    %v3517 = vrot.slane %v2079, 1
    %v3518 = vrot.slane %v2082, 1
    %v3519 = vsel %vm732, %v3517, %v3518
    %v3520 = vrot.slane %v2080, 1
    %v3521 = vrot.slane %v2083, 1
    %v3522 = vsel %vm732, %v3520, %v3521
    %v3523 = vrot.slane %v2081, 1
    %v3524 = vrot.slane %v2084, 1
    %v3525 = vsel %vm732, %v3523, %v3524
    %v3618 = vunpack.c.l.b16 %v3423
    %v3619 = vunpack.c.h.b16 %v3423
    %v3620 = vunpack.c.l.b16 %v3424
    %v3621 = vunpack.c.l.b16 %v3425
    %v3622 = vunpack.c.h.b16 %v3425
    %v3623 = vunpack.c.l.b16 %v3426
    %v3624 = vunpack.c.l.b16 %v3427
    %v3625 = vunpack.c.h.b16 %v3427
    %v3626 = vunpack.c.l.b16 %v3428
    %v3627 = vunpack.c.l.b16 %v3429
    %v3628 = vunpack.c.h.b16 %v3429
    %v3629 = vunpack.c.l.b16 %v3430
    %v3630 = vunpack.c.l.b16 %v3431
    %v3631 = vunpack.c.h.b16 %v3431
    %v3632 = vunpack.c.l.b16 %v3432
    %v3633 = vunpack.c.l.b16 %v3433
    %v3634 = vunpack.c.h.b16 %v3433
    %v3635 = vunpack.c.l.b16 %v3434
    %v3636 = vunpack.c.l.b16 %v3435
    %v3637 = vunpack.c.h.b16 %v3435
    %v3638 = vunpack.c.l.b16 %v3436
    %v3639 = vunpack.c.l.b16 %v3437
    %v3640 = vunpack.c.h.b16 %v3437
    %v3641 = vunpack.c.l.b16 %v3438
    %v3642 = vunpack.c.l.b16 %v3439
    %v3643 = vunpack.c.h.b16 %v3439
    %v3644 = vunpack.c.l.b16 %v3440
    %v3645 = vunpack.c.l.b16 %v3441
    %v3646 = vunpack.c.h.b16 %v3441
    %v3647 = vunpack.c.l.b16 %v3442
    %v3648 = vunpack.c.l.b16 %v3443
    %v3649 = vunpack.c.h.b16 %v3443
    %v3650 = vunpack.c.l.b16 %v3444
    %v3651 = vunpack.c.l.b16 %v3445
    %v3652 = vunpack.c.h.b16 %v3445
    %v3653 = vunpack.c.l.b16 %v3446
    %v3654 = vunpack.c.l.b16 %v3447
    %v3655 = vunpack.c.h.b16 %v3447
    %v3656 = vunpack.c.l.b16 %v3448
    %v3657 = vunpack.c.l.b16 %v3449
    %v3658 = vunpack.c.h.b16 %v3449
    %v3659 = vunpack.c.l.b16 %v3450
    %v3660 = vunpack.c.l.b16 %v3451
    %v3661 = vunpack.c.h.b16 %v3451
    %v3662 = vunpack.c.l.b16 %v3452
    %v3663 = vunpack.c.l.b16 %v3453
    %v3664 = vunpack.c.h.b16 %v3453
    %v3665 = vunpack.c.l.b16 %v3454
    %v3666 = vunpack.c.l.b16 %v3455
    %v3667 = vunpack.c.h.b16 %v3455
    %v3668 = vunpack.c.l.b16 %v3456
    %v3669 = vunpack.c.l.b16 %v3457
    %v3670 = vunpack.c.h.b16 %v3457
    %v3671 = vunpack.c.l.b16 %v3458
    %v3672 = vunpack.c.l.b16 %v3459
    %v3673 = vunpack.c.h.b16 %v3459
    %v3674 = vunpack.c.l.b16 %v3460
    %v3675 = vunpack.c.l.b16 %v3461
    %v3676 = vunpack.c.h.b16 %v3461
    %v3677 = vunpack.c.l.b16 %v3462
    %v3678 = vunpack.c.l.b16 %v3463
    %v3679 = vunpack.c.h.b16 %v3463
    %v3680 = vunpack.c.l.b16 %v3464
    %v3681 = vunpack.c.l.b16 %v3465
    %v3682 = vunpack.c.h.b16 %v3465
    %v3683 = vunpack.c.l.b16 %v3466
    %v3684 = vunpack.c.l.b16 %v3467
    %v3685 = vunpack.c.h.b16 %v3467
    %v3686 = vunpack.c.l.b16 %v3468
    %v3687 = vunpack.c.l.b16 %v3469
    %v3688 = vunpack.c.h.b16 %v3469
    %v3689 = vunpack.c.l.b16 %v3470
    %v3690 = vunpack.c.l.b16 %v3471
    %v3691 = vunpack.c.h.b16 %v3471
    %v3692 = vunpack.c.l.b16 %v3472
    %v3693 = vunpack.c.l.b16 %v3473
    %v3694 = vunpack.c.h.b16 %v3473
    %v3695 = vunpack.c.l.b16 %v3474
    %v3696 = vunpack.c.l.b16 %v3475
    %v3697 = vunpack.c.h.b16 %v3475
    %v3698 = vunpack.c.l.b16 %v3476
    %v3699 = vunpack.c.l.b16 %v3477
    %v3700 = vunpack.c.h.b16 %v3477
    %v3701 = vunpack.c.l.b16 %v3478
    %v3702 = vunpack.c.l.b16 %v3479
    %v3703 = vunpack.c.h.b16 %v3479
    %v3704 = vunpack.c.l.b16 %v3480
    %v3705 = vunpack.c.l.b16 %v3481
    %v3706 = vunpack.c.h.b16 %v3481
    %v3707 = vunpack.c.l.b16 %v3482
    %v3708 = vunpack.c.l.b16 %v3483
    %v3709 = vunpack.c.h.b16 %v3483
    %v3710 = vunpack.c.l.b16 %v3484
    %v3711 = vunpack.c.l.b16 %v3485
    %v3712 = vunpack.c.h.b16 %v3485
    %v3713 = vunpack.c.l.b16 %v3486
    %v3714 = vunpack.c.l.b16 %v3487
    %v3715 = vunpack.c.h.b16 %v3487
    %v3716 = vunpack.c.l.b16 %v3488
    %v3717 = vunpack.c.l.b16 %v3489
    %v3718 = vunpack.c.h.b16 %v3489
    %v3719 = vunpack.c.l.b16 %v3490
    %v3720 = vunpack.c.l.b16 %v3491
    %v3721 = vunpack.c.h.b16 %v3491
    %v3722 = vunpack.c.l.b16 %v3492
    %v3723 = vunpack.c.l.b16 %v3493
    %v3724 = vunpack.c.h.b16 %v3493
    %v3725 = vunpack.c.l.b16 %v3494
    %v3726 = vunpack.c.l.b16 %v3495
    %v3727 = vunpack.c.h.b16 %v3495
    %v3728 = vunpack.c.l.b16 %v3496
    %v3729 = vunpack.c.l.b16 %v3497
    %v3730 = vunpack.c.h.b16 %v3497
    %v3731 = vunpack.c.l.b16 %v3498
    %v3732 = vunpack.c.l.b16 %v3499
    %v3733 = vunpack.c.h.b16 %v3499
    %v3734 = vunpack.c.l.b16 %v3500
    %v3735 = vunpack.c.l.b16 %v3501
    %v3736 = vunpack.c.h.b16 %v3501
    %v3737 = vunpack.c.l.b16 %v3502
    %v3738 = vunpack.c.l.b16 %v3503
    %v3739 = vunpack.c.h.b16 %v3503
    %v3740 = vunpack.c.l.b16 %v3504
    %v3741 = vunpack.c.l.b16 %v3505
    %v3742 = vunpack.c.h.b16 %v3505
    %v3743 = vunpack.c.l.b16 %v3506
    %v3744 = vunpack.c.l.b16 %v3507
    %v3745 = vunpack.c.h.b16 %v3507
    %v3746 = vunpack.c.l.b16 %v3508
    %v3747 = vunpack.c.l.b16 %v3509
    %v3748 = vunpack.c.h.b16 %v3509
    %v3749 = vunpack.c.l.b16 %v3510
    %v3750 = vpack.c.b16 %v3621, %v3618
    %v3751 = vpack.c.b16 %v3622, %v3619
    %v3752 = vpack.c.b16 %v3623, %v3620
    %v3753 = vpack.c.b16 %v3627, %v3624
    %v3754 = vpack.c.b16 %v3628, %v3625
    %v3755 = vpack.c.b16 %v3629, %v3626
    %v3756 = vpack.c.b16 %v3633, %v3630
    %v3757 = vpack.c.b16 %v3634, %v3631
    %v3758 = vpack.c.b16 %v3635, %v3632
    %v3759 = vpack.c.b16 %v3639, %v3636
    %v3760 = vpack.c.b16 %v3640, %v3637
    %v3761 = vpack.c.b16 %v3641, %v3638
    %v3762 = vpack.c.b16 %v3645, %v3642
    %v3763 = vpack.c.b16 %v3646, %v3643
    %v3764 = vpack.c.b16 %v3647, %v3644
    %v3765 = vpack.c.b16 %v3651, %v3648
    %v3766 = vpack.c.b16 %v3652, %v3649
    %v3767 = vpack.c.b16 %v3653, %v3650
    %v3768 = vpack.c.b16 %v3657, %v3654
    %v3769 = vpack.c.b16 %v3658, %v3655
    %v3770 = vpack.c.b16 %v3659, %v3656
    %v3771 = vpack.c.b16 %v3663, %v3660
    %v3772 = vpack.c.b16 %v3664, %v3661
    %v3773 = vpack.c.b16 %v3665, %v3662
    %v3774 = vpack.c.b16 %v3669, %v3666
    %v3775 = vpack.c.b16 %v3670, %v3667
    %v3776 = vpack.c.b16 %v3671, %v3668
    %v3777 = vpack.c.b16 %v3675, %v3672
    %v3778 = vpack.c.b16 %v3676, %v3673
    %v3779 = vpack.c.b16 %v3677, %v3674
    %v3780 = vpack.c.b16 %v3681, %v3678
    %v3781 = vpack.c.b16 %v3682, %v3679
    %v3782 = vpack.c.b16 %v3683, %v3680
    %v3783 = vpack.c.b16 %v3687, %v3684
    %v3784 = vpack.c.b16 %v3688, %v3685
    %v3785 = vpack.c.b16 %v3689, %v3686
    %v3786 = vpack.c.b16 %v3693, %v3690
    %v3787 = vpack.c.b16 %v3694, %v3691
    %v3788 = vpack.c.b16 %v3695, %v3692
    %v3789 = vpack.c.b16 %v3699, %v3696
    %v3790 = vpack.c.b16 %v3700, %v3697
    %v3791 = vpack.c.b16 %v3701, %v3698
    %v3792 = vpack.c.b16 %v3705, %v3702
    %v3793 = vpack.c.b16 %v3706, %v3703
    %v3794 = vpack.c.b16 %v3707, %v3704
    %v3795 = vpack.c.b16 %v3711, %v3708
    %v3796 = vpack.c.b16 %v3712, %v3709
    %v3797 = vpack.c.b16 %v3713, %v3710
    %v3798 = vpack.c.b16 %v3717, %v3714
    %v3799 = vpack.c.b16 %v3718, %v3715
    %v3800 = vpack.c.b16 %v3719, %v3716
    %v3801 = vpack.c.b16 %v3723, %v3720
    %v3802 = vpack.c.b16 %v3724, %v3721
    %v3803 = vpack.c.b16 %v3725, %v3722
    %v3804 = vpack.c.b16 %v3729, %v3726
    %v3805 = vpack.c.b16 %v3730, %v3727
    %v3806 = vpack.c.b16 %v3731, %v3728
    %v3807 = vpack.c.b16 %v3735, %v3732
    %v3808 = vpack.c.b16 %v3736, %v3733
    %v3809 = vpack.c.b16 %v3737, %v3734
    %v3810 = vpack.c.b16 %v3741, %v3738
    %v3811 = vpack.c.b16 %v3742, %v3739
    %v3812 = vpack.c.b16 %v3743, %v3740
    %v3813 = vpack.c.b16 %v3747, %v3744
    %v3814 = vpack.c.b16 %v3748, %v3745
    %v3815 = vpack.c.b16 %v3749, %v3746
    %v3883 = vsel %vm2663, %v3525, 0
    %v3886 = vsel %vm2663, %v3524, 0
    %3888 = vmatprep.subr.bf16.mxu0 %v3751
    %3889 = vmatpush1.bf16.msra.mxu0 %v3750
    %3890 = vmatprep.subr.bf16.mxu0 %v3754
    %3891 = vmatpush1.bf16.msra.mxu0 %v3753
    %3892 = vmatprep.subr.bf16.mxu0 %v3757
    %3893 = vmatpush1.bf16.msra.mxu0 %v3756
    %3894 = vmatprep.subr.bf16.mxu0 %v3760
    %3895 = vmatpush1.bf16.msra.mxu0 %v3759
    %3896 = vmatprep.subr.bf16.mxu0 %v3763
    %3897 = vmatpush1.bf16.msra.mxu0 %v3762
    %3898 = vmatprep.subr.bf16.mxu0 %v3766
    %3899 = vmatpush1.bf16.msra.mxu0 %v3765
    %3900 = vmatprep.subr.bf16.mxu0 %v3769
    %3901 = vmatpush1.bf16.msra.mxu0 %v3768
    %3902 = vmatprep.subr.bf16.mxu0 %v3772
    %3903 = vmatpush1.bf16.msra.mxu0 %v3771
    %3904 = vmatprep.subr.bf16.mxu0 %v3775
    %3905 = vmatpush1.bf16.msra.mxu0 %v3774
    %3906 = vmatprep.subr.bf16.mxu0 %v3778
    %3907 = vmatpush1.bf16.msra.mxu0 %v3777
    %3908 = vmatprep.subr.bf16.mxu0 %v3781
    %3909 = vmatpush1.bf16.msra.mxu0 %v3780
    %3910 = vmatprep.subr.bf16.mxu0 %v3784
    %3911 = vmatpush1.bf16.msra.mxu0 %v3783
    %3912 = vmatprep.subr.bf16.mxu0 %v3787
    %3913 = vmatpush1.bf16.msra.mxu0 %v3786
    %3914 = vmatprep.subr.bf16.mxu0 %v3790
    %3915 = vmatpush1.bf16.msra.mxu0 %v3789
    %3916 = vmatprep.subr.bf16.mxu0 %v3793
    %3917 = vmatpush1.bf16.msra.mxu0 %v3792
    %3918 = vmatprep.subr.bf16.mxu0 %v3796
    %3919 = vmatpush1.bf16.msra.mxu0 %v3795
    %3920 = vmatprep.mubr.bf16.mxu0 %v3522
    %3921 = vmatmul.mubr.bf16.gmra.mrb[0].mxu0 %v3519
    %v3922 = vpop.f32.mrb[0].mxu0
    %v3923 = vadd.f32 0.0, %v3922
    %v3924 = vpop.f32.mrb[0].mxu0
    %v3925 = vadd.f32 0.0, %v3924
    %v3926 = vpop.f32.mrb[0].mxu0
    %v3927 = vadd.f32 0.0, %v3926
    %v3928 = vpop.f32.mrb[0].mxu0
    %v3929 = vadd.f32 0.0, %v3928
    %3930 = vmatprep.mubr.bf16.mxu0 %v3521
    %3931 = vmatmul.mubr.bf16.gmra.mrb[0].mxu0 %v3518
    %v3932 = vpop.f32.mrb[0].mxu0
    %v3933 = vadd.f32 0.0, %v3932
    %v3934 = vpop.f32.mrb[0].mxu0
    %v3935 = vadd.f32 0.0, %v3934
    %v3936 = vpop.f32.mrb[0].mxu0
    %v3937 = vpop.f32.mrb[0].mxu0
    %3938 = vdwg.mxu0
    %3939 = vmatprep.subr.bf16.mxu0 %v3799
    %3940 = vmatpush1.bf16.msra.mxu0 %v3798
    %3941 = vmatprep.subr.bf16.mxu0 %v3802
    %3942 = vmatpush1.bf16.msra.mxu0 %v3801
    %3943 = vmatprep.subr.bf16.mxu0 %v3805
    %3944 = vmatpush1.bf16.msra.mxu0 %v3804
    %3945 = vmatprep.subr.bf16.mxu0 %v3808
    %3946 = vmatpush1.bf16.msra.mxu0 %v3807
    %3947 = vmatprep.subr.bf16.mxu0 %v3811
    %3948 = vmatpush1.bf16.msra.mxu0 %v3810
    %3949 = vmatprep.subr.bf16.mxu0 %v3814
    %3950 = vmatpush1.bf16.msra.mxu0 %v3813
    %3951 = vmatprep.subr.bf16.mxu0 0
    %3952 = vmatpush1.bf16.msra.mxu0 0
    %3953 = vmatprep.subr.bf16.mxu0 0
    %3954 = vmatpush1.bf16.msra.mxu0 0
    %3955 = vmatprep.subr.bf16.mxu0 0
    %3956 = vmatpush1.bf16.msra.mxu0 0
    %3957 = vmatprep.subr.bf16.mxu0 0
    %3958 = vmatpush1.bf16.msra.mxu0 0
    %3959 = vmatprep.subr.bf16.mxu0 0
    %3960 = vmatpush1.bf16.msra.mxu0 0
    %3961 = vmatprep.subr.bf16.mxu0 0
    %3962 = vmatpush1.bf16.msra.mxu0 0
    %3963 = vmatprep.subr.bf16.mxu0 0
    %3964 = vmatpush1.bf16.msra.mxu0 0
    %3965 = vmatprep.subr.bf16.mxu0 0
    %3966 = vmatpush1.bf16.msra.mxu0 0
    %3967 = vmatprep.subr.bf16.mxu0 0
    %3968 = vmatpush1.bf16.msra.mxu0 0
    %3969 = vmatprep.subr.bf16.mxu0 0
    %3970 = vmatpush1.bf16.msra.mxu0 0
    %3971 = vmatprep.mubr.bf16.mxu0 0
    %3972 = vmatmul.mubr.bf16.gmra.mrb[0].mxu0 %v3883
    %v3973 = vpop.f32.mrb[0].mxu0
    %v3974 = vadd.f32 %v3923, %v3973
    %v3975 = vpop.f32.mrb[0].mxu0
    %v3976 = vadd.f32 %v3925, %v3975
    %v3977 = vpop.f32.mrb[0].mxu0
    %v3978 = vadd.f32 %v3927, %v3977
    %v3979 = vpop.f32.mrb[0].mxu0
    %v3980 = vadd.f32 %v3929, %v3979
    %3981 = vmatprep.mubr.bf16.mxu0 0
    %3982 = vmatmul.mubr.bf16.gmra.mrb[0].mxu0 %v3886
    %v3983 = vpop.f32.mrb[0].mxu0
    %v3984 = vadd.f32 %v3933, %v3983
    %v3985 = vpop.f32.mrb[0].mxu0
    %v3986 = vadd.f32 %v3935, %v3985
    %v3987 = vpop.f32.mrb[0].mxu0
    %v3988 = vpop.f32.mrb[0].mxu0
    %3989 = vdwg.mxu0
    %3990 = vmatprep.subr.bf16.mxu0 0
    %3991 = vmatpush1.bf16.msra.mxu0 %v3752
    %3992 = vmatprep.subr.bf16.mxu0 0
    %3993 = vmatpush1.bf16.msra.mxu0 %v3755
    %3994 = vmatprep.subr.bf16.mxu0 0
    %3995 = vmatpush1.bf16.msra.mxu0 %v3758
    %3996 = vmatprep.subr.bf16.mxu0 0
    %3997 = vmatpush1.bf16.msra.mxu0 %v3761
    %3998 = vmatprep.subr.bf16.mxu0 0
    %3999 = vmatpush1.bf16.msra.mxu0 %v3764
    %4000 = vmatprep.subr.bf16.mxu0 0
    %4001 = vmatpush1.bf16.msra.mxu0 %v3767
    %4002 = vmatprep.subr.bf16.mxu0 0
    %4003 = vmatpush1.bf16.msra.mxu0 %v3770
    %4004 = vmatprep.subr.bf16.mxu0 0
    %4005 = vmatpush1.bf16.msra.mxu0 %v3773
    %4006 = vmatprep.subr.bf16.mxu0 0
    %4007 = vmatpush1.bf16.msra.mxu0 %v3776
    %4008 = vmatprep.subr.bf16.mxu0 0
    %4009 = vmatpush1.bf16.msra.mxu0 %v3779
    %4010 = vmatprep.subr.bf16.mxu0 0
    %4011 = vmatpush1.bf16.msra.mxu0 %v3782
    %4012 = vmatprep.subr.bf16.mxu0 0
    %4013 = vmatpush1.bf16.msra.mxu0 %v3785
    %4014 = vmatprep.subr.bf16.mxu0 0
    %4015 = vmatpush1.bf16.msra.mxu0 %v3788
    %4016 = vmatprep.subr.bf16.mxu0 0
    %4017 = vmatpush1.bf16.msra.mxu0 %v3791
    %4018 = vmatprep.subr.bf16.mxu0 0
    %4019 = vmatpush1.bf16.msra.mxu0 %v3794
    %4020 = vmatprep.subr.bf16.mxu0 0
    %4021 = vmatpush1.bf16.msra.mxu0 %v3797
    %4022 = vmatprep.mubr.bf16.mxu0 %v3522
    %4023 = vmatmul.mubr.bf16.gmra.mrb[0].mxu0 %v3519
    %v4024 = vpop.f32.mrb[0].mxu0
    %v4025 = vadd.f32 0.0, %v4024
    %v4026 = vpop.f32.mrb[0].mxu0
    %v4027 = vpop.f32.mrb[0].mxu0
    %v4028 = vadd.f32 0.0, %v4027
    %v4029 = vpop.f32.mrb[0].mxu0
    %4030 = vmatprep.mubr.bf16.mxu0 %v3521
    %4031 = vmatmul.mubr.bf16.gmra.mrb[0].mxu0 %v3518
    %v4032 = vpop.f32.mrb[0].mxu0
    %v4033 = vadd.f32 0.0, %v4032
    %v4034 = vpop.f32.mrb[0].mxu0
    %v4035 = vpop.f32.mrb[0].mxu0
    %v4036 = vpop.f32.mrb[0].mxu0
    %4037 = vdwg.mxu0
    %4038 = vmatprep.subr.bf16.mxu0 0
    %4039 = vmatpush1.bf16.msra.mxu0 %v3800
    %4040 = vmatprep.subr.bf16.mxu0 0
    %4041 = vmatpush1.bf16.msra.mxu0 %v3803
    %4042 = vmatprep.subr.bf16.mxu0 0
    %4043 = vmatpush1.bf16.msra.mxu0 %v3806
    %4044 = vmatprep.subr.bf16.mxu0 0
    %4045 = vmatpush1.bf16.msra.mxu0 %v3809
    %4046 = vmatprep.subr.bf16.mxu0 0
    %4047 = vmatpush1.bf16.msra.mxu0 %v3812
    %4048 = vmatprep.subr.bf16.mxu0 0
    %4049 = vmatpush1.bf16.msra.mxu0 %v3815
    %4050 = vmatprep.subr.bf16.mxu0 0
    %4051 = vmatpush1.bf16.msra.mxu0 0
    %4052 = vmatprep.subr.bf16.mxu0 0
    %4053 = vmatpush1.bf16.msra.mxu0 0
    %4054 = vmatprep.subr.bf16.mxu0 0
    %4055 = vmatpush1.bf16.msra.mxu0 0
    %4056 = vmatprep.subr.bf16.mxu0 0
    %4057 = vmatpush1.bf16.msra.mxu0 0
    %4058 = vmatprep.subr.bf16.mxu0 0
    %4059 = vmatpush1.bf16.msra.mxu0 0
    %4060 = vmatprep.subr.bf16.mxu0 0
    %4061 = vmatpush1.bf16.msra.mxu0 0
    %4062 = vmatprep.subr.bf16.mxu0 0
    %4063 = vmatpush1.bf16.msra.mxu0 0
    %4064 = vmatprep.subr.bf16.mxu0 0
    %4065 = vmatpush1.bf16.msra.mxu0 0
    %4066 = vmatprep.subr.bf16.mxu0 0
    %4067 = vmatpush1.bf16.msra.mxu0 0
    %4068 = vmatprep.subr.bf16.mxu0 0
    %4069 = vmatpush1.bf16.msra.mxu0 0
    %4070 = vmatprep.mubr.bf16.mxu0 0
    %4071 = vmatmul.mubr.bf16.gmra.mrb[0].mxu0 %v3883
    %v4072 = vpop.f32.mrb[0].mxu0
    %v4073 = vadd.f32 %v4025, %v4072
    %v4074 = vpop.f32.mrb[0].mxu0
    %v4075 = vpop.f32.mrb[0].mxu0
    %v4076 = vadd.f32 %v4028, %v4075
    %v4077 = vpop.f32.mrb[0].mxu0
    %4078 = vmatprep.mubr.bf16.mxu0 0
    %4079 = vmatmul.mubr.bf16.gmra.mrb[0].mxu0 %v3886
    %v4080 = vpop.f32.mrb[0].mxu0
    %v4081 = vadd.f32 %v4033, %v4080
    %v4082 = vpop.f32.mrb[0].mxu0
    %v4083 = vpop.f32.mrb[0].mxu0
    %v4084 = vpop.f32.mrb[0].mxu0
    %4085 = vdwg.mxu0
    %v4086 = vadd.f32 %v3310, %v3974
    %v4087 = vadd.f32 %v3312, %v3976
    %v4088 = vadd.f32 %v3409, %v4073
    %v4089 = vadd.f32 %v3314, %v3978
    %v4090 = vadd.f32 %v3316, %v3980
    %v4091 = vadd.f32 %v3412, %v4076
    %v4092 = vadd.f32 %v3320, %v3984
    %v4093 = vadd.f32 %v3322, %v3986
    %v4094 = vadd.f32 %v3417, %v4081
    %v4096 = vlaneseq
    %v4097 = vshrl.u32 %v4096, 7
    %v4098 = vsub.s32 0, %v4097
    %v4099 = vrot.slane %v462, %v4098
    %v4100 = vlaneseq
    %v4101 = vshrl.u32 %v4100, 7
    %v4102 = vsub.s32 1, %v4101
    %v4103 = vrot.slane %v462, %v4102
    %v4104 = vlaneseq
    %v4105 = vshrl.u32 %v4104, 7
    %v4106 = vsub.s32 2, %v4105
    %v4107 = vrot.slane %v462, %v4106
    %v4111 = vadd.f32 %v4086, %v4099
    %v4112 = vadd.f32 %v4087, %v4103
    %v4113 = vadd.f32 %v4088, %v4107
    %v4114 = vadd.f32 %v4089, %v4099
    %v4115 = vadd.f32 %v4090, %v4103
    %v4116 = vadd.f32 %v4091, %v4107
    %v4117 = vadd.f32 %v4092, %v4099
    %v4118 = vadd.f32 %v4093, %v4103
    %v4119 = vadd.f32 %v4094, %v4107
    %v4120 = vmax.f32 %v4111, 0.0
    %v4121 = vmax.f32 %v4112, 0.0
    %v4122 = vmax.f32 %v4113, 0.0
    %v4123 = vmax.f32 %v4114, 0.0
    %v4124 = vmax.f32 %v4115, 0.0
    %v4125 = vmax.f32 %v4116, 0.0
    %v4126 = vmax.f32 %v4117, 0.0
    %v4127 = vmax.f32 %v4118, 0.0
    %v4128 = vmax.f32 %v4119, 0.0
    %v4129 = vpack.c.bf16 %v4123, %v4120
    %v4130 = vpack.c.bf16 %v4124, %v4121
    %v4131 = vpack.c.bf16 %v4125, %v4122
    %v4132 = vpack.c.bf16 %v4126, %v4126
    %v4133 = vpack.c.bf16 %v4127, %v4127
    %v4134 = vpack.c.bf16 %v4128, %v4128
    %s4135 = smul.u32 4, 36
    %s4136 = smul.u32 %s4135, 8
    %s4137 = sshll.u32 %s4136, 4
    %4138 = dma.done [#allocation5], %s4137
    %v4139 = vld [vmem:[#allocation2] sm:$0xff]
    %v4140 = vld [vmem:[#allocation2 + $0x8] sm:$0xff]
    %v4141 = vld [vmem:[#allocation2 + $0x10] sm:$0xff]
    %v4142 = vld [vmem:[#allocation2 + $0x18] sm:$0xff]
    %v4143 = vld [vmem:[#allocation2 + $0x20] sm:$0xff]
    %v4144 = vld [vmem:[#allocation2 + $0x28] sm:$0xff]
    %v4145 = vld [vmem:[#allocation2 + $0x30] sm:$0xff]
    %v4146 = vld [vmem:[#allocation2 + $0x38] sm:$0xff]
    %v4147 = vld [vmem:[#allocation2 + $0x40] sm:$0xff]
    %v4148 = vld [vmem:[#allocation2 + $0x48] sm:$0xff]
    %v4149 = vld [vmem:[#allocation2 + $0x50] sm:$0xff]
    %v4150 = vld [vmem:[#allocation2 + $0x58] sm:$0xff]
    %v4151 = vld [vmem:[#allocation2 + $0x60] sm:$0xff]
    %v4152 = vld [vmem:[#allocation2 + $0x68] sm:$0xff]
    %v4153 = vld [vmem:[#allocation2 + $0x70] sm:$0xff]
    %v4154 = vld [vmem:[#allocation2 + $0x78] sm:$0xff]
    %v4155 = vld [vmem:[#allocation2 + $0x80] sm:$0xff]
    %v4156 = vld [vmem:[#allocation2 + $0x88] sm:$0xff]
    %v4157 = vld [vmem:[#allocation2 + $0x90] sm:$0xff]
    %v4158 = vld [vmem:[#allocation2 + $0x98] sm:$0xff]
    %v4159 = vld [vmem:[#allocation2 + $0xa0] sm:$0xff]
    %v4160 = vld [vmem:[#allocation2 + $0xa8] sm:$0xff]
    %v4161 = vld [vmem:[#allocation2 + $0xb0] sm:$0xff]
    %v4162 = vld [vmem:[#allocation2 + $0xb8] sm:$0xff]
    %v4163 = vld [vmem:[#allocation2 + $0xc0] sm:$0xff]
    %v4164 = vld [vmem:[#allocation2 + $0xc8] sm:$0xff]
    %v4165 = vld [vmem:[#allocation2 + $0xd0] sm:$0xff]
    %v4166 = vld [vmem:[#allocation2 + $0xd8] sm:$0xff]
    %v4167 = vld [vmem:[#allocation2 + $0xe0] sm:$0xff]
    %v4168 = vld [vmem:[#allocation2 + $0xe8] sm:$0xff]
    %v4169 = vld [vmem:[#allocation2 + $0xf0] sm:$0xff]
    %v4170 = vld [vmem:[#allocation2 + $0xf8] sm:$0xff]
    %v4171 = vld [vmem:[#allocation2 + $0x100] sm:$0xff]
    %v4172 = vld [vmem:[#allocation2 + $0x108] sm:$0xff]
    %v4173 = vld [vmem:[#allocation2 + $0x110] sm:$0xff]
    %v4174 = vld [vmem:[#allocation2 + $0x118] sm:$0xff]
    %v4175 = vld [vmem:[#allocation2 + $0x120] sm:$0xff]
    %v4176 = vld [vmem:[#allocation2 + $0x128] sm:$0xff]
    %v4177 = vld [vmem:[#allocation2 + $0x130] sm:$0xff]
    %v4178 = vld [vmem:[#allocation2 + $0x138] sm:$0xff]
    %v4179 = vld [vmem:[#allocation2 + $0x140] sm:$0xff]
    %v4180 = vld [vmem:[#allocation2 + $0x148] sm:$0xff]
    %v4181 = vld [vmem:[#allocation2 + $0x150] sm:$0xff]
    %v4182 = vld [vmem:[#allocation2 + $0x158] sm:$0xff]
    %v4183 = vld [vmem:[#allocation2 + $0x160] sm:$0xff]
    %v4184 = vld [vmem:[#allocation2 + $0x168] sm:$0xff]
    %v4185 = vld [vmem:[#allocation2 + $0x170] sm:$0xff]
    %v4186 = vld [vmem:[#allocation2 + $0x178] sm:$0xff]
    %v4187 = vld [vmem:[#allocation2 + $0x180] sm:$0xff]
    %v4188 = vld [vmem:[#allocation2 + $0x188] sm:$0xff]
    %v4189 = vld [vmem:[#allocation2 + $0x190] sm:$0xff]
    %v4190 = vld [vmem:[#allocation2 + $0x198] sm:$0xff]
    %v4191 = vld [vmem:[#allocation2 + $0x1a0] sm:$0xff]
    %v4192 = vld [vmem:[#allocation2 + $0x1a8] sm:$0xff]
    %v4193 = vld [vmem:[#allocation2 + $0x1b0] sm:$0xff]
    %v4194 = vld [vmem:[#allocation2 + $0x1b8] sm:$0xff]
    %v4195 = vld [vmem:[#allocation2 + $0x1c0] sm:$0xff]
    %v4196 = vld [vmem:[#allocation2 + $0x1c8] sm:$0xff]
    %v4197 = vld [vmem:[#allocation2 + $0x1d0] sm:$0xff]
    %v4198 = vld [vmem:[#allocation2 + $0x1d8] sm:$0xff]
    %v4199 = vld [vmem:[#allocation2 + $0x1e0] sm:$0xff]
    %v4200 = vld [vmem:[#allocation2 + $0x1e8] sm:$0xff]
    %v4201 = vld [vmem:[#allocation2 + $0x1f0] sm:$0xff]
    %v4202 = vld [vmem:[#allocation2 + $0x1f8] sm:$0xff]
    %v4203 = vld [vmem:[#allocation2 + $0x200] sm:$0xff]
    %v4204 = vld [vmem:[#allocation2 + $0x208] sm:$0xff]
    %v4205 = vld [vmem:[#allocation2 + $0x210] sm:$0xff]
    %v4206 = vld [vmem:[#allocation2 + $0x218] sm:$0xff]
    %v4207 = vld [vmem:[#allocation2 + $0x220] sm:$0xff]
    %v4208 = vld [vmem:[#allocation2 + $0x228] sm:$0xff]
    %v4209 = vld [vmem:[#allocation2 + $0x230] sm:$0xff]
    %v4210 = vld [vmem:[#allocation2 + $0x238] sm:$0xff]
    %v4211 = vld [vmem:[#allocation2 + $0x240] sm:$0xff]
    %v4212 = vld [vmem:[#allocation2 + $0x248] sm:$0xff]
    %v4213 = vld [vmem:[#allocation2 + $0x250] sm:$0xff]
    %v4214 = vld [vmem:[#allocation2 + $0x258] sm:$0xff]
    %v4215 = vld [vmem:[#allocation2 + $0x260] sm:$0xff]
    %v4216 = vld [vmem:[#allocation2 + $0x268] sm:$0xff]
    %v4217 = vld [vmem:[#allocation2 + $0x270] sm:$0xff]
    %v4218 = vld [vmem:[#allocation2 + $0x278] sm:$0xff]
    %v4219 = vld [vmem:[#allocation2 + $0x280] sm:$0xff]
    %v4220 = vld [vmem:[#allocation2 + $0x288] sm:$0xff]
    %v4221 = vld [vmem:[#allocation2 + $0x290] sm:$0xff]
    %v4222 = vld [vmem:[#allocation2 + $0x298] sm:$0xff]
    %v4223 = vld [vmem:[#allocation2 + $0x2a0] sm:$0xff]
    %v4224 = vld [vmem:[#allocation2 + $0x2a8] sm:$0xff]
    %v4225 = vld [vmem:[#allocation2 + $0x2b0] sm:$0xff]
    %v4226 = vld [vmem:[#allocation2 + $0x2b8] sm:$0xff]
    %v4227 = vld [vmem:[#allocation2 + $0x2c0] sm:$0xff]
    %v4228 = vld [vmem:[#allocation2 + $0x2c8] sm:$0xff]
    %v4229 = vld [vmem:[#allocation2 + $0x2d0] sm:$0xff]
    %v4230 = vld [vmem:[#allocation2 + $0x2d8] sm:$0xff]
    %v4231 = vld [vmem:[#allocation2 + $0x2e0] sm:$0xff]
    %v4232 = vld [vmem:[#allocation2 + $0x2e8] sm:$0xff]
    %v4233 = vld [vmem:[#allocation2 + $0x2f0] sm:$0xff]
    %v4234 = vld [vmem:[#allocation2 + $0x2f8] sm:$0xff]
    %v4235 = vld [vmem:[#allocation2 + $0x300] sm:$0xff]
    %v4236 = vld [vmem:[#allocation2 + $0x308] sm:$0xff]
    %v4237 = vld [vmem:[#allocation2 + $0x310] sm:$0xff]
    %v4238 = vld [vmem:[#allocation2 + $0x318] sm:$0xff]
    %v4239 = vld [vmem:[#allocation2 + $0x320] sm:$0xff]
    %v4240 = vld [vmem:[#allocation2 + $0x328] sm:$0xff]
    %v4241 = vld [vmem:[#allocation2 + $0x330] sm:$0xff]
    %v4242 = vld [vmem:[#allocation2 + $0x338] sm:$0xff]
    %v4243 = vld [vmem:[#allocation2 + $0x340] sm:$0xff]
    %v4244 = vld [vmem:[#allocation2 + $0x348] sm:$0xff]
    %v4245 = vld [vmem:[#allocation2 + $0x350] sm:$0xff]
    %v4246 = vld [vmem:[#allocation2 + $0x358] sm:$0xff]
    %v4247 = vld [vmem:[#allocation2 + $0x360] sm:$0xff]
    %v4248 = vld [vmem:[#allocation2 + $0x368] sm:$0xff]
    %v4249 = vld [vmem:[#allocation2 + $0x370] sm:$0xff]
    %v4250 = vld [vmem:[#allocation2 + $0x378] sm:$0xff]
    %v4251 = vld [vmem:[#allocation2 + $0x380] sm:$0xff]
    %v4252 = vld [vmem:[#allocation2 + $0x388] sm:$0xff]
    %v4253 = vld [vmem:[#allocation2 + $0x390] sm:$0xff]
    %v4254 = vld [vmem:[#allocation2 + $0x398] sm:$0xff]
    %v4255 = vld [vmem:[#allocation2 + $0x3a0] sm:$0xff]
    %v4256 = vld [vmem:[#allocation2 + $0x3a8] sm:$0xff]
    %v4257 = vld [vmem:[#allocation2 + $0x3b0] sm:$0xff]
    %v4258 = vld [vmem:[#allocation2 + $0x3b8] sm:$0xff]
    %v4259 = vld [vmem:[#allocation2 + $0x3c0] sm:$0xff]
    %v4260 = vld [vmem:[#allocation2 + $0x3c8] sm:$0xff]
    %v4261 = vld [vmem:[#allocation2 + $0x3d0] sm:$0xff]
    %v4262 = vld [vmem:[#allocation2 + $0x3d8] sm:$0xff]
    %v4263 = vld [vmem:[#allocation2 + $0x3e0] sm:$0xff]
    %v4264 = vld [vmem:[#allocation2 + $0x3e8] sm:$0xff]
    %v4265 = vld [vmem:[#allocation2 + $0x3f0] sm:$0xff]
    %v4266 = vld [vmem:[#allocation2 + $0x3f8] sm:$0xff]
    %v4267 = vld [vmem:[#allocation2 + $0x400] sm:$0xff]
    %v4268 = vld [vmem:[#allocation2 + $0x408] sm:$0xff]
    %v4269 = vld [vmem:[#allocation2 + $0x410] sm:$0xff]
    %v4270 = vld [vmem:[#allocation2 + $0x418] sm:$0xff]
    %v4271 = vld [vmem:[#allocation2 + $0x420] sm:$0xff]
    %v4272 = vld [vmem:[#allocation2 + $0x428] sm:$0xff]
    %v4273 = vld [vmem:[#allocation2 + $0x430] sm:$0xff]
    %v4274 = vld [vmem:[#allocation2 + $0x438] sm:$0xff]
    %v4275 = vld [vmem:[#allocation2 + $0x440] sm:$0xff]
    %v4276 = vld [vmem:[#allocation2 + $0x448] sm:$0xff]
    %v4277 = vld [vmem:[#allocation2 + $0x450] sm:$0xff]
    %v4278 = vld [vmem:[#allocation2 + $0x458] sm:$0xff]
    %v4279 = vld [vmem:[#allocation2 + $0x460] sm:$0xff]
    %v4280 = vld [vmem:[#allocation2 + $0x468] sm:$0xff]
    %v4281 = vld [vmem:[#allocation2 + $0x470] sm:$0xff]
    %v4282 = vld [vmem:[#allocation2 + $0x478] sm:$0xff]
    %s4283 = sshll.u32 %s4136, 4
    %4284 = dma.done %s117, %s4283
    %v4285 = vld [vmem:[%s116] sm:$0xff]
    %v4286 = vld [vmem:[%s116 + $0x8] sm:$0xff]
    %v4287 = vld [vmem:[%s116 + $0x10] sm:$0xff]
    %v4288 = vld [vmem:[%s116 + $0x18] sm:$0xff]
    %v4289 = vld [vmem:[%s116 + $0x20] sm:$0xff]
    %v4290 = vld [vmem:[%s116 + $0x28] sm:$0xff]
    %v4291 = vld [vmem:[%s116 + $0x30] sm:$0xff]
    %v4292 = vld [vmem:[%s116 + $0x38] sm:$0xff]
    %v4293 = vld [vmem:[%s116 + $0x40] sm:$0xff]
    %v4294 = vld [vmem:[%s116 + $0x48] sm:$0xff]
    %v4295 = vld [vmem:[%s116 + $0x50] sm:$0xff]
    %v4296 = vld [vmem:[%s116 + $0x58] sm:$0xff]
    %v4297 = vld [vmem:[%s116 + $0x60] sm:$0xff]
    %v4298 = vld [vmem:[%s116 + $0x68] sm:$0xff]
    %v4299 = vld [vmem:[%s116 + $0x70] sm:$0xff]
    %v4300 = vld [vmem:[%s116 + $0x78] sm:$0xff]
    %v4301 = vld [vmem:[%s116 + $0x80] sm:$0xff]
    %v4302 = vld [vmem:[%s116 + $0x88] sm:$0xff]
    %v4303 = vld [vmem:[%s116 + $0x90] sm:$0xff]
    %v4304 = vld [vmem:[%s116 + $0x98] sm:$0xff]
    %v4305 = vld [vmem:[%s116 + $0xa0] sm:$0xff]
    %v4306 = vld [vmem:[%s116 + $0xa8] sm:$0xff]
    %v4307 = vld [vmem:[%s116 + $0xb0] sm:$0xff]
    %v4308 = vld [vmem:[%s116 + $0xb8] sm:$0xff]
    %v4309 = vld [vmem:[%s116 + $0xc0] sm:$0xff]
    %v4310 = vld [vmem:[%s116 + $0xc8] sm:$0xff]
    %v4311 = vld [vmem:[%s116 + $0xd0] sm:$0xff]
    %v4312 = vld [vmem:[%s116 + $0xd8] sm:$0xff]
    %v4313 = vld [vmem:[%s116 + $0xe0] sm:$0xff]
    %v4314 = vld [vmem:[%s116 + $0xe8] sm:$0xff]
    %v4315 = vld [vmem:[%s116 + $0xf0] sm:$0xff]
    %v4316 = vld [vmem:[%s116 + $0xf8] sm:$0xff]
    %v4317 = vld [vmem:[%s116 + $0x100] sm:$0xff]
    %v4318 = vld [vmem:[%s116 + $0x108] sm:$0xff]
    %v4319 = vld [vmem:[%s116 + $0x110] sm:$0xff]
    %v4320 = vld [vmem:[%s116 + $0x118] sm:$0xff]
    %v4321 = vld [vmem:[%s116 + $0x120] sm:$0xff]
    %v4322 = vld [vmem:[%s116 + $0x128] sm:$0xff]
    %v4323 = vld [vmem:[%s116 + $0x130] sm:$0xff]
    %v4324 = vld [vmem:[%s116 + $0x138] sm:$0xff]
    %v4325 = vld [vmem:[%s116 + $0x140] sm:$0xff]
    %v4326 = vld [vmem:[%s116 + $0x148] sm:$0xff]
    %v4327 = vld [vmem:[%s116 + $0x150] sm:$0xff]
    %v4328 = vld [vmem:[%s116 + $0x158] sm:$0xff]
    %v4329 = vld [vmem:[%s116 + $0x160] sm:$0xff]
    %v4330 = vld [vmem:[%s116 + $0x168] sm:$0xff]
    %v4331 = vld [vmem:[%s116 + $0x170] sm:$0xff]
    %v4332 = vld [vmem:[%s116 + $0x178] sm:$0xff]
    %v4333 = vld [vmem:[%s116 + $0x180] sm:$0xff]
    %v4334 = vld [vmem:[%s116 + $0x188] sm:$0xff]
    %v4335 = vld [vmem:[%s116 + $0x190] sm:$0xff]
    %v4336 = vld [vmem:[%s116 + $0x198] sm:$0xff]
    %v4337 = vld [vmem:[%s116 + $0x1a0] sm:$0xff]
    %v4338 = vld [vmem:[%s116 + $0x1a8] sm:$0xff]
    %v4339 = vld [vmem:[%s116 + $0x1b0] sm:$0xff]
    %v4340 = vld [vmem:[%s116 + $0x1b8] sm:$0xff]
    %v4341 = vld [vmem:[%s116 + $0x1c0] sm:$0xff]
    %v4342 = vld [vmem:[%s116 + $0x1c8] sm:$0xff]
    %v4343 = vld [vmem:[%s116 + $0x1d0] sm:$0xff]
    %v4344 = vld [vmem:[%s116 + $0x1d8] sm:$0xff]
    %v4345 = vld [vmem:[%s116 + $0x1e0] sm:$0xff]
    %v4346 = vld [vmem:[%s116 + $0x1e8] sm:$0xff]
    %v4347 = vld [vmem:[%s116 + $0x1f0] sm:$0xff]
    %v4348 = vld [vmem:[%s116 + $0x1f8] sm:$0xff]
    %v4349 = vld [vmem:[%s116 + $0x200] sm:$0xff]
    %v4350 = vld [vmem:[%s116 + $0x208] sm:$0xff]
    %v4351 = vld [vmem:[%s116 + $0x210] sm:$0xff]
    %v4352 = vld [vmem:[%s116 + $0x218] sm:$0xff]
    %v4353 = vld [vmem:[%s116 + $0x220] sm:$0xff]
    %v4354 = vld [vmem:[%s116 + $0x228] sm:$0xff]
    %v4355 = vld [vmem:[%s116 + $0x230] sm:$0xff]
    %v4356 = vld [vmem:[%s116 + $0x238] sm:$0xff]
    %v4357 = vld [vmem:[%s116 + $0x240] sm:$0xff]
    %v4358 = vld [vmem:[%s116 + $0x248] sm:$0xff]
    %v4359 = vld [vmem:[%s116 + $0x250] sm:$0xff]
    %v4360 = vld [vmem:[%s116 + $0x258] sm:$0xff]
    %v4361 = vld [vmem:[%s116 + $0x260] sm:$0xff]
    %v4362 = vld [vmem:[%s116 + $0x268] sm:$0xff]
    %v4363 = vld [vmem:[%s116 + $0x270] sm:$0xff]
    %v4364 = vld [vmem:[%s116 + $0x278] sm:$0xff]
    %v4365 = vld [vmem:[%s116 + $0x280] sm:$0xff]
    %v4366 = vld [vmem:[%s116 + $0x288] sm:$0xff]
    %v4367 = vld [vmem:[%s116 + $0x290] sm:$0xff]
    %v4368 = vld [vmem:[%s116 + $0x298] sm:$0xff]
    %v4369 = vld [vmem:[%s116 + $0x2a0] sm:$0xff]
    %v4370 = vld [vmem:[%s116 + $0x2a8] sm:$0xff]
    %v4371 = vld [vmem:[%s116 + $0x2b0] sm:$0xff]
    %v4372 = vld [vmem:[%s116 + $0x2b8] sm:$0xff]
    %v4373 = vld [vmem:[%s116 + $0x2c0] sm:$0xff]
    %v4374 = vld [vmem:[%s116 + $0x2c8] sm:$0xff]
    %v4375 = vld [vmem:[%s116 + $0x2d0] sm:$0xff]
    %v4376 = vld [vmem:[%s116 + $0x2d8] sm:$0xff]
    %v4377 = vld [vmem:[%s116 + $0x2e0] sm:$0xff]
    %v4378 = vld [vmem:[%s116 + $0x2e8] sm:$0xff]
    %v4379 = vld [vmem:[%s116 + $0x2f0] sm:$0xff]
    %v4380 = vld [vmem:[%s116 + $0x2f8] sm:$0xff]
    %v4381 = vld [vmem:[%s116 + $0x300] sm:$0xff]
    %v4382 = vld [vmem:[%s116 + $0x308] sm:$0xff]
    %v4383 = vld [vmem:[%s116 + $0x310] sm:$0xff]
    %v4384 = vld [vmem:[%s116 + $0x318] sm:$0xff]
    %v4385 = vld [vmem:[%s116 + $0x320] sm:$0xff]
    %v4386 = vld [vmem:[%s116 + $0x328] sm:$0xff]
    %v4387 = vld [vmem:[%s116 + $0x330] sm:$0xff]
    %v4388 = vld [vmem:[%s116 + $0x338] sm:$0xff]
    %v4389 = vld [vmem:[%s116 + $0x340] sm:$0xff]
    %v4390 = vld [vmem:[%s116 + $0x348] sm:$0xff]
    %v4391 = vld [vmem:[%s116 + $0x350] sm:$0xff]
    %v4392 = vld [vmem:[%s116 + $0x358] sm:$0xff]
    %v4393 = vld [vmem:[%s116 + $0x360] sm:$0xff]
    %v4394 = vld [vmem:[%s116 + $0x368] sm:$0xff]
    %v4395 = vld [vmem:[%s116 + $0x370] sm:$0xff]
    %v4396 = vld [vmem:[%s116 + $0x378] sm:$0xff]
    %v4397 = vld [vmem:[%s116 + $0x380] sm:$0xff]
    %v4398 = vld [vmem:[%s116 + $0x388] sm:$0xff]
    %v4399 = vld [vmem:[%s116 + $0x390] sm:$0xff]
    %v4400 = vld [vmem:[%s116 + $0x398] sm:$0xff]
    %v4401 = vld [vmem:[%s116 + $0x3a0] sm:$0xff]
    %v4402 = vld [vmem:[%s116 + $0x3a8] sm:$0xff]
    %v4403 = vld [vmem:[%s116 + $0x3b0] sm:$0xff]
    %v4404 = vld [vmem:[%s116 + $0x3b8] sm:$0xff]
    %v4405 = vld [vmem:[%s116 + $0x3c0] sm:$0xff]
    %v4406 = vld [vmem:[%s116 + $0x3c8] sm:$0xff]
    %v4407 = vld [vmem:[%s116 + $0x3d0] sm:$0xff]
    %v4408 = vld [vmem:[%s116 + $0x3d8] sm:$0xff]
    %v4409 = vld [vmem:[%s116 + $0x3e0] sm:$0xff]
    %v4410 = vld [vmem:[%s116 + $0x3e8] sm:$0xff]
    %v4411 = vld [vmem:[%s116 + $0x3f0] sm:$0xff]
    %v4412 = vld [vmem:[%s116 + $0x3f8] sm:$0xff]
    %v4413 = vld [vmem:[%s116 + $0x400] sm:$0xff]
    %v4414 = vld [vmem:[%s116 + $0x408] sm:$0xff]
    %v4415 = vld [vmem:[%s116 + $0x410] sm:$0xff]
    %v4416 = vld [vmem:[%s116 + $0x418] sm:$0xff]
    %v4417 = vld [vmem:[%s116 + $0x420] sm:$0xff]
    %v4418 = vld [vmem:[%s116 + $0x428] sm:$0xff]
    %v4419 = vld [vmem:[%s116 + $0x430] sm:$0xff]
    %v4420 = vld [vmem:[%s116 + $0x438] sm:$0xff]
    %v4421 = vld [vmem:[%s116 + $0x440] sm:$0xff]
    %v4422 = vld [vmem:[%s116 + $0x448] sm:$0xff]
    %v4423 = vld [vmem:[%s116 + $0x450] sm:$0xff]
    %v4424 = vld [vmem:[%s116 + $0x458] sm:$0xff]
    %v4425 = vld [vmem:[%s116 + $0x460] sm:$0xff]
    %v4426 = vld [vmem:[%s116 + $0x468] sm:$0xff]
    %v4427 = vld [vmem:[%s116 + $0x470] sm:$0xff]
    %v4428 = vld [vmem:[%s116 + $0x478] sm:$0xff]
    %v4430 = vshrl.u32 %v4129, 16
    %v4432 = vshll.u32 %v4129, 16
    %v4434 = vrot.slane %v4432, 1
    %v4435 = vor.u32 %v4430, %v4434
    %v4437 = vshll.u32 %v4132, 16
    %v4439 = vrot.slane %v4437, 1
    %v4440 = vsel %vm499, %v4435, %v4439
    %v4442 = vshrl.u32 %v4130, 16
    %v4444 = vshll.u32 %v4130, 16
    %v4446 = vrot.slane %v4444, 1
    %v4447 = vor.u32 %v4442, %v4446
    %v4449 = vshll.u32 %v4133, 16
    %v4451 = vrot.slane %v4449, 1
    %v4452 = vsel %vm499, %v4447, %v4451
    %v4454 = vshrl.u32 %v4131, 16
    %v4456 = vshll.u32 %v4131, 16
    %v4458 = vrot.slane %v4456, 1
    %v4459 = vor.u32 %v4454, %v4458
    %v4461 = vshll.u32 %v4134, 16
    %v4463 = vrot.slane %v4461, 1
    %v4464 = vsel %vm499, %v4459, %v4463
    %vm4467 = vcmask 261120
    %v4469 = vsel %vm4467, %v4464, 0
    %4471 = vmatprep.subr.bf16.mxu0 %v4286
    %4472 = vmatpush1.bf16.msra.mxu0 %v4285
    %4473 = vmatprep.subr.bf16.mxu0 %v4294
    %4474 = vmatpush1.bf16.msra.mxu0 %v4293
    %4475 = vmatprep.subr.bf16.mxu0 %v4302
    %4476 = vmatpush1.bf16.msra.mxu0 %v4301
    %4477 = vmatprep.subr.bf16.mxu0 %v4310
    %4478 = vmatpush1.bf16.msra.mxu0 %v4309
    %4479 = vmatprep.subr.bf16.mxu0 %v4318
    %4480 = vmatpush1.bf16.msra.mxu0 %v4317
    %4481 = vmatprep.subr.bf16.mxu0 %v4326
    %4482 = vmatpush1.bf16.msra.mxu0 %v4325
    %4483 = vmatprep.subr.bf16.mxu0 %v4334
    %4484 = vmatpush1.bf16.msra.mxu0 %v4333
    %4485 = vmatprep.subr.bf16.mxu0 %v4342
    %4486 = vmatpush1.bf16.msra.mxu0 %v4341
    %4487 = vmatprep.subr.bf16.mxu0 %v4350
    %4488 = vmatpush1.bf16.msra.mxu0 %v4349
    %4489 = vmatprep.subr.bf16.mxu0 %v4358
    %4490 = vmatpush1.bf16.msra.mxu0 %v4357
    %4491 = vmatprep.subr.bf16.mxu0 %v4366
    %4492 = vmatpush1.bf16.msra.mxu0 %v4365
    %4493 = vmatprep.subr.bf16.mxu0 %v4374
    %4494 = vmatpush1.bf16.msra.mxu0 %v4373
    %4495 = vmatprep.subr.bf16.mxu0 %v4382
    %4496 = vmatpush1.bf16.msra.mxu0 %v4381
    %4497 = vmatprep.subr.bf16.mxu0 %v4390
    %4498 = vmatpush1.bf16.msra.mxu0 %v4389
    %4499 = vmatprep.subr.bf16.mxu0 %v4398
    %4500 = vmatpush1.bf16.msra.mxu0 %v4397
    %4501 = vmatprep.subr.bf16.mxu0 %v4406
    %4502 = vmatpush1.bf16.msra.mxu0 %v4405
    %4503 = vmatprep.mubr.bf16.mxu0 %v4452
    %4504 = vmatmul.mubr.bf16.gmra.mrb[0].mxu0 %v4440
    %v4505 = vpop.f32.mrb[0].mxu0
    %v4506 = vadd.f32 0.0, %v4505
    %v4507 = vpop.f32.mrb[0].mxu0
    %v4508 = vadd.f32 0.0, %v4507
    %v4509 = vpop.f32.mrb[0].mxu0
    %v4510 = vadd.f32 0.0, %v4509
    %v4511 = vpop.f32.mrb[0].mxu0
    %v4512 = vadd.f32 0.0, %v4511
    %4513 = vdwg.mxu0
    %4514 = vmatprep.subr.bf16.mxu0 %v4414
    %4515 = vmatpush1.bf16.msra.mxu0 %v4413
    %4516 = vmatprep.subr.bf16.mxu0 %v4422
    %4517 = vmatpush1.bf16.msra.mxu0 %v4421
    %4518 = vmatprep.subr.bf16.mxu0 0
    %4519 = vmatpush1.bf16.msra.mxu0 0
    %4520 = vmatprep.subr.bf16.mxu0 0
    %4521 = vmatpush1.bf16.msra.mxu0 0
    %4522 = vmatprep.subr.bf16.mxu0 0
    %4523 = vmatpush1.bf16.msra.mxu0 0
    %4524 = vmatprep.subr.bf16.mxu0 0
    %4525 = vmatpush1.bf16.msra.mxu0 0
    %4526 = vmatprep.subr.bf16.mxu0 0
    %4527 = vmatpush1.bf16.msra.mxu0 0
    %4528 = vmatprep.subr.bf16.mxu0 0
    %4529 = vmatpush1.bf16.msra.mxu0 0
    %4530 = vmatprep.subr.bf16.mxu0 0
    %4531 = vmatpush1.bf16.msra.mxu0 0
    %4532 = vmatprep.subr.bf16.mxu0 0
    %4533 = vmatpush1.bf16.msra.mxu0 0
    %4534 = vmatprep.subr.bf16.mxu0 0
    %4535 = vmatpush1.bf16.msra.mxu0 0
    %4536 = vmatprep.subr.bf16.mxu0 0
    %4537 = vmatpush1.bf16.msra.mxu0 0
    %4538 = vmatprep.subr.bf16.mxu0 0
    %4539 = vmatpush1.bf16.msra.mxu0 0
    %4540 = vmatprep.subr.bf16.mxu0 0
    %4541 = vmatpush1.bf16.msra.mxu0 0
    %4542 = vmatprep.subr.bf16.mxu0 0
    %4543 = vmatpush1.bf16.msra.mxu0 0
    %4544 = vmatprep.subr.bf16.mxu0 0
    %4545 = vmatpush1.bf16.msra.mxu0 0
    %4546 = vmatprep.mubr.bf16.mxu0 0
    %4547 = vmatmul.mubr.bf16.gmra.mrb[0].mxu0 %v4469
    %v4548 = vpop.f32.mrb[0].mxu0
    %v4549 = vadd.f32 %v4506, %v4548
    %v4550 = vpop.f32.mrb[0].mxu0
    %v4551 = vadd.f32 %v4508, %v4550
    %v4552 = vpop.f32.mrb[0].mxu0
    %v4553 = vadd.f32 %v4510, %v4552
    %v4554 = vpop.f32.mrb[0].mxu0
    %v4555 = vadd.f32 %v4512, %v4554
    %4556 = vdwg.mxu0
    %4557 = vmatprep.subr.bf16.mxu0 %v4288
    %4558 = vmatpush1.bf16.msra.mxu0 %v4287
    %4559 = vmatprep.subr.bf16.mxu0 %v4296
    %4560 = vmatpush1.bf16.msra.mxu0 %v4295
    %4561 = vmatprep.subr.bf16.mxu0 %v4304
    %4562 = vmatpush1.bf16.msra.mxu0 %v4303
    %4563 = vmatprep.subr.bf16.mxu0 %v4312
    %4564 = vmatpush1.bf16.msra.mxu0 %v4311
    %4565 = vmatprep.subr.bf16.mxu0 %v4320
    %4566 = vmatpush1.bf16.msra.mxu0 %v4319
    %4567 = vmatprep.subr.bf16.mxu0 %v4328
    %4568 = vmatpush1.bf16.msra.mxu0 %v4327
    %4569 = vmatprep.subr.bf16.mxu0 %v4336
    %4570 = vmatpush1.bf16.msra.mxu0 %v4335
    %4571 = vmatprep.subr.bf16.mxu0 %v4344
    %4572 = vmatpush1.bf16.msra.mxu0 %v4343
    %4573 = vmatprep.subr.bf16.mxu0 %v4352
    %4574 = vmatpush1.bf16.msra.mxu0 %v4351
    %4575 = vmatprep.subr.bf16.mxu0 %v4360
    %4576 = vmatpush1.bf16.msra.mxu0 %v4359
    %4577 = vmatprep.subr.bf16.mxu0 %v4368
    %4578 = vmatpush1.bf16.msra.mxu0 %v4367
    %4579 = vmatprep.subr.bf16.mxu0 %v4376
    %4580 = vmatpush1.bf16.msra.mxu0 %v4375
    %4581 = vmatprep.subr.bf16.mxu0 %v4384
    %4582 = vmatpush1.bf16.msra.mxu0 %v4383
    %4583 = vmatprep.subr.bf16.mxu0 %v4392
    %4584 = vmatpush1.bf16.msra.mxu0 %v4391
    %4585 = vmatprep.subr.bf16.mxu0 %v4400
    %4586 = vmatpush1.bf16.msra.mxu0 %v4399
    %4587 = vmatprep.subr.bf16.mxu0 %v4408
    %4588 = vmatpush1.bf16.msra.mxu0 %v4407
    %4589 = vmatprep.mubr.bf16.mxu0 %v4452
    %4590 = vmatmul.mubr.bf16.gmra.mrb[0].mxu0 %v4440
    %v4591 = vpop.f32.mrb[0].mxu0
    %v4592 = vadd.f32 0.0, %v4591
    %v4593 = vpop.f32.mrb[0].mxu0
    %v4594 = vadd.f32 0.0, %v4593
    %v4595 = vpop.f32.mrb[0].mxu0
    %v4596 = vadd.f32 0.0, %v4595
    %v4597 = vpop.f32.mrb[0].mxu0
    %v4598 = vadd.f32 0.0, %v4597
    %4599 = vdwg.mxu0
    %4600 = vmatprep.subr.bf16.mxu0 %v4416
    %4601 = vmatpush1.bf16.msra.mxu0 %v4415
    %4602 = vmatprep.subr.bf16.mxu0 %v4424
    %4603 = vmatpush1.bf16.msra.mxu0 %v4423
    %4604 = vmatprep.subr.bf16.mxu0 0
    %4605 = vmatpush1.bf16.msra.mxu0 0
    %4606 = vmatprep.subr.bf16.mxu0 0
    %4607 = vmatpush1.bf16.msra.mxu0 0
    %4608 = vmatprep.subr.bf16.mxu0 0
    %4609 = vmatpush1.bf16.msra.mxu0 0
    %4610 = vmatprep.subr.bf16.mxu0 0
    %4611 = vmatpush1.bf16.msra.mxu0 0
    %4612 = vmatprep.subr.bf16.mxu0 0
    %4613 = vmatpush1.bf16.msra.mxu0 0
    %4614 = vmatprep.subr.bf16.mxu0 0
    %4615 = vmatpush1.bf16.msra.mxu0 0
    %4616 = vmatprep.subr.bf16.mxu0 0
    %4617 = vmatpush1.bf16.msra.mxu0 0
    %4618 = vmatprep.subr.bf16.mxu0 0
    %4619 = vmatpush1.bf16.msra.mxu0 0
    %4620 = vmatprep.subr.bf16.mxu0 0
    %4621 = vmatpush1.bf16.msra.mxu0 0
    %4622 = vmatprep.subr.bf16.mxu0 0
    %4623 = vmatpush1.bf16.msra.mxu0 0
    %4624 = vmatprep.subr.bf16.mxu0 0
    %4625 = vmatpush1.bf16.msra.mxu0 0
    %4626 = vmatprep.subr.bf16.mxu0 0
    %4627 = vmatpush1.bf16.msra.mxu0 0
    %4628 = vmatprep.subr.bf16.mxu0 0
    %4629 = vmatpush1.bf16.msra.mxu0 0
    %4630 = vmatprep.subr.bf16.mxu0 0
    %4631 = vmatpush1.bf16.msra.mxu0 0
    %4632 = vmatprep.mubr.bf16.mxu0 0
    %4633 = vmatmul.mubr.bf16.gmra.mrb[0].mxu0 %v4469
    %v4634 = vpop.f32.mrb[0].mxu0
    %v4635 = vadd.f32 %v4592, %v4634
    %v4636 = vpop.f32.mrb[0].mxu0
    %v4637 = vadd.f32 %v4594, %v4636
    %v4638 = vpop.f32.mrb[0].mxu0
    %v4639 = vadd.f32 %v4596, %v4638
    %v4640 = vpop.f32.mrb[0].mxu0
    %v4641 = vadd.f32 %v4598, %v4640
    %4642 = vdwg.mxu0
    %4643 = vmatprep.subr.bf16.mxu0 %v4290
    %4644 = vmatpush1.bf16.msra.mxu0 %v4289
    %4645 = vmatprep.subr.bf16.mxu0 %v4298
    %4646 = vmatpush1.bf16.msra.mxu0 %v4297
    %4647 = vmatprep.subr.bf16.mxu0 %v4306
    %4648 = vmatpush1.bf16.msra.mxu0 %v4305
    %4649 = vmatprep.subr.bf16.mxu0 %v4314
    %4650 = vmatpush1.bf16.msra.mxu0 %v4313
    %4651 = vmatprep.subr.bf16.mxu0 %v4322
    %4652 = vmatpush1.bf16.msra.mxu0 %v4321
    %4653 = vmatprep.subr.bf16.mxu0 %v4330
    %4654 = vmatpush1.bf16.msra.mxu0 %v4329
    %4655 = vmatprep.subr.bf16.mxu0 %v4338
    %4656 = vmatpush1.bf16.msra.mxu0 %v4337
    %4657 = vmatprep.subr.bf16.mxu0 %v4346
    %4658 = vmatpush1.bf16.msra.mxu0 %v4345
    %4659 = vmatprep.subr.bf16.mxu0 %v4354
    %4660 = vmatpush1.bf16.msra.mxu0 %v4353
    %4661 = vmatprep.subr.bf16.mxu0 %v4362
    %4662 = vmatpush1.bf16.msra.mxu0 %v4361
    %4663 = vmatprep.subr.bf16.mxu0 %v4370
    %4664 = vmatpush1.bf16.msra.mxu0 %v4369
    %4665 = vmatprep.subr.bf16.mxu0 %v4378
    %4666 = vmatpush1.bf16.msra.mxu0 %v4377
    %4667 = vmatprep.subr.bf16.mxu0 %v4386
    %4668 = vmatpush1.bf16.msra.mxu0 %v4385
    %4669 = vmatprep.subr.bf16.mxu0 %v4394
    %4670 = vmatpush1.bf16.msra.mxu0 %v4393
    %4671 = vmatprep.subr.bf16.mxu0 %v4402
    %4672 = vmatpush1.bf16.msra.mxu0 %v4401
    %4673 = vmatprep.subr.bf16.mxu0 %v4410
    %4674 = vmatpush1.bf16.msra.mxu0 %v4409
    %4675 = vmatprep.mubr.bf16.mxu0 %v4452
    %4676 = vmatmul.mubr.bf16.gmra.mrb[0].mxu0 %v4440
    %v4677 = vpop.f32.mrb[0].mxu0
    %v4678 = vadd.f32 0.0, %v4677
    %v4679 = vpop.f32.mrb[0].mxu0
    %v4680 = vadd.f32 0.0, %v4679
    %v4681 = vpop.f32.mrb[0].mxu0
    %v4682 = vadd.f32 0.0, %v4681
    %v4683 = vpop.f32.mrb[0].mxu0
    %v4684 = vadd.f32 0.0, %v4683
    %4685 = vdwg.mxu0
    %4686 = vmatprep.subr.bf16.mxu0 %v4418
    %4687 = vmatpush1.bf16.msra.mxu0 %v4417
    %4688 = vmatprep.subr.bf16.mxu0 %v4426
    %4689 = vmatpush1.bf16.msra.mxu0 %v4425
    %4690 = vmatprep.subr.bf16.mxu0 0
    %4691 = vmatpush1.bf16.msra.mxu0 0
    %4692 = vmatprep.subr.bf16.mxu0 0
    %4693 = vmatpush1.bf16.msra.mxu0 0
    %4694 = vmatprep.subr.bf16.mxu0 0
    %4695 = vmatpush1.bf16.msra.mxu0 0
    %4696 = vmatprep.subr.bf16.mxu0 0
    %4697 = vmatpush1.bf16.msra.mxu0 0
    %4698 = vmatprep.subr.bf16.mxu0 0
    %4699 = vmatpush1.bf16.msra.mxu0 0
    %4700 = vmatprep.subr.bf16.mxu0 0
    %4701 = vmatpush1.bf16.msra.mxu0 0
    %4702 = vmatprep.subr.bf16.mxu0 0
    %4703 = vmatpush1.bf16.msra.mxu0 0
    %4704 = vmatprep.subr.bf16.mxu0 0
    %4705 = vmatpush1.bf16.msra.mxu0 0
    %4706 = vmatprep.subr.bf16.mxu0 0
    %4707 = vmatpush1.bf16.msra.mxu0 0
    %4708 = vmatprep.subr.bf16.mxu0 0
    %4709 = vmatpush1.bf16.msra.mxu0 0
    %4710 = vmatprep.subr.bf16.mxu0 0
    %4711 = vmatpush1.bf16.msra.mxu0 0
    %4712 = vmatprep.subr.bf16.mxu0 0
    %4713 = vmatpush1.bf16.msra.mxu0 0
    %4714 = vmatprep.subr.bf16.mxu0 0
    %4715 = vmatpush1.bf16.msra.mxu0 0
    %4716 = vmatprep.subr.bf16.mxu0 0
    %4717 = vmatpush1.bf16.msra.mxu0 0
    %4718 = vmatprep.mubr.bf16.mxu0 0
    %4719 = vmatmul.mubr.bf16.gmra.mrb[0].mxu0 %v4469
    %v4720 = vpop.f32.mrb[0].mxu0
    %v4721 = vadd.f32 %v4678, %v4720
    %v4722 = vpop.f32.mrb[0].mxu0
    %v4723 = vadd.f32 %v4680, %v4722
    %v4724 = vpop.f32.mrb[0].mxu0
    %v4725 = vadd.f32 %v4682, %v4724
    %v4726 = vpop.f32.mrb[0].mxu0
    %v4727 = vadd.f32 %v4684, %v4726
    %4728 = vdwg.mxu0
    %4729 = vmatprep.subr.bf16.mxu0 %v4292
    %4730 = vmatpush1.bf16.msra.mxu0 %v4291
    %4731 = vmatprep.subr.bf16.mxu0 %v4300
    %4732 = vmatpush1.bf16.msra.mxu0 %v4299
    %4733 = vmatprep.subr.bf16.mxu0 %v4308
    %4734 = vmatpush1.bf16.msra.mxu0 %v4307
    %4735 = vmatprep.subr.bf16.mxu0 %v4316
    %4736 = vmatpush1.bf16.msra.mxu0 %v4315
    %4737 = vmatprep.subr.bf16.mxu0 %v4324
    %4738 = vmatpush1.bf16.msra.mxu0 %v4323
    %4739 = vmatprep.subr.bf16.mxu0 %v4332
    %4740 = vmatpush1.bf16.msra.mxu0 %v4331
    %4741 = vmatprep.subr.bf16.mxu0 %v4340
    %4742 = vmatpush1.bf16.msra.mxu0 %v4339
    %4743 = vmatprep.subr.bf16.mxu0 %v4348
    %4744 = vmatpush1.bf16.msra.mxu0 %v4347
    %4745 = vmatprep.subr.bf16.mxu0 %v4356
    %4746 = vmatpush1.bf16.msra.mxu0 %v4355
    %4747 = vmatprep.subr.bf16.mxu0 %v4364
    %4748 = vmatpush1.bf16.msra.mxu0 %v4363
    %4749 = vmatprep.subr.bf16.mxu0 %v4372
    %4750 = vmatpush1.bf16.msra.mxu0 %v4371
    %4751 = vmatprep.subr.bf16.mxu0 %v4380
    %4752 = vmatpush1.bf16.msra.mxu0 %v4379
    %4753 = vmatprep.subr.bf16.mxu0 %v4388
    %4754 = vmatpush1.bf16.msra.mxu0 %v4387
    %4755 = vmatprep.subr.bf16.mxu0 %v4396
    %4756 = vmatpush1.bf16.msra.mxu0 %v4395
    %4757 = vmatprep.subr.bf16.mxu0 %v4404
    %4758 = vmatpush1.bf16.msra.mxu0 %v4403
    %4759 = vmatprep.subr.bf16.mxu0 %v4412
    %4760 = vmatpush1.bf16.msra.mxu0 %v4411
    %4761 = vmatprep.mubr.bf16.mxu0 %v4452
    %4762 = vmatmul.mubr.bf16.gmra.mrb[0].mxu0 %v4440
    %v4763 = vpop.f32.mrb[0].mxu0
    %v4764 = vadd.f32 0.0, %v4763
    %v4765 = vpop.f32.mrb[0].mxu0
    %v4766 = vadd.f32 0.0, %v4765
    %v4767 = vpop.f32.mrb[0].mxu0
    %v4768 = vadd.f32 0.0, %v4767
    %v4769 = vpop.f32.mrb[0].mxu0
    %v4770 = vadd.f32 0.0, %v4769
    %4771 = vdwg.mxu0
    %4772 = vmatprep.subr.bf16.mxu0 %v4420
    %4773 = vmatpush1.bf16.msra.mxu0 %v4419
    %4774 = vmatprep.subr.bf16.mxu0 %v4428
    %4775 = vmatpush1.bf16.msra.mxu0 %v4427
    %4776 = vmatprep.subr.bf16.mxu0 0
    %4777 = vmatpush1.bf16.msra.mxu0 0
    %4778 = vmatprep.subr.bf16.mxu0 0
    %4779 = vmatpush1.bf16.msra.mxu0 0
    %4780 = vmatprep.subr.bf16.mxu0 0
    %4781 = vmatpush1.bf16.msra.mxu0 0
    %4782 = vmatprep.subr.bf16.mxu0 0
    %4783 = vmatpush1.bf16.msra.mxu0 0
    %4784 = vmatprep.subr.bf16.mxu0 0
    %4785 = vmatpush1.bf16.msra.mxu0 0
    %4786 = vmatprep.subr.bf16.mxu0 0
    %4787 = vmatpush1.bf16.msra.mxu0 0
    %4788 = vmatprep.subr.bf16.mxu0 0
    %4789 = vmatpush1.bf16.msra.mxu0 0
    %4790 = vmatprep.subr.bf16.mxu0 0
    %4791 = vmatpush1.bf16.msra.mxu0 0
    %4792 = vmatprep.subr.bf16.mxu0 0
    %4793 = vmatpush1.bf16.msra.mxu0 0
    %4794 = vmatprep.subr.bf16.mxu0 0
    %4795 = vmatpush1.bf16.msra.mxu0 0
    %4796 = vmatprep.subr.bf16.mxu0 0
    %4797 = vmatpush1.bf16.msra.mxu0 0
    %4798 = vmatprep.subr.bf16.mxu0 0
    %4799 = vmatpush1.bf16.msra.mxu0 0
    %4800 = vmatprep.subr.bf16.mxu0 0
    %4801 = vmatpush1.bf16.msra.mxu0 0
    %4802 = vmatprep.subr.bf16.mxu0 0
    %4803 = vmatpush1.bf16.msra.mxu0 0
    %4804 = vmatprep.mubr.bf16.mxu0 0
    %4805 = vmatmul.mubr.bf16.gmra.mrb[0].mxu0 %v4469
    %v4806 = vpop.f32.mrb[0].mxu0
    %v4807 = vadd.f32 %v4764, %v4806
    %v4808 = vpop.f32.mrb[0].mxu0
    %v4809 = vadd.f32 %v4766, %v4808
    %v4810 = vpop.f32.mrb[0].mxu0
    %v4811 = vadd.f32 %v4768, %v4810
    %v4812 = vpop.f32.mrb[0].mxu0
    %v4813 = vadd.f32 %v4770, %v4812
    %4814 = vdwg.mxu0
    %v4815 = vsel %vm4467, %v4131, 0
    %4817 = vmatprep.subr.bf16.mxu0 %v4140
    %4818 = vmatpush1.bf16.msra.mxu0 %v4139
    %4819 = vmatprep.subr.bf16.mxu0 %v4148
    %4820 = vmatpush1.bf16.msra.mxu0 %v4147
    %4821 = vmatprep.subr.bf16.mxu0 %v4156
    %4822 = vmatpush1.bf16.msra.mxu0 %v4155
    %4823 = vmatprep.subr.bf16.mxu0 %v4164
    %4824 = vmatpush1.bf16.msra.mxu0 %v4163
    %4825 = vmatprep.subr.bf16.mxu0 %v4172
    %4826 = vmatpush1.bf16.msra.mxu0 %v4171
    %4827 = vmatprep.subr.bf16.mxu0 %v4180
    %4828 = vmatpush1.bf16.msra.mxu0 %v4179
    %4829 = vmatprep.subr.bf16.mxu0 %v4188
    %4830 = vmatpush1.bf16.msra.mxu0 %v4187
    %4831 = vmatprep.subr.bf16.mxu0 %v4196
    %4832 = vmatpush1.bf16.msra.mxu0 %v4195
    %4833 = vmatprep.subr.bf16.mxu0 %v4204
    %4834 = vmatpush1.bf16.msra.mxu0 %v4203
    %4835 = vmatprep.subr.bf16.mxu0 %v4212
    %4836 = vmatpush1.bf16.msra.mxu0 %v4211
    %4837 = vmatprep.subr.bf16.mxu0 %v4220
    %4838 = vmatpush1.bf16.msra.mxu0 %v4219
    %4839 = vmatprep.subr.bf16.mxu0 %v4228
    %4840 = vmatpush1.bf16.msra.mxu0 %v4227
    %4841 = vmatprep.subr.bf16.mxu0 %v4236
    %4842 = vmatpush1.bf16.msra.mxu0 %v4235
    %4843 = vmatprep.subr.bf16.mxu0 %v4244
    %4844 = vmatpush1.bf16.msra.mxu0 %v4243
    %4845 = vmatprep.subr.bf16.mxu0 %v4252
    %4846 = vmatpush1.bf16.msra.mxu0 %v4251
    %4847 = vmatprep.subr.bf16.mxu0 %v4260
    %4848 = vmatpush1.bf16.msra.mxu0 %v4259
    %4849 = vmatprep.mubr.bf16.mxu0 %v4130
    %4850 = vmatmul.mubr.bf16.gmra.mrb[0].mxu0 %v4129
    %v4851 = vpop.f32.mrb[0].mxu0
    %v4852 = vadd.f32 %v4549, %v4851
    %v4853 = vpop.f32.mrb[0].mxu0
    %v4854 = vadd.f32 %v4551, %v4853
    %v4855 = vpop.f32.mrb[0].mxu0
    %v4856 = vadd.f32 %v4553, %v4855
    %v4857 = vpop.f32.mrb[0].mxu0
    %v4858 = vadd.f32 %v4555, %v4857
    %4859 = vdwg.mxu0
    %4860 = vmatprep.subr.bf16.mxu0 %v4268
    %4861 = vmatpush1.bf16.msra.mxu0 %v4267
    %4862 = vmatprep.subr.bf16.mxu0 %v4276
    %4863 = vmatpush1.bf16.msra.mxu0 %v4275
    %4864 = vmatprep.subr.bf16.mxu0 0
    %4865 = vmatpush1.bf16.msra.mxu0 0
    %4866 = vmatprep.subr.bf16.mxu0 0
    %4867 = vmatpush1.bf16.msra.mxu0 0
    %4868 = vmatprep.subr.bf16.mxu0 0
    %4869 = vmatpush1.bf16.msra.mxu0 0
    %4870 = vmatprep.subr.bf16.mxu0 0
    %4871 = vmatpush1.bf16.msra.mxu0 0
    %4872 = vmatprep.subr.bf16.mxu0 0
    %4873 = vmatpush1.bf16.msra.mxu0 0
    %4874 = vmatprep.subr.bf16.mxu0 0
    %4875 = vmatpush1.bf16.msra.mxu0 0
    %4876 = vmatprep.subr.bf16.mxu0 0
    %4877 = vmatpush1.bf16.msra.mxu0 0
    %4878 = vmatprep.subr.bf16.mxu0 0
    %4879 = vmatpush1.bf16.msra.mxu0 0
    %4880 = vmatprep.subr.bf16.mxu0 0
    %4881 = vmatpush1.bf16.msra.mxu0 0
    %4882 = vmatprep.subr.bf16.mxu0 0
    %4883 = vmatpush1.bf16.msra.mxu0 0
    %4884 = vmatprep.subr.bf16.mxu0 0
    %4885 = vmatpush1.bf16.msra.mxu0 0
    %4886 = vmatprep.subr.bf16.mxu0 0
    %4887 = vmatpush1.bf16.msra.mxu0 0
    %4888 = vmatprep.subr.bf16.mxu0 0
    %4889 = vmatpush1.bf16.msra.mxu0 0
    %4890 = vmatprep.subr.bf16.mxu0 0
    %4891 = vmatpush1.bf16.msra.mxu0 0
    %4892 = vmatprep.mubr.bf16.mxu0 0
    %4893 = vmatmul.mubr.bf16.gmra.mrb[0].mxu0 %v4815
    %v4894 = vpop.f32.mrb[0].mxu0
    %v4895 = vadd.f32 %v4852, %v4894
    %v4896 = vpop.f32.mrb[0].mxu0
    %v4897 = vadd.f32 %v4854, %v4896
    %v4898 = vpop.f32.mrb[0].mxu0
    %v4899 = vadd.f32 %v4856, %v4898
    %v4900 = vpop.f32.mrb[0].mxu0
    %v4901 = vadd.f32 %v4858, %v4900
    %4902 = vdwg.mxu0
    %4903 = vmatprep.subr.bf16.mxu0 %v4142
    %4904 = vmatpush1.bf16.msra.mxu0 %v4141
    %4905 = vmatprep.subr.bf16.mxu0 %v4150
    %4906 = vmatpush1.bf16.msra.mxu0 %v4149
    %4907 = vmatprep.subr.bf16.mxu0 %v4158
    %4908 = vmatpush1.bf16.msra.mxu0 %v4157
    %4909 = vmatprep.subr.bf16.mxu0 %v4166
    %4910 = vmatpush1.bf16.msra.mxu0 %v4165
    %4911 = vmatprep.subr.bf16.mxu0 %v4174
    %4912 = vmatpush1.bf16.msra.mxu0 %v4173
    %4913 = vmatprep.subr.bf16.mxu0 %v4182
    %4914 = vmatpush1.bf16.msra.mxu0 %v4181
    %4915 = vmatprep.subr.bf16.mxu0 %v4190
    %4916 = vmatpush1.bf16.msra.mxu0 %v4189
    %4917 = vmatprep.subr.bf16.mxu0 %v4198
    %4918 = vmatpush1.bf16.msra.mxu0 %v4197
    %4919 = vmatprep.subr.bf16.mxu0 %v4206
    %4920 = vmatpush1.bf16.msra.mxu0 %v4205
    %4921 = vmatprep.subr.bf16.mxu0 %v4214
    %4922 = vmatpush1.bf16.msra.mxu0 %v4213
    %4923 = vmatprep.subr.bf16.mxu0 %v4222
    %4924 = vmatpush1.bf16.msra.mxu0 %v4221
    %4925 = vmatprep.subr.bf16.mxu0 %v4230
    %4926 = vmatpush1.bf16.msra.mxu0 %v4229
    %4927 = vmatprep.subr.bf16.mxu0 %v4238
    %4928 = vmatpush1.bf16.msra.mxu0 %v4237
    %4929 = vmatprep.subr.bf16.mxu0 %v4246
    %4930 = vmatpush1.bf16.msra.mxu0 %v4245
    %4931 = vmatprep.subr.bf16.mxu0 %v4254
    %4932 = vmatpush1.bf16.msra.mxu0 %v4253
    %4933 = vmatprep.subr.bf16.mxu0 %v4262
    %4934 = vmatpush1.bf16.msra.mxu0 %v4261
    %4935 = vmatprep.mubr.bf16.mxu0 %v4130
    %4936 = vmatmul.mubr.bf16.gmra.mrb[0].mxu0 %v4129
    %v4937 = vpop.f32.mrb[0].mxu0
    %v4938 = vadd.f32 %v4635, %v4937
    %v4939 = vpop.f32.mrb[0].mxu0
    %v4940 = vadd.f32 %v4637, %v4939
    %v4941 = vpop.f32.mrb[0].mxu0
    %v4942 = vadd.f32 %v4639, %v4941
    %v4943 = vpop.f32.mrb[0].mxu0
    %v4944 = vadd.f32 %v4641, %v4943
    %4945 = vdwg.mxu0
    %4946 = vmatprep.subr.bf16.mxu0 %v4270
    %4947 = vmatpush1.bf16.msra.mxu0 %v4269
    %4948 = vmatprep.subr.bf16.mxu0 %v4278
    %4949 = vmatpush1.bf16.msra.mxu0 %v4277
    %4950 = vmatprep.subr.bf16.mxu0 0
    %4951 = vmatpush1.bf16.msra.mxu0 0
    %4952 = vmatprep.subr.bf16.mxu0 0
    %4953 = vmatpush1.bf16.msra.mxu0 0
    %4954 = vmatprep.subr.bf16.mxu0 0
    %4955 = vmatpush1.bf16.msra.mxu0 0
    %4956 = vmatprep.subr.bf16.mxu0 0
    %4957 = vmatpush1.bf16.msra.mxu0 0
    %4958 = vmatprep.subr.bf16.mxu0 0
    %4959 = vmatpush1.bf16.msra.mxu0 0
    %4960 = vmatprep.subr.bf16.mxu0 0
    %4961 = vmatpush1.bf16.msra.mxu0 0
    %4962 = vmatprep.subr.bf16.mxu0 0
    %4963 = vmatpush1.bf16.msra.mxu0 0
    %4964 = vmatprep.subr.bf16.mxu0 0
    %4965 = vmatpush1.bf16.msra.mxu0 0
    %4966 = vmatprep.subr.bf16.mxu0 0
    %4967 = vmatpush1.bf16.msra.mxu0 0
    %4968 = vmatprep.subr.bf16.mxu0 0
    %4969 = vmatpush1.bf16.msra.mxu0 0
    %4970 = vmatprep.subr.bf16.mxu0 0
    %4971 = vmatpush1.bf16.msra.mxu0 0
    %4972 = vmatprep.subr.bf16.mxu0 0
    %4973 = vmatpush1.bf16.msra.mxu0 0
    %4974 = vmatprep.subr.bf16.mxu0 0
    %4975 = vmatpush1.bf16.msra.mxu0 0
    %4976 = vmatprep.subr.bf16.mxu0 0
    %4977 = vmatpush1.bf16.msra.mxu0 0
    %4978 = vmatprep.mubr.bf16.mxu0 0
    %4979 = vmatmul.mubr.bf16.gmra.mrb[0].mxu0 %v4815
    %v4980 = vpop.f32.mrb[0].mxu0
    %v4981 = vadd.f32 %v4938, %v4980
    %v4982 = vpop.f32.mrb[0].mxu0
    %v4983 = vadd.f32 %v4940, %v4982
    %v4984 = vpop.f32.mrb[0].mxu0
    %v4985 = vadd.f32 %v4942, %v4984
    %v4986 = vpop.f32.mrb[0].mxu0
    %v4987 = vadd.f32 %v4944, %v4986
    %4988 = vdwg.mxu0
    %4989 = vmatprep.subr.bf16.mxu0 %v4144
    %4990 = vmatpush1.bf16.msra.mxu0 %v4143
    %4991 = vmatprep.subr.bf16.mxu0 %v4152
    %4992 = vmatpush1.bf16.msra.mxu0 %v4151
    %4993 = vmatprep.subr.bf16.mxu0 %v4160
    %4994 = vmatpush1.bf16.msra.mxu0 %v4159
    %4995 = vmatprep.subr.bf16.mxu0 %v4168
    %4996 = vmatpush1.bf16.msra.mxu0 %v4167
    %4997 = vmatprep.subr.bf16.mxu0 %v4176
    %4998 = vmatpush1.bf16.msra.mxu0 %v4175
    %4999 = vmatprep.subr.bf16.mxu0 %v4184
    %5000 = vmatpush1.bf16.msra.mxu0 %v4183
    %5001 = vmatprep.subr.bf16.mxu0 %v4192
    %5002 = vmatpush1.bf16.msra.mxu0 %v4191
    %5003 = vmatprep.subr.bf16.mxu0 %v4200
    %5004 = vmatpush1.bf16.msra.mxu0 %v4199
    %5005 = vmatprep.subr.bf16.mxu0 %v4208
    %5006 = vmatpush1.bf16.msra.mxu0 %v4207
    %5007 = vmatprep.subr.bf16.mxu0 %v4216
    %5008 = vmatpush1.bf16.msra.mxu0 %v4215
    %5009 = vmatprep.subr.bf16.mxu0 %v4224
    %5010 = vmatpush1.bf16.msra.mxu0 %v4223
    %5011 = vmatprep.subr.bf16.mxu0 %v4232
    %5012 = vmatpush1.bf16.msra.mxu0 %v4231
    %5013 = vmatprep.subr.bf16.mxu0 %v4240
    %5014 = vmatpush1.bf16.msra.mxu0 %v4239
    %5015 = vmatprep.subr.bf16.mxu0 %v4248
    %5016 = vmatpush1.bf16.msra.mxu0 %v4247
    %5017 = vmatprep.subr.bf16.mxu0 %v4256
    %5018 = vmatpush1.bf16.msra.mxu0 %v4255
    %5019 = vmatprep.subr.bf16.mxu0 %v4264
    %5020 = vmatpush1.bf16.msra.mxu0 %v4263
    %5021 = vmatprep.mubr.bf16.mxu0 %v4130
    %5022 = vmatmul.mubr.bf16.gmra.mrb[0].mxu0 %v4129
    %v5023 = vpop.f32.mrb[0].mxu0
    %v5024 = vadd.f32 %v4721, %v5023
    %v5025 = vpop.f32.mrb[0].mxu0
    %v5026 = vadd.f32 %v4723, %v5025
    %v5027 = vpop.f32.mrb[0].mxu0
    %v5028 = vadd.f32 %v4725, %v5027
    %v5029 = vpop.f32.mrb[0].mxu0
    %v5030 = vadd.f32 %v4727, %v5029
    %5031 = vdwg.mxu0
    %5032 = vmatprep.subr.bf16.mxu0 %v4272
    %5033 = vmatpush1.bf16.msra.mxu0 %v4271
    %5034 = vmatprep.subr.bf16.mxu0 %v4280
    %5035 = vmatpush1.bf16.msra.mxu0 %v4279
    %5036 = vmatprep.subr.bf16.mxu0 0
    %5037 = vmatpush1.bf16.msra.mxu0 0
    %5038 = vmatprep.subr.bf16.mxu0 0
    %5039 = vmatpush1.bf16.msra.mxu0 0
    %5040 = vmatprep.subr.bf16.mxu0 0
    %5041 = vmatpush1.bf16.msra.mxu0 0
    %5042 = vmatprep.subr.bf16.mxu0 0
    %5043 = vmatpush1.bf16.msra.mxu0 0
    %5044 = vmatprep.subr.bf16.mxu0 0
    %5045 = vmatpush1.bf16.msra.mxu0 0
    %5046 = vmatprep.subr.bf16.mxu0 0
    %5047 = vmatpush1.bf16.msra.mxu0 0
    %5048 = vmatprep.subr.bf16.mxu0 0
    %5049 = vmatpush1.bf16.msra.mxu0 0
    %5050 = vmatprep.subr.bf16.mxu0 0
    %5051 = vmatpush1.bf16.msra.mxu0 0
    %5052 = vmatprep.subr.bf16.mxu0 0
    %5053 = vmatpush1.bf16.msra.mxu0 0
    %5054 = vmatprep.subr.bf16.mxu0 0
    %5055 = vmatpush1.bf16.msra.mxu0 0
    %5056 = vmatprep.subr.bf16.mxu0 0
    %5057 = vmatpush1.bf16.msra.mxu0 0
    %5058 = vmatprep.subr.bf16.mxu0 0
    %5059 = vmatpush1.bf16.msra.mxu0 0
    %5060 = vmatprep.subr.bf16.mxu0 0
    %5061 = vmatpush1.bf16.msra.mxu0 0
    %5062 = vmatprep.subr.bf16.mxu0 0
    %5063 = vmatpush1.bf16.msra.mxu0 0
    %5064 = vmatprep.mubr.bf16.mxu0 0
    %5065 = vmatmul.mubr.bf16.gmra.mrb[0].mxu0 %v4815
    %v5066 = vpop.f32.mrb[0].mxu0
    %v5067 = vadd.f32 %v5024, %v5066
    %v5068 = vpop.f32.mrb[0].mxu0
    %v5069 = vadd.f32 %v5026, %v5068
    %v5070 = vpop.f32.mrb[0].mxu0
    %v5071 = vadd.f32 %v5028, %v5070
    %v5072 = vpop.f32.mrb[0].mxu0
    %v5073 = vadd.f32 %v5030, %v5072
    %5074 = vdwg.mxu0
    %5075 = vmatprep.subr.bf16.mxu0 %v4146
    %5076 = vmatpush1.bf16.msra.mxu0 %v4145
    %5077 = vmatprep.subr.bf16.mxu0 %v4154
    %5078 = vmatpush1.bf16.msra.mxu0 %v4153
    %5079 = vmatprep.subr.bf16.mxu0 %v4162
    %5080 = vmatpush1.bf16.msra.mxu0 %v4161
    %5081 = vmatprep.subr.bf16.mxu0 %v4170
    %5082 = vmatpush1.bf16.msra.mxu0 %v4169
    %5083 = vmatprep.subr.bf16.mxu0 %v4178
    %5084 = vmatpush1.bf16.msra.mxu0 %v4177
    %5085 = vmatprep.subr.bf16.mxu0 %v4186
    %5086 = vmatpush1.bf16.msra.mxu0 %v4185
    %5087 = vmatprep.subr.bf16.mxu0 %v4194
    %5088 = vmatpush1.bf16.msra.mxu0 %v4193
    %5089 = vmatprep.subr.bf16.mxu0 %v4202
    %5090 = vmatpush1.bf16.msra.mxu0 %v4201
    %5091 = vmatprep.subr.bf16.mxu0 %v4210
    %5092 = vmatpush1.bf16.msra.mxu0 %v4209
    %5093 = vmatprep.subr.bf16.mxu0 %v4218
    %5094 = vmatpush1.bf16.msra.mxu0 %v4217
    %5095 = vmatprep.subr.bf16.mxu0 %v4226
    %5096 = vmatpush1.bf16.msra.mxu0 %v4225
    %5097 = vmatprep.subr.bf16.mxu0 %v4234
    %5098 = vmatpush1.bf16.msra.mxu0 %v4233
    %5099 = vmatprep.subr.bf16.mxu0 %v4242
    %5100 = vmatpush1.bf16.msra.mxu0 %v4241
    %5101 = vmatprep.subr.bf16.mxu0 %v4250
    %5102 = vmatpush1.bf16.msra.mxu0 %v4249
    %5103 = vmatprep.subr.bf16.mxu0 %v4258
    %5104 = vmatpush1.bf16.msra.mxu0 %v4257
    %5105 = vmatprep.subr.bf16.mxu0 %v4266
    %5106 = vmatpush1.bf16.msra.mxu0 %v4265
    %5107 = vmatprep.mubr.bf16.mxu0 %v4130
    %5108 = vmatmul.mubr.bf16.gmra.mrb[0].mxu0 %v4129
    %v5109 = vpop.f32.mrb[0].mxu0
    %v5110 = vadd.f32 %v4807, %v5109
    %v5111 = vpop.f32.mrb[0].mxu0
    %v5112 = vadd.f32 %v4809, %v5111
    %v5113 = vpop.f32.mrb[0].mxu0
    %v5114 = vadd.f32 %v4811, %v5113
    %v5115 = vpop.f32.mrb[0].mxu0
    %v5116 = vadd.f32 %v4813, %v5115
    %5117 = vdwg.mxu0
    %5118 = vmatprep.subr.bf16.mxu0 %v4274
    %5119 = vmatpush1.bf16.msra.mxu0 %v4273
    %5120 = vmatprep.subr.bf16.mxu0 %v4282
    %5121 = vmatpush1.bf16.msra.mxu0 %v4281
    %5122 = vmatprep.subr.bf16.mxu0 0
    %5123 = vmatpush1.bf16.msra.mxu0 0
    %5124 = vmatprep.subr.bf16.mxu0 0
    %5125 = vmatpush1.bf16.msra.mxu0 0
    %5126 = vmatprep.subr.bf16.mxu0 0
    %5127 = vmatpush1.bf16.msra.mxu0 0
    %5128 = vmatprep.subr.bf16.mxu0 0
    %5129 = vmatpush1.bf16.msra.mxu0 0
    %5130 = vmatprep.subr.bf16.mxu0 0
    %5131 = vmatpush1.bf16.msra.mxu0 0
    %5132 = vmatprep.subr.bf16.mxu0 0
    %5133 = vmatpush1.bf16.msra.mxu0 0
    %5134 = vmatprep.subr.bf16.mxu0 0
    %5135 = vmatpush1.bf16.msra.mxu0 0
    %5136 = vmatprep.subr.bf16.mxu0 0
    %5137 = vmatpush1.bf16.msra.mxu0 0
    %5138 = vmatprep.subr.bf16.mxu0 0
    %5139 = vmatpush1.bf16.msra.mxu0 0
    %5140 = vmatprep.subr.bf16.mxu0 0
    %5141 = vmatpush1.bf16.msra.mxu0 0
    %5142 = vmatprep.subr.bf16.mxu0 0
    %5143 = vmatpush1.bf16.msra.mxu0 0
    %5144 = vmatprep.subr.bf16.mxu0 0
    %5145 = vmatpush1.bf16.msra.mxu0 0
    %5146 = vmatprep.subr.bf16.mxu0 0
    %5147 = vmatpush1.bf16.msra.mxu0 0
    %5148 = vmatprep.subr.bf16.mxu0 0
    %5149 = vmatpush1.bf16.msra.mxu0 0
    %5150 = vmatprep.mubr.bf16.mxu0 0
    %5151 = vmatmul.mubr.bf16.gmra.mrb[0].mxu0 %v4815
    %v5152 = vpop.f32.mrb[0].mxu0
    %v5153 = vadd.f32 %v5110, %v5152
    %v5154 = vpop.f32.mrb[0].mxu0
    %v5155 = vadd.f32 %v5112, %v5154
    %v5156 = vpop.f32.mrb[0].mxu0
    %v5157 = vadd.f32 %v5114, %v5156
    %v5158 = vpop.f32.mrb[0].mxu0
    %v5159 = vadd.f32 %v5116, %v5158
    %5160 = vdwg.mxu0
    %s5161 = sshll.u32 %s4136, 4
    %5162 = dma.done %s154, %s5161
    %v5163 = vld [vmem:[%s153] sm:$0xff]
    %v5164 = vld [vmem:[%s153 + $0x8] sm:$0xff]
    %v5165 = vld [vmem:[%s153 + $0x10] sm:$0xff]
    %v5166 = vld [vmem:[%s153 + $0x18] sm:$0xff]
    %v5167 = vld [vmem:[%s153 + $0x20] sm:$0xff]
    %v5168 = vld [vmem:[%s153 + $0x28] sm:$0xff]
    %v5169 = vld [vmem:[%s153 + $0x30] sm:$0xff]
    %v5170 = vld [vmem:[%s153 + $0x38] sm:$0xff]
    %v5171 = vld [vmem:[%s153 + $0x40] sm:$0xff]
    %v5172 = vld [vmem:[%s153 + $0x48] sm:$0xff]
    %v5173 = vld [vmem:[%s153 + $0x50] sm:$0xff]
    %v5174 = vld [vmem:[%s153 + $0x58] sm:$0xff]
    %v5175 = vld [vmem:[%s153 + $0x60] sm:$0xff]
    %v5176 = vld [vmem:[%s153 + $0x68] sm:$0xff]
    %v5177 = vld [vmem:[%s153 + $0x70] sm:$0xff]
    %v5178 = vld [vmem:[%s153 + $0x78] sm:$0xff]
    %v5179 = vld [vmem:[%s153 + $0x80] sm:$0xff]
    %v5180 = vld [vmem:[%s153 + $0x88] sm:$0xff]
    %v5181 = vld [vmem:[%s153 + $0x90] sm:$0xff]
    %v5182 = vld [vmem:[%s153 + $0x98] sm:$0xff]
    %v5183 = vld [vmem:[%s153 + $0xa0] sm:$0xff]
    %v5184 = vld [vmem:[%s153 + $0xa8] sm:$0xff]
    %v5185 = vld [vmem:[%s153 + $0xb0] sm:$0xff]
    %v5186 = vld [vmem:[%s153 + $0xb8] sm:$0xff]
    %v5187 = vld [vmem:[%s153 + $0xc0] sm:$0xff]
    %v5188 = vld [vmem:[%s153 + $0xc8] sm:$0xff]
    %v5189 = vld [vmem:[%s153 + $0xd0] sm:$0xff]
    %v5190 = vld [vmem:[%s153 + $0xd8] sm:$0xff]
    %v5191 = vld [vmem:[%s153 + $0xe0] sm:$0xff]
    %v5192 = vld [vmem:[%s153 + $0xe8] sm:$0xff]
    %v5193 = vld [vmem:[%s153 + $0xf0] sm:$0xff]
    %v5194 = vld [vmem:[%s153 + $0xf8] sm:$0xff]
    %v5195 = vld [vmem:[%s153 + $0x100] sm:$0xff]
    %v5196 = vld [vmem:[%s153 + $0x108] sm:$0xff]
    %v5197 = vld [vmem:[%s153 + $0x110] sm:$0xff]
    %v5198 = vld [vmem:[%s153 + $0x118] sm:$0xff]
    %v5199 = vld [vmem:[%s153 + $0x120] sm:$0xff]
    %v5200 = vld [vmem:[%s153 + $0x128] sm:$0xff]
    %v5201 = vld [vmem:[%s153 + $0x130] sm:$0xff]
    %v5202 = vld [vmem:[%s153 + $0x138] sm:$0xff]
    %v5203 = vld [vmem:[%s153 + $0x140] sm:$0xff]
    %v5204 = vld [vmem:[%s153 + $0x148] sm:$0xff]
    %v5205 = vld [vmem:[%s153 + $0x150] sm:$0xff]
    %v5206 = vld [vmem:[%s153 + $0x158] sm:$0xff]
    %v5207 = vld [vmem:[%s153 + $0x160] sm:$0xff]
    %v5208 = vld [vmem:[%s153 + $0x168] sm:$0xff]
    %v5209 = vld [vmem:[%s153 + $0x170] sm:$0xff]
    %v5210 = vld [vmem:[%s153 + $0x178] sm:$0xff]
    %v5211 = vld [vmem:[%s153 + $0x180] sm:$0xff]
    %v5212 = vld [vmem:[%s153 + $0x188] sm:$0xff]
    %v5213 = vld [vmem:[%s153 + $0x190] sm:$0xff]
    %v5214 = vld [vmem:[%s153 + $0x198] sm:$0xff]
    %v5215 = vld [vmem:[%s153 + $0x1a0] sm:$0xff]
    %v5216 = vld [vmem:[%s153 + $0x1a8] sm:$0xff]
    %v5217 = vld [vmem:[%s153 + $0x1b0] sm:$0xff]
    %v5218 = vld [vmem:[%s153 + $0x1b8] sm:$0xff]
    %v5219 = vld [vmem:[%s153 + $0x1c0] sm:$0xff]
    %v5220 = vld [vmem:[%s153 + $0x1c8] sm:$0xff]
    %v5221 = vld [vmem:[%s153 + $0x1d0] sm:$0xff]
    %v5222 = vld [vmem:[%s153 + $0x1d8] sm:$0xff]
    %v5223 = vld [vmem:[%s153 + $0x1e0] sm:$0xff]
    %v5224 = vld [vmem:[%s153 + $0x1e8] sm:$0xff]
    %v5225 = vld [vmem:[%s153 + $0x1f0] sm:$0xff]
    %v5226 = vld [vmem:[%s153 + $0x1f8] sm:$0xff]
    %v5227 = vld [vmem:[%s153 + $0x200] sm:$0xff]
    %v5228 = vld [vmem:[%s153 + $0x208] sm:$0xff]
    %v5229 = vld [vmem:[%s153 + $0x210] sm:$0xff]
    %v5230 = vld [vmem:[%s153 + $0x218] sm:$0xff]
    %v5231 = vld [vmem:[%s153 + $0x220] sm:$0xff]
    %v5232 = vld [vmem:[%s153 + $0x228] sm:$0xff]
    %v5233 = vld [vmem:[%s153 + $0x230] sm:$0xff]
    %v5234 = vld [vmem:[%s153 + $0x238] sm:$0xff]
    %v5235 = vld [vmem:[%s153 + $0x240] sm:$0xff]
    %v5236 = vld [vmem:[%s153 + $0x248] sm:$0xff]
    %v5237 = vld [vmem:[%s153 + $0x250] sm:$0xff]
    %v5238 = vld [vmem:[%s153 + $0x258] sm:$0xff]
    %v5239 = vld [vmem:[%s153 + $0x260] sm:$0xff]
    %v5240 = vld [vmem:[%s153 + $0x268] sm:$0xff]
    %v5241 = vld [vmem:[%s153 + $0x270] sm:$0xff]
    %v5242 = vld [vmem:[%s153 + $0x278] sm:$0xff]
    %v5243 = vld [vmem:[%s153 + $0x280] sm:$0xff]
    %v5244 = vld [vmem:[%s153 + $0x288] sm:$0xff]
    %v5245 = vld [vmem:[%s153 + $0x290] sm:$0xff]
    %v5246 = vld [vmem:[%s153 + $0x298] sm:$0xff]
    %v5247 = vld [vmem:[%s153 + $0x2a0] sm:$0xff]
    %v5248 = vld [vmem:[%s153 + $0x2a8] sm:$0xff]
    %v5249 = vld [vmem:[%s153 + $0x2b0] sm:$0xff]
    %v5250 = vld [vmem:[%s153 + $0x2b8] sm:$0xff]
    %v5251 = vld [vmem:[%s153 + $0x2c0] sm:$0xff]
    %v5252 = vld [vmem:[%s153 + $0x2c8] sm:$0xff]
    %v5253 = vld [vmem:[%s153 + $0x2d0] sm:$0xff]
    %v5254 = vld [vmem:[%s153 + $0x2d8] sm:$0xff]
    %v5255 = vld [vmem:[%s153 + $0x2e0] sm:$0xff]
    %v5256 = vld [vmem:[%s153 + $0x2e8] sm:$0xff]
    %v5257 = vld [vmem:[%s153 + $0x2f0] sm:$0xff]
    %v5258 = vld [vmem:[%s153 + $0x2f8] sm:$0xff]
    %v5259 = vld [vmem:[%s153 + $0x300] sm:$0xff]
    %v5260 = vld [vmem:[%s153 + $0x308] sm:$0xff]
    %v5261 = vld [vmem:[%s153 + $0x310] sm:$0xff]
    %v5262 = vld [vmem:[%s153 + $0x318] sm:$0xff]
    %v5263 = vld [vmem:[%s153 + $0x320] sm:$0xff]
    %v5264 = vld [vmem:[%s153 + $0x328] sm:$0xff]
    %v5265 = vld [vmem:[%s153 + $0x330] sm:$0xff]
    %v5266 = vld [vmem:[%s153 + $0x338] sm:$0xff]
    %v5267 = vld [vmem:[%s153 + $0x340] sm:$0xff]
    %v5268 = vld [vmem:[%s153 + $0x348] sm:$0xff]
    %v5269 = vld [vmem:[%s153 + $0x350] sm:$0xff]
    %v5270 = vld [vmem:[%s153 + $0x358] sm:$0xff]
    %v5271 = vld [vmem:[%s153 + $0x360] sm:$0xff]
    %v5272 = vld [vmem:[%s153 + $0x368] sm:$0xff]
    %v5273 = vld [vmem:[%s153 + $0x370] sm:$0xff]
    %v5274 = vld [vmem:[%s153 + $0x378] sm:$0xff]
    %v5275 = vld [vmem:[%s153 + $0x380] sm:$0xff]
    %v5276 = vld [vmem:[%s153 + $0x388] sm:$0xff]
    %v5277 = vld [vmem:[%s153 + $0x390] sm:$0xff]
    %v5278 = vld [vmem:[%s153 + $0x398] sm:$0xff]
    %v5279 = vld [vmem:[%s153 + $0x3a0] sm:$0xff]
    %v5280 = vld [vmem:[%s153 + $0x3a8] sm:$0xff]
    %v5281 = vld [vmem:[%s153 + $0x3b0] sm:$0xff]
    %v5282 = vld [vmem:[%s153 + $0x3b8] sm:$0xff]
    %v5283 = vld [vmem:[%s153 + $0x3c0] sm:$0xff]
    %v5284 = vld [vmem:[%s153 + $0x3c8] sm:$0xff]
    %v5285 = vld [vmem:[%s153 + $0x3d0] sm:$0xff]
    %v5286 = vld [vmem:[%s153 + $0x3d8] sm:$0xff]
    %v5287 = vld [vmem:[%s153 + $0x3e0] sm:$0xff]
    %v5288 = vld [vmem:[%s153 + $0x3e8] sm:$0xff]
    %v5289 = vld [vmem:[%s153 + $0x3f0] sm:$0xff]
    %v5290 = vld [vmem:[%s153 + $0x3f8] sm:$0xff]
    %v5291 = vld [vmem:[%s153 + $0x400] sm:$0xff]
    %v5292 = vld [vmem:[%s153 + $0x408] sm:$0xff]
    %v5293 = vld [vmem:[%s153 + $0x410] sm:$0xff]
    %v5294 = vld [vmem:[%s153 + $0x418] sm:$0xff]
    %v5295 = vld [vmem:[%s153 + $0x420] sm:$0xff]
    %v5296 = vld [vmem:[%s153 + $0x428] sm:$0xff]
    %v5297 = vld [vmem:[%s153 + $0x430] sm:$0xff]
    %v5298 = vld [vmem:[%s153 + $0x438] sm:$0xff]
    %v5299 = vld [vmem:[%s153 + $0x440] sm:$0xff]
    %v5300 = vld [vmem:[%s153 + $0x448] sm:$0xff]
    %v5301 = vld [vmem:[%s153 + $0x450] sm:$0xff]
    %v5302 = vld [vmem:[%s153 + $0x458] sm:$0xff]
    %v5303 = vld [vmem:[%s153 + $0x460] sm:$0xff]
    %v5304 = vld [vmem:[%s153 + $0x468] sm:$0xff]
    %v5305 = vld [vmem:[%s153 + $0x470] sm:$0xff]
    %v5306 = vld [vmem:[%s153 + $0x478] sm:$0xff]
    %v5313 = vrot.slane %v4129, 1
    %v5314 = vrot.slane %v4132, 1
    %v5315 = vsel %vm732, %v5313, %v5314
    %v5316 = vrot.slane %v4130, 1
    %v5317 = vrot.slane %v4133, 1
    %v5318 = vsel %vm732, %v5316, %v5317
    %v5319 = vrot.slane %v4131, 1
    %v5320 = vrot.slane %v4134, 1
    %v5321 = vsel %vm732, %v5319, %v5320
    %v5325 = vsel %vm4467, %v5321, 0
    %5327 = vmatprep.subr.bf16.mxu0 %v5164
    %5328 = vmatpush1.bf16.msra.mxu0 %v5163
    %5329 = vmatprep.subr.bf16.mxu0 %v5172
    %5330 = vmatpush1.bf16.msra.mxu0 %v5171
    %5331 = vmatprep.subr.bf16.mxu0 %v5180
    %5332 = vmatpush1.bf16.msra.mxu0 %v5179
    %5333 = vmatprep.subr.bf16.mxu0 %v5188
    %5334 = vmatpush1.bf16.msra.mxu0 %v5187
    %5335 = vmatprep.subr.bf16.mxu0 %v5196
    %5336 = vmatpush1.bf16.msra.mxu0 %v5195
    %5337 = vmatprep.subr.bf16.mxu0 %v5204
    %5338 = vmatpush1.bf16.msra.mxu0 %v5203
    %5339 = vmatprep.subr.bf16.mxu0 %v5212
    %5340 = vmatpush1.bf16.msra.mxu0 %v5211
    %5341 = vmatprep.subr.bf16.mxu0 %v5220
    %5342 = vmatpush1.bf16.msra.mxu0 %v5219
    %5343 = vmatprep.subr.bf16.mxu0 %v5228
    %5344 = vmatpush1.bf16.msra.mxu0 %v5227
    %5345 = vmatprep.subr.bf16.mxu0 %v5236
    %5346 = vmatpush1.bf16.msra.mxu0 %v5235
    %5347 = vmatprep.subr.bf16.mxu0 %v5244
    %5348 = vmatpush1.bf16.msra.mxu0 %v5243
    %5349 = vmatprep.subr.bf16.mxu0 %v5252
    %5350 = vmatpush1.bf16.msra.mxu0 %v5251
    %5351 = vmatprep.subr.bf16.mxu0 %v5260
    %5352 = vmatpush1.bf16.msra.mxu0 %v5259
    %5353 = vmatprep.subr.bf16.mxu0 %v5268
    %5354 = vmatpush1.bf16.msra.mxu0 %v5267
    %5355 = vmatprep.subr.bf16.mxu0 %v5276
    %5356 = vmatpush1.bf16.msra.mxu0 %v5275
    %5357 = vmatprep.subr.bf16.mxu0 %v5284
    %5358 = vmatpush1.bf16.msra.mxu0 %v5283
    %5359 = vmatprep.mubr.bf16.mxu0 %v5318
    %5360 = vmatmul.mubr.bf16.gmra.mrb[0].mxu0 %v5315
    %v5361 = vpop.f32.mrb[0].mxu0
    %v5362 = vadd.f32 0.0, %v5361
    %v5363 = vpop.f32.mrb[0].mxu0
    %v5364 = vadd.f32 0.0, %v5363
    %v5365 = vpop.f32.mrb[0].mxu0
    %v5366 = vadd.f32 0.0, %v5365
    %v5367 = vpop.f32.mrb[0].mxu0
    %v5368 = vadd.f32 0.0, %v5367
    %5369 = vdwg.mxu0
    %5370 = vmatprep.subr.bf16.mxu0 %v5292
    %5371 = vmatpush1.bf16.msra.mxu0 %v5291
    %5372 = vmatprep.subr.bf16.mxu0 %v5300
    %5373 = vmatpush1.bf16.msra.mxu0 %v5299
    %5374 = vmatprep.subr.bf16.mxu0 0
    %5375 = vmatpush1.bf16.msra.mxu0 0
    %5376 = vmatprep.subr.bf16.mxu0 0
    %5377 = vmatpush1.bf16.msra.mxu0 0
    %5378 = vmatprep.subr.bf16.mxu0 0
    %5379 = vmatpush1.bf16.msra.mxu0 0
    %5380 = vmatprep.subr.bf16.mxu0 0
    %5381 = vmatpush1.bf16.msra.mxu0 0
    %5382 = vmatprep.subr.bf16.mxu0 0
    %5383 = vmatpush1.bf16.msra.mxu0 0
    %5384 = vmatprep.subr.bf16.mxu0 0
    %5385 = vmatpush1.bf16.msra.mxu0 0
    %5386 = vmatprep.subr.bf16.mxu0 0
    %5387 = vmatpush1.bf16.msra.mxu0 0
    %5388 = vmatprep.subr.bf16.mxu0 0
    %5389 = vmatpush1.bf16.msra.mxu0 0
    %5390 = vmatprep.subr.bf16.mxu0 0
    %5391 = vmatpush1.bf16.msra.mxu0 0
    %5392 = vmatprep.subr.bf16.mxu0 0
    %5393 = vmatpush1.bf16.msra.mxu0 0
    %5394 = vmatprep.subr.bf16.mxu0 0
    %5395 = vmatpush1.bf16.msra.mxu0 0
    %5396 = vmatprep.subr.bf16.mxu0 0
    %5397 = vmatpush1.bf16.msra.mxu0 0
    %5398 = vmatprep.subr.bf16.mxu0 0
    %5399 = vmatpush1.bf16.msra.mxu0 0
    %5400 = vmatprep.subr.bf16.mxu0 0
    %5401 = vmatpush1.bf16.msra.mxu0 0
    %5402 = vmatprep.mubr.bf16.mxu0 0
    %5403 = vmatmul.mubr.bf16.gmra.mrb[0].mxu0 %v5325
    %v5404 = vpop.f32.mrb[0].mxu0
    %v5405 = vadd.f32 %v5362, %v5404
    %v5406 = vpop.f32.mrb[0].mxu0
    %v5407 = vadd.f32 %v5364, %v5406
    %v5408 = vpop.f32.mrb[0].mxu0
    %v5409 = vadd.f32 %v5366, %v5408
    %v5410 = vpop.f32.mrb[0].mxu0
    %v5411 = vadd.f32 %v5368, %v5410
    %5412 = vdwg.mxu0
    %5413 = vmatprep.subr.bf16.mxu0 %v5166
    %5414 = vmatpush1.bf16.msra.mxu0 %v5165
    %5415 = vmatprep.subr.bf16.mxu0 %v5174
    %5416 = vmatpush1.bf16.msra.mxu0 %v5173
    %5417 = vmatprep.subr.bf16.mxu0 %v5182
    %5418 = vmatpush1.bf16.msra.mxu0 %v5181
    %5419 = vmatprep.subr.bf16.mxu0 %v5190
    %5420 = vmatpush1.bf16.msra.mxu0 %v5189
    %5421 = vmatprep.subr.bf16.mxu0 %v5198
    %5422 = vmatpush1.bf16.msra.mxu0 %v5197
    %5423 = vmatprep.subr.bf16.mxu0 %v5206
    %5424 = vmatpush1.bf16.msra.mxu0 %v5205
    %5425 = vmatprep.subr.bf16.mxu0 %v5214
    %5426 = vmatpush1.bf16.msra.mxu0 %v5213
    %5427 = vmatprep.subr.bf16.mxu0 %v5222
    %5428 = vmatpush1.bf16.msra.mxu0 %v5221
    %5429 = vmatprep.subr.bf16.mxu0 %v5230
    %5430 = vmatpush1.bf16.msra.mxu0 %v5229
    %5431 = vmatprep.subr.bf16.mxu0 %v5238
    %5432 = vmatpush1.bf16.msra.mxu0 %v5237
    %5433 = vmatprep.subr.bf16.mxu0 %v5246
    %5434 = vmatpush1.bf16.msra.mxu0 %v5245
    %5435 = vmatprep.subr.bf16.mxu0 %v5254
    %5436 = vmatpush1.bf16.msra.mxu0 %v5253
    %5437 = vmatprep.subr.bf16.mxu0 %v5262
    %5438 = vmatpush1.bf16.msra.mxu0 %v5261
    %5439 = vmatprep.subr.bf16.mxu0 %v5270
    %5440 = vmatpush1.bf16.msra.mxu0 %v5269
    %5441 = vmatprep.subr.bf16.mxu0 %v5278
    %5442 = vmatpush1.bf16.msra.mxu0 %v5277
    %5443 = vmatprep.subr.bf16.mxu0 %v5286
    %5444 = vmatpush1.bf16.msra.mxu0 %v5285
    %5445 = vmatprep.mubr.bf16.mxu0 %v5318
    %5446 = vmatmul.mubr.bf16.gmra.mrb[0].mxu0 %v5315
    %v5447 = vpop.f32.mrb[0].mxu0
    %v5448 = vadd.f32 0.0, %v5447
    %v5449 = vpop.f32.mrb[0].mxu0
    %v5450 = vadd.f32 0.0, %v5449
    %v5451 = vpop.f32.mrb[0].mxu0
    %v5452 = vadd.f32 0.0, %v5451
    %v5453 = vpop.f32.mrb[0].mxu0
    %v5454 = vadd.f32 0.0, %v5453
    %5455 = vdwg.mxu0
    %5456 = vmatprep.subr.bf16.mxu0 %v5294
    %5457 = vmatpush1.bf16.msra.mxu0 %v5293
    %5458 = vmatprep.subr.bf16.mxu0 %v5302
    %5459 = vmatpush1.bf16.msra.mxu0 %v5301
    %5460 = vmatprep.subr.bf16.mxu0 0
    %5461 = vmatpush1.bf16.msra.mxu0 0
    %5462 = vmatprep.subr.bf16.mxu0 0
    %5463 = vmatpush1.bf16.msra.mxu0 0
    %5464 = vmatprep.subr.bf16.mxu0 0
    %5465 = vmatpush1.bf16.msra.mxu0 0
    %5466 = vmatprep.subr.bf16.mxu0 0
    %5467 = vmatpush1.bf16.msra.mxu0 0
    %5468 = vmatprep.subr.bf16.mxu0 0
    %5469 = vmatpush1.bf16.msra.mxu0 0
    %5470 = vmatprep.subr.bf16.mxu0 0
    %5471 = vmatpush1.bf16.msra.mxu0 0
    %5472 = vmatprep.subr.bf16.mxu0 0
    %5473 = vmatpush1.bf16.msra.mxu0 0
    %5474 = vmatprep.subr.bf16.mxu0 0
    %5475 = vmatpush1.bf16.msra.mxu0 0
    %5476 = vmatprep.subr.bf16.mxu0 0
    %5477 = vmatpush1.bf16.msra.mxu0 0
    %5478 = vmatprep.subr.bf16.mxu0 0
    %5479 = vmatpush1.bf16.msra.mxu0 0
    %5480 = vmatprep.subr.bf16.mxu0 0
    %5481 = vmatpush1.bf16.msra.mxu0 0
    %5482 = vmatprep.subr.bf16.mxu0 0
    %5483 = vmatpush1.bf16.msra.mxu0 0
    %5484 = vmatprep.subr.bf16.mxu0 0
    %5485 = vmatpush1.bf16.msra.mxu0 0
    %5486 = vmatprep.subr.bf16.mxu0 0
    %5487 = vmatpush1.bf16.msra.mxu0 0
    %5488 = vmatprep.mubr.bf16.mxu0 0
    %5489 = vmatmul.mubr.bf16.gmra.mrb[0].mxu0 %v5325
    %v5490 = vpop.f32.mrb[0].mxu0
    %v5491 = vadd.f32 %v5448, %v5490
    %v5492 = vpop.f32.mrb[0].mxu0
    %v5493 = vadd.f32 %v5450, %v5492
    %v5494 = vpop.f32.mrb[0].mxu0
    %v5495 = vadd.f32 %v5452, %v5494
    %v5496 = vpop.f32.mrb[0].mxu0
    %v5497 = vadd.f32 %v5454, %v5496
    %5498 = vdwg.mxu0
    %5499 = vmatprep.subr.bf16.mxu0 %v5168
    %5500 = vmatpush1.bf16.msra.mxu0 %v5167
    %5501 = vmatprep.subr.bf16.mxu0 %v5176
    %5502 = vmatpush1.bf16.msra.mxu0 %v5175
    %5503 = vmatprep.subr.bf16.mxu0 %v5184
    %5504 = vmatpush1.bf16.msra.mxu0 %v5183
    %5505 = vmatprep.subr.bf16.mxu0 %v5192
    %5506 = vmatpush1.bf16.msra.mxu0 %v5191
    %5507 = vmatprep.subr.bf16.mxu0 %v5200
    %5508 = vmatpush1.bf16.msra.mxu0 %v5199
    %5509 = vmatprep.subr.bf16.mxu0 %v5208
    %5510 = vmatpush1.bf16.msra.mxu0 %v5207
    %5511 = vmatprep.subr.bf16.mxu0 %v5216
    %5512 = vmatpush1.bf16.msra.mxu0 %v5215
    %5513 = vmatprep.subr.bf16.mxu0 %v5224
    %5514 = vmatpush1.bf16.msra.mxu0 %v5223
    %5515 = vmatprep.subr.bf16.mxu0 %v5232
    %5516 = vmatpush1.bf16.msra.mxu0 %v5231
    %5517 = vmatprep.subr.bf16.mxu0 %v5240
    %5518 = vmatpush1.bf16.msra.mxu0 %v5239
    %5519 = vmatprep.subr.bf16.mxu0 %v5248
    %5520 = vmatpush1.bf16.msra.mxu0 %v5247
    %5521 = vmatprep.subr.bf16.mxu0 %v5256
    %5522 = vmatpush1.bf16.msra.mxu0 %v5255
    %5523 = vmatprep.subr.bf16.mxu0 %v5264
    %5524 = vmatpush1.bf16.msra.mxu0 %v5263
    %5525 = vmatprep.subr.bf16.mxu0 %v5272
    %5526 = vmatpush1.bf16.msra.mxu0 %v5271
    %5527 = vmatprep.subr.bf16.mxu0 %v5280
    %5528 = vmatpush1.bf16.msra.mxu0 %v5279
    %5529 = vmatprep.subr.bf16.mxu0 %v5288
    %5530 = vmatpush1.bf16.msra.mxu0 %v5287
    %5531 = vmatprep.mubr.bf16.mxu0 %v5318
    %5532 = vmatmul.mubr.bf16.gmra.mrb[0].mxu0 %v5315
    %v5533 = vpop.f32.mrb[0].mxu0
    %v5534 = vadd.f32 0.0, %v5533
    %v5535 = vpop.f32.mrb[0].mxu0
    %v5536 = vadd.f32 0.0, %v5535
    %v5537 = vpop.f32.mrb[0].mxu0
    %v5538 = vadd.f32 0.0, %v5537
    %v5539 = vpop.f32.mrb[0].mxu0
    %v5540 = vadd.f32 0.0, %v5539
    %5541 = vdwg.mxu0
    %5542 = vmatprep.subr.bf16.mxu0 %v5296
    %5543 = vmatpush1.bf16.msra.mxu0 %v5295
    %5544 = vmatprep.subr.bf16.mxu0 %v5304
    %5545 = vmatpush1.bf16.msra.mxu0 %v5303
    %5546 = vmatprep.subr.bf16.mxu0 0
    %5547 = vmatpush1.bf16.msra.mxu0 0
    %5548 = vmatprep.subr.bf16.mxu0 0
    %5549 = vmatpush1.bf16.msra.mxu0 0
    %5550 = vmatprep.subr.bf16.mxu0 0
    %5551 = vmatpush1.bf16.msra.mxu0 0
    %5552 = vmatprep.subr.bf16.mxu0 0
    %5553 = vmatpush1.bf16.msra.mxu0 0
    %5554 = vmatprep.subr.bf16.mxu0 0
    %5555 = vmatpush1.bf16.msra.mxu0 0
    %5556 = vmatprep.subr.bf16.mxu0 0
    %5557 = vmatpush1.bf16.msra.mxu0 0
    %5558 = vmatprep.subr.bf16.mxu0 0
    %5559 = vmatpush1.bf16.msra.mxu0 0
    %5560 = vmatprep.subr.bf16.mxu0 0
    %5561 = vmatpush1.bf16.msra.mxu0 0
    %5562 = vmatprep.subr.bf16.mxu0 0
    %5563 = vmatpush1.bf16.msra.mxu0 0
    %5564 = vmatprep.subr.bf16.mxu0 0
    %5565 = vmatpush1.bf16.msra.mxu0 0
    %5566 = vmatprep.subr.bf16.mxu0 0
    %5567 = vmatpush1.bf16.msra.mxu0 0
    %5568 = vmatprep.subr.bf16.mxu0 0
    %5569 = vmatpush1.bf16.msra.mxu0 0
    %5570 = vmatprep.subr.bf16.mxu0 0
    %5571 = vmatpush1.bf16.msra.mxu0 0
    %5572 = vmatprep.subr.bf16.mxu0 0
    %5573 = vmatpush1.bf16.msra.mxu0 0
    %5574 = vmatprep.mubr.bf16.mxu0 0
    %5575 = vmatmul.mubr.bf16.gmra.mrb[0].mxu0 %v5325
    %v5576 = vpop.f32.mrb[0].mxu0
    %v5577 = vadd.f32 %v5534, %v5576
    %v5578 = vpop.f32.mrb[0].mxu0
    %v5579 = vadd.f32 %v5536, %v5578
    %v5580 = vpop.f32.mrb[0].mxu0
    %v5581 = vadd.f32 %v5538, %v5580
    %v5582 = vpop.f32.mrb[0].mxu0
    %v5583 = vadd.f32 %v5540, %v5582
    %5584 = vdwg.mxu0
    %5585 = vmatprep.subr.bf16.mxu0 %v5170
    %5586 = vmatpush1.bf16.msra.mxu0 %v5169
    %5587 = vmatprep.subr.bf16.mxu0 %v5178
    %5588 = vmatpush1.bf16.msra.mxu0 %v5177
    %5589 = vmatprep.subr.bf16.mxu0 %v5186
    %5590 = vmatpush1.bf16.msra.mxu0 %v5185
    %5591 = vmatprep.subr.bf16.mxu0 %v5194
    %5592 = vmatpush1.bf16.msra.mxu0 %v5193
    %5593 = vmatprep.subr.bf16.mxu0 %v5202
    %5594 = vmatpush1.bf16.msra.mxu0 %v5201
    %5595 = vmatprep.subr.bf16.mxu0 %v5210
    %5596 = vmatpush1.bf16.msra.mxu0 %v5209
    %5597 = vmatprep.subr.bf16.mxu0 %v5218
    %5598 = vmatpush1.bf16.msra.mxu0 %v5217
    %5599 = vmatprep.subr.bf16.mxu0 %v5226
    %5600 = vmatpush1.bf16.msra.mxu0 %v5225
    %5601 = vmatprep.subr.bf16.mxu0 %v5234
    %5602 = vmatpush1.bf16.msra.mxu0 %v5233
    %5603 = vmatprep.subr.bf16.mxu0 %v5242
    %5604 = vmatpush1.bf16.msra.mxu0 %v5241
    %5605 = vmatprep.subr.bf16.mxu0 %v5250
    %5606 = vmatpush1.bf16.msra.mxu0 %v5249
    %5607 = vmatprep.subr.bf16.mxu0 %v5258
    %5608 = vmatpush1.bf16.msra.mxu0 %v5257
    %5609 = vmatprep.subr.bf16.mxu0 %v5266
    %5610 = vmatpush1.bf16.msra.mxu0 %v5265
    %5611 = vmatprep.subr.bf16.mxu0 %v5274
    %5612 = vmatpush1.bf16.msra.mxu0 %v5273
    %5613 = vmatprep.subr.bf16.mxu0 %v5282
    %5614 = vmatpush1.bf16.msra.mxu0 %v5281
    %5615 = vmatprep.subr.bf16.mxu0 %v5290
    %5616 = vmatpush1.bf16.msra.mxu0 %v5289
    %5617 = vmatprep.mubr.bf16.mxu0 %v5318
    %5618 = vmatmul.mubr.bf16.gmra.mrb[0].mxu0 %v5315
    %v5619 = vpop.f32.mrb[0].mxu0
    %v5620 = vadd.f32 0.0, %v5619
    %v5621 = vpop.f32.mrb[0].mxu0
    %v5622 = vadd.f32 0.0, %v5621
    %v5623 = vpop.f32.mrb[0].mxu0
    %v5624 = vadd.f32 0.0, %v5623
    %v5625 = vpop.f32.mrb[0].mxu0
    %v5626 = vadd.f32 0.0, %v5625
    %5627 = vdwg.mxu0
    %5628 = vmatprep.subr.bf16.mxu0 %v5298
    %5629 = vmatpush1.bf16.msra.mxu0 %v5297
    %5630 = vmatprep.subr.bf16.mxu0 %v5306
    %5631 = vmatpush1.bf16.msra.mxu0 %v5305
    %5632 = vmatprep.subr.bf16.mxu0 0
    %5633 = vmatpush1.bf16.msra.mxu0 0
    %5634 = vmatprep.subr.bf16.mxu0 0
    %5635 = vmatpush1.bf16.msra.mxu0 0
    %5636 = vmatprep.subr.bf16.mxu0 0
    %5637 = vmatpush1.bf16.msra.mxu0 0
    %5638 = vmatprep.subr.bf16.mxu0 0
    %5639 = vmatpush1.bf16.msra.mxu0 0
    %5640 = vmatprep.subr.bf16.mxu0 0
    %5641 = vmatpush1.bf16.msra.mxu0 0
    %5642 = vmatprep.subr.bf16.mxu0 0
    %5643 = vmatpush1.bf16.msra.mxu0 0
    %5644 = vmatprep.subr.bf16.mxu0 0
    %5645 = vmatpush1.bf16.msra.mxu0 0
    %5646 = vmatprep.subr.bf16.mxu0 0
    %5647 = vmatpush1.bf16.msra.mxu0 0
    %5648 = vmatprep.subr.bf16.mxu0 0
    %5649 = vmatpush1.bf16.msra.mxu0 0
    %5650 = vmatprep.subr.bf16.mxu0 0
    %5651 = vmatpush1.bf16.msra.mxu0 0
    %5652 = vmatprep.subr.bf16.mxu0 0
    %5653 = vmatpush1.bf16.msra.mxu0 0
    %5654 = vmatprep.subr.bf16.mxu0 0
    %5655 = vmatpush1.bf16.msra.mxu0 0
    %5656 = vmatprep.subr.bf16.mxu0 0
    %5657 = vmatpush1.bf16.msra.mxu0 0
    %5658 = vmatprep.subr.bf16.mxu0 0
    %5659 = vmatpush1.bf16.msra.mxu0 0
    %5660 = vmatprep.mubr.bf16.mxu0 0
    %5661 = vmatmul.mubr.bf16.gmra.mrb[0].mxu0 %v5325
    %v5662 = vpop.f32.mrb[0].mxu0
    %v5663 = vadd.f32 %v5620, %v5662
    %v5664 = vpop.f32.mrb[0].mxu0
    %v5665 = vadd.f32 %v5622, %v5664
    %v5666 = vpop.f32.mrb[0].mxu0
    %v5667 = vadd.f32 %v5624, %v5666
    %v5668 = vpop.f32.mrb[0].mxu0
    %v5669 = vadd.f32 %v5626, %v5668
    %5670 = vdwg.mxu0
    %v5671 = vadd.f32 %v4895, %v5405
    %v5672 = vadd.f32 %v4897, %v5407
    %v5673 = vadd.f32 %v4981, %v5491
    %v5674 = vadd.f32 %v4983, %v5493
    %v5675 = vadd.f32 %v5067, %v5577
    %v5676 = vadd.f32 %v5069, %v5579
    %v5677 = vadd.f32 %v5153, %v5663
    %v5678 = vadd.f32 %v5155, %v5665
    %v5679 = vadd.f32 %v4899, %v5409
    %v5680 = vadd.f32 %v4901, %v5411
    %v5681 = vadd.f32 %v4985, %v5495
    %v5682 = vadd.f32 %v4987, %v5497
    %v5683 = vadd.f32 %v5071, %v5581
    %v5684 = vadd.f32 %v5073, %v5583
    %v5685 = vadd.f32 %v5157, %v5667
    %v5686 = vadd.f32 %v5159, %v5669
    %s5687 = sshll.u32 %s4136, 4
    %5688 = dma.done %s191, %s5687
    %v5689 = vld [vmem:[%s190] sm:$0xff]
    %v5690 = vld [vmem:[%s190 + $0x8] sm:$0xff]
    %v5691 = vld [vmem:[%s190 + $0x10] sm:$0xff]
    %v5692 = vld [vmem:[%s190 + $0x18] sm:$0xff]
    %v5693 = vld [vmem:[%s190 + $0x20] sm:$0xff]
    %v5694 = vld [vmem:[%s190 + $0x28] sm:$0xff]
    %v5695 = vld [vmem:[%s190 + $0x30] sm:$0xff]
    %v5696 = vld [vmem:[%s190 + $0x38] sm:$0xff]
    %v5697 = vld [vmem:[%s190 + $0x40] sm:$0xff]
    %v5698 = vld [vmem:[%s190 + $0x48] sm:$0xff]
    %v5699 = vld [vmem:[%s190 + $0x50] sm:$0xff]
    %v5700 = vld [vmem:[%s190 + $0x58] sm:$0xff]
    %v5701 = vld [vmem:[%s190 + $0x60] sm:$0xff]
    %v5702 = vld [vmem:[%s190 + $0x68] sm:$0xff]
    %v5703 = vld [vmem:[%s190 + $0x70] sm:$0xff]
    %v5704 = vld [vmem:[%s190 + $0x78] sm:$0xff]
    %v5705 = vld [vmem:[%s190 + $0x80] sm:$0xff]
    %v5706 = vld [vmem:[%s190 + $0x88] sm:$0xff]
    %v5707 = vld [vmem:[%s190 + $0x90] sm:$0xff]
    %v5708 = vld [vmem:[%s190 + $0x98] sm:$0xff]
    %v5709 = vld [vmem:[%s190 + $0xa0] sm:$0xff]
    %v5710 = vld [vmem:[%s190 + $0xa8] sm:$0xff]
    %v5711 = vld [vmem:[%s190 + $0xb0] sm:$0xff]
    %v5712 = vld [vmem:[%s190 + $0xb8] sm:$0xff]
    %v5713 = vld [vmem:[%s190 + $0xc0] sm:$0xff]
    %v5714 = vld [vmem:[%s190 + $0xc8] sm:$0xff]
    %v5715 = vld [vmem:[%s190 + $0xd0] sm:$0xff]
    %v5716 = vld [vmem:[%s190 + $0xd8] sm:$0xff]
    %v5717 = vld [vmem:[%s190 + $0xe0] sm:$0xff]
    %v5718 = vld [vmem:[%s190 + $0xe8] sm:$0xff]
    %v5719 = vld [vmem:[%s190 + $0xf0] sm:$0xff]
    %v5720 = vld [vmem:[%s190 + $0xf8] sm:$0xff]
    %v5721 = vld [vmem:[%s190 + $0x100] sm:$0xff]
    %v5722 = vld [vmem:[%s190 + $0x108] sm:$0xff]
    %v5723 = vld [vmem:[%s190 + $0x110] sm:$0xff]
    %v5724 = vld [vmem:[%s190 + $0x118] sm:$0xff]
    %v5725 = vld [vmem:[%s190 + $0x120] sm:$0xff]
    %v5726 = vld [vmem:[%s190 + $0x128] sm:$0xff]
    %v5727 = vld [vmem:[%s190 + $0x130] sm:$0xff]
    %v5728 = vld [vmem:[%s190 + $0x138] sm:$0xff]
    %v5729 = vld [vmem:[%s190 + $0x140] sm:$0xff]
    %v5730 = vld [vmem:[%s190 + $0x148] sm:$0xff]
    %v5731 = vld [vmem:[%s190 + $0x150] sm:$0xff]
    %v5732 = vld [vmem:[%s190 + $0x158] sm:$0xff]
    %v5733 = vld [vmem:[%s190 + $0x160] sm:$0xff]
    %v5734 = vld [vmem:[%s190 + $0x168] sm:$0xff]
    %v5735 = vld [vmem:[%s190 + $0x170] sm:$0xff]
    %v5736 = vld [vmem:[%s190 + $0x178] sm:$0xff]
    %v5737 = vld [vmem:[%s190 + $0x180] sm:$0xff]
    %v5738 = vld [vmem:[%s190 + $0x188] sm:$0xff]
    %v5739 = vld [vmem:[%s190 + $0x190] sm:$0xff]
    %v5740 = vld [vmem:[%s190 + $0x198] sm:$0xff]
    %v5741 = vld [vmem:[%s190 + $0x1a0] sm:$0xff]
    %v5742 = vld [vmem:[%s190 + $0x1a8] sm:$0xff]
    %v5743 = vld [vmem:[%s190 + $0x1b0] sm:$0xff]
    %v5744 = vld [vmem:[%s190 + $0x1b8] sm:$0xff]
    %v5745 = vld [vmem:[%s190 + $0x1c0] sm:$0xff]
    %v5746 = vld [vmem:[%s190 + $0x1c8] sm:$0xff]
    %v5747 = vld [vmem:[%s190 + $0x1d0] sm:$0xff]
    %v5748 = vld [vmem:[%s190 + $0x1d8] sm:$0xff]
    %v5749 = vld [vmem:[%s190 + $0x1e0] sm:$0xff]
    %v5750 = vld [vmem:[%s190 + $0x1e8] sm:$0xff]
    %v5751 = vld [vmem:[%s190 + $0x1f0] sm:$0xff]
    %v5752 = vld [vmem:[%s190 + $0x1f8] sm:$0xff]
    %v5753 = vld [vmem:[%s190 + $0x200] sm:$0xff]
    %v5754 = vld [vmem:[%s190 + $0x208] sm:$0xff]
    %v5755 = vld [vmem:[%s190 + $0x210] sm:$0xff]
    %v5756 = vld [vmem:[%s190 + $0x218] sm:$0xff]
    %v5757 = vld [vmem:[%s190 + $0x220] sm:$0xff]
    %v5758 = vld [vmem:[%s190 + $0x228] sm:$0xff]
    %v5759 = vld [vmem:[%s190 + $0x230] sm:$0xff]
    %v5760 = vld [vmem:[%s190 + $0x238] sm:$0xff]
    %v5761 = vld [vmem:[%s190 + $0x240] sm:$0xff]
    %v5762 = vld [vmem:[%s190 + $0x248] sm:$0xff]
    %v5763 = vld [vmem:[%s190 + $0x250] sm:$0xff]
    %v5764 = vld [vmem:[%s190 + $0x258] sm:$0xff]
    %v5765 = vld [vmem:[%s190 + $0x260] sm:$0xff]
    %v5766 = vld [vmem:[%s190 + $0x268] sm:$0xff]
    %v5767 = vld [vmem:[%s190 + $0x270] sm:$0xff]
    %v5768 = vld [vmem:[%s190 + $0x278] sm:$0xff]
    %v5769 = vld [vmem:[%s190 + $0x280] sm:$0xff]
    %v5770 = vld [vmem:[%s190 + $0x288] sm:$0xff]
    %v5771 = vld [vmem:[%s190 + $0x290] sm:$0xff]
    %v5772 = vld [vmem:[%s190 + $0x298] sm:$0xff]
    %v5773 = vld [vmem:[%s190 + $0x2a0] sm:$0xff]
    %v5774 = vld [vmem:[%s190 + $0x2a8] sm:$0xff]
    %v5775 = vld [vmem:[%s190 + $0x2b0] sm:$0xff]
    %v5776 = vld [vmem:[%s190 + $0x2b8] sm:$0xff]
    %v5777 = vld [vmem:[%s190 + $0x2c0] sm:$0xff]
    %v5778 = vld [vmem:[%s190 + $0x2c8] sm:$0xff]
    %v5779 = vld [vmem:[%s190 + $0x2d0] sm:$0xff]
    %v5780 = vld [vmem:[%s190 + $0x2d8] sm:$0xff]
    %v5781 = vld [vmem:[%s190 + $0x2e0] sm:$0xff]
    %v5782 = vld [vmem:[%s190 + $0x2e8] sm:$0xff]
    %v5783 = vld [vmem:[%s190 + $0x2f0] sm:$0xff]
    %v5784 = vld [vmem:[%s190 + $0x2f8] sm:$0xff]
    %v5785 = vld [vmem:[%s190 + $0x300] sm:$0xff]
    %v5786 = vld [vmem:[%s190 + $0x308] sm:$0xff]
    %v5787 = vld [vmem:[%s190 + $0x310] sm:$0xff]
    %v5788 = vld [vmem:[%s190 + $0x318] sm:$0xff]
    %v5789 = vld [vmem:[%s190 + $0x320] sm:$0xff]
    %v5790 = vld [vmem:[%s190 + $0x328] sm:$0xff]
    %v5791 = vld [vmem:[%s190 + $0x330] sm:$0xff]
    %v5792 = vld [vmem:[%s190 + $0x338] sm:$0xff]
    %v5793 = vld [vmem:[%s190 + $0x340] sm:$0xff]
    %v5794 = vld [vmem:[%s190 + $0x348] sm:$0xff]
    %v5795 = vld [vmem:[%s190 + $0x350] sm:$0xff]
    %v5796 = vld [vmem:[%s190 + $0x358] sm:$0xff]
    %v5797 = vld [vmem:[%s190 + $0x360] sm:$0xff]
    %v5798 = vld [vmem:[%s190 + $0x368] sm:$0xff]
    %v5799 = vld [vmem:[%s190 + $0x370] sm:$0xff]
    %v5800 = vld [vmem:[%s190 + $0x378] sm:$0xff]
    %v5801 = vld [vmem:[%s190 + $0x380] sm:$0xff]
    %v5802 = vld [vmem:[%s190 + $0x388] sm:$0xff]
    %v5803 = vld [vmem:[%s190 + $0x390] sm:$0xff]
    %v5804 = vld [vmem:[%s190 + $0x398] sm:$0xff]
    %v5805 = vld [vmem:[%s190 + $0x3a0] sm:$0xff]
    %v5806 = vld [vmem:[%s190 + $0x3a8] sm:$0xff]
    %v5807 = vld [vmem:[%s190 + $0x3b0] sm:$0xff]
    %v5808 = vld [vmem:[%s190 + $0x3b8] sm:$0xff]
    %v5809 = vld [vmem:[%s190 + $0x3c0] sm:$0xff]
    %v5810 = vld [vmem:[%s190 + $0x3c8] sm:$0xff]
    %v5811 = vld [vmem:[%s190 + $0x3d0] sm:$0xff]
    %v5812 = vld [vmem:[%s190 + $0x3d8] sm:$0xff]
    %v5813 = vld [vmem:[%s190 + $0x3e0] sm:$0xff]
    %v5814 = vld [vmem:[%s190 + $0x3e8] sm:$0xff]
    %v5815 = vld [vmem:[%s190 + $0x3f0] sm:$0xff]
    %v5816 = vld [vmem:[%s190 + $0x3f8] sm:$0xff]
    %v5817 = vld [vmem:[%s190 + $0x400] sm:$0xff]
    %v5818 = vld [vmem:[%s190 + $0x408] sm:$0xff]
    %v5819 = vld [vmem:[%s190 + $0x410] sm:$0xff]
    %v5820 = vld [vmem:[%s190 + $0x418] sm:$0xff]
    %v5821 = vld [vmem:[%s190 + $0x420] sm:$0xff]
    %v5822 = vld [vmem:[%s190 + $0x428] sm:$0xff]
    %v5823 = vld [vmem:[%s190 + $0x430] sm:$0xff]
    %v5824 = vld [vmem:[%s190 + $0x438] sm:$0xff]
    %v5825 = vld [vmem:[%s190 + $0x440] sm:$0xff]
    %v5826 = vld [vmem:[%s190 + $0x448] sm:$0xff]
    %v5827 = vld [vmem:[%s190 + $0x450] sm:$0xff]
    %v5828 = vld [vmem:[%s190 + $0x458] sm:$0xff]
    %v5829 = vld [vmem:[%s190 + $0x460] sm:$0xff]
    %v5830 = vld [vmem:[%s190 + $0x468] sm:$0xff]
    %v5831 = vld [vmem:[%s190 + $0x470] sm:$0xff]
    %v5832 = vld [vmem:[%s190 + $0x478] sm:$0xff]
    %vm5833 = vsmask.f32 6400
    %v5834 = vrot.slane %v4430, 1
    %v5835 = vrot.slane %v4432, 2
    %v5836 = vor.u32 %v5834, %v5835
    %v5837 = vshrl.u32 %v4132, 16
    %v5839 = vrot.slane %v5837, 1
    %v5840 = vrot.slane %v4437, 2
    %v5841 = vor.u32 %v5839, %v5840
    %v5842 = vsel %vm5833, %v5836, %v5841
    %v5843 = vrot.slane %v4442, 1
    %v5844 = vrot.slane %v4444, 2
    %v5845 = vor.u32 %v5843, %v5844
    %v5846 = vshrl.u32 %v4133, 16
    %v5848 = vrot.slane %v5846, 1
    %v5849 = vrot.slane %v4449, 2
    %v5850 = vor.u32 %v5848, %v5849
    %v5851 = vsel %vm5833, %v5845, %v5850
    %v5852 = vrot.slane %v4454, 1
    %v5853 = vrot.slane %v4456, 2
    %v5854 = vor.u32 %v5852, %v5853
    %v5855 = vshrl.u32 %v4134, 16
    %v5857 = vrot.slane %v5855, 1
    %v5858 = vrot.slane %v4461, 2
    %v5859 = vor.u32 %v5857, %v5858
    %v5860 = vsel %vm5833, %v5854, %v5859
    %v5864 = vsel %vm4467, %v5860, 0
    %5866 = vmatprep.subr.bf16.mxu0 %v5690
    %5867 = vmatpush1.bf16.msra.mxu0 %v5689
    %5868 = vmatprep.subr.bf16.mxu0 %v5698
    %5869 = vmatpush1.bf16.msra.mxu0 %v5697
    %5870 = vmatprep.subr.bf16.mxu0 %v5706
    %5871 = vmatpush1.bf16.msra.mxu0 %v5705
    %5872 = vmatprep.subr.bf16.mxu0 %v5714
    %5873 = vmatpush1.bf16.msra.mxu0 %v5713
    %5874 = vmatprep.subr.bf16.mxu0 %v5722
    %5875 = vmatpush1.bf16.msra.mxu0 %v5721
    %5876 = vmatprep.subr.bf16.mxu0 %v5730
    %5877 = vmatpush1.bf16.msra.mxu0 %v5729
    %5878 = vmatprep.subr.bf16.mxu0 %v5738
    %5879 = vmatpush1.bf16.msra.mxu0 %v5737
    %5880 = vmatprep.subr.bf16.mxu0 %v5746
    %5881 = vmatpush1.bf16.msra.mxu0 %v5745
    %5882 = vmatprep.subr.bf16.mxu0 %v5754
    %5883 = vmatpush1.bf16.msra.mxu0 %v5753
    %5884 = vmatprep.subr.bf16.mxu0 %v5762
    %5885 = vmatpush1.bf16.msra.mxu0 %v5761
    %5886 = vmatprep.subr.bf16.mxu0 %v5770
    %5887 = vmatpush1.bf16.msra.mxu0 %v5769
    %5888 = vmatprep.subr.bf16.mxu0 %v5778
    %5889 = vmatpush1.bf16.msra.mxu0 %v5777
    %5890 = vmatprep.subr.bf16.mxu0 %v5786
    %5891 = vmatpush1.bf16.msra.mxu0 %v5785
    %5892 = vmatprep.subr.bf16.mxu0 %v5794
    %5893 = vmatpush1.bf16.msra.mxu0 %v5793
    %5894 = vmatprep.subr.bf16.mxu0 %v5802
    %5895 = vmatpush1.bf16.msra.mxu0 %v5801
    %5896 = vmatprep.subr.bf16.mxu0 %v5810
    %5897 = vmatpush1.bf16.msra.mxu0 %v5809
    %5898 = vmatprep.mubr.bf16.mxu0 %v5851
    %5899 = vmatmul.mubr.bf16.gmra.mrb[0].mxu0 %v5842
    %v5900 = vpop.f32.mrb[0].mxu0
    %v5901 = vadd.f32 0.0, %v5900
    %v5902 = vpop.f32.mrb[0].mxu0
    %v5903 = vadd.f32 0.0, %v5902
    %v5904 = vpop.f32.mrb[0].mxu0
    %v5905 = vadd.f32 0.0, %v5904
    %v5906 = vpop.f32.mrb[0].mxu0
    %v5907 = vadd.f32 0.0, %v5906
    %5908 = vdwg.mxu0
    %5909 = vmatprep.subr.bf16.mxu0 %v5818
    %5910 = vmatpush1.bf16.msra.mxu0 %v5817
    %5911 = vmatprep.subr.bf16.mxu0 %v5826
    %5912 = vmatpush1.bf16.msra.mxu0 %v5825
    %5913 = vmatprep.subr.bf16.mxu0 0
    %5914 = vmatpush1.bf16.msra.mxu0 0
    %5915 = vmatprep.subr.bf16.mxu0 0
    %5916 = vmatpush1.bf16.msra.mxu0 0
    %5917 = vmatprep.subr.bf16.mxu0 0
    %5918 = vmatpush1.bf16.msra.mxu0 0
    %5919 = vmatprep.subr.bf16.mxu0 0
    %5920 = vmatpush1.bf16.msra.mxu0 0
    %5921 = vmatprep.subr.bf16.mxu0 0
    %5922 = vmatpush1.bf16.msra.mxu0 0
    %5923 = vmatprep.subr.bf16.mxu0 0
    %5924 = vmatpush1.bf16.msra.mxu0 0
    %5925 = vmatprep.subr.bf16.mxu0 0
    %5926 = vmatpush1.bf16.msra.mxu0 0
    %5927 = vmatprep.subr.bf16.mxu0 0
    %5928 = vmatpush1.bf16.msra.mxu0 0
    %5929 = vmatprep.subr.bf16.mxu0 0
    %5930 = vmatpush1.bf16.msra.mxu0 0
    %5931 = vmatprep.subr.bf16.mxu0 0
    %5932 = vmatpush1.bf16.msra.mxu0 0
    %5933 = vmatprep.subr.bf16.mxu0 0
    %5934 = vmatpush1.bf16.msra.mxu0 0
    %5935 = vmatprep.subr.bf16.mxu0 0
    %5936 = vmatpush1.bf16.msra.mxu0 0
    %5937 = vmatprep.subr.bf16.mxu0 0
    %5938 = vmatpush1.bf16.msra.mxu0 0
    %5939 = vmatprep.subr.bf16.mxu0 0
    %5940 = vmatpush1.bf16.msra.mxu0 0
    %5941 = vmatprep.mubr.bf16.mxu0 0
    %5942 = vmatmul.mubr.bf16.gmra.mrb[0].mxu0 %v5864
    %v5943 = vpop.f32.mrb[0].mxu0
    %v5944 = vadd.f32 %v5901, %v5943
    %v5945 = vpop.f32.mrb[0].mxu0
    %v5946 = vadd.f32 %v5903, %v5945
    %v5947 = vpop.f32.mrb[0].mxu0
    %v5948 = vadd.f32 %v5905, %v5947
    %v5949 = vpop.f32.mrb[0].mxu0
    %v5950 = vadd.f32 %v5907, %v5949
    %5951 = vdwg.mxu0
    %5952 = vmatprep.subr.bf16.mxu0 %v5692
    %5953 = vmatpush1.bf16.msra.mxu0 %v5691
    %5954 = vmatprep.subr.bf16.mxu0 %v5700
    %5955 = vmatpush1.bf16.msra.mxu0 %v5699
    %5956 = vmatprep.subr.bf16.mxu0 %v5708
    %5957 = vmatpush1.bf16.msra.mxu0 %v5707
    %5958 = vmatprep.subr.bf16.mxu0 %v5716
    %5959 = vmatpush1.bf16.msra.mxu0 %v5715
    %5960 = vmatprep.subr.bf16.mxu0 %v5724
    %5961 = vmatpush1.bf16.msra.mxu0 %v5723
    %5962 = vmatprep.subr.bf16.mxu0 %v5732
    %5963 = vmatpush1.bf16.msra.mxu0 %v5731
    %5964 = vmatprep.subr.bf16.mxu0 %v5740
    %5965 = vmatpush1.bf16.msra.mxu0 %v5739
    %5966 = vmatprep.subr.bf16.mxu0 %v5748
    %5967 = vmatpush1.bf16.msra.mxu0 %v5747
    %5968 = vmatprep.subr.bf16.mxu0 %v5756
    %5969 = vmatpush1.bf16.msra.mxu0 %v5755
    %5970 = vmatprep.subr.bf16.mxu0 %v5764
    %5971 = vmatpush1.bf16.msra.mxu0 %v5763
    %5972 = vmatprep.subr.bf16.mxu0 %v5772
    %5973 = vmatpush1.bf16.msra.mxu0 %v5771
    %5974 = vmatprep.subr.bf16.mxu0 %v5780
    %5975 = vmatpush1.bf16.msra.mxu0 %v5779
    %5976 = vmatprep.subr.bf16.mxu0 %v5788
    %5977 = vmatpush1.bf16.msra.mxu0 %v5787
    %5978 = vmatprep.subr.bf16.mxu0 %v5796
    %5979 = vmatpush1.bf16.msra.mxu0 %v5795
    %5980 = vmatprep.subr.bf16.mxu0 %v5804
    %5981 = vmatpush1.bf16.msra.mxu0 %v5803
    %5982 = vmatprep.subr.bf16.mxu0 %v5812
    %5983 = vmatpush1.bf16.msra.mxu0 %v5811
    %5984 = vmatprep.mubr.bf16.mxu0 %v5851
    %5985 = vmatmul.mubr.bf16.gmra.mrb[0].mxu0 %v5842
    %v5986 = vpop.f32.mrb[0].mxu0
    %v5987 = vadd.f32 0.0, %v5986
    %v5988 = vpop.f32.mrb[0].mxu0
    %v5989 = vadd.f32 0.0, %v5988
    %v5990 = vpop.f32.mrb[0].mxu0
    %v5991 = vadd.f32 0.0, %v5990
    %v5992 = vpop.f32.mrb[0].mxu0
    %v5993 = vadd.f32 0.0, %v5992
    %5994 = vdwg.mxu0
    %5995 = vmatprep.subr.bf16.mxu0 %v5820
    %5996 = vmatpush1.bf16.msra.mxu0 %v5819
    %5997 = vmatprep.subr.bf16.mxu0 %v5828
    %5998 = vmatpush1.bf16.msra.mxu0 %v5827
    %5999 = vmatprep.subr.bf16.mxu0 0
    %6000 = vmatpush1.bf16.msra.mxu0 0
    %6001 = vmatprep.subr.bf16.mxu0 0
    %6002 = vmatpush1.bf16.msra.mxu0 0
    %6003 = vmatprep.subr.bf16.mxu0 0
    %6004 = vmatpush1.bf16.msra.mxu0 0
    %6005 = vmatprep.subr.bf16.mxu0 0
    %6006 = vmatpush1.bf16.msra.mxu0 0
    %6007 = vmatprep.subr.bf16.mxu0 0
    %6008 = vmatpush1.bf16.msra.mxu0 0
    %6009 = vmatprep.subr.bf16.mxu0 0
    %6010 = vmatpush1.bf16.msra.mxu0 0
    %6011 = vmatprep.subr.bf16.mxu0 0
    %6012 = vmatpush1.bf16.msra.mxu0 0
    %6013 = vmatprep.subr.bf16.mxu0 0
    %6014 = vmatpush1.bf16.msra.mxu0 0
    %6015 = vmatprep.subr.bf16.mxu0 0
    %6016 = vmatpush1.bf16.msra.mxu0 0
    %6017 = vmatprep.subr.bf16.mxu0 0
    %6018 = vmatpush1.bf16.msra.mxu0 0
    %6019 = vmatprep.subr.bf16.mxu0 0
    %6020 = vmatpush1.bf16.msra.mxu0 0
    %6021 = vmatprep.subr.bf16.mxu0 0
    %6022 = vmatpush1.bf16.msra.mxu0 0
    %6023 = vmatprep.subr.bf16.mxu0 0
    %6024 = vmatpush1.bf16.msra.mxu0 0
    %6025 = vmatprep.subr.bf16.mxu0 0
    %6026 = vmatpush1.bf16.msra.mxu0 0
    %6027 = vmatprep.mubr.bf16.mxu0 0
    %6028 = vmatmul.mubr.bf16.gmra.mrb[0].mxu0 %v5864
    %v6029 = vpop.f32.mrb[0].mxu0
    %v6030 = vadd.f32 %v5987, %v6029
    %v6031 = vpop.f32.mrb[0].mxu0
    %v6032 = vadd.f32 %v5989, %v6031
    %v6033 = vpop.f32.mrb[0].mxu0
    %v6034 = vadd.f32 %v5991, %v6033
    %v6035 = vpop.f32.mrb[0].mxu0
    %v6036 = vadd.f32 %v5993, %v6035
    %6037 = vdwg.mxu0
    %6038 = vmatprep.subr.bf16.mxu0 %v5694
    %6039 = vmatpush1.bf16.msra.mxu0 %v5693
    %6040 = vmatprep.subr.bf16.mxu0 %v5702
    %6041 = vmatpush1.bf16.msra.mxu0 %v5701
    %6042 = vmatprep.subr.bf16.mxu0 %v5710
    %6043 = vmatpush1.bf16.msra.mxu0 %v5709
    %6044 = vmatprep.subr.bf16.mxu0 %v5718
    %6045 = vmatpush1.bf16.msra.mxu0 %v5717
    %6046 = vmatprep.subr.bf16.mxu0 %v5726
    %6047 = vmatpush1.bf16.msra.mxu0 %v5725
    %6048 = vmatprep.subr.bf16.mxu0 %v5734
    %6049 = vmatpush1.bf16.msra.mxu0 %v5733
    %6050 = vmatprep.subr.bf16.mxu0 %v5742
    %6051 = vmatpush1.bf16.msra.mxu0 %v5741
    %6052 = vmatprep.subr.bf16.mxu0 %v5750
    %6053 = vmatpush1.bf16.msra.mxu0 %v5749
    %6054 = vmatprep.subr.bf16.mxu0 %v5758
    %6055 = vmatpush1.bf16.msra.mxu0 %v5757
    %6056 = vmatprep.subr.bf16.mxu0 %v5766
    %6057 = vmatpush1.bf16.msra.mxu0 %v5765
    %6058 = vmatprep.subr.bf16.mxu0 %v5774
    %6059 = vmatpush1.bf16.msra.mxu0 %v5773
    %6060 = vmatprep.subr.bf16.mxu0 %v5782
    %6061 = vmatpush1.bf16.msra.mxu0 %v5781
    %6062 = vmatprep.subr.bf16.mxu0 %v5790
    %6063 = vmatpush1.bf16.msra.mxu0 %v5789
    %6064 = vmatprep.subr.bf16.mxu0 %v5798
    %6065 = vmatpush1.bf16.msra.mxu0 %v5797
    %6066 = vmatprep.subr.bf16.mxu0 %v5806
    %6067 = vmatpush1.bf16.msra.mxu0 %v5805
    %6068 = vmatprep.subr.bf16.mxu0 %v5814
    %6069 = vmatpush1.bf16.msra.mxu0 %v5813
    %6070 = vmatprep.mubr.bf16.mxu0 %v5851
    %6071 = vmatmul.mubr.bf16.gmra.mrb[0].mxu0 %v5842
    %v6072 = vpop.f32.mrb[0].mxu0
    %v6073 = vadd.f32 0.0, %v6072
    %v6074 = vpop.f32.mrb[0].mxu0
    %v6075 = vadd.f32 0.0, %v6074
    %v6076 = vpop.f32.mrb[0].mxu0
    %v6077 = vadd.f32 0.0, %v6076
    %v6078 = vpop.f32.mrb[0].mxu0
    %v6079 = vadd.f32 0.0, %v6078
    %6080 = vdwg.mxu0
    %6081 = vmatprep.subr.bf16.mxu0 %v5822
    %6082 = vmatpush1.bf16.msra.mxu0 %v5821
    %6083 = vmatprep.subr.bf16.mxu0 %v5830
    %6084 = vmatpush1.bf16.msra.mxu0 %v5829
    %6085 = vmatprep.subr.bf16.mxu0 0
    %6086 = vmatpush1.bf16.msra.mxu0 0
    %6087 = vmatprep.subr.bf16.mxu0 0
    %6088 = vmatpush1.bf16.msra.mxu0 0
    %6089 = vmatprep.subr.bf16.mxu0 0
    %6090 = vmatpush1.bf16.msra.mxu0 0
    %6091 = vmatprep.subr.bf16.mxu0 0
    %6092 = vmatpush1.bf16.msra.mxu0 0
    %6093 = vmatprep.subr.bf16.mxu0 0
    %6094 = vmatpush1.bf16.msra.mxu0 0
    %6095 = vmatprep.subr.bf16.mxu0 0
    %6096 = vmatpush1.bf16.msra.mxu0 0
    %6097 = vmatprep.subr.bf16.mxu0 0
    %6098 = vmatpush1.bf16.msra.mxu0 0
    %6099 = vmatprep.subr.bf16.mxu0 0
    %6100 = vmatpush1.bf16.msra.mxu0 0
    %6101 = vmatprep.subr.bf16.mxu0 0
    %6102 = vmatpush1.bf16.msra.mxu0 0
    %6103 = vmatprep.subr.bf16.mxu0 0
    %6104 = vmatpush1.bf16.msra.mxu0 0
    %6105 = vmatprep.subr.bf16.mxu0 0
    %6106 = vmatpush1.bf16.msra.mxu0 0
    %6107 = vmatprep.subr.bf16.mxu0 0
    %6108 = vmatpush1.bf16.msra.mxu0 0
    %6109 = vmatprep.subr.bf16.mxu0 0
    %6110 = vmatpush1.bf16.msra.mxu0 0
    %6111 = vmatprep.subr.bf16.mxu0 0
    %6112 = vmatpush1.bf16.msra.mxu0 0
    %6113 = vmatprep.mubr.bf16.mxu0 0
    %6114 = vmatmul.mubr.bf16.gmra.mrb[0].mxu0 %v5864
    %v6115 = vpop.f32.mrb[0].mxu0
    %v6116 = vadd.f32 %v6073, %v6115
    %v6117 = vpop.f32.mrb[0].mxu0
    %v6118 = vadd.f32 %v6075, %v6117
    %v6119 = vpop.f32.mrb[0].mxu0
    %v6120 = vadd.f32 %v6077, %v6119
    %v6121 = vpop.f32.mrb[0].mxu0
    %v6122 = vadd.f32 %v6079, %v6121
    %6123 = vdwg.mxu0
    %6124 = vmatprep.subr.bf16.mxu0 %v5696
    %6125 = vmatpush1.bf16.msra.mxu0 %v5695
    %6126 = vmatprep.subr.bf16.mxu0 %v5704
    %6127 = vmatpush1.bf16.msra.mxu0 %v5703
    %6128 = vmatprep.subr.bf16.mxu0 %v5712
    %6129 = vmatpush1.bf16.msra.mxu0 %v5711
    %6130 = vmatprep.subr.bf16.mxu0 %v5720
    %6131 = vmatpush1.bf16.msra.mxu0 %v5719
    %6132 = vmatprep.subr.bf16.mxu0 %v5728
    %6133 = vmatpush1.bf16.msra.mxu0 %v5727
    %6134 = vmatprep.subr.bf16.mxu0 %v5736
    %6135 = vmatpush1.bf16.msra.mxu0 %v5735
    %6136 = vmatprep.subr.bf16.mxu0 %v5744
    %6137 = vmatpush1.bf16.msra.mxu0 %v5743
    %6138 = vmatprep.subr.bf16.mxu0 %v5752
    %6139 = vmatpush1.bf16.msra.mxu0 %v5751
    %6140 = vmatprep.subr.bf16.mxu0 %v5760
    %6141 = vmatpush1.bf16.msra.mxu0 %v5759
    %6142 = vmatprep.subr.bf16.mxu0 %v5768
    %6143 = vmatpush1.bf16.msra.mxu0 %v5767
    %6144 = vmatprep.subr.bf16.mxu0 %v5776
    %6145 = vmatpush1.bf16.msra.mxu0 %v5775
    %6146 = vmatprep.subr.bf16.mxu0 %v5784
    %6147 = vmatpush1.bf16.msra.mxu0 %v5783
    %6148 = vmatprep.subr.bf16.mxu0 %v5792
    %6149 = vmatpush1.bf16.msra.mxu0 %v5791
    %6150 = vmatprep.subr.bf16.mxu0 %v5800
    %6151 = vmatpush1.bf16.msra.mxu0 %v5799
    %6152 = vmatprep.subr.bf16.mxu0 %v5808
    %6153 = vmatpush1.bf16.msra.mxu0 %v5807
    %6154 = vmatprep.subr.bf16.mxu0 %v5816
    %6155 = vmatpush1.bf16.msra.mxu0 %v5815
    %6156 = vmatprep.mubr.bf16.mxu0 %v5851
    %6157 = vmatmul.mubr.bf16.gmra.mrb[0].mxu0 %v5842
    %v6158 = vpop.f32.mrb[0].mxu0
    %v6159 = vadd.f32 0.0, %v6158
    %v6160 = vpop.f32.mrb[0].mxu0
    %v6161 = vadd.f32 0.0, %v6160
    %v6162 = vpop.f32.mrb[0].mxu0
    %v6163 = vadd.f32 0.0, %v6162
    %v6164 = vpop.f32.mrb[0].mxu0
    %v6165 = vadd.f32 0.0, %v6164
    %6166 = vdwg.mxu0
    %6167 = vmatprep.subr.bf16.mxu0 %v5824
    %6168 = vmatpush1.bf16.msra.mxu0 %v5823
    %6169 = vmatprep.subr.bf16.mxu0 %v5832
    %6170 = vmatpush1.bf16.msra.mxu0 %v5831
    %6171 = vmatprep.subr.bf16.mxu0 0
    %6172 = vmatpush1.bf16.msra.mxu0 0
    %6173 = vmatprep.subr.bf16.mxu0 0
    %6174 = vmatpush1.bf16.msra.mxu0 0
    %6175 = vmatprep.subr.bf16.mxu0 0
    %6176 = vmatpush1.bf16.msra.mxu0 0
    %6177 = vmatprep.subr.bf16.mxu0 0
    %6178 = vmatpush1.bf16.msra.mxu0 0
    %6179 = vmatprep.subr.bf16.mxu0 0
    %6180 = vmatpush1.bf16.msra.mxu0 0
    %6181 = vmatprep.subr.bf16.mxu0 0
    %6182 = vmatpush1.bf16.msra.mxu0 0
    %6183 = vmatprep.subr.bf16.mxu0 0
    %6184 = vmatpush1.bf16.msra.mxu0 0
    %6185 = vmatprep.subr.bf16.mxu0 0
    %6186 = vmatpush1.bf16.msra.mxu0 0
    %6187 = vmatprep.subr.bf16.mxu0 0
    %6188 = vmatpush1.bf16.msra.mxu0 0
    %6189 = vmatprep.subr.bf16.mxu0 0
    %6190 = vmatpush1.bf16.msra.mxu0 0
    %6191 = vmatprep.subr.bf16.mxu0 0
    %6192 = vmatpush1.bf16.msra.mxu0 0
    %6193 = vmatprep.subr.bf16.mxu0 0
    %6194 = vmatpush1.bf16.msra.mxu0 0
    %6195 = vmatprep.subr.bf16.mxu0 0
    %6196 = vmatpush1.bf16.msra.mxu0 0
    %6197 = vmatprep.subr.bf16.mxu0 0
    %6198 = vmatpush1.bf16.msra.mxu0 0
    %6199 = vmatprep.mubr.bf16.mxu0 0
    %6200 = vmatmul.mubr.bf16.gmra.mrb[0].mxu0 %v5864
    %v6201 = vpop.f32.mrb[0].mxu0
    %v6202 = vadd.f32 %v6159, %v6201
    %v6203 = vpop.f32.mrb[0].mxu0
    %v6204 = vadd.f32 %v6161, %v6203
    %v6205 = vpop.f32.mrb[0].mxu0
    %v6206 = vadd.f32 %v6163, %v6205
    %v6207 = vpop.f32.mrb[0].mxu0
    %v6208 = vadd.f32 %v6165, %v6207
    %6209 = vdwg.mxu0
    %v6210 = vadd.f32 %v5671, %v5944
    %v6211 = vadd.f32 %v5672, %v5946
    %v6212 = vadd.f32 %v5673, %v6030
    %v6213 = vadd.f32 %v5674, %v6032
    %v6214 = vadd.f32 %v5675, %v6116
    %v6215 = vadd.f32 %v5676, %v6118
    %v6216 = vadd.f32 %v5677, %v6202
    %v6217 = vadd.f32 %v5678, %v6204
    %v6218 = vadd.f32 %v5679, %v5948
    %v6219 = vadd.f32 %v5680, %v5950
    %v6220 = vadd.f32 %v5681, %v6034
    %v6221 = vadd.f32 %v5682, %v6036
    %v6222 = vadd.f32 %v5683, %v6120
    %v6223 = vadd.f32 %v5684, %v6122
    %v6224 = vadd.f32 %v5685, %v6206
    %v6225 = vadd.f32 %v5686, %v6208
    %s6226 = sshll.u32 %s4136, 4
    %6227 = dma.done %s228, %s6226
    %v6228 = vld [vmem:[%s227] sm:$0xff]
    %v6229 = vld [vmem:[%s227 + $0x8] sm:$0xff]
    %v6230 = vld [vmem:[%s227 + $0x10] sm:$0xff]
    %v6231 = vld [vmem:[%s227 + $0x18] sm:$0xff]
    %v6232 = vld [vmem:[%s227 + $0x20] sm:$0xff]
    %v6233 = vld [vmem:[%s227 + $0x28] sm:$0xff]
    %v6234 = vld [vmem:[%s227 + $0x30] sm:$0xff]
    %v6235 = vld [vmem:[%s227 + $0x38] sm:$0xff]
    %v6236 = vld [vmem:[%s227 + $0x40] sm:$0xff]
    %v6237 = vld [vmem:[%s227 + $0x48] sm:$0xff]
    %v6238 = vld [vmem:[%s227 + $0x50] sm:$0xff]
    %v6239 = vld [vmem:[%s227 + $0x58] sm:$0xff]
    %v6240 = vld [vmem:[%s227 + $0x60] sm:$0xff]
    %v6241 = vld [vmem:[%s227 + $0x68] sm:$0xff]
    %v6242 = vld [vmem:[%s227 + $0x70] sm:$0xff]
    %v6243 = vld [vmem:[%s227 + $0x78] sm:$0xff]
    %v6244 = vld [vmem:[%s227 + $0x80] sm:$0xff]
    %v6245 = vld [vmem:[%s227 + $0x88] sm:$0xff]
    %v6246 = vld [vmem:[%s227 + $0x90] sm:$0xff]
    %v6247 = vld [vmem:[%s227 + $0x98] sm:$0xff]
    %v6248 = vld [vmem:[%s227 + $0xa0] sm:$0xff]
    %v6249 = vld [vmem:[%s227 + $0xa8] sm:$0xff]
    %v6250 = vld [vmem:[%s227 + $0xb0] sm:$0xff]
    %v6251 = vld [vmem:[%s227 + $0xb8] sm:$0xff]
    %v6252 = vld [vmem:[%s227 + $0xc0] sm:$0xff]
    %v6253 = vld [vmem:[%s227 + $0xc8] sm:$0xff]
    %v6254 = vld [vmem:[%s227 + $0xd0] sm:$0xff]
    %v6255 = vld [vmem:[%s227 + $0xd8] sm:$0xff]
    %v6256 = vld [vmem:[%s227 + $0xe0] sm:$0xff]
    %v6257 = vld [vmem:[%s227 + $0xe8] sm:$0xff]
    %v6258 = vld [vmem:[%s227 + $0xf0] sm:$0xff]
    %v6259 = vld [vmem:[%s227 + $0xf8] sm:$0xff]
    %v6260 = vld [vmem:[%s227 + $0x100] sm:$0xff]
    %v6261 = vld [vmem:[%s227 + $0x108] sm:$0xff]
    %v6262 = vld [vmem:[%s227 + $0x110] sm:$0xff]
    %v6263 = vld [vmem:[%s227 + $0x118] sm:$0xff]
    %v6264 = vld [vmem:[%s227 + $0x120] sm:$0xff]
    %v6265 = vld [vmem:[%s227 + $0x128] sm:$0xff]
    %v6266 = vld [vmem:[%s227 + $0x130] sm:$0xff]
    %v6267 = vld [vmem:[%s227 + $0x138] sm:$0xff]
    %v6268 = vld [vmem:[%s227 + $0x140] sm:$0xff]
    %v6269 = vld [vmem:[%s227 + $0x148] sm:$0xff]
    %v6270 = vld [vmem:[%s227 + $0x150] sm:$0xff]
    %v6271 = vld [vmem:[%s227 + $0x158] sm:$0xff]
    %v6272 = vld [vmem:[%s227 + $0x160] sm:$0xff]
    %v6273 = vld [vmem:[%s227 + $0x168] sm:$0xff]
    %v6274 = vld [vmem:[%s227 + $0x170] sm:$0xff]
    %v6275 = vld [vmem:[%s227 + $0x178] sm:$0xff]
    %v6276 = vld [vmem:[%s227 + $0x180] sm:$0xff]
    %v6277 = vld [vmem:[%s227 + $0x188] sm:$0xff]
    %v6278 = vld [vmem:[%s227 + $0x190] sm:$0xff]
    %v6279 = vld [vmem:[%s227 + $0x198] sm:$0xff]
    %v6280 = vld [vmem:[%s227 + $0x1a0] sm:$0xff]
    %v6281 = vld [vmem:[%s227 + $0x1a8] sm:$0xff]
    %v6282 = vld [vmem:[%s227 + $0x1b0] sm:$0xff]
    %v6283 = vld [vmem:[%s227 + $0x1b8] sm:$0xff]
    %v6284 = vld [vmem:[%s227 + $0x1c0] sm:$0xff]
    %v6285 = vld [vmem:[%s227 + $0x1c8] sm:$0xff]
    %v6286 = vld [vmem:[%s227 + $0x1d0] sm:$0xff]
    %v6287 = vld [vmem:[%s227 + $0x1d8] sm:$0xff]
    %v6288 = vld [vmem:[%s227 + $0x1e0] sm:$0xff]
    %v6289 = vld [vmem:[%s227 + $0x1e8] sm:$0xff]
    %v6290 = vld [vmem:[%s227 + $0x1f0] sm:$0xff]
    %v6291 = vld [vmem:[%s227 + $0x1f8] sm:$0xff]
    %v6292 = vld [vmem:[%s227 + $0x200] sm:$0xff]
    %v6293 = vld [vmem:[%s227 + $0x208] sm:$0xff]
    %v6294 = vld [vmem:[%s227 + $0x210] sm:$0xff]
    %v6295 = vld [vmem:[%s227 + $0x218] sm:$0xff]
    %v6296 = vld [vmem:[%s227 + $0x220] sm:$0xff]
    %v6297 = vld [vmem:[%s227 + $0x228] sm:$0xff]
    %v6298 = vld [vmem:[%s227 + $0x230] sm:$0xff]
    %v6299 = vld [vmem:[%s227 + $0x238] sm:$0xff]
    %v6300 = vld [vmem:[%s227 + $0x240] sm:$0xff]
    %v6301 = vld [vmem:[%s227 + $0x248] sm:$0xff]
    %v6302 = vld [vmem:[%s227 + $0x250] sm:$0xff]
    %v6303 = vld [vmem:[%s227 + $0x258] sm:$0xff]
    %v6304 = vld [vmem:[%s227 + $0x260] sm:$0xff]
    %v6305 = vld [vmem:[%s227 + $0x268] sm:$0xff]
    %v6306 = vld [vmem:[%s227 + $0x270] sm:$0xff]
    %v6307 = vld [vmem:[%s227 + $0x278] sm:$0xff]
    %v6308 = vld [vmem:[%s227 + $0x280] sm:$0xff]
    %v6309 = vld [vmem:[%s227 + $0x288] sm:$0xff]
    %v6310 = vld [vmem:[%s227 + $0x290] sm:$0xff]
    %v6311 = vld [vmem:[%s227 + $0x298] sm:$0xff]
    %v6312 = vld [vmem:[%s227 + $0x2a0] sm:$0xff]
    %v6313 = vld [vmem:[%s227 + $0x2a8] sm:$0xff]
    %v6314 = vld [vmem:[%s227 + $0x2b0] sm:$0xff]
    %v6315 = vld [vmem:[%s227 + $0x2b8] sm:$0xff]
    %v6316 = vld [vmem:[%s227 + $0x2c0] sm:$0xff]
    %v6317 = vld [vmem:[%s227 + $0x2c8] sm:$0xff]
    %v6318 = vld [vmem:[%s227 + $0x2d0] sm:$0xff]
    %v6319 = vld [vmem:[%s227 + $0x2d8] sm:$0xff]
    %v6320 = vld [vmem:[%s227 + $0x2e0] sm:$0xff]
    %v6321 = vld [vmem:[%s227 + $0x2e8] sm:$0xff]
    %v6322 = vld [vmem:[%s227 + $0x2f0] sm:$0xff]
    %v6323 = vld [vmem:[%s227 + $0x2f8] sm:$0xff]
    %v6324 = vld [vmem:[%s227 + $0x300] sm:$0xff]
    %v6325 = vld [vmem:[%s227 + $0x308] sm:$0xff]
    %v6326 = vld [vmem:[%s227 + $0x310] sm:$0xff]
    %v6327 = vld [vmem:[%s227 + $0x318] sm:$0xff]
    %v6328 = vld [vmem:[%s227 + $0x320] sm:$0xff]
    %v6329 = vld [vmem:[%s227 + $0x328] sm:$0xff]
    %v6330 = vld [vmem:[%s227 + $0x330] sm:$0xff]
    %v6331 = vld [vmem:[%s227 + $0x338] sm:$0xff]
    %v6332 = vld [vmem:[%s227 + $0x340] sm:$0xff]
    %v6333 = vld [vmem:[%s227 + $0x348] sm:$0xff]
    %v6334 = vld [vmem:[%s227 + $0x350] sm:$0xff]
    %v6335 = vld [vmem:[%s227 + $0x358] sm:$0xff]
    %v6336 = vld [vmem:[%s227 + $0x360] sm:$0xff]
    %v6337 = vld [vmem:[%s227 + $0x368] sm:$0xff]
    %v6338 = vld [vmem:[%s227 + $0x370] sm:$0xff]
    %v6339 = vld [vmem:[%s227 + $0x378] sm:$0xff]
    %v6340 = vld [vmem:[%s227 + $0x380] sm:$0xff]
    %v6341 = vld [vmem:[%s227 + $0x388] sm:$0xff]
    %v6342 = vld [vmem:[%s227 + $0x390] sm:$0xff]
    %v6343 = vld [vmem:[%s227 + $0x398] sm:$0xff]
    %v6344 = vld [vmem:[%s227 + $0x3a0] sm:$0xff]
    %v6345 = vld [vmem:[%s227 + $0x3a8] sm:$0xff]
    %v6346 = vld [vmem:[%s227 + $0x3b0] sm:$0xff]
    %v6347 = vld [vmem:[%s227 + $0x3b8] sm:$0xff]
    %v6348 = vld [vmem:[%s227 + $0x3c0] sm:$0xff]
    %v6349 = vld [vmem:[%s227 + $0x3c8] sm:$0xff]
    %v6350 = vld [vmem:[%s227 + $0x3d0] sm:$0xff]
    %v6351 = vld [vmem:[%s227 + $0x3d8] sm:$0xff]
    %v6352 = vld [vmem:[%s227 + $0x3e0] sm:$0xff]
    %v6353 = vld [vmem:[%s227 + $0x3e8] sm:$0xff]
    %v6354 = vld [vmem:[%s227 + $0x3f0] sm:$0xff]
    %v6355 = vld [vmem:[%s227 + $0x3f8] sm:$0xff]
    %v6356 = vld [vmem:[%s227 + $0x400] sm:$0xff]
    %v6357 = vld [vmem:[%s227 + $0x408] sm:$0xff]
    %v6358 = vld [vmem:[%s227 + $0x410] sm:$0xff]
    %v6359 = vld [vmem:[%s227 + $0x418] sm:$0xff]
    %v6360 = vld [vmem:[%s227 + $0x420] sm:$0xff]
    %v6361 = vld [vmem:[%s227 + $0x428] sm:$0xff]
    %v6362 = vld [vmem:[%s227 + $0x430] sm:$0xff]
    %v6363 = vld [vmem:[%s227 + $0x438] sm:$0xff]
    %v6364 = vld [vmem:[%s227 + $0x440] sm:$0xff]
    %v6365 = vld [vmem:[%s227 + $0x448] sm:$0xff]
    %v6366 = vld [vmem:[%s227 + $0x450] sm:$0xff]
    %v6367 = vld [vmem:[%s227 + $0x458] sm:$0xff]
    %v6368 = vld [vmem:[%s227 + $0x460] sm:$0xff]
    %v6369 = vld [vmem:[%s227 + $0x468] sm:$0xff]
    %v6370 = vld [vmem:[%s227 + $0x470] sm:$0xff]
    %v6371 = vld [vmem:[%s227 + $0x478] sm:$0xff]
    %vm6372 = vcmask 1045504
    %v6373 = vrot.slane %v4129, 2
    %v6374 = vrot.slane %v4132, 2
    %v6375 = vsel %vm6372, %v6373, %v6374
    %v6376 = vrot.slane %v4130, 2
    %v6377 = vrot.slane %v4133, 2
    %v6378 = vsel %vm6372, %v6376, %v6377
    %v6379 = vrot.slane %v4131, 2
    %v6380 = vrot.slane %v4134, 2
    %v6381 = vsel %vm6372, %v6379, %v6380
    %v6385 = vsel %vm4467, %v6381, 0
    %6387 = vmatprep.subr.bf16.mxu0 %v6229
    %6388 = vmatpush1.bf16.msra.mxu0 %v6228
    %6389 = vmatprep.subr.bf16.mxu0 %v6237
    %6390 = vmatpush1.bf16.msra.mxu0 %v6236
    %6391 = vmatprep.subr.bf16.mxu0 %v6245
    %6392 = vmatpush1.bf16.msra.mxu0 %v6244
    %6393 = vmatprep.subr.bf16.mxu0 %v6253
    %6394 = vmatpush1.bf16.msra.mxu0 %v6252
    %6395 = vmatprep.subr.bf16.mxu0 %v6261
    %6396 = vmatpush1.bf16.msra.mxu0 %v6260
    %6397 = vmatprep.subr.bf16.mxu0 %v6269
    %6398 = vmatpush1.bf16.msra.mxu0 %v6268
    %6399 = vmatprep.subr.bf16.mxu0 %v6277
    %6400 = vmatpush1.bf16.msra.mxu0 %v6276
    %6401 = vmatprep.subr.bf16.mxu0 %v6285
    %6402 = vmatpush1.bf16.msra.mxu0 %v6284
    %6403 = vmatprep.subr.bf16.mxu0 %v6293
    %6404 = vmatpush1.bf16.msra.mxu0 %v6292
    %6405 = vmatprep.subr.bf16.mxu0 %v6301
    %6406 = vmatpush1.bf16.msra.mxu0 %v6300
    %6407 = vmatprep.subr.bf16.mxu0 %v6309
    %6408 = vmatpush1.bf16.msra.mxu0 %v6308
    %6409 = vmatprep.subr.bf16.mxu0 %v6317
    %6410 = vmatpush1.bf16.msra.mxu0 %v6316
    %6411 = vmatprep.subr.bf16.mxu0 %v6325
    %6412 = vmatpush1.bf16.msra.mxu0 %v6324
    %6413 = vmatprep.subr.bf16.mxu0 %v6333
    %6414 = vmatpush1.bf16.msra.mxu0 %v6332
    %6415 = vmatprep.subr.bf16.mxu0 %v6341
    %6416 = vmatpush1.bf16.msra.mxu0 %v6340
    %6417 = vmatprep.subr.bf16.mxu0 %v6349
    %6418 = vmatpush1.bf16.msra.mxu0 %v6348
    %6419 = vmatprep.mubr.bf16.mxu0 %v6378
    %6420 = vmatmul.mubr.bf16.gmra.mrb[0].mxu0 %v6375
    %v6421 = vpop.f32.mrb[0].mxu0
    %v6422 = vadd.f32 0.0, %v6421
    %v6423 = vpop.f32.mrb[0].mxu0
    %v6424 = vadd.f32 0.0, %v6423
    %v6425 = vpop.f32.mrb[0].mxu0
    %v6426 = vadd.f32 0.0, %v6425
    %v6427 = vpop.f32.mrb[0].mxu0
    %v6428 = vadd.f32 0.0, %v6427
    %6429 = vdwg.mxu0
    %6430 = vmatprep.subr.bf16.mxu0 %v6357
    %6431 = vmatpush1.bf16.msra.mxu0 %v6356
    %6432 = vmatprep.subr.bf16.mxu0 %v6365
    %6433 = vmatpush1.bf16.msra.mxu0 %v6364
    %6434 = vmatprep.subr.bf16.mxu0 0
    %6435 = vmatpush1.bf16.msra.mxu0 0
    %6436 = vmatprep.subr.bf16.mxu0 0
    %6437 = vmatpush1.bf16.msra.mxu0 0
    %6438 = vmatprep.subr.bf16.mxu0 0
    %6439 = vmatpush1.bf16.msra.mxu0 0
    %6440 = vmatprep.subr.bf16.mxu0 0
    %6441 = vmatpush1.bf16.msra.mxu0 0
    %6442 = vmatprep.subr.bf16.mxu0 0
    %6443 = vmatpush1.bf16.msra.mxu0 0
    %6444 = vmatprep.subr.bf16.mxu0 0
    %6445 = vmatpush1.bf16.msra.mxu0 0
    %6446 = vmatprep.subr.bf16.mxu0 0
    %6447 = vmatpush1.bf16.msra.mxu0 0
    %6448 = vmatprep.subr.bf16.mxu0 0
    %6449 = vmatpush1.bf16.msra.mxu0 0
    %6450 = vmatprep.subr.bf16.mxu0 0
    %6451 = vmatpush1.bf16.msra.mxu0 0
    %6452 = vmatprep.subr.bf16.mxu0 0
    %6453 = vmatpush1.bf16.msra.mxu0 0
    %6454 = vmatprep.subr.bf16.mxu0 0
    %6455 = vmatpush1.bf16.msra.mxu0 0
    %6456 = vmatprep.subr.bf16.mxu0 0
    %6457 = vmatpush1.bf16.msra.mxu0 0
    %6458 = vmatprep.subr.bf16.mxu0 0
    %6459 = vmatpush1.bf16.msra.mxu0 0
    %6460 = vmatprep.subr.bf16.mxu0 0
    %6461 = vmatpush1.bf16.msra.mxu0 0
    %6462 = vmatprep.mubr.bf16.mxu0 0
    %6463 = vmatmul.mubr.bf16.gmra.mrb[0].mxu0 %v6385
    %v6464 = vpop.f32.mrb[0].mxu0
    %v6465 = vadd.f32 %v6422, %v6464
    %v6466 = vpop.f32.mrb[0].mxu0
    %v6467 = vadd.f32 %v6424, %v6466
    %v6468 = vpop.f32.mrb[0].mxu0
    %v6469 = vadd.f32 %v6426, %v6468
    %v6470 = vpop.f32.mrb[0].mxu0
    %v6471 = vadd.f32 %v6428, %v6470
    %6472 = vdwg.mxu0
    %6473 = vmatprep.subr.bf16.mxu0 %v6231
    %6474 = vmatpush1.bf16.msra.mxu0 %v6230
    %6475 = vmatprep.subr.bf16.mxu0 %v6239
    %6476 = vmatpush1.bf16.msra.mxu0 %v6238
    %6477 = vmatprep.subr.bf16.mxu0 %v6247
    %6478 = vmatpush1.bf16.msra.mxu0 %v6246
    %6479 = vmatprep.subr.bf16.mxu0 %v6255
    %6480 = vmatpush1.bf16.msra.mxu0 %v6254
    %6481 = vmatprep.subr.bf16.mxu0 %v6263
    %6482 = vmatpush1.bf16.msra.mxu0 %v6262
    %6483 = vmatprep.subr.bf16.mxu0 %v6271
    %6484 = vmatpush1.bf16.msra.mxu0 %v6270
    %6485 = vmatprep.subr.bf16.mxu0 %v6279
    %6486 = vmatpush1.bf16.msra.mxu0 %v6278
    %6487 = vmatprep.subr.bf16.mxu0 %v6287
    %6488 = vmatpush1.bf16.msra.mxu0 %v6286
    %6489 = vmatprep.subr.bf16.mxu0 %v6295
    %6490 = vmatpush1.bf16.msra.mxu0 %v6294
    %6491 = vmatprep.subr.bf16.mxu0 %v6303
    %6492 = vmatpush1.bf16.msra.mxu0 %v6302
    %6493 = vmatprep.subr.bf16.mxu0 %v6311
    %6494 = vmatpush1.bf16.msra.mxu0 %v6310
    %6495 = vmatprep.subr.bf16.mxu0 %v6319
    %6496 = vmatpush1.bf16.msra.mxu0 %v6318
    %6497 = vmatprep.subr.bf16.mxu0 %v6327
    %6498 = vmatpush1.bf16.msra.mxu0 %v6326
    %6499 = vmatprep.subr.bf16.mxu0 %v6335
    %6500 = vmatpush1.bf16.msra.mxu0 %v6334
    %6501 = vmatprep.subr.bf16.mxu0 %v6343
    %6502 = vmatpush1.bf16.msra.mxu0 %v6342
    %6503 = vmatprep.subr.bf16.mxu0 %v6351
    %6504 = vmatpush1.bf16.msra.mxu0 %v6350
    %6505 = vmatprep.mubr.bf16.mxu0 %v6378
    %6506 = vmatmul.mubr.bf16.gmra.mrb[0].mxu0 %v6375
    %v6507 = vpop.f32.mrb[0].mxu0
    %v6508 = vadd.f32 0.0, %v6507
    %v6509 = vpop.f32.mrb[0].mxu0
    %v6510 = vadd.f32 0.0, %v6509
    %v6511 = vpop.f32.mrb[0].mxu0
    %v6512 = vadd.f32 0.0, %v6511
    %v6513 = vpop.f32.mrb[0].mxu0
    %v6514 = vadd.f32 0.0, %v6513
    %6515 = vdwg.mxu0
    %6516 = vmatprep.subr.bf16.mxu0 %v6359
    %6517 = vmatpush1.bf16.msra.mxu0 %v6358
    %6518 = vmatprep.subr.bf16.mxu0 %v6367
    %6519 = vmatpush1.bf16.msra.mxu0 %v6366
    %6520 = vmatprep.subr.bf16.mxu0 0
    %6521 = vmatpush1.bf16.msra.mxu0 0
    %6522 = vmatprep.subr.bf16.mxu0 0
    %6523 = vmatpush1.bf16.msra.mxu0 0
    %6524 = vmatprep.subr.bf16.mxu0 0
    %6525 = vmatpush1.bf16.msra.mxu0 0
    %6526 = vmatprep.subr.bf16.mxu0 0
    %6527 = vmatpush1.bf16.msra.mxu0 0
    %6528 = vmatprep.subr.bf16.mxu0 0
    %6529 = vmatpush1.bf16.msra.mxu0 0
    %6530 = vmatprep.subr.bf16.mxu0 0
    %6531 = vmatpush1.bf16.msra.mxu0 0
    %6532 = vmatprep.subr.bf16.mxu0 0
    %6533 = vmatpush1.bf16.msra.mxu0 0
    %6534 = vmatprep.subr.bf16.mxu0 0
    %6535 = vmatpush1.bf16.msra.mxu0 0
    %6536 = vmatprep.subr.bf16.mxu0 0
    %6537 = vmatpush1.bf16.msra.mxu0 0
    %6538 = vmatprep.subr.bf16.mxu0 0
    %6539 = vmatpush1.bf16.msra.mxu0 0
    %6540 = vmatprep.subr.bf16.mxu0 0
    %6541 = vmatpush1.bf16.msra.mxu0 0
    %6542 = vmatprep.subr.bf16.mxu0 0
    %6543 = vmatpush1.bf16.msra.mxu0 0
    %6544 = vmatprep.subr.bf16.mxu0 0
    %6545 = vmatpush1.bf16.msra.mxu0 0
    %6546 = vmatprep.subr.bf16.mxu0 0
    %6547 = vmatpush1.bf16.msra.mxu0 0
    %6548 = vmatprep.mubr.bf16.mxu0 0
    %6549 = vmatmul.mubr.bf16.gmra.mrb[0].mxu0 %v6385
    %v6550 = vpop.f32.mrb[0].mxu0
    %v6551 = vadd.f32 %v6508, %v6550
    %v6552 = vpop.f32.mrb[0].mxu0
    %v6553 = vadd.f32 %v6510, %v6552
    %v6554 = vpop.f32.mrb[0].mxu0
    %v6555 = vadd.f32 %v6512, %v6554
    %v6556 = vpop.f32.mrb[0].mxu0
    %v6557 = vadd.f32 %v6514, %v6556
    %6558 = vdwg.mxu0
    %6559 = vmatprep.subr.bf16.mxu0 %v6233
    %6560 = vmatpush1.bf16.msra.mxu0 %v6232
    %6561 = vmatprep.subr.bf16.mxu0 %v6241
    %6562 = vmatpush1.bf16.msra.mxu0 %v6240
    %6563 = vmatprep.subr.bf16.mxu0 %v6249
    %6564 = vmatpush1.bf16.msra.mxu0 %v6248
    %6565 = vmatprep.subr.bf16.mxu0 %v6257
    %6566 = vmatpush1.bf16.msra.mxu0 %v6256
    %6567 = vmatprep.subr.bf16.mxu0 %v6265
    %6568 = vmatpush1.bf16.msra.mxu0 %v6264
    %6569 = vmatprep.subr.bf16.mxu0 %v6273
    %6570 = vmatpush1.bf16.msra.mxu0 %v6272
    %6571 = vmatprep.subr.bf16.mxu0 %v6281
    %6572 = vmatpush1.bf16.msra.mxu0 %v6280
    %6573 = vmatprep.subr.bf16.mxu0 %v6289
    %6574 = vmatpush1.bf16.msra.mxu0 %v6288
    %6575 = vmatprep.subr.bf16.mxu0 %v6297
    %6576 = vmatpush1.bf16.msra.mxu0 %v6296
    %6577 = vmatprep.subr.bf16.mxu0 %v6305
    %6578 = vmatpush1.bf16.msra.mxu0 %v6304
    %6579 = vmatprep.subr.bf16.mxu0 %v6313
    %6580 = vmatpush1.bf16.msra.mxu0 %v6312
    %6581 = vmatprep.subr.bf16.mxu0 %v6321
    %6582 = vmatpush1.bf16.msra.mxu0 %v6320
    %6583 = vmatprep.subr.bf16.mxu0 %v6329
    %6584 = vmatpush1.bf16.msra.mxu0 %v6328
    %6585 = vmatprep.subr.bf16.mxu0 %v6337
    %6586 = vmatpush1.bf16.msra.mxu0 %v6336
    %6587 = vmatprep.subr.bf16.mxu0 %v6345
    %6588 = vmatpush1.bf16.msra.mxu0 %v6344
    %6589 = vmatprep.subr.bf16.mxu0 %v6353
    %6590 = vmatpush1.bf16.msra.mxu0 %v6352
    %6591 = vmatprep.mubr.bf16.mxu0 %v6378
    %6592 = vmatmul.mubr.bf16.gmra.mrb[0].mxu0 %v6375
    %v6593 = vpop.f32.mrb[0].mxu0
    %v6594 = vadd.f32 0.0, %v6593
    %v6595 = vpop.f32.mrb[0].mxu0
    %v6596 = vadd.f32 0.0, %v6595
    %v6597 = vpop.f32.mrb[0].mxu0
    %v6598 = vadd.f32 0.0, %v6597
    %v6599 = vpop.f32.mrb[0].mxu0
    %v6600 = vadd.f32 0.0, %v6599
    %6601 = vdwg.mxu0
    %6602 = vmatprep.subr.bf16.mxu0 %v6361
    %6603 = vmatpush1.bf16.msra.mxu0 %v6360
    %6604 = vmatprep.subr.bf16.mxu0 %v6369
    %6605 = vmatpush1.bf16.msra.mxu0 %v6368
    %6606 = vmatprep.subr.bf16.mxu0 0
    %6607 = vmatpush1.bf16.msra.mxu0 0
    %6608 = vmatprep.subr.bf16.mxu0 0
    %6609 = vmatpush1.bf16.msra.mxu0 0
    %6610 = vmatprep.subr.bf16.mxu0 0
    %6611 = vmatpush1.bf16.msra.mxu0 0
    %6612 = vmatprep.subr.bf16.mxu0 0
    %6613 = vmatpush1.bf16.msra.mxu0 0
    %6614 = vmatprep.subr.bf16.mxu0 0
    %6615 = vmatpush1.bf16.msra.mxu0 0
    %6616 = vmatprep.subr.bf16.mxu0 0
    %6617 = vmatpush1.bf16.msra.mxu0 0
    %6618 = vmatprep.subr.bf16.mxu0 0
    %6619 = vmatpush1.bf16.msra.mxu0 0
    %6620 = vmatprep.subr.bf16.mxu0 0
    %6621 = vmatpush1.bf16.msra.mxu0 0
    %6622 = vmatprep.subr.bf16.mxu0 0
    %6623 = vmatpush1.bf16.msra.mxu0 0
    %6624 = vmatprep.subr.bf16.mxu0 0
    %6625 = vmatpush1.bf16.msra.mxu0 0
    %6626 = vmatprep.subr.bf16.mxu0 0
    %6627 = vmatpush1.bf16.msra.mxu0 0
    %6628 = vmatprep.subr.bf16.mxu0 0
    %6629 = vmatpush1.bf16.msra.mxu0 0
    %6630 = vmatprep.subr.bf16.mxu0 0
    %6631 = vmatpush1.bf16.msra.mxu0 0
    %6632 = vmatprep.subr.bf16.mxu0 0
    %6633 = vmatpush1.bf16.msra.mxu0 0
    %6634 = vmatprep.mubr.bf16.mxu0 0
    %6635 = vmatmul.mubr.bf16.gmra.mrb[0].mxu0 %v6385
    %v6636 = vpop.f32.mrb[0].mxu0
    %v6637 = vadd.f32 %v6594, %v6636
    %v6638 = vpop.f32.mrb[0].mxu0
    %v6639 = vadd.f32 %v6596, %v6638
    %v6640 = vpop.f32.mrb[0].mxu0
    %v6641 = vadd.f32 %v6598, %v6640
    %v6642 = vpop.f32.mrb[0].mxu0
    %v6643 = vadd.f32 %v6600, %v6642
    %6644 = vdwg.mxu0
    %6645 = vmatprep.subr.bf16.mxu0 %v6235
    %6646 = vmatpush1.bf16.msra.mxu0 %v6234
    %6647 = vmatprep.subr.bf16.mxu0 %v6243
    %6648 = vmatpush1.bf16.msra.mxu0 %v6242
    %6649 = vmatprep.subr.bf16.mxu0 %v6251
    %6650 = vmatpush1.bf16.msra.mxu0 %v6250
    %6651 = vmatprep.subr.bf16.mxu0 %v6259
    %6652 = vmatpush1.bf16.msra.mxu0 %v6258
    %6653 = vmatprep.subr.bf16.mxu0 %v6267
    %6654 = vmatpush1.bf16.msra.mxu0 %v6266
    %6655 = vmatprep.subr.bf16.mxu0 %v6275
    %6656 = vmatpush1.bf16.msra.mxu0 %v6274
    %6657 = vmatprep.subr.bf16.mxu0 %v6283
    %6658 = vmatpush1.bf16.msra.mxu0 %v6282
    %6659 = vmatprep.subr.bf16.mxu0 %v6291
    %6660 = vmatpush1.bf16.msra.mxu0 %v6290
    %6661 = vmatprep.subr.bf16.mxu0 %v6299
    %6662 = vmatpush1.bf16.msra.mxu0 %v6298
    %6663 = vmatprep.subr.bf16.mxu0 %v6307
    %6664 = vmatpush1.bf16.msra.mxu0 %v6306
    %6665 = vmatprep.subr.bf16.mxu0 %v6315
    %6666 = vmatpush1.bf16.msra.mxu0 %v6314
    %6667 = vmatprep.subr.bf16.mxu0 %v6323
    %6668 = vmatpush1.bf16.msra.mxu0 %v6322
    %6669 = vmatprep.subr.bf16.mxu0 %v6331
    %6670 = vmatpush1.bf16.msra.mxu0 %v6330
    %6671 = vmatprep.subr.bf16.mxu0 %v6339
    %6672 = vmatpush1.bf16.msra.mxu0 %v6338
    %6673 = vmatprep.subr.bf16.mxu0 %v6347
    %6674 = vmatpush1.bf16.msra.mxu0 %v6346
    %6675 = vmatprep.subr.bf16.mxu0 %v6355
    %6676 = vmatpush1.bf16.msra.mxu0 %v6354
    %6677 = vmatprep.mubr.bf16.mxu0 %v6378
    %6678 = vmatmul.mubr.bf16.gmra.mrb[0].mxu0 %v6375
    %v6679 = vpop.f32.mrb[0].mxu0
    %v6680 = vadd.f32 0.0, %v6679
    %v6681 = vpop.f32.mrb[0].mxu0
    %v6682 = vadd.f32 0.0, %v6681
    %v6683 = vpop.f32.mrb[0].mxu0
    %v6684 = vadd.f32 0.0, %v6683
    %v6685 = vpop.f32.mrb[0].mxu0
    %v6686 = vadd.f32 0.0, %v6685
    %6687 = vdwg.mxu0
    %6688 = vmatprep.subr.bf16.mxu0 %v6363
    %6689 = vmatpush1.bf16.msra.mxu0 %v6362
    %6690 = vmatprep.subr.bf16.mxu0 %v6371
    %6691 = vmatpush1.bf16.msra.mxu0 %v6370
    %6692 = vmatprep.subr.bf16.mxu0 0
    %6693 = vmatpush1.bf16.msra.mxu0 0
    %6694 = vmatprep.subr.bf16.mxu0 0
    %6695 = vmatpush1.bf16.msra.mxu0 0
    %6696 = vmatprep.subr.bf16.mxu0 0
    %6697 = vmatpush1.bf16.msra.mxu0 0
    %6698 = vmatprep.subr.bf16.mxu0 0
    %6699 = vmatpush1.bf16.msra.mxu0 0
    %6700 = vmatprep.subr.bf16.mxu0 0
    %6701 = vmatpush1.bf16.msra.mxu0 0
    %6702 = vmatprep.subr.bf16.mxu0 0
    %6703 = vmatpush1.bf16.msra.mxu0 0
    %6704 = vmatprep.subr.bf16.mxu0 0
    %6705 = vmatpush1.bf16.msra.mxu0 0
    %6706 = vmatprep.subr.bf16.mxu0 0
    %6707 = vmatpush1.bf16.msra.mxu0 0
    %6708 = vmatprep.subr.bf16.mxu0 0
    %6709 = vmatpush1.bf16.msra.mxu0 0
    %6710 = vmatprep.subr.bf16.mxu0 0
    %6711 = vmatpush1.bf16.msra.mxu0 0
    %6712 = vmatprep.subr.bf16.mxu0 0
    %6713 = vmatpush1.bf16.msra.mxu0 0
    %6714 = vmatprep.subr.bf16.mxu0 0
    %6715 = vmatpush1.bf16.msra.mxu0 0
    %6716 = vmatprep.subr.bf16.mxu0 0
    %6717 = vmatpush1.bf16.msra.mxu0 0
    %6718 = vmatprep.subr.bf16.mxu0 0
    %6719 = vmatpush1.bf16.msra.mxu0 0
    %6720 = vmatprep.mubr.bf16.mxu0 0
    %6721 = vmatmul.mubr.bf16.gmra.mrb[0].mxu0 %v6385
    %v6722 = vpop.f32.mrb[0].mxu0
    %v6723 = vadd.f32 %v6680, %v6722
    %v6724 = vpop.f32.mrb[0].mxu0
    %v6725 = vadd.f32 %v6682, %v6724
    %v6726 = vpop.f32.mrb[0].mxu0
    %v6727 = vadd.f32 %v6684, %v6726
    %v6728 = vpop.f32.mrb[0].mxu0
    %v6729 = vadd.f32 %v6686, %v6728
    %6730 = vdwg.mxu0
    %v6731 = vadd.f32 %v6210, %v6465
    %v6732 = vadd.f32 %v6211, %v6467
    %v6733 = vadd.f32 %v6212, %v6551
    %v6734 = vadd.f32 %v6213, %v6553
    %v6735 = vadd.f32 %v6214, %v6637
    %v6736 = vadd.f32 %v6215, %v6639
    %v6737 = vadd.f32 %v6216, %v6723
    %v6738 = vadd.f32 %v6217, %v6725
    %v6739 = vadd.f32 %v6218, %v6469
    %v6740 = vadd.f32 %v6219, %v6471
    %v6741 = vadd.f32 %v6220, %v6555
    %v6742 = vadd.f32 %v6221, %v6557
    %v6743 = vadd.f32 %v6222, %v6641
    %v6744 = vadd.f32 %v6223, %v6643
    %v6745 = vadd.f32 %v6224, %v6727
    %v6746 = vadd.f32 %v6225, %v6729
    %s6747 = sshll.u32 %s4136, 4
    %6748 = dma.done %s265, %s6747
    %v6749 = vld [vmem:[%s264] sm:$0xff]
    %v6750 = vld [vmem:[%s264 + $0x8] sm:$0xff]
    %v6751 = vld [vmem:[%s264 + $0x10] sm:$0xff]
    %v6752 = vld [vmem:[%s264 + $0x18] sm:$0xff]
    %v6753 = vld [vmem:[%s264 + $0x20] sm:$0xff]
    %v6754 = vld [vmem:[%s264 + $0x28] sm:$0xff]
    %v6755 = vld [vmem:[%s264 + $0x30] sm:$0xff]
    %v6756 = vld [vmem:[%s264 + $0x38] sm:$0xff]
    %v6757 = vld [vmem:[%s264 + $0x40] sm:$0xff]
    %v6758 = vld [vmem:[%s264 + $0x48] sm:$0xff]
    %v6759 = vld [vmem:[%s264 + $0x50] sm:$0xff]
    %v6760 = vld [vmem:[%s264 + $0x58] sm:$0xff]
    %v6761 = vld [vmem:[%s264 + $0x60] sm:$0xff]
    %v6762 = vld [vmem:[%s264 + $0x68] sm:$0xff]
    %v6763 = vld [vmem:[%s264 + $0x70] sm:$0xff]
    %v6764 = vld [vmem:[%s264 + $0x78] sm:$0xff]
    %v6765 = vld [vmem:[%s264 + $0x80] sm:$0xff]
    %v6766 = vld [vmem:[%s264 + $0x88] sm:$0xff]
    %v6767 = vld [vmem:[%s264 + $0x90] sm:$0xff]
    %v6768 = vld [vmem:[%s264 + $0x98] sm:$0xff]
    %v6769 = vld [vmem:[%s264 + $0xa0] sm:$0xff]
    %v6770 = vld [vmem:[%s264 + $0xa8] sm:$0xff]
    %v6771 = vld [vmem:[%s264 + $0xb0] sm:$0xff]
    %v6772 = vld [vmem:[%s264 + $0xb8] sm:$0xff]
    %v6773 = vld [vmem:[%s264 + $0xc0] sm:$0xff]
    %v6774 = vld [vmem:[%s264 + $0xc8] sm:$0xff]
    %v6775 = vld [vmem:[%s264 + $0xd0] sm:$0xff]
    %v6776 = vld [vmem:[%s264 + $0xd8] sm:$0xff]
    %v6777 = vld [vmem:[%s264 + $0xe0] sm:$0xff]
    %v6778 = vld [vmem:[%s264 + $0xe8] sm:$0xff]
    %v6779 = vld [vmem:[%s264 + $0xf0] sm:$0xff]
    %v6780 = vld [vmem:[%s264 + $0xf8] sm:$0xff]
    %v6781 = vld [vmem:[%s264 + $0x100] sm:$0xff]
    %v6782 = vld [vmem:[%s264 + $0x108] sm:$0xff]
    %v6783 = vld [vmem:[%s264 + $0x110] sm:$0xff]
    %v6784 = vld [vmem:[%s264 + $0x118] sm:$0xff]
    %v6785 = vld [vmem:[%s264 + $0x120] sm:$0xff]
    %v6786 = vld [vmem:[%s264 + $0x128] sm:$0xff]
    %v6787 = vld [vmem:[%s264 + $0x130] sm:$0xff]
    %v6788 = vld [vmem:[%s264 + $0x138] sm:$0xff]
    %v6789 = vld [vmem:[%s264 + $0x140] sm:$0xff]
    %v6790 = vld [vmem:[%s264 + $0x148] sm:$0xff]
    %v6791 = vld [vmem:[%s264 + $0x150] sm:$0xff]
    %v6792 = vld [vmem:[%s264 + $0x158] sm:$0xff]
    %v6793 = vld [vmem:[%s264 + $0x160] sm:$0xff]
    %v6794 = vld [vmem:[%s264 + $0x168] sm:$0xff]
    %v6795 = vld [vmem:[%s264 + $0x170] sm:$0xff]
    %v6796 = vld [vmem:[%s264 + $0x178] sm:$0xff]
    %v6797 = vld [vmem:[%s264 + $0x180] sm:$0xff]
    %v6798 = vld [vmem:[%s264 + $0x188] sm:$0xff]
    %v6799 = vld [vmem:[%s264 + $0x190] sm:$0xff]
    %v6800 = vld [vmem:[%s264 + $0x198] sm:$0xff]
    %v6801 = vld [vmem:[%s264 + $0x1a0] sm:$0xff]
    %v6802 = vld [vmem:[%s264 + $0x1a8] sm:$0xff]
    %v6803 = vld [vmem:[%s264 + $0x1b0] sm:$0xff]
    %v6804 = vld [vmem:[%s264 + $0x1b8] sm:$0xff]
    %v6805 = vld [vmem:[%s264 + $0x1c0] sm:$0xff]
    %v6806 = vld [vmem:[%s264 + $0x1c8] sm:$0xff]
    %v6807 = vld [vmem:[%s264 + $0x1d0] sm:$0xff]
    %v6808 = vld [vmem:[%s264 + $0x1d8] sm:$0xff]
    %v6809 = vld [vmem:[%s264 + $0x1e0] sm:$0xff]
    %v6810 = vld [vmem:[%s264 + $0x1e8] sm:$0xff]
    %v6811 = vld [vmem:[%s264 + $0x1f0] sm:$0xff]
    %v6812 = vld [vmem:[%s264 + $0x1f8] sm:$0xff]
    %v6813 = vld [vmem:[%s264 + $0x200] sm:$0xff]
    %v6814 = vld [vmem:[%s264 + $0x208] sm:$0xff]
    %v6815 = vld [vmem:[%s264 + $0x210] sm:$0xff]
    %v6816 = vld [vmem:[%s264 + $0x218] sm:$0xff]
    %v6817 = vld [vmem:[%s264 + $0x220] sm:$0xff]
    %v6818 = vld [vmem:[%s264 + $0x228] sm:$0xff]
    %v6819 = vld [vmem:[%s264 + $0x230] sm:$0xff]
    %v6820 = vld [vmem:[%s264 + $0x238] sm:$0xff]
    %v6821 = vld [vmem:[%s264 + $0x240] sm:$0xff]
    %v6822 = vld [vmem:[%s264 + $0x248] sm:$0xff]
    %v6823 = vld [vmem:[%s264 + $0x250] sm:$0xff]
    %v6824 = vld [vmem:[%s264 + $0x258] sm:$0xff]
    %v6825 = vld [vmem:[%s264 + $0x260] sm:$0xff]
    %v6826 = vld [vmem:[%s264 + $0x268] sm:$0xff]
    %v6827 = vld [vmem:[%s264 + $0x270] sm:$0xff]
    %v6828 = vld [vmem:[%s264 + $0x278] sm:$0xff]
    %v6829 = vld [vmem:[%s264 + $0x280] sm:$0xff]
    %v6830 = vld [vmem:[%s264 + $0x288] sm:$0xff]
    %v6831 = vld [vmem:[%s264 + $0x290] sm:$0xff]
    %v6832 = vld [vmem:[%s264 + $0x298] sm:$0xff]
    %v6833 = vld [vmem:[%s264 + $0x2a0] sm:$0xff]
    %v6834 = vld [vmem:[%s264 + $0x2a8] sm:$0xff]
    %v6835 = vld [vmem:[%s264 + $0x2b0] sm:$0xff]
    %v6836 = vld [vmem:[%s264 + $0x2b8] sm:$0xff]
    %v6837 = vld [vmem:[%s264 + $0x2c0] sm:$0xff]
    %v6838 = vld [vmem:[%s264 + $0x2c8] sm:$0xff]
    %v6839 = vld [vmem:[%s264 + $0x2d0] sm:$0xff]
    %v6840 = vld [vmem:[%s264 + $0x2d8] sm:$0xff]
    %v6841 = vld [vmem:[%s264 + $0x2e0] sm:$0xff]
    %v6842 = vld [vmem:[%s264 + $0x2e8] sm:$0xff]
    %v6843 = vld [vmem:[%s264 + $0x2f0] sm:$0xff]
    %v6844 = vld [vmem:[%s264 + $0x2f8] sm:$0xff]
    %v6845 = vld [vmem:[%s264 + $0x300] sm:$0xff]
    %v6846 = vld [vmem:[%s264 + $0x308] sm:$0xff]
    %v6847 = vld [vmem:[%s264 + $0x310] sm:$0xff]
    %v6848 = vld [vmem:[%s264 + $0x318] sm:$0xff]
    %v6849 = vld [vmem:[%s264 + $0x320] sm:$0xff]
    %v6850 = vld [vmem:[%s264 + $0x328] sm:$0xff]
    %v6851 = vld [vmem:[%s264 + $0x330] sm:$0xff]
    %v6852 = vld [vmem:[%s264 + $0x338] sm:$0xff]
    %v6853 = vld [vmem:[%s264 + $0x340] sm:$0xff]
    %v6854 = vld [vmem:[%s264 + $0x348] sm:$0xff]
    %v6855 = vld [vmem:[%s264 + $0x350] sm:$0xff]
    %v6856 = vld [vmem:[%s264 + $0x358] sm:$0xff]
    %v6857 = vld [vmem:[%s264 + $0x360] sm:$0xff]
    %v6858 = vld [vmem:[%s264 + $0x368] sm:$0xff]
    %v6859 = vld [vmem:[%s264 + $0x370] sm:$0xff]
    %v6860 = vld [vmem:[%s264 + $0x378] sm:$0xff]
    %v6861 = vld [vmem:[%s264 + $0x380] sm:$0xff]
    %v6862 = vld [vmem:[%s264 + $0x388] sm:$0xff]
    %v6863 = vld [vmem:[%s264 + $0x390] sm:$0xff]
    %v6864 = vld [vmem:[%s264 + $0x398] sm:$0xff]
    %v6865 = vld [vmem:[%s264 + $0x3a0] sm:$0xff]
    %v6866 = vld [vmem:[%s264 + $0x3a8] sm:$0xff]
    %v6867 = vld [vmem:[%s264 + $0x3b0] sm:$0xff]
    %v6868 = vld [vmem:[%s264 + $0x3b8] sm:$0xff]
    %v6869 = vld [vmem:[%s264 + $0x3c0] sm:$0xff]
    %v6870 = vld [vmem:[%s264 + $0x3c8] sm:$0xff]
    %v6871 = vld [vmem:[%s264 + $0x3d0] sm:$0xff]
    %v6872 = vld [vmem:[%s264 + $0x3d8] sm:$0xff]
    %v6873 = vld [vmem:[%s264 + $0x3e0] sm:$0xff]
    %v6874 = vld [vmem:[%s264 + $0x3e8] sm:$0xff]
    %v6875 = vld [vmem:[%s264 + $0x3f0] sm:$0xff]
    %v6876 = vld [vmem:[%s264 + $0x3f8] sm:$0xff]
    %v6877 = vld [vmem:[%s264 + $0x400] sm:$0xff]
    %v6878 = vld [vmem:[%s264 + $0x408] sm:$0xff]
    %v6879 = vld [vmem:[%s264 + $0x410] sm:$0xff]
    %v6880 = vld [vmem:[%s264 + $0x418] sm:$0xff]
    %v6881 = vld [vmem:[%s264 + $0x420] sm:$0xff]
    %v6882 = vld [vmem:[%s264 + $0x428] sm:$0xff]
    %v6883 = vld [vmem:[%s264 + $0x430] sm:$0xff]
    %v6884 = vld [vmem:[%s264 + $0x438] sm:$0xff]
    %v6885 = vld [vmem:[%s264 + $0x440] sm:$0xff]
    %v6886 = vld [vmem:[%s264 + $0x448] sm:$0xff]
    %v6887 = vld [vmem:[%s264 + $0x450] sm:$0xff]
    %v6888 = vld [vmem:[%s264 + $0x458] sm:$0xff]
    %v6889 = vld [vmem:[%s264 + $0x460] sm:$0xff]
    %v6890 = vld [vmem:[%s264 + $0x468] sm:$0xff]
    %v6891 = vld [vmem:[%s264 + $0x470] sm:$0xff]
    %v6892 = vld [vmem:[%s264 + $0x478] sm:$0xff]
    %vm6893 = vsmask.f32 5376
    %v6894 = vrot.slane %v4430, 2
    %v6895 = vrot.slane %v4432, 3
    %v6896 = vor.u32 %v6894, %v6895
    %v6897 = vrot.slane %v5837, 2
    %v6898 = vrot.slane %v4437, 3
    %v6899 = vor.u32 %v6897, %v6898
    %v6900 = vsel %vm6893, %v6896, %v6899
    %v6901 = vrot.slane %v4442, 2
    %v6902 = vrot.slane %v4444, 3
    %v6903 = vor.u32 %v6901, %v6902
    %v6904 = vrot.slane %v5846, 2
    %v6905 = vrot.slane %v4449, 3
    %v6906 = vor.u32 %v6904, %v6905
    %v6907 = vsel %vm6893, %v6903, %v6906
    %v6908 = vrot.slane %v4454, 2
    %v6909 = vrot.slane %v4456, 3
    %v6910 = vor.u32 %v6908, %v6909
    %v6911 = vrot.slane %v5855, 2
    %v6912 = vrot.slane %v4461, 3
    %v6913 = vor.u32 %v6911, %v6912
    %v6914 = vsel %vm6893, %v6910, %v6913
    %v6918 = vsel %vm4467, %v6914, 0
    %6920 = vmatprep.subr.bf16.mxu0 %v6750
    %6921 = vmatpush1.bf16.msra.mxu0 %v6749
    %6922 = vmatprep.subr.bf16.mxu0 %v6758
    %6923 = vmatpush1.bf16.msra.mxu0 %v6757
    %6924 = vmatprep.subr.bf16.mxu0 %v6766
    %6925 = vmatpush1.bf16.msra.mxu0 %v6765
    %6926 = vmatprep.subr.bf16.mxu0 %v6774
    %6927 = vmatpush1.bf16.msra.mxu0 %v6773
    %6928 = vmatprep.subr.bf16.mxu0 %v6782
    %6929 = vmatpush1.bf16.msra.mxu0 %v6781
    %6930 = vmatprep.subr.bf16.mxu0 %v6790
    %6931 = vmatpush1.bf16.msra.mxu0 %v6789
    %6932 = vmatprep.subr.bf16.mxu0 %v6798
    %6933 = vmatpush1.bf16.msra.mxu0 %v6797
    %6934 = vmatprep.subr.bf16.mxu0 %v6806
    %6935 = vmatpush1.bf16.msra.mxu0 %v6805
    %6936 = vmatprep.subr.bf16.mxu0 %v6814
    %6937 = vmatpush1.bf16.msra.mxu0 %v6813
    %6938 = vmatprep.subr.bf16.mxu0 %v6822
    %6939 = vmatpush1.bf16.msra.mxu0 %v6821
    %6940 = vmatprep.subr.bf16.mxu0 %v6830
    %6941 = vmatpush1.bf16.msra.mxu0 %v6829
    %6942 = vmatprep.subr.bf16.mxu0 %v6838
    %6943 = vmatpush1.bf16.msra.mxu0 %v6837
    %6944 = vmatprep.subr.bf16.mxu0 %v6846
    %6945 = vmatpush1.bf16.msra.mxu0 %v6845
    %6946 = vmatprep.subr.bf16.mxu0 %v6854
    %6947 = vmatpush1.bf16.msra.mxu0 %v6853
    %6948 = vmatprep.subr.bf16.mxu0 %v6862
    %6949 = vmatpush1.bf16.msra.mxu0 %v6861
    %6950 = vmatprep.subr.bf16.mxu0 %v6870
    %6951 = vmatpush1.bf16.msra.mxu0 %v6869
    %6952 = vmatprep.mubr.bf16.mxu0 %v6907
    %6953 = vmatmul.mubr.bf16.gmra.mrb[0].mxu0 %v6900
    %v6954 = vpop.f32.mrb[0].mxu0
    %v6955 = vadd.f32 0.0, %v6954
    %v6956 = vpop.f32.mrb[0].mxu0
    %v6957 = vadd.f32 0.0, %v6956
    %v6958 = vpop.f32.mrb[0].mxu0
    %v6959 = vadd.f32 0.0, %v6958
    %v6960 = vpop.f32.mrb[0].mxu0
    %v6961 = vadd.f32 0.0, %v6960
    %6962 = vdwg.mxu0
    %6963 = vmatprep.subr.bf16.mxu0 %v6878
    %6964 = vmatpush1.bf16.msra.mxu0 %v6877
    %6965 = vmatprep.subr.bf16.mxu0 %v6886
    %6966 = vmatpush1.bf16.msra.mxu0 %v6885
    %6967 = vmatprep.subr.bf16.mxu0 0
    %6968 = vmatpush1.bf16.msra.mxu0 0
    %6969 = vmatprep.subr.bf16.mxu0 0
    %6970 = vmatpush1.bf16.msra.mxu0 0
    %6971 = vmatprep.subr.bf16.mxu0 0
    %6972 = vmatpush1.bf16.msra.mxu0 0
    %6973 = vmatprep.subr.bf16.mxu0 0
    %6974 = vmatpush1.bf16.msra.mxu0 0
    %6975 = vmatprep.subr.bf16.mxu0 0
    %6976 = vmatpush1.bf16.msra.mxu0 0
    %6977 = vmatprep.subr.bf16.mxu0 0
    %6978 = vmatpush1.bf16.msra.mxu0 0
    %6979 = vmatprep.subr.bf16.mxu0 0
    %6980 = vmatpush1.bf16.msra.mxu0 0
    %6981 = vmatprep.subr.bf16.mxu0 0
    %6982 = vmatpush1.bf16.msra.mxu0 0
    %6983 = vmatprep.subr.bf16.mxu0 0
    %6984 = vmatpush1.bf16.msra.mxu0 0
    %6985 = vmatprep.subr.bf16.mxu0 0
    %6986 = vmatpush1.bf16.msra.mxu0 0
    %6987 = vmatprep.subr.bf16.mxu0 0
    %6988 = vmatpush1.bf16.msra.mxu0 0
    %6989 = vmatprep.subr.bf16.mxu0 0
    %6990 = vmatpush1.bf16.msra.mxu0 0
    %6991 = vmatprep.subr.bf16.mxu0 0
    %6992 = vmatpush1.bf16.msra.mxu0 0
    %6993 = vmatprep.subr.bf16.mxu0 0
    %6994 = vmatpush1.bf16.msra.mxu0 0
    %6995 = vmatprep.mubr.bf16.mxu0 0
    %6996 = vmatmul.mubr.bf16.gmra.mrb[0].mxu0 %v6918
    %v6997 = vpop.f32.mrb[0].mxu0
    %v6998 = vadd.f32 %v6955, %v6997
    %v6999 = vpop.f32.mrb[0].mxu0
    %v7000 = vadd.f32 %v6957, %v6999
    %v7001 = vpop.f32.mrb[0].mxu0
    %v7002 = vadd.f32 %v6959, %v7001
    %v7003 = vpop.f32.mrb[0].mxu0
    %v7004 = vadd.f32 %v6961, %v7003
    %7005 = vdwg.mxu0
    %7006 = vmatprep.subr.bf16.mxu0 %v6752
    %7007 = vmatpush1.bf16.msra.mxu0 %v6751
    %7008 = vmatprep.subr.bf16.mxu0 %v6760
    %7009 = vmatpush1.bf16.msra.mxu0 %v6759
    %7010 = vmatprep.subr.bf16.mxu0 %v6768
    %7011 = vmatpush1.bf16.msra.mxu0 %v6767
    %7012 = vmatprep.subr.bf16.mxu0 %v6776
    %7013 = vmatpush1.bf16.msra.mxu0 %v6775
    %7014 = vmatprep.subr.bf16.mxu0 %v6784
    %7015 = vmatpush1.bf16.msra.mxu0 %v6783
    %7016 = vmatprep.subr.bf16.mxu0 %v6792
    %7017 = vmatpush1.bf16.msra.mxu0 %v6791
    %7018 = vmatprep.subr.bf16.mxu0 %v6800
    %7019 = vmatpush1.bf16.msra.mxu0 %v6799
    %7020 = vmatprep.subr.bf16.mxu0 %v6808
    %7021 = vmatpush1.bf16.msra.mxu0 %v6807
    %7022 = vmatprep.subr.bf16.mxu0 %v6816
    %7023 = vmatpush1.bf16.msra.mxu0 %v6815
    %7024 = vmatprep.subr.bf16.mxu0 %v6824
    %7025 = vmatpush1.bf16.msra.mxu0 %v6823
    %7026 = vmatprep.subr.bf16.mxu0 %v6832
    %7027 = vmatpush1.bf16.msra.mxu0 %v6831
    %7028 = vmatprep.subr.bf16.mxu0 %v6840
    %7029 = vmatpush1.bf16.msra.mxu0 %v6839
    %7030 = vmatprep.subr.bf16.mxu0 %v6848
    %7031 = vmatpush1.bf16.msra.mxu0 %v6847
    %7032 = vmatprep.subr.bf16.mxu0 %v6856
    %7033 = vmatpush1.bf16.msra.mxu0 %v6855
    %7034 = vmatprep.subr.bf16.mxu0 %v6864
    %7035 = vmatpush1.bf16.msra.mxu0 %v6863
    %7036 = vmatprep.subr.bf16.mxu0 %v6872
    %7037 = vmatpush1.bf16.msra.mxu0 %v6871
    %7038 = vmatprep.mubr.bf16.mxu0 %v6907
    %7039 = vmatmul.mubr.bf16.gmra.mrb[0].mxu0 %v6900
    %v7040 = vpop.f32.mrb[0].mxu0
    %v7041 = vadd.f32 0.0, %v7040
    %v7042 = vpop.f32.mrb[0].mxu0
    %v7043 = vadd.f32 0.0, %v7042
    %v7044 = vpop.f32.mrb[0].mxu0
    %v7045 = vadd.f32 0.0, %v7044
    %v7046 = vpop.f32.mrb[0].mxu0
    %v7047 = vadd.f32 0.0, %v7046
    %7048 = vdwg.mxu0
    %7049 = vmatprep.subr.bf16.mxu0 %v6880
    %7050 = vmatpush1.bf16.msra.mxu0 %v6879
    %7051 = vmatprep.subr.bf16.mxu0 %v6888
    %7052 = vmatpush1.bf16.msra.mxu0 %v6887
    %7053 = vmatprep.subr.bf16.mxu0 0
    %7054 = vmatpush1.bf16.msra.mxu0 0
    %7055 = vmatprep.subr.bf16.mxu0 0
    %7056 = vmatpush1.bf16.msra.mxu0 0
    %7057 = vmatprep.subr.bf16.mxu0 0
    %7058 = vmatpush1.bf16.msra.mxu0 0
    %7059 = vmatprep.subr.bf16.mxu0 0
    %7060 = vmatpush1.bf16.msra.mxu0 0
    %7061 = vmatprep.subr.bf16.mxu0 0
    %7062 = vmatpush1.bf16.msra.mxu0 0
    %7063 = vmatprep.subr.bf16.mxu0 0
    %7064 = vmatpush1.bf16.msra.mxu0 0
    %7065 = vmatprep.subr.bf16.mxu0 0
    %7066 = vmatpush1.bf16.msra.mxu0 0
    %7067 = vmatprep.subr.bf16.mxu0 0
    %7068 = vmatpush1.bf16.msra.mxu0 0
    %7069 = vmatprep.subr.bf16.mxu0 0
    %7070 = vmatpush1.bf16.msra.mxu0 0
    %7071 = vmatprep.subr.bf16.mxu0 0
    %7072 = vmatpush1.bf16.msra.mxu0 0
    %7073 = vmatprep.subr.bf16.mxu0 0
    %7074 = vmatpush1.bf16.msra.mxu0 0
    %7075 = vmatprep.subr.bf16.mxu0 0
    %7076 = vmatpush1.bf16.msra.mxu0 0
    %7077 = vmatprep.subr.bf16.mxu0 0
    %7078 = vmatpush1.bf16.msra.mxu0 0
    %7079 = vmatprep.subr.bf16.mxu0 0
    %7080 = vmatpush1.bf16.msra.mxu0 0
    %7081 = vmatprep.mubr.bf16.mxu0 0
    %7082 = vmatmul.mubr.bf16.gmra.mrb[0].mxu0 %v6918
    %v7083 = vpop.f32.mrb[0].mxu0
    %v7084 = vadd.f32 %v7041, %v7083
    %v7085 = vpop.f32.mrb[0].mxu0
    %v7086 = vadd.f32 %v7043, %v7085
    %v7087 = vpop.f32.mrb[0].mxu0
    %v7088 = vadd.f32 %v7045, %v7087
    %v7089 = vpop.f32.mrb[0].mxu0
    %v7090 = vadd.f32 %v7047, %v7089
    %7091 = vdwg.mxu0
    %7092 = vmatprep.subr.bf16.mxu0 %v6754
    %7093 = vmatpush1.bf16.msra.mxu0 %v6753
    %7094 = vmatprep.subr.bf16.mxu0 %v6762
    %7095 = vmatpush1.bf16.msra.mxu0 %v6761
    %7096 = vmatprep.subr.bf16.mxu0 %v6770
    %7097 = vmatpush1.bf16.msra.mxu0 %v6769
    %7098 = vmatprep.subr.bf16.mxu0 %v6778
    %7099 = vmatpush1.bf16.msra.mxu0 %v6777
    %7100 = vmatprep.subr.bf16.mxu0 %v6786
    %7101 = vmatpush1.bf16.msra.mxu0 %v6785
    %7102 = vmatprep.subr.bf16.mxu0 %v6794
    %7103 = vmatpush1.bf16.msra.mxu0 %v6793
    %7104 = vmatprep.subr.bf16.mxu0 %v6802
    %7105 = vmatpush1.bf16.msra.mxu0 %v6801
    %7106 = vmatprep.subr.bf16.mxu0 %v6810
    %7107 = vmatpush1.bf16.msra.mxu0 %v6809
    %7108 = vmatprep.subr.bf16.mxu0 %v6818
    %7109 = vmatpush1.bf16.msra.mxu0 %v6817
    %7110 = vmatprep.subr.bf16.mxu0 %v6826
    %7111 = vmatpush1.bf16.msra.mxu0 %v6825
    %7112 = vmatprep.subr.bf16.mxu0 %v6834
    %7113 = vmatpush1.bf16.msra.mxu0 %v6833
    %7114 = vmatprep.subr.bf16.mxu0 %v6842
    %7115 = vmatpush1.bf16.msra.mxu0 %v6841
    %7116 = vmatprep.subr.bf16.mxu0 %v6850
    %7117 = vmatpush1.bf16.msra.mxu0 %v6849
    %7118 = vmatprep.subr.bf16.mxu0 %v6858
    %7119 = vmatpush1.bf16.msra.mxu0 %v6857
    %7120 = vmatprep.subr.bf16.mxu0 %v6866
    %7121 = vmatpush1.bf16.msra.mxu0 %v6865
    %7122 = vmatprep.subr.bf16.mxu0 %v6874
    %7123 = vmatpush1.bf16.msra.mxu0 %v6873
    %7124 = vmatprep.mubr.bf16.mxu0 %v6907
    %7125 = vmatmul.mubr.bf16.gmra.mrb[0].mxu0 %v6900
    %v7126 = vpop.f32.mrb[0].mxu0
    %v7127 = vadd.f32 0.0, %v7126
    %v7128 = vpop.f32.mrb[0].mxu0
    %v7129 = vadd.f32 0.0, %v7128
    %v7130 = vpop.f32.mrb[0].mxu0
    %v7131 = vadd.f32 0.0, %v7130
    %v7132 = vpop.f32.mrb[0].mxu0
    %v7133 = vadd.f32 0.0, %v7132
    %7134 = vdwg.mxu0
    %7135 = vmatprep.subr.bf16.mxu0 %v6882
    %7136 = vmatpush1.bf16.msra.mxu0 %v6881
    %7137 = vmatprep.subr.bf16.mxu0 %v6890
    %7138 = vmatpush1.bf16.msra.mxu0 %v6889
    %7139 = vmatprep.subr.bf16.mxu0 0
    %7140 = vmatpush1.bf16.msra.mxu0 0
    %7141 = vmatprep.subr.bf16.mxu0 0
    %7142 = vmatpush1.bf16.msra.mxu0 0
    %7143 = vmatprep.subr.bf16.mxu0 0
    %7144 = vmatpush1.bf16.msra.mxu0 0
    %7145 = vmatprep.subr.bf16.mxu0 0
    %7146 = vmatpush1.bf16.msra.mxu0 0
    %7147 = vmatprep.subr.bf16.mxu0 0
    %7148 = vmatpush1.bf16.msra.mxu0 0
    %7149 = vmatprep.subr.bf16.mxu0 0
    %7150 = vmatpush1.bf16.msra.mxu0 0
    %7151 = vmatprep.subr.bf16.mxu0 0
    %7152 = vmatpush1.bf16.msra.mxu0 0
    %7153 = vmatprep.subr.bf16.mxu0 0
    %7154 = vmatpush1.bf16.msra.mxu0 0
    %7155 = vmatprep.subr.bf16.mxu0 0
    %7156 = vmatpush1.bf16.msra.mxu0 0
    %7157 = vmatprep.subr.bf16.mxu0 0
    %7158 = vmatpush1.bf16.msra.mxu0 0
    %7159 = vmatprep.subr.bf16.mxu0 0
    %7160 = vmatpush1.bf16.msra.mxu0 0
    %7161 = vmatprep.subr.bf16.mxu0 0
    %7162 = vmatpush1.bf16.msra.mxu0 0
    %7163 = vmatprep.subr.bf16.mxu0 0
    %7164 = vmatpush1.bf16.msra.mxu0 0
    %7165 = vmatprep.subr.bf16.mxu0 0
    %7166 = vmatpush1.bf16.msra.mxu0 0
    %7167 = vmatprep.mubr.bf16.mxu0 0
    %7168 = vmatmul.mubr.bf16.gmra.mrb[0].mxu0 %v6918
    %v7169 = vpop.f32.mrb[0].mxu0
    %v7170 = vadd.f32 %v7127, %v7169
    %v7171 = vpop.f32.mrb[0].mxu0
    %v7172 = vadd.f32 %v7129, %v7171
    %v7173 = vpop.f32.mrb[0].mxu0
    %v7174 = vadd.f32 %v7131, %v7173
    %v7175 = vpop.f32.mrb[0].mxu0
    %v7176 = vadd.f32 %v7133, %v7175
    %7177 = vdwg.mxu0
    %7178 = vmatprep.subr.bf16.mxu0 %v6756
    %7179 = vmatpush1.bf16.msra.mxu0 %v6755
    %7180 = vmatprep.subr.bf16.mxu0 %v6764
    %7181 = vmatpush1.bf16.msra.mxu0 %v6763
    %7182 = vmatprep.subr.bf16.mxu0 %v6772
    %7183 = vmatpush1.bf16.msra.mxu0 %v6771
    %7184 = vmatprep.subr.bf16.mxu0 %v6780
    %7185 = vmatpush1.bf16.msra.mxu0 %v6779
    %7186 = vmatprep.subr.bf16.mxu0 %v6788
    %7187 = vmatpush1.bf16.msra.mxu0 %v6787
    %7188 = vmatprep.subr.bf16.mxu0 %v6796
    %7189 = vmatpush1.bf16.msra.mxu0 %v6795
    %7190 = vmatprep.subr.bf16.mxu0 %v6804
    %7191 = vmatpush1.bf16.msra.mxu0 %v6803
    %7192 = vmatprep.subr.bf16.mxu0 %v6812
    %7193 = vmatpush1.bf16.msra.mxu0 %v6811
    %7194 = vmatprep.subr.bf16.mxu0 %v6820
    %7195 = vmatpush1.bf16.msra.mxu0 %v6819
    %7196 = vmatprep.subr.bf16.mxu0 %v6828
    %7197 = vmatpush1.bf16.msra.mxu0 %v6827
    %7198 = vmatprep.subr.bf16.mxu0 %v6836
    %7199 = vmatpush1.bf16.msra.mxu0 %v6835
    %7200 = vmatprep.subr.bf16.mxu0 %v6844
    %7201 = vmatpush1.bf16.msra.mxu0 %v6843
    %7202 = vmatprep.subr.bf16.mxu0 %v6852
    %7203 = vmatpush1.bf16.msra.mxu0 %v6851
    %7204 = vmatprep.subr.bf16.mxu0 %v6860
    %7205 = vmatpush1.bf16.msra.mxu0 %v6859
    %7206 = vmatprep.subr.bf16.mxu0 %v6868
    %7207 = vmatpush1.bf16.msra.mxu0 %v6867
    %7208 = vmatprep.subr.bf16.mxu0 %v6876
    %7209 = vmatpush1.bf16.msra.mxu0 %v6875
    %7210 = vmatprep.mubr.bf16.mxu0 %v6907
    %7211 = vmatmul.mubr.bf16.gmra.mrb[0].mxu0 %v6900
    %v7212 = vpop.f32.mrb[0].mxu0
    %v7213 = vadd.f32 0.0, %v7212
    %v7214 = vpop.f32.mrb[0].mxu0
    %v7215 = vadd.f32 0.0, %v7214
    %v7216 = vpop.f32.mrb[0].mxu0
    %v7217 = vadd.f32 0.0, %v7216
    %v7218 = vpop.f32.mrb[0].mxu0
    %v7219 = vadd.f32 0.0, %v7218
    %7220 = vdwg.mxu0
    %7221 = vmatprep.subr.bf16.mxu0 %v6884
    %7222 = vmatpush1.bf16.msra.mxu0 %v6883
    %7223 = vmatprep.subr.bf16.mxu0 %v6892
    %7224 = vmatpush1.bf16.msra.mxu0 %v6891
    %7225 = vmatprep.subr.bf16.mxu0 0
    %7226 = vmatpush1.bf16.msra.mxu0 0
    %7227 = vmatprep.subr.bf16.mxu0 0
    %7228 = vmatpush1.bf16.msra.mxu0 0
    %7229 = vmatprep.subr.bf16.mxu0 0
    %7230 = vmatpush1.bf16.msra.mxu0 0
    %7231 = vmatprep.subr.bf16.mxu0 0
    %7232 = vmatpush1.bf16.msra.mxu0 0
    %7233 = vmatprep.subr.bf16.mxu0 0
    %7234 = vmatpush1.bf16.msra.mxu0 0
    %7235 = vmatprep.subr.bf16.mxu0 0
    %7236 = vmatpush1.bf16.msra.mxu0 0
    %7237 = vmatprep.subr.bf16.mxu0 0
    %7238 = vmatpush1.bf16.msra.mxu0 0
    %7239 = vmatprep.subr.bf16.mxu0 0
    %7240 = vmatpush1.bf16.msra.mxu0 0
    %7241 = vmatprep.subr.bf16.mxu0 0
    %7242 = vmatpush1.bf16.msra.mxu0 0
    %7243 = vmatprep.subr.bf16.mxu0 0
    %7244 = vmatpush1.bf16.msra.mxu0 0
    %7245 = vmatprep.subr.bf16.mxu0 0
    %7246 = vmatpush1.bf16.msra.mxu0 0
    %7247 = vmatprep.subr.bf16.mxu0 0
    %7248 = vmatpush1.bf16.msra.mxu0 0
    %7249 = vmatprep.subr.bf16.mxu0 0
    %7250 = vmatpush1.bf16.msra.mxu0 0
    %7251 = vmatprep.subr.bf16.mxu0 0
    %7252 = vmatpush1.bf16.msra.mxu0 0
    %7253 = vmatprep.mubr.bf16.mxu0 0
    %7254 = vmatmul.mubr.bf16.gmra.mrb[0].mxu0 %v6918
    %v7255 = vpop.f32.mrb[0].mxu0
    %v7256 = vadd.f32 %v7213, %v7255
    %v7257 = vpop.f32.mrb[0].mxu0
    %v7258 = vadd.f32 %v7215, %v7257
    %v7259 = vpop.f32.mrb[0].mxu0
    %v7260 = vadd.f32 %v7217, %v7259
    %v7261 = vpop.f32.mrb[0].mxu0
    %v7262 = vadd.f32 %v7219, %v7261
    %7263 = vdwg.mxu0
    %v7264 = vadd.f32 %v6731, %v6998
    %v7265 = vadd.f32 %v6732, %v7000
    %v7266 = vadd.f32 %v6733, %v7084
    %v7267 = vadd.f32 %v6734, %v7086
    %v7268 = vadd.f32 %v6735, %v7170
    %v7269 = vadd.f32 %v6736, %v7172
    %v7270 = vadd.f32 %v6737, %v7256
    %v7271 = vadd.f32 %v6738, %v7258
    %v7272 = vadd.f32 %v6739, %v7002
    %v7273 = vadd.f32 %v6740, %v7004
    %v7274 = vadd.f32 %v6741, %v7088
    %v7275 = vadd.f32 %v6742, %v7090
    %v7276 = vadd.f32 %v6743, %v7174
    %v7277 = vadd.f32 %v6744, %v7176
    %v7278 = vadd.f32 %v6745, %v7260
    %v7279 = vadd.f32 %v6746, %v7262
    %s7280 = sshll.u32 %s4136, 4
    %7281 = dma.done %s302, %s7280
    %v7282 = vld [vmem:[%s301] sm:$0xff]
    %v7283 = vld [vmem:[%s301 + $0x8] sm:$0xff]
    %v7284 = vld [vmem:[%s301 + $0x10] sm:$0xff]
    %v7285 = vld [vmem:[%s301 + $0x18] sm:$0xff]
    %v7286 = vld [vmem:[%s301 + $0x20] sm:$0xff]
    %v7287 = vld [vmem:[%s301 + $0x28] sm:$0xff]
    %v7288 = vld [vmem:[%s301 + $0x30] sm:$0xff]
    %v7289 = vld [vmem:[%s301 + $0x38] sm:$0xff]
    %v7290 = vld [vmem:[%s301 + $0x40] sm:$0xff]
    %v7291 = vld [vmem:[%s301 + $0x48] sm:$0xff]
    %v7292 = vld [vmem:[%s301 + $0x50] sm:$0xff]
    %v7293 = vld [vmem:[%s301 + $0x58] sm:$0xff]
    %v7294 = vld [vmem:[%s301 + $0x60] sm:$0xff]
    %v7295 = vld [vmem:[%s301 + $0x68] sm:$0xff]
    %v7296 = vld [vmem:[%s301 + $0x70] sm:$0xff]
    %v7297 = vld [vmem:[%s301 + $0x78] sm:$0xff]
    %v7298 = vld [vmem:[%s301 + $0x80] sm:$0xff]
    %v7299 = vld [vmem:[%s301 + $0x88] sm:$0xff]
    %v7300 = vld [vmem:[%s301 + $0x90] sm:$0xff]
    %v7301 = vld [vmem:[%s301 + $0x98] sm:$0xff]
    %v7302 = vld [vmem:[%s301 + $0xa0] sm:$0xff]
    %v7303 = vld [vmem:[%s301 + $0xa8] sm:$0xff]
    %v7304 = vld [vmem:[%s301 + $0xb0] sm:$0xff]
    %v7305 = vld [vmem:[%s301 + $0xb8] sm:$0xff]
    %v7306 = vld [vmem:[%s301 + $0xc0] sm:$0xff]
    %v7307 = vld [vmem:[%s301 + $0xc8] sm:$0xff]
    %v7308 = vld [vmem:[%s301 + $0xd0] sm:$0xff]
    %v7309 = vld [vmem:[%s301 + $0xd8] sm:$0xff]
    %v7310 = vld [vmem:[%s301 + $0xe0] sm:$0xff]
    %v7311 = vld [vmem:[%s301 + $0xe8] sm:$0xff]
    %v7312 = vld [vmem:[%s301 + $0xf0] sm:$0xff]
    %v7313 = vld [vmem:[%s301 + $0xf8] sm:$0xff]
    %v7314 = vld [vmem:[%s301 + $0x100] sm:$0xff]
    %v7315 = vld [vmem:[%s301 + $0x108] sm:$0xff]
    %v7316 = vld [vmem:[%s301 + $0x110] sm:$0xff]
    %v7317 = vld [vmem:[%s301 + $0x118] sm:$0xff]
    %v7318 = vld [vmem:[%s301 + $0x120] sm:$0xff]
    %v7319 = vld [vmem:[%s301 + $0x128] sm:$0xff]
    %v7320 = vld [vmem:[%s301 + $0x130] sm:$0xff]
    %v7321 = vld [vmem:[%s301 + $0x138] sm:$0xff]
    %v7322 = vld [vmem:[%s301 + $0x140] sm:$0xff]
    %v7323 = vld [vmem:[%s301 + $0x148] sm:$0xff]
    %v7324 = vld [vmem:[%s301 + $0x150] sm:$0xff]
    %v7325 = vld [vmem:[%s301 + $0x158] sm:$0xff]
    %v7326 = vld [vmem:[%s301 + $0x160] sm:$0xff]
    %v7327 = vld [vmem:[%s301 + $0x168] sm:$0xff]
    %v7328 = vld [vmem:[%s301 + $0x170] sm:$0xff]
    %v7329 = vld [vmem:[%s301 + $0x178] sm:$0xff]
    %v7330 = vld [vmem:[%s301 + $0x180] sm:$0xff]
    %v7331 = vld [vmem:[%s301 + $0x188] sm:$0xff]
    %v7332 = vld [vmem:[%s301 + $0x190] sm:$0xff]
    %v7333 = vld [vmem:[%s301 + $0x198] sm:$0xff]
    %v7334 = vld [vmem:[%s301 + $0x1a0] sm:$0xff]
    %v7335 = vld [vmem:[%s301 + $0x1a8] sm:$0xff]
    %v7336 = vld [vmem:[%s301 + $0x1b0] sm:$0xff]
    %v7337 = vld [vmem:[%s301 + $0x1b8] sm:$0xff]
    %v7338 = vld [vmem:[%s301 + $0x1c0] sm:$0xff]
    %v7339 = vld [vmem:[%s301 + $0x1c8] sm:$0xff]
    %v7340 = vld [vmem:[%s301 + $0x1d0] sm:$0xff]
    %v7341 = vld [vmem:[%s301 + $0x1d8] sm:$0xff]
    %v7342 = vld [vmem:[%s301 + $0x1e0] sm:$0xff]
    %v7343 = vld [vmem:[%s301 + $0x1e8] sm:$0xff]
    %v7344 = vld [vmem:[%s301 + $0x1f0] sm:$0xff]
    %v7345 = vld [vmem:[%s301 + $0x1f8] sm:$0xff]
    %v7346 = vld [vmem:[%s301 + $0x200] sm:$0xff]
    %v7347 = vld [vmem:[%s301 + $0x208] sm:$0xff]
    %v7348 = vld [vmem:[%s301 + $0x210] sm:$0xff]
    %v7349 = vld [vmem:[%s301 + $0x218] sm:$0xff]
    %v7350 = vld [vmem:[%s301 + $0x220] sm:$0xff]
    %v7351 = vld [vmem:[%s301 + $0x228] sm:$0xff]
    %v7352 = vld [vmem:[%s301 + $0x230] sm:$0xff]
    %v7353 = vld [vmem:[%s301 + $0x238] sm:$0xff]
    %v7354 = vld [vmem:[%s301 + $0x240] sm:$0xff]
    %v7355 = vld [vmem:[%s301 + $0x248] sm:$0xff]
    %v7356 = vld [vmem:[%s301 + $0x250] sm:$0xff]
    %v7357 = vld [vmem:[%s301 + $0x258] sm:$0xff]
    %v7358 = vld [vmem:[%s301 + $0x260] sm:$0xff]
    %v7359 = vld [vmem:[%s301 + $0x268] sm:$0xff]
    %v7360 = vld [vmem:[%s301 + $0x270] sm:$0xff]
    %v7361 = vld [vmem:[%s301 + $0x278] sm:$0xff]
    %v7362 = vld [vmem:[%s301 + $0x280] sm:$0xff]
    %v7363 = vld [vmem:[%s301 + $0x288] sm:$0xff]
    %v7364 = vld [vmem:[%s301 + $0x290] sm:$0xff]
    %v7365 = vld [vmem:[%s301 + $0x298] sm:$0xff]
    %v7366 = vld [vmem:[%s301 + $0x2a0] sm:$0xff]
    %v7367 = vld [vmem:[%s301 + $0x2a8] sm:$0xff]
    %v7368 = vld [vmem:[%s301 + $0x2b0] sm:$0xff]
    %v7369 = vld [vmem:[%s301 + $0x2b8] sm:$0xff]
    %v7370 = vld [vmem:[%s301 + $0x2c0] sm:$0xff]
    %v7371 = vld [vmem:[%s301 + $0x2c8] sm:$0xff]
    %v7372 = vld [vmem:[%s301 + $0x2d0] sm:$0xff]
    %v7373 = vld [vmem:[%s301 + $0x2d8] sm:$0xff]
    %v7374 = vld [vmem:[%s301 + $0x2e0] sm:$0xff]
    %v7375 = vld [vmem:[%s301 + $0x2e8] sm:$0xff]
    %v7376 = vld [vmem:[%s301 + $0x2f0] sm:$0xff]
    %v7377 = vld [vmem:[%s301 + $0x2f8] sm:$0xff]
    %v7378 = vld [vmem:[%s301 + $0x300] sm:$0xff]
    %v7379 = vld [vmem:[%s301 + $0x308] sm:$0xff]
    %v7380 = vld [vmem:[%s301 + $0x310] sm:$0xff]
    %v7381 = vld [vmem:[%s301 + $0x318] sm:$0xff]
    %v7382 = vld [vmem:[%s301 + $0x320] sm:$0xff]
    %v7383 = vld [vmem:[%s301 + $0x328] sm:$0xff]
    %v7384 = vld [vmem:[%s301 + $0x330] sm:$0xff]
    %v7385 = vld [vmem:[%s301 + $0x338] sm:$0xff]
    %v7386 = vld [vmem:[%s301 + $0x340] sm:$0xff]
    %v7387 = vld [vmem:[%s301 + $0x348] sm:$0xff]
    %v7388 = vld [vmem:[%s301 + $0x350] sm:$0xff]
    %v7389 = vld [vmem:[%s301 + $0x358] sm:$0xff]
    %v7390 = vld [vmem:[%s301 + $0x360] sm:$0xff]
    %v7391 = vld [vmem:[%s301 + $0x368] sm:$0xff]
    %v7392 = vld [vmem:[%s301 + $0x370] sm:$0xff]
    %v7393 = vld [vmem:[%s301 + $0x378] sm:$0xff]
    %v7394 = vld [vmem:[%s301 + $0x380] sm:$0xff]
    %v7395 = vld [vmem:[%s301 + $0x388] sm:$0xff]
    %v7396 = vld [vmem:[%s301 + $0x390] sm:$0xff]
    %v7397 = vld [vmem:[%s301 + $0x398] sm:$0xff]
    %v7398 = vld [vmem:[%s301 + $0x3a0] sm:$0xff]
    %v7399 = vld [vmem:[%s301 + $0x3a8] sm:$0xff]
    %v7400 = vld [vmem:[%s301 + $0x3b0] sm:$0xff]
    %v7401 = vld [vmem:[%s301 + $0x3b8] sm:$0xff]
    %v7402 = vld [vmem:[%s301 + $0x3c0] sm:$0xff]
    %v7403 = vld [vmem:[%s301 + $0x3c8] sm:$0xff]
    %v7404 = vld [vmem:[%s301 + $0x3d0] sm:$0xff]
    %v7405 = vld [vmem:[%s301 + $0x3d8] sm:$0xff]
    %v7406 = vld [vmem:[%s301 + $0x3e0] sm:$0xff]
    %v7407 = vld [vmem:[%s301 + $0x3e8] sm:$0xff]
    %v7408 = vld [vmem:[%s301 + $0x3f0] sm:$0xff]
    %v7409 = vld [vmem:[%s301 + $0x3f8] sm:$0xff]
    %v7410 = vld [vmem:[%s301 + $0x400] sm:$0xff]
    %v7411 = vld [vmem:[%s301 + $0x408] sm:$0xff]
    %v7412 = vld [vmem:[%s301 + $0x410] sm:$0xff]
    %v7413 = vld [vmem:[%s301 + $0x418] sm:$0xff]
    %v7414 = vld [vmem:[%s301 + $0x420] sm:$0xff]
    %v7415 = vld [vmem:[%s301 + $0x428] sm:$0xff]
    %v7416 = vld [vmem:[%s301 + $0x430] sm:$0xff]
    %v7417 = vld [vmem:[%s301 + $0x438] sm:$0xff]
    %v7418 = vld [vmem:[%s301 + $0x440] sm:$0xff]
    %v7419 = vld [vmem:[%s301 + $0x448] sm:$0xff]
    %v7420 = vld [vmem:[%s301 + $0x450] sm:$0xff]
    %v7421 = vld [vmem:[%s301 + $0x458] sm:$0xff]
    %v7422 = vld [vmem:[%s301 + $0x460] sm:$0xff]
    %v7423 = vld [vmem:[%s301 + $0x468] sm:$0xff]
    %v7424 = vld [vmem:[%s301 + $0x470] sm:$0xff]
    %v7425 = vld [vmem:[%s301 + $0x478] sm:$0xff]
    %vm7426 = vcmask 1044480
    %v7427 = vrot.slane %v4129, 3
    %v7428 = vrot.slane %v4132, 3
    %v7429 = vsel %vm7426, %v7427, %v7428
    %v7430 = vrot.slane %v4130, 3
    %v7431 = vrot.slane %v4133, 3
    %v7432 = vsel %vm7426, %v7430, %v7431
    %v7433 = vrot.slane %v4131, 3
    %v7434 = vrot.slane %v4134, 3
    %v7435 = vsel %vm7426, %v7433, %v7434
    %v7439 = vsel %vm4467, %v7435, 0
    %7441 = vmatprep.subr.bf16.mxu0 %v7283
    %7442 = vmatpush1.bf16.msra.mxu0 %v7282
    %7443 = vmatprep.subr.bf16.mxu0 %v7291
    %7444 = vmatpush1.bf16.msra.mxu0 %v7290
    %7445 = vmatprep.subr.bf16.mxu0 %v7299
    %7446 = vmatpush1.bf16.msra.mxu0 %v7298
    %7447 = vmatprep.subr.bf16.mxu0 %v7307
    %7448 = vmatpush1.bf16.msra.mxu0 %v7306
    %7449 = vmatprep.subr.bf16.mxu0 %v7315
    %7450 = vmatpush1.bf16.msra.mxu0 %v7314
    %7451 = vmatprep.subr.bf16.mxu0 %v7323
    %7452 = vmatpush1.bf16.msra.mxu0 %v7322
    %7453 = vmatprep.subr.bf16.mxu0 %v7331
    %7454 = vmatpush1.bf16.msra.mxu0 %v7330
    %7455 = vmatprep.subr.bf16.mxu0 %v7339
    %7456 = vmatpush1.bf16.msra.mxu0 %v7338
    %7457 = vmatprep.subr.bf16.mxu0 %v7347
    %7458 = vmatpush1.bf16.msra.mxu0 %v7346
    %7459 = vmatprep.subr.bf16.mxu0 %v7355
    %7460 = vmatpush1.bf16.msra.mxu0 %v7354
    %7461 = vmatprep.subr.bf16.mxu0 %v7363
    %7462 = vmatpush1.bf16.msra.mxu0 %v7362
    %7463 = vmatprep.subr.bf16.mxu0 %v7371
    %7464 = vmatpush1.bf16.msra.mxu0 %v7370
    %7465 = vmatprep.subr.bf16.mxu0 %v7379
    %7466 = vmatpush1.bf16.msra.mxu0 %v7378
    %7467 = vmatprep.subr.bf16.mxu0 %v7387
    %7468 = vmatpush1.bf16.msra.mxu0 %v7386
    %7469 = vmatprep.subr.bf16.mxu0 %v7395
    %7470 = vmatpush1.bf16.msra.mxu0 %v7394
    %7471 = vmatprep.subr.bf16.mxu0 %v7403
    %7472 = vmatpush1.bf16.msra.mxu0 %v7402
    %7473 = vmatprep.mubr.bf16.mxu0 %v7432
    %7474 = vmatmul.mubr.bf16.gmra.mrb[0].mxu0 %v7429
    %v7475 = vpop.f32.mrb[0].mxu0
    %v7476 = vadd.f32 0.0, %v7475
    %v7477 = vpop.f32.mrb[0].mxu0
    %v7478 = vadd.f32 0.0, %v7477
    %v7479 = vpop.f32.mrb[0].mxu0
    %v7480 = vadd.f32 0.0, %v7479
    %v7481 = vpop.f32.mrb[0].mxu0
    %v7482 = vadd.f32 0.0, %v7481
    %7483 = vdwg.mxu0
    %7484 = vmatprep.subr.bf16.mxu0 %v7411
    %7485 = vmatpush1.bf16.msra.mxu0 %v7410
    %7486 = vmatprep.subr.bf16.mxu0 %v7419
    %7487 = vmatpush1.bf16.msra.mxu0 %v7418
    %7488 = vmatprep.subr.bf16.mxu0 0
    %7489 = vmatpush1.bf16.msra.mxu0 0
    %7490 = vmatprep.subr.bf16.mxu0 0
    %7491 = vmatpush1.bf16.msra.mxu0 0
    %7492 = vmatprep.subr.bf16.mxu0 0
    %7493 = vmatpush1.bf16.msra.mxu0 0
    %7494 = vmatprep.subr.bf16.mxu0 0
    %7495 = vmatpush1.bf16.msra.mxu0 0
    %7496 = vmatprep.subr.bf16.mxu0 0
    %7497 = vmatpush1.bf16.msra.mxu0 0
    %7498 = vmatprep.subr.bf16.mxu0 0
    %7499 = vmatpush1.bf16.msra.mxu0 0
    %7500 = vmatprep.subr.bf16.mxu0 0
    %7501 = vmatpush1.bf16.msra.mxu0 0
    %7502 = vmatprep.subr.bf16.mxu0 0
    %7503 = vmatpush1.bf16.msra.mxu0 0
    %7504 = vmatprep.subr.bf16.mxu0 0
    %7505 = vmatpush1.bf16.msra.mxu0 0
    %7506 = vmatprep.subr.bf16.mxu0 0
    %7507 = vmatpush1.bf16.msra.mxu0 0
    %7508 = vmatprep.subr.bf16.mxu0 0
    %7509 = vmatpush1.bf16.msra.mxu0 0
    %7510 = vmatprep.subr.bf16.mxu0 0
    %7511 = vmatpush1.bf16.msra.mxu0 0
    %7512 = vmatprep.subr.bf16.mxu0 0
    %7513 = vmatpush1.bf16.msra.mxu0 0
    %7514 = vmatprep.subr.bf16.mxu0 0
    %7515 = vmatpush1.bf16.msra.mxu0 0
    %7516 = vmatprep.mubr.bf16.mxu0 0
    %7517 = vmatmul.mubr.bf16.gmra.mrb[0].mxu0 %v7439
    %v7518 = vpop.f32.mrb[0].mxu0
    %v7519 = vadd.f32 %v7476, %v7518
    %v7520 = vpop.f32.mrb[0].mxu0
    %v7521 = vadd.f32 %v7478, %v7520
    %v7522 = vpop.f32.mrb[0].mxu0
    %v7523 = vadd.f32 %v7480, %v7522
    %v7524 = vpop.f32.mrb[0].mxu0
    %v7525 = vadd.f32 %v7482, %v7524
    %7526 = vdwg.mxu0
    %7527 = vmatprep.subr.bf16.mxu0 %v7285
    %7528 = vmatpush1.bf16.msra.mxu0 %v7284
    %7529 = vmatprep.subr.bf16.mxu0 %v7293
    %7530 = vmatpush1.bf16.msra.mxu0 %v7292
    %7531 = vmatprep.subr.bf16.mxu0 %v7301
    %7532 = vmatpush1.bf16.msra.mxu0 %v7300
    %7533 = vmatprep.subr.bf16.mxu0 %v7309
    %7534 = vmatpush1.bf16.msra.mxu0 %v7308
    %7535 = vmatprep.subr.bf16.mxu0 %v7317
    %7536 = vmatpush1.bf16.msra.mxu0 %v7316
    %7537 = vmatprep.subr.bf16.mxu0 %v7325
    %7538 = vmatpush1.bf16.msra.mxu0 %v7324
    %7539 = vmatprep.subr.bf16.mxu0 %v7333
    %7540 = vmatpush1.bf16.msra.mxu0 %v7332
    %7541 = vmatprep.subr.bf16.mxu0 %v7341
    %7542 = vmatpush1.bf16.msra.mxu0 %v7340
    %7543 = vmatprep.subr.bf16.mxu0 %v7349
    %7544 = vmatpush1.bf16.msra.mxu0 %v7348
    %7545 = vmatprep.subr.bf16.mxu0 %v7357
    %7546 = vmatpush1.bf16.msra.mxu0 %v7356
    %7547 = vmatprep.subr.bf16.mxu0 %v7365
    %7548 = vmatpush1.bf16.msra.mxu0 %v7364
    %7549 = vmatprep.subr.bf16.mxu0 %v7373
    %7550 = vmatpush1.bf16.msra.mxu0 %v7372
    %7551 = vmatprep.subr.bf16.mxu0 %v7381
    %7552 = vmatpush1.bf16.msra.mxu0 %v7380
    %7553 = vmatprep.subr.bf16.mxu0 %v7389
    %7554 = vmatpush1.bf16.msra.mxu0 %v7388
    %7555 = vmatprep.subr.bf16.mxu0 %v7397
    %7556 = vmatpush1.bf16.msra.mxu0 %v7396
    %7557 = vmatprep.subr.bf16.mxu0 %v7405
    %7558 = vmatpush1.bf16.msra.mxu0 %v7404
    %7559 = vmatprep.mubr.bf16.mxu0 %v7432
    %7560 = vmatmul.mubr.bf16.gmra.mrb[0].mxu0 %v7429
    %v7561 = vpop.f32.mrb[0].mxu0
    %v7562 = vadd.f32 0.0, %v7561
    %v7563 = vpop.f32.mrb[0].mxu0
    %v7564 = vadd.f32 0.0, %v7563
    %v7565 = vpop.f32.mrb[0].mxu0
    %v7566 = vadd.f32 0.0, %v7565
    %v7567 = vpop.f32.mrb[0].mxu0
    %v7568 = vadd.f32 0.0, %v7567
    %7569 = vdwg.mxu0
    %7570 = vmatprep.subr.bf16.mxu0 %v7413
    %7571 = vmatpush1.bf16.msra.mxu0 %v7412
    %7572 = vmatprep.subr.bf16.mxu0 %v7421
    %7573 = vmatpush1.bf16.msra.mxu0 %v7420
    %7574 = vmatprep.subr.bf16.mxu0 0
    %7575 = vmatpush1.bf16.msra.mxu0 0
    %7576 = vmatprep.subr.bf16.mxu0 0
    %7577 = vmatpush1.bf16.msra.mxu0 0
    %7578 = vmatprep.subr.bf16.mxu0 0
    %7579 = vmatpush1.bf16.msra.mxu0 0
    %7580 = vmatprep.subr.bf16.mxu0 0
    %7581 = vmatpush1.bf16.msra.mxu0 0
    %7582 = vmatprep.subr.bf16.mxu0 0
    %7583 = vmatpush1.bf16.msra.mxu0 0
    %7584 = vmatprep.subr.bf16.mxu0 0
    %7585 = vmatpush1.bf16.msra.mxu0 0
    %7586 = vmatprep.subr.bf16.mxu0 0
    %7587 = vmatpush1.bf16.msra.mxu0 0
    %7588 = vmatprep.subr.bf16.mxu0 0
    %7589 = vmatpush1.bf16.msra.mxu0 0
    %7590 = vmatprep.subr.bf16.mxu0 0
    %7591 = vmatpush1.bf16.msra.mxu0 0
    %7592 = vmatprep.subr.bf16.mxu0 0
    %7593 = vmatpush1.bf16.msra.mxu0 0
    %7594 = vmatprep.subr.bf16.mxu0 0
    %7595 = vmatpush1.bf16.msra.mxu0 0
    %7596 = vmatprep.subr.bf16.mxu0 0
    %7597 = vmatpush1.bf16.msra.mxu0 0
    %7598 = vmatprep.subr.bf16.mxu0 0
    %7599 = vmatpush1.bf16.msra.mxu0 0
    %7600 = vmatprep.subr.bf16.mxu0 0
    %7601 = vmatpush1.bf16.msra.mxu0 0
    %7602 = vmatprep.mubr.bf16.mxu0 0
    %7603 = vmatmul.mubr.bf16.gmra.mrb[0].mxu0 %v7439
    %v7604 = vpop.f32.mrb[0].mxu0
    %v7605 = vadd.f32 %v7562, %v7604
    %v7606 = vpop.f32.mrb[0].mxu0
    %v7607 = vadd.f32 %v7564, %v7606
    %v7608 = vpop.f32.mrb[0].mxu0
    %v7609 = vadd.f32 %v7566, %v7608
    %v7610 = vpop.f32.mrb[0].mxu0
    %v7611 = vadd.f32 %v7568, %v7610
    %7612 = vdwg.mxu0
    %7613 = vmatprep.subr.bf16.mxu0 %v7287
    %7614 = vmatpush1.bf16.msra.mxu0 %v7286
    %7615 = vmatprep.subr.bf16.mxu0 %v7295
    %7616 = vmatpush1.bf16.msra.mxu0 %v7294
    %7617 = vmatprep.subr.bf16.mxu0 %v7303
    %7618 = vmatpush1.bf16.msra.mxu0 %v7302
    %7619 = vmatprep.subr.bf16.mxu0 %v7311
    %7620 = vmatpush1.bf16.msra.mxu0 %v7310
    %7621 = vmatprep.subr.bf16.mxu0 %v7319
    %7622 = vmatpush1.bf16.msra.mxu0 %v7318
    %7623 = vmatprep.subr.bf16.mxu0 %v7327
    %7624 = vmatpush1.bf16.msra.mxu0 %v7326
    %7625 = vmatprep.subr.bf16.mxu0 %v7335
    %7626 = vmatpush1.bf16.msra.mxu0 %v7334
    %7627 = vmatprep.subr.bf16.mxu0 %v7343
    %7628 = vmatpush1.bf16.msra.mxu0 %v7342
    %7629 = vmatprep.subr.bf16.mxu0 %v7351
    %7630 = vmatpush1.bf16.msra.mxu0 %v7350
    %7631 = vmatprep.subr.bf16.mxu0 %v7359
    %7632 = vmatpush1.bf16.msra.mxu0 %v7358
    %7633 = vmatprep.subr.bf16.mxu0 %v7367
    %7634 = vmatpush1.bf16.msra.mxu0 %v7366
    %7635 = vmatprep.subr.bf16.mxu0 %v7375
    %7636 = vmatpush1.bf16.msra.mxu0 %v7374
    %7637 = vmatprep.subr.bf16.mxu0 %v7383
    %7638 = vmatpush1.bf16.msra.mxu0 %v7382
    %7639 = vmatprep.subr.bf16.mxu0 %v7391
    %7640 = vmatpush1.bf16.msra.mxu0 %v7390
    %7641 = vmatprep.subr.bf16.mxu0 %v7399
    %7642 = vmatpush1.bf16.msra.mxu0 %v7398
    %7643 = vmatprep.subr.bf16.mxu0 %v7407
    %7644 = vmatpush1.bf16.msra.mxu0 %v7406
    %7645 = vmatprep.mubr.bf16.mxu0 %v7432
    %7646 = vmatmul.mubr.bf16.gmra.mrb[0].mxu0 %v7429
    %v7647 = vpop.f32.mrb[0].mxu0
    %v7648 = vadd.f32 0.0, %v7647
    %v7649 = vpop.f32.mrb[0].mxu0
    %v7650 = vadd.f32 0.0, %v7649
    %v7651 = vpop.f32.mrb[0].mxu0
    %v7652 = vadd.f32 0.0, %v7651
    %v7653 = vpop.f32.mrb[0].mxu0
    %v7654 = vadd.f32 0.0, %v7653
    %7655 = vdwg.mxu0
    %7656 = vmatprep.subr.bf16.mxu0 %v7415
    %7657 = vmatpush1.bf16.msra.mxu0 %v7414
    %7658 = vmatprep.subr.bf16.mxu0 %v7423
    %7659 = vmatpush1.bf16.msra.mxu0 %v7422
    %7660 = vmatprep.subr.bf16.mxu0 0
    %7661 = vmatpush1.bf16.msra.mxu0 0
    %7662 = vmatprep.subr.bf16.mxu0 0
    %7663 = vmatpush1.bf16.msra.mxu0 0
    %7664 = vmatprep.subr.bf16.mxu0 0
    %7665 = vmatpush1.bf16.msra.mxu0 0
    %7666 = vmatprep.subr.bf16.mxu0 0
    %7667 = vmatpush1.bf16.msra.mxu0 0
    %7668 = vmatprep.subr.bf16.mxu0 0
    %7669 = vmatpush1.bf16.msra.mxu0 0
    %7670 = vmatprep.subr.bf16.mxu0 0
    %7671 = vmatpush1.bf16.msra.mxu0 0
    %7672 = vmatprep.subr.bf16.mxu0 0
    %7673 = vmatpush1.bf16.msra.mxu0 0
    %7674 = vmatprep.subr.bf16.mxu0 0
    %7675 = vmatpush1.bf16.msra.mxu0 0
    %7676 = vmatprep.subr.bf16.mxu0 0
    %7677 = vmatpush1.bf16.msra.mxu0 0
    %7678 = vmatprep.subr.bf16.mxu0 0
    %7679 = vmatpush1.bf16.msra.mxu0 0
    %7680 = vmatprep.subr.bf16.mxu0 0
    %7681 = vmatpush1.bf16.msra.mxu0 0
    %7682 = vmatprep.subr.bf16.mxu0 0
    %7683 = vmatpush1.bf16.msra.mxu0 0
    %7684 = vmatprep.subr.bf16.mxu0 0
    %7685 = vmatpush1.bf16.msra.mxu0 0
    %7686 = vmatprep.subr.bf16.mxu0 0
    %7687 = vmatpush1.bf16.msra.mxu0 0
    %7688 = vmatprep.mubr.bf16.mxu0 0
    %7689 = vmatmul.mubr.bf16.gmra.mrb[0].mxu0 %v7439
    %v7690 = vpop.f32.mrb[0].mxu0
    %v7691 = vadd.f32 %v7648, %v7690
    %v7692 = vpop.f32.mrb[0].mxu0
    %v7693 = vadd.f32 %v7650, %v7692
    %v7694 = vpop.f32.mrb[0].mxu0
    %v7695 = vadd.f32 %v7652, %v7694
    %v7696 = vpop.f32.mrb[0].mxu0
    %v7697 = vadd.f32 %v7654, %v7696
    %7698 = vdwg.mxu0
    %7699 = vmatprep.subr.bf16.mxu0 %v7289
    %7700 = vmatpush1.bf16.msra.mxu0 %v7288
    %7701 = vmatprep.subr.bf16.mxu0 %v7297
    %7702 = vmatpush1.bf16.msra.mxu0 %v7296
    %7703 = vmatprep.subr.bf16.mxu0 %v7305
    %7704 = vmatpush1.bf16.msra.mxu0 %v7304
    %7705 = vmatprep.subr.bf16.mxu0 %v7313
    %7706 = vmatpush1.bf16.msra.mxu0 %v7312
    %7707 = vmatprep.subr.bf16.mxu0 %v7321
    %7708 = vmatpush1.bf16.msra.mxu0 %v7320
    %7709 = vmatprep.subr.bf16.mxu0 %v7329
    %7710 = vmatpush1.bf16.msra.mxu0 %v7328
    %7711 = vmatprep.subr.bf16.mxu0 %v7337
    %7712 = vmatpush1.bf16.msra.mxu0 %v7336
    %7713 = vmatprep.subr.bf16.mxu0 %v7345
    %7714 = vmatpush1.bf16.msra.mxu0 %v7344
    %7715 = vmatprep.subr.bf16.mxu0 %v7353
    %7716 = vmatpush1.bf16.msra.mxu0 %v7352
    %7717 = vmatprep.subr.bf16.mxu0 %v7361
    %7718 = vmatpush1.bf16.msra.mxu0 %v7360
    %7719 = vmatprep.subr.bf16.mxu0 %v7369
    %7720 = vmatpush1.bf16.msra.mxu0 %v7368
    %7721 = vmatprep.subr.bf16.mxu0 %v7377
    %7722 = vmatpush1.bf16.msra.mxu0 %v7376
    %7723 = vmatprep.subr.bf16.mxu0 %v7385
    %7724 = vmatpush1.bf16.msra.mxu0 %v7384
    %7725 = vmatprep.subr.bf16.mxu0 %v7393
    %7726 = vmatpush1.bf16.msra.mxu0 %v7392
    %7727 = vmatprep.subr.bf16.mxu0 %v7401
    %7728 = vmatpush1.bf16.msra.mxu0 %v7400
    %7729 = vmatprep.subr.bf16.mxu0 %v7409
    %7730 = vmatpush1.bf16.msra.mxu0 %v7408
    %7731 = vmatprep.mubr.bf16.mxu0 %v7432
    %7732 = vmatmul.mubr.bf16.gmra.mrb[0].mxu0 %v7429
    %v7733 = vpop.f32.mrb[0].mxu0
    %v7734 = vadd.f32 0.0, %v7733
    %v7735 = vpop.f32.mrb[0].mxu0
    %v7736 = vadd.f32 0.0, %v7735
    %v7737 = vpop.f32.mrb[0].mxu0
    %v7738 = vadd.f32 0.0, %v7737
    %v7739 = vpop.f32.mrb[0].mxu0
    %v7740 = vadd.f32 0.0, %v7739
    %7741 = vdwg.mxu0
    %7742 = vmatprep.subr.bf16.mxu0 %v7417
    %7743 = vmatpush1.bf16.msra.mxu0 %v7416
    %7744 = vmatprep.subr.bf16.mxu0 %v7425
    %7745 = vmatpush1.bf16.msra.mxu0 %v7424
    %7746 = vmatprep.subr.bf16.mxu0 0
    %7747 = vmatpush1.bf16.msra.mxu0 0
    %7748 = vmatprep.subr.bf16.mxu0 0
    %7749 = vmatpush1.bf16.msra.mxu0 0
    %7750 = vmatprep.subr.bf16.mxu0 0
    %7751 = vmatpush1.bf16.msra.mxu0 0
    %7752 = vmatprep.subr.bf16.mxu0 0
    %7753 = vmatpush1.bf16.msra.mxu0 0
    %7754 = vmatprep.subr.bf16.mxu0 0
    %7755 = vmatpush1.bf16.msra.mxu0 0
    %7756 = vmatprep.subr.bf16.mxu0 0
    %7757 = vmatpush1.bf16.msra.mxu0 0
    %7758 = vmatprep.subr.bf16.mxu0 0
    %7759 = vmatpush1.bf16.msra.mxu0 0
    %7760 = vmatprep.subr.bf16.mxu0 0
    %7761 = vmatpush1.bf16.msra.mxu0 0
    %7762 = vmatprep.subr.bf16.mxu0 0
    %7763 = vmatpush1.bf16.msra.mxu0 0
    %7764 = vmatprep.subr.bf16.mxu0 0
    %7765 = vmatpush1.bf16.msra.mxu0 0
    %7766 = vmatprep.subr.bf16.mxu0 0
    %7767 = vmatpush1.bf16.msra.mxu0 0
    %7768 = vmatprep.subr.bf16.mxu0 0
    %7769 = vmatpush1.bf16.msra.mxu0 0
    %7770 = vmatprep.subr.bf16.mxu0 0
    %7771 = vmatpush1.bf16.msra.mxu0 0
    %7772 = vmatprep.subr.bf16.mxu0 0
    %7773 = vmatpush1.bf16.msra.mxu0 0
    %7774 = vmatprep.mubr.bf16.mxu0 0
    %7775 = vmatmul.mubr.bf16.gmra.mrb[0].mxu0 %v7439
    %v7776 = vpop.f32.mrb[0].mxu0
    %v7777 = vadd.f32 %v7734, %v7776
    %v7778 = vpop.f32.mrb[0].mxu0
    %v7779 = vadd.f32 %v7736, %v7778
    %v7780 = vpop.f32.mrb[0].mxu0
    %v7781 = vadd.f32 %v7738, %v7780
    %v7782 = vpop.f32.mrb[0].mxu0
    %v7783 = vadd.f32 %v7740, %v7782
    %7784 = vdwg.mxu0
    %v7785 = vadd.f32 %v7264, %v7519
    %v7786 = vadd.f32 %v7265, %v7521
    %v7787 = vadd.f32 %v7266, %v7605
    %v7788 = vadd.f32 %v7267, %v7607
    %v7789 = vadd.f32 %v7268, %v7691
    %v7790 = vadd.f32 %v7269, %v7693
    %v7791 = vadd.f32 %v7270, %v7777
    %v7792 = vadd.f32 %v7271, %v7779
    %v7793 = vadd.f32 %v7272, %v7523
    %v7794 = vadd.f32 %v7273, %v7525
    %v7795 = vadd.f32 %v7274, %v7609
    %v7796 = vadd.f32 %v7275, %v7611
    %v7797 = vadd.f32 %v7276, %v7695
    %v7798 = vadd.f32 %v7277, %v7697
    %v7799 = vadd.f32 %v7278, %v7781
    %v7800 = vadd.f32 %v7279, %v7783
    %s7801 = sshll.u32 %s4136, 4
    %7802 = dma.done %s339, %s7801
    %v7803 = vld [vmem:[%s338] sm:$0xff]
    %v7804 = vld [vmem:[%s338 + $0x8] sm:$0xff]
    %v7805 = vld [vmem:[%s338 + $0x10] sm:$0xff]
    %v7806 = vld [vmem:[%s338 + $0x18] sm:$0xff]
    %v7807 = vld [vmem:[%s338 + $0x20] sm:$0xff]
    %v7808 = vld [vmem:[%s338 + $0x28] sm:$0xff]
    %v7809 = vld [vmem:[%s338 + $0x30] sm:$0xff]
    %v7810 = vld [vmem:[%s338 + $0x38] sm:$0xff]
    %v7811 = vld [vmem:[%s338 + $0x40] sm:$0xff]
    %v7812 = vld [vmem:[%s338 + $0x48] sm:$0xff]
    %v7813 = vld [vmem:[%s338 + $0x50] sm:$0xff]
    %v7814 = vld [vmem:[%s338 + $0x58] sm:$0xff]
    %v7815 = vld [vmem:[%s338 + $0x60] sm:$0xff]
    %v7816 = vld [vmem:[%s338 + $0x68] sm:$0xff]
    %v7817 = vld [vmem:[%s338 + $0x70] sm:$0xff]
    %v7818 = vld [vmem:[%s338 + $0x78] sm:$0xff]
    %v7819 = vld [vmem:[%s338 + $0x80] sm:$0xff]
    %v7820 = vld [vmem:[%s338 + $0x88] sm:$0xff]
    %v7821 = vld [vmem:[%s338 + $0x90] sm:$0xff]
    %v7822 = vld [vmem:[%s338 + $0x98] sm:$0xff]
    %v7823 = vld [vmem:[%s338 + $0xa0] sm:$0xff]
    %v7824 = vld [vmem:[%s338 + $0xa8] sm:$0xff]
    %v7825 = vld [vmem:[%s338 + $0xb0] sm:$0xff]
    %v7826 = vld [vmem:[%s338 + $0xb8] sm:$0xff]
    %v7827 = vld [vmem:[%s338 + $0xc0] sm:$0xff]
    %v7828 = vld [vmem:[%s338 + $0xc8] sm:$0xff]
    %v7829 = vld [vmem:[%s338 + $0xd0] sm:$0xff]
    %v7830 = vld [vmem:[%s338 + $0xd8] sm:$0xff]
    %v7831 = vld [vmem:[%s338 + $0xe0] sm:$0xff]
    %v7832 = vld [vmem:[%s338 + $0xe8] sm:$0xff]
    %v7833 = vld [vmem:[%s338 + $0xf0] sm:$0xff]
    %v7834 = vld [vmem:[%s338 + $0xf8] sm:$0xff]
    %v7835 = vld [vmem:[%s338 + $0x100] sm:$0xff]
    %v7836 = vld [vmem:[%s338 + $0x108] sm:$0xff]
    %v7837 = vld [vmem:[%s338 + $0x110] sm:$0xff]
    %v7838 = vld [vmem:[%s338 + $0x118] sm:$0xff]
    %v7839 = vld [vmem:[%s338 + $0x120] sm:$0xff]
    %v7840 = vld [vmem:[%s338 + $0x128] sm:$0xff]
    %v7841 = vld [vmem:[%s338 + $0x130] sm:$0xff]
    %v7842 = vld [vmem:[%s338 + $0x138] sm:$0xff]
    %v7843 = vld [vmem:[%s338 + $0x140] sm:$0xff]
    %v7844 = vld [vmem:[%s338 + $0x148] sm:$0xff]
    %v7845 = vld [vmem:[%s338 + $0x150] sm:$0xff]
    %v7846 = vld [vmem:[%s338 + $0x158] sm:$0xff]
    %v7847 = vld [vmem:[%s338 + $0x160] sm:$0xff]
    %v7848 = vld [vmem:[%s338 + $0x168] sm:$0xff]
    %v7849 = vld [vmem:[%s338 + $0x170] sm:$0xff]
    %v7850 = vld [vmem:[%s338 + $0x178] sm:$0xff]
    %v7851 = vld [vmem:[%s338 + $0x180] sm:$0xff]
    %v7852 = vld [vmem:[%s338 + $0x188] sm:$0xff]
    %v7853 = vld [vmem:[%s338 + $0x190] sm:$0xff]
    %v7854 = vld [vmem:[%s338 + $0x198] sm:$0xff]
    %v7855 = vld [vmem:[%s338 + $0x1a0] sm:$0xff]
    %v7856 = vld [vmem:[%s338 + $0x1a8] sm:$0xff]
    %v7857 = vld [vmem:[%s338 + $0x1b0] sm:$0xff]
    %v7858 = vld [vmem:[%s338 + $0x1b8] sm:$0xff]
    %v7859 = vld [vmem:[%s338 + $0x1c0] sm:$0xff]
    %v7860 = vld [vmem:[%s338 + $0x1c8] sm:$0xff]
    %v7861 = vld [vmem:[%s338 + $0x1d0] sm:$0xff]
    %v7862 = vld [vmem:[%s338 + $0x1d8] sm:$0xff]
    %v7863 = vld [vmem:[%s338 + $0x1e0] sm:$0xff]
    %v7864 = vld [vmem:[%s338 + $0x1e8] sm:$0xff]
    %v7865 = vld [vmem:[%s338 + $0x1f0] sm:$0xff]
    %v7866 = vld [vmem:[%s338 + $0x1f8] sm:$0xff]
    %v7867 = vld [vmem:[%s338 + $0x200] sm:$0xff]
    %v7868 = vld [vmem:[%s338 + $0x208] sm:$0xff]
    %v7869 = vld [vmem:[%s338 + $0x210] sm:$0xff]
    %v7870 = vld [vmem:[%s338 + $0x218] sm:$0xff]
    %v7871 = vld [vmem:[%s338 + $0x220] sm:$0xff]
    %v7872 = vld [vmem:[%s338 + $0x228] sm:$0xff]
    %v7873 = vld [vmem:[%s338 + $0x230] sm:$0xff]
    %v7874 = vld [vmem:[%s338 + $0x238] sm:$0xff]
    %v7875 = vld [vmem:[%s338 + $0x240] sm:$0xff]
    %v7876 = vld [vmem:[%s338 + $0x248] sm:$0xff]
    %v7877 = vld [vmem:[%s338 + $0x250] sm:$0xff]
    %v7878 = vld [vmem:[%s338 + $0x258] sm:$0xff]
    %v7879 = vld [vmem:[%s338 + $0x260] sm:$0xff]
    %v7880 = vld [vmem:[%s338 + $0x268] sm:$0xff]
    %v7881 = vld [vmem:[%s338 + $0x270] sm:$0xff]
    %v7882 = vld [vmem:[%s338 + $0x278] sm:$0xff]
    %v7883 = vld [vmem:[%s338 + $0x280] sm:$0xff]
    %v7884 = vld [vmem:[%s338 + $0x288] sm:$0xff]
    %v7885 = vld [vmem:[%s338 + $0x290] sm:$0xff]
    %v7886 = vld [vmem:[%s338 + $0x298] sm:$0xff]
    %v7887 = vld [vmem:[%s338 + $0x2a0] sm:$0xff]
    %v7888 = vld [vmem:[%s338 + $0x2a8] sm:$0xff]
    %v7889 = vld [vmem:[%s338 + $0x2b0] sm:$0xff]
    %v7890 = vld [vmem:[%s338 + $0x2b8] sm:$0xff]
    %v7891 = vld [vmem:[%s338 + $0x2c0] sm:$0xff]
    %v7892 = vld [vmem:[%s338 + $0x2c8] sm:$0xff]
    %v7893 = vld [vmem:[%s338 + $0x2d0] sm:$0xff]
    %v7894 = vld [vmem:[%s338 + $0x2d8] sm:$0xff]
    %v7895 = vld [vmem:[%s338 + $0x2e0] sm:$0xff]
    %v7896 = vld [vmem:[%s338 + $0x2e8] sm:$0xff]
    %v7897 = vld [vmem:[%s338 + $0x2f0] sm:$0xff]
    %v7898 = vld [vmem:[%s338 + $0x2f8] sm:$0xff]
    %v7899 = vld [vmem:[%s338 + $0x300] sm:$0xff]
    %v7900 = vld [vmem:[%s338 + $0x308] sm:$0xff]
    %v7901 = vld [vmem:[%s338 + $0x310] sm:$0xff]
    %v7902 = vld [vmem:[%s338 + $0x318] sm:$0xff]
    %v7903 = vld [vmem:[%s338 + $0x320] sm:$0xff]
    %v7904 = vld [vmem:[%s338 + $0x328] sm:$0xff]
    %v7905 = vld [vmem:[%s338 + $0x330] sm:$0xff]
    %v7906 = vld [vmem:[%s338 + $0x338] sm:$0xff]
    %v7907 = vld [vmem:[%s338 + $0x340] sm:$0xff]
    %v7908 = vld [vmem:[%s338 + $0x348] sm:$0xff]
    %v7909 = vld [vmem:[%s338 + $0x350] sm:$0xff]
    %v7910 = vld [vmem:[%s338 + $0x358] sm:$0xff]
    %v7911 = vld [vmem:[%s338 + $0x360] sm:$0xff]
    %v7912 = vld [vmem:[%s338 + $0x368] sm:$0xff]
    %v7913 = vld [vmem:[%s338 + $0x370] sm:$0xff]
    %v7914 = vld [vmem:[%s338 + $0x378] sm:$0xff]
    %v7915 = vld [vmem:[%s338 + $0x380] sm:$0xff]
    %v7916 = vld [vmem:[%s338 + $0x388] sm:$0xff]
    %v7917 = vld [vmem:[%s338 + $0x390] sm:$0xff]
    %v7918 = vld [vmem:[%s338 + $0x398] sm:$0xff]
    %v7919 = vld [vmem:[%s338 + $0x3a0] sm:$0xff]
    %v7920 = vld [vmem:[%s338 + $0x3a8] sm:$0xff]
    %v7921 = vld [vmem:[%s338 + $0x3b0] sm:$0xff]
    %v7922 = vld [vmem:[%s338 + $0x3b8] sm:$0xff]
    %v7923 = vld [vmem:[%s338 + $0x3c0] sm:$0xff]
    %v7924 = vld [vmem:[%s338 + $0x3c8] sm:$0xff]
    %v7925 = vld [vmem:[%s338 + $0x3d0] sm:$0xff]
    %v7926 = vld [vmem:[%s338 + $0x3d8] sm:$0xff]
    %v7927 = vld [vmem:[%s338 + $0x3e0] sm:$0xff]
    %v7928 = vld [vmem:[%s338 + $0x3e8] sm:$0xff]
    %v7929 = vld [vmem:[%s338 + $0x3f0] sm:$0xff]
    %v7930 = vld [vmem:[%s338 + $0x3f8] sm:$0xff]
    %v7931 = vld [vmem:[%s338 + $0x400] sm:$0xff]
    %v7932 = vld [vmem:[%s338 + $0x408] sm:$0xff]
    %v7933 = vld [vmem:[%s338 + $0x410] sm:$0xff]
    %v7934 = vld [vmem:[%s338 + $0x418] sm:$0xff]
    %v7935 = vld [vmem:[%s338 + $0x420] sm:$0xff]
    %v7936 = vld [vmem:[%s338 + $0x428] sm:$0xff]
    %v7937 = vld [vmem:[%s338 + $0x430] sm:$0xff]
    %v7938 = vld [vmem:[%s338 + $0x438] sm:$0xff]
    %v7939 = vld [vmem:[%s338 + $0x440] sm:$0xff]
    %v7940 = vld [vmem:[%s338 + $0x448] sm:$0xff]
    %v7941 = vld [vmem:[%s338 + $0x450] sm:$0xff]
    %v7942 = vld [vmem:[%s338 + $0x458] sm:$0xff]
    %v7943 = vld [vmem:[%s338 + $0x460] sm:$0xff]
    %v7944 = vld [vmem:[%s338 + $0x468] sm:$0xff]
    %v7945 = vld [vmem:[%s338 + $0x470] sm:$0xff]
    %v7946 = vld [vmem:[%s338 + $0x478] sm:$0xff]
    %vm7947 = vsmask.f32 4352
    %v7948 = vrot.slane %v4430, 3
    %v7949 = vrot.slane %v4432, 4
    %v7950 = vor.u32 %v7948, %v7949
    %v7951 = vrot.slane %v5837, 3
    %v7952 = vrot.slane %v4437, 4
    %v7953 = vor.u32 %v7951, %v7952
    %v7954 = vsel %vm7947, %v7950, %v7953
    %v7955 = vrot.slane %v4442, 3
    %v7956 = vrot.slane %v4444, 4
    %v7957 = vor.u32 %v7955, %v7956
    %v7958 = vrot.slane %v5846, 3
    %v7959 = vrot.slane %v4449, 4
    %v7960 = vor.u32 %v7958, %v7959
    %v7961 = vsel %vm7947, %v7957, %v7960
    %v7962 = vrot.slane %v4454, 3
    %v7963 = vrot.slane %v4456, 4
    %v7964 = vor.u32 %v7962, %v7963
    %v7965 = vrot.slane %v5855, 3
    %v7966 = vrot.slane %v4461, 4
    %v7967 = vor.u32 %v7965, %v7966
    %v7968 = vsel %vm7947, %v7964, %v7967
    %v7972 = vsel %vm4467, %v7968, 0
    %7974 = vmatprep.subr.bf16.mxu0 %v7804
    %7975 = vmatpush1.bf16.msra.mxu0 %v7803
    %7976 = vmatprep.subr.bf16.mxu0 %v7812
    %7977 = vmatpush1.bf16.msra.mxu0 %v7811
    %7978 = vmatprep.subr.bf16.mxu0 %v7820
    %7979 = vmatpush1.bf16.msra.mxu0 %v7819
    %7980 = vmatprep.subr.bf16.mxu0 %v7828
    %7981 = vmatpush1.bf16.msra.mxu0 %v7827
    %7982 = vmatprep.subr.bf16.mxu0 %v7836
    %7983 = vmatpush1.bf16.msra.mxu0 %v7835
    %7984 = vmatprep.subr.bf16.mxu0 %v7844
    %7985 = vmatpush1.bf16.msra.mxu0 %v7843
    %7986 = vmatprep.subr.bf16.mxu0 %v7852
    %7987 = vmatpush1.bf16.msra.mxu0 %v7851
    %7988 = vmatprep.subr.bf16.mxu0 %v7860
    %7989 = vmatpush1.bf16.msra.mxu0 %v7859
    %7990 = vmatprep.subr.bf16.mxu0 %v7868
    %7991 = vmatpush1.bf16.msra.mxu0 %v7867
    %7992 = vmatprep.subr.bf16.mxu0 %v7876
    %7993 = vmatpush1.bf16.msra.mxu0 %v7875
    %7994 = vmatprep.subr.bf16.mxu0 %v7884
    %7995 = vmatpush1.bf16.msra.mxu0 %v7883
    %7996 = vmatprep.subr.bf16.mxu0 %v7892
    %7997 = vmatpush1.bf16.msra.mxu0 %v7891
    %7998 = vmatprep.subr.bf16.mxu0 %v7900
    %7999 = vmatpush1.bf16.msra.mxu0 %v7899
    %8000 = vmatprep.subr.bf16.mxu0 %v7908
    %8001 = vmatpush1.bf16.msra.mxu0 %v7907
    %8002 = vmatprep.subr.bf16.mxu0 %v7916
    %8003 = vmatpush1.bf16.msra.mxu0 %v7915
    %8004 = vmatprep.subr.bf16.mxu0 %v7924
    %8005 = vmatpush1.bf16.msra.mxu0 %v7923
    %8006 = vmatprep.mubr.bf16.mxu0 %v7961
    %8007 = vmatmul.mubr.bf16.gmra.mrb[0].mxu0 %v7954
    %v8008 = vpop.f32.mrb[0].mxu0
    %v8009 = vadd.f32 0.0, %v8008
    %v8010 = vpop.f32.mrb[0].mxu0
    %v8011 = vadd.f32 0.0, %v8010
    %v8012 = vpop.f32.mrb[0].mxu0
    %v8013 = vadd.f32 0.0, %v8012
    %v8014 = vpop.f32.mrb[0].mxu0
    %v8015 = vadd.f32 0.0, %v8014
    %8016 = vdwg.mxu0
    %8017 = vmatprep.subr.bf16.mxu0 %v7932
    %8018 = vmatpush1.bf16.msra.mxu0 %v7931
    %8019 = vmatprep.subr.bf16.mxu0 %v7940
    %8020 = vmatpush1.bf16.msra.mxu0 %v7939
    %8021 = vmatprep.subr.bf16.mxu0 0
    %8022 = vmatpush1.bf16.msra.mxu0 0
    %8023 = vmatprep.subr.bf16.mxu0 0
    %8024 = vmatpush1.bf16.msra.mxu0 0
    %8025 = vmatprep.subr.bf16.mxu0 0
    %8026 = vmatpush1.bf16.msra.mxu0 0
    %8027 = vmatprep.subr.bf16.mxu0 0
    %8028 = vmatpush1.bf16.msra.mxu0 0
    %8029 = vmatprep.subr.bf16.mxu0 0
    %8030 = vmatpush1.bf16.msra.mxu0 0
    %8031 = vmatprep.subr.bf16.mxu0 0
    %8032 = vmatpush1.bf16.msra.mxu0 0
    %8033 = vmatprep.subr.bf16.mxu0 0
    %8034 = vmatpush1.bf16.msra.mxu0 0
    %8035 = vmatprep.subr.bf16.mxu0 0
    %8036 = vmatpush1.bf16.msra.mxu0 0
    %8037 = vmatprep.subr.bf16.mxu0 0
    %8038 = vmatpush1.bf16.msra.mxu0 0
    %8039 = vmatprep.subr.bf16.mxu0 0
    %8040 = vmatpush1.bf16.msra.mxu0 0
    %8041 = vmatprep.subr.bf16.mxu0 0
    %8042 = vmatpush1.bf16.msra.mxu0 0
    %8043 = vmatprep.subr.bf16.mxu0 0
    %8044 = vmatpush1.bf16.msra.mxu0 0
    %8045 = vmatprep.subr.bf16.mxu0 0
    %8046 = vmatpush1.bf16.msra.mxu0 0
    %8047 = vmatprep.subr.bf16.mxu0 0
    %8048 = vmatpush1.bf16.msra.mxu0 0
    %8049 = vmatprep.mubr.bf16.mxu0 0
    %8050 = vmatmul.mubr.bf16.gmra.mrb[0].mxu0 %v7972
    %v8051 = vpop.f32.mrb[0].mxu0
    %v8052 = vadd.f32 %v8009, %v8051
    %v8053 = vpop.f32.mrb[0].mxu0
    %v8054 = vadd.f32 %v8011, %v8053
    %v8055 = vpop.f32.mrb[0].mxu0
    %v8056 = vadd.f32 %v8013, %v8055
    %v8057 = vpop.f32.mrb[0].mxu0
    %v8058 = vadd.f32 %v8015, %v8057
    %8059 = vdwg.mxu0
    %8060 = vmatprep.subr.bf16.mxu0 %v7806
    %8061 = vmatpush1.bf16.msra.mxu0 %v7805
    %8062 = vmatprep.subr.bf16.mxu0 %v7814
    %8063 = vmatpush1.bf16.msra.mxu0 %v7813
    %8064 = vmatprep.subr.bf16.mxu0 %v7822
    %8065 = vmatpush1.bf16.msra.mxu0 %v7821
    %8066 = vmatprep.subr.bf16.mxu0 %v7830
    %8067 = vmatpush1.bf16.msra.mxu0 %v7829
    %8068 = vmatprep.subr.bf16.mxu0 %v7838
    %8069 = vmatpush1.bf16.msra.mxu0 %v7837
    %8070 = vmatprep.subr.bf16.mxu0 %v7846
    %8071 = vmatpush1.bf16.msra.mxu0 %v7845
    %8072 = vmatprep.subr.bf16.mxu0 %v7854
    %8073 = vmatpush1.bf16.msra.mxu0 %v7853
    %8074 = vmatprep.subr.bf16.mxu0 %v7862
    %8075 = vmatpush1.bf16.msra.mxu0 %v7861
    %8076 = vmatprep.subr.bf16.mxu0 %v7870
    %8077 = vmatpush1.bf16.msra.mxu0 %v7869
    %8078 = vmatprep.subr.bf16.mxu0 %v7878
    %8079 = vmatpush1.bf16.msra.mxu0 %v7877
    %8080 = vmatprep.subr.bf16.mxu0 %v7886
    %8081 = vmatpush1.bf16.msra.mxu0 %v7885
    %8082 = vmatprep.subr.bf16.mxu0 %v7894
    %8083 = vmatpush1.bf16.msra.mxu0 %v7893
    %8084 = vmatprep.subr.bf16.mxu0 %v7902
    %8085 = vmatpush1.bf16.msra.mxu0 %v7901
    %8086 = vmatprep.subr.bf16.mxu0 %v7910
    %8087 = vmatpush1.bf16.msra.mxu0 %v7909
    %8088 = vmatprep.subr.bf16.mxu0 %v7918
    %8089 = vmatpush1.bf16.msra.mxu0 %v7917
    %8090 = vmatprep.subr.bf16.mxu0 %v7926
    %8091 = vmatpush1.bf16.msra.mxu0 %v7925
    %8092 = vmatprep.mubr.bf16.mxu0 %v7961
    %8093 = vmatmul.mubr.bf16.gmra.mrb[0].mxu0 %v7954
    %v8094 = vpop.f32.mrb[0].mxu0
    %v8095 = vadd.f32 0.0, %v8094
    %v8096 = vpop.f32.mrb[0].mxu0
    %v8097 = vadd.f32 0.0, %v8096
    %v8098 = vpop.f32.mrb[0].mxu0
    %v8099 = vadd.f32 0.0, %v8098
    %v8100 = vpop.f32.mrb[0].mxu0
    %v8101 = vadd.f32 0.0, %v8100
    %8102 = vdwg.mxu0
    %8103 = vmatprep.subr.bf16.mxu0 %v7934
    %8104 = vmatpush1.bf16.msra.mxu0 %v7933
    %8105 = vmatprep.subr.bf16.mxu0 %v7942
    %8106 = vmatpush1.bf16.msra.mxu0 %v7941
    %8107 = vmatprep.subr.bf16.mxu0 0
    %8108 = vmatpush1.bf16.msra.mxu0 0
    %8109 = vmatprep.subr.bf16.mxu0 0
    %8110 = vmatpush1.bf16.msra.mxu0 0
    %8111 = vmatprep.subr.bf16.mxu0 0
    %8112 = vmatpush1.bf16.msra.mxu0 0
    %8113 = vmatprep.subr.bf16.mxu0 0
    %8114 = vmatpush1.bf16.msra.mxu0 0
    %8115 = vmatprep.subr.bf16.mxu0 0
    %8116 = vmatpush1.bf16.msra.mxu0 0
    %8117 = vmatprep.subr.bf16.mxu0 0
    %8118 = vmatpush1.bf16.msra.mxu0 0
    %8119 = vmatprep.subr.bf16.mxu0 0
    %8120 = vmatpush1.bf16.msra.mxu0 0
    %8121 = vmatprep.subr.bf16.mxu0 0
    %8122 = vmatpush1.bf16.msra.mxu0 0
    %8123 = vmatprep.subr.bf16.mxu0 0
    %8124 = vmatpush1.bf16.msra.mxu0 0
    %8125 = vmatprep.subr.bf16.mxu0 0
    %8126 = vmatpush1.bf16.msra.mxu0 0
    %8127 = vmatprep.subr.bf16.mxu0 0
    %8128 = vmatpush1.bf16.msra.mxu0 0
    %8129 = vmatprep.subr.bf16.mxu0 0
    %8130 = vmatpush1.bf16.msra.mxu0 0
    %8131 = vmatprep.subr.bf16.mxu0 0
    %8132 = vmatpush1.bf16.msra.mxu0 0
    %8133 = vmatprep.subr.bf16.mxu0 0
    %8134 = vmatpush1.bf16.msra.mxu0 0
    %8135 = vmatprep.mubr.bf16.mxu0 0
    %8136 = vmatmul.mubr.bf16.gmra.mrb[0].mxu0 %v7972
    %v8137 = vpop.f32.mrb[0].mxu0
    %v8138 = vadd.f32 %v8095, %v8137
    %v8139 = vpop.f32.mrb[0].mxu0
    %v8140 = vadd.f32 %v8097, %v8139
    %v8141 = vpop.f32.mrb[0].mxu0
    %v8142 = vadd.f32 %v8099, %v8141
    %v8143 = vpop.f32.mrb[0].mxu0
    %v8144 = vadd.f32 %v8101, %v8143
    %8145 = vdwg.mxu0
    %8146 = vmatprep.subr.bf16.mxu0 %v7808
    %8147 = vmatpush1.bf16.msra.mxu0 %v7807
    %8148 = vmatprep.subr.bf16.mxu0 %v7816
    %8149 = vmatpush1.bf16.msra.mxu0 %v7815
    %8150 = vmatprep.subr.bf16.mxu0 %v7824
    %8151 = vmatpush1.bf16.msra.mxu0 %v7823
    %8152 = vmatprep.subr.bf16.mxu0 %v7832
    %8153 = vmatpush1.bf16.msra.mxu0 %v7831
    %8154 = vmatprep.subr.bf16.mxu0 %v7840
    %8155 = vmatpush1.bf16.msra.mxu0 %v7839
    %8156 = vmatprep.subr.bf16.mxu0 %v7848
    %8157 = vmatpush1.bf16.msra.mxu0 %v7847
    %8158 = vmatprep.subr.bf16.mxu0 %v7856
    %8159 = vmatpush1.bf16.msra.mxu0 %v7855
    %8160 = vmatprep.subr.bf16.mxu0 %v7864
    %8161 = vmatpush1.bf16.msra.mxu0 %v7863
    %8162 = vmatprep.subr.bf16.mxu0 %v7872
    %8163 = vmatpush1.bf16.msra.mxu0 %v7871
    %8164 = vmatprep.subr.bf16.mxu0 %v7880
    %8165 = vmatpush1.bf16.msra.mxu0 %v7879
    %8166 = vmatprep.subr.bf16.mxu0 %v7888
    %8167 = vmatpush1.bf16.msra.mxu0 %v7887
    %8168 = vmatprep.subr.bf16.mxu0 %v7896
    %8169 = vmatpush1.bf16.msra.mxu0 %v7895
    %8170 = vmatprep.subr.bf16.mxu0 %v7904
    %8171 = vmatpush1.bf16.msra.mxu0 %v7903
    %8172 = vmatprep.subr.bf16.mxu0 %v7912
    %8173 = vmatpush1.bf16.msra.mxu0 %v7911
    %8174 = vmatprep.subr.bf16.mxu0 %v7920
    %8175 = vmatpush1.bf16.msra.mxu0 %v7919
    %8176 = vmatprep.subr.bf16.mxu0 %v7928
    %8177 = vmatpush1.bf16.msra.mxu0 %v7927
    %8178 = vmatprep.mubr.bf16.mxu0 %v7961
    %8179 = vmatmul.mubr.bf16.gmra.mrb[0].mxu0 %v7954
    %v8180 = vpop.f32.mrb[0].mxu0
    %v8181 = vadd.f32 0.0, %v8180
    %v8182 = vpop.f32.mrb[0].mxu0
    %v8183 = vadd.f32 0.0, %v8182
    %v8184 = vpop.f32.mrb[0].mxu0
    %v8185 = vadd.f32 0.0, %v8184
    %v8186 = vpop.f32.mrb[0].mxu0
    %v8187 = vadd.f32 0.0, %v8186
    %8188 = vdwg.mxu0
    %8189 = vmatprep.subr.bf16.mxu0 %v7936
    %8190 = vmatpush1.bf16.msra.mxu0 %v7935
    %8191 = vmatprep.subr.bf16.mxu0 %v7944
    %8192 = vmatpush1.bf16.msra.mxu0 %v7943
    %8193 = vmatprep.subr.bf16.mxu0 0
    %8194 = vmatpush1.bf16.msra.mxu0 0
    %8195 = vmatprep.subr.bf16.mxu0 0
    %8196 = vmatpush1.bf16.msra.mxu0 0
    %8197 = vmatprep.subr.bf16.mxu0 0
    %8198 = vmatpush1.bf16.msra.mxu0 0
    %8199 = vmatprep.subr.bf16.mxu0 0
    %8200 = vmatpush1.bf16.msra.mxu0 0
    %8201 = vmatprep.subr.bf16.mxu0 0
    %8202 = vmatpush1.bf16.msra.mxu0 0
    %8203 = vmatprep.subr.bf16.mxu0 0
    %8204 = vmatpush1.bf16.msra.mxu0 0
    %8205 = vmatprep.subr.bf16.mxu0 0
    %8206 = vmatpush1.bf16.msra.mxu0 0
    %8207 = vmatprep.subr.bf16.mxu0 0
    %8208 = vmatpush1.bf16.msra.mxu0 0
    %8209 = vmatprep.subr.bf16.mxu0 0
    %8210 = vmatpush1.bf16.msra.mxu0 0
    %8211 = vmatprep.subr.bf16.mxu0 0
    %8212 = vmatpush1.bf16.msra.mxu0 0
    %8213 = vmatprep.subr.bf16.mxu0 0
    %8214 = vmatpush1.bf16.msra.mxu0 0
    %8215 = vmatprep.subr.bf16.mxu0 0
    %8216 = vmatpush1.bf16.msra.mxu0 0
    %8217 = vmatprep.subr.bf16.mxu0 0
    %8218 = vmatpush1.bf16.msra.mxu0 0
    %8219 = vmatprep.subr.bf16.mxu0 0
    %8220 = vmatpush1.bf16.msra.mxu0 0
    %8221 = vmatprep.mubr.bf16.mxu0 0
    %8222 = vmatmul.mubr.bf16.gmra.mrb[0].mxu0 %v7972
    %v8223 = vpop.f32.mrb[0].mxu0
    %v8224 = vadd.f32 %v8181, %v8223
    %v8225 = vpop.f32.mrb[0].mxu0
    %v8226 = vadd.f32 %v8183, %v8225
    %v8227 = vpop.f32.mrb[0].mxu0
    %v8228 = vadd.f32 %v8185, %v8227
    %v8229 = vpop.f32.mrb[0].mxu0
    %v8230 = vadd.f32 %v8187, %v8229
    %8231 = vdwg.mxu0
    %8232 = vmatprep.subr.bf16.mxu0 %v7810
    %8233 = vmatpush1.bf16.msra.mxu0 %v7809
    %8234 = vmatprep.subr.bf16.mxu0 %v7818
    %8235 = vmatpush1.bf16.msra.mxu0 %v7817
    %8236 = vmatprep.subr.bf16.mxu0 %v7826
    %8237 = vmatpush1.bf16.msra.mxu0 %v7825
    %8238 = vmatprep.subr.bf16.mxu0 %v7834
    %8239 = vmatpush1.bf16.msra.mxu0 %v7833
    %8240 = vmatprep.subr.bf16.mxu0 %v7842
    %8241 = vmatpush1.bf16.msra.mxu0 %v7841
    %8242 = vmatprep.subr.bf16.mxu0 %v7850
    %8243 = vmatpush1.bf16.msra.mxu0 %v7849
    %8244 = vmatprep.subr.bf16.mxu0 %v7858
    %8245 = vmatpush1.bf16.msra.mxu0 %v7857
    %8246 = vmatprep.subr.bf16.mxu0 %v7866
    %8247 = vmatpush1.bf16.msra.mxu0 %v7865
    %8248 = vmatprep.subr.bf16.mxu0 %v7874
    %8249 = vmatpush1.bf16.msra.mxu0 %v7873
    %8250 = vmatprep.subr.bf16.mxu0 %v7882
    %8251 = vmatpush1.bf16.msra.mxu0 %v7881
    %8252 = vmatprep.subr.bf16.mxu0 %v7890
    %8253 = vmatpush1.bf16.msra.mxu0 %v7889
    %8254 = vmatprep.subr.bf16.mxu0 %v7898
    %8255 = vmatpush1.bf16.msra.mxu0 %v7897
    %8256 = vmatprep.subr.bf16.mxu0 %v7906
    %8257 = vmatpush1.bf16.msra.mxu0 %v7905
    %8258 = vmatprep.subr.bf16.mxu0 %v7914
    %8259 = vmatpush1.bf16.msra.mxu0 %v7913
    %8260 = vmatprep.subr.bf16.mxu0 %v7922
    %8261 = vmatpush1.bf16.msra.mxu0 %v7921
    %8262 = vmatprep.subr.bf16.mxu0 %v7930
    %8263 = vmatpush1.bf16.msra.mxu0 %v7929
    %8264 = vmatprep.mubr.bf16.mxu0 %v7961
    %8265 = vmatmul.mubr.bf16.gmra.mrb[0].mxu0 %v7954
    %v8266 = vpop.f32.mrb[0].mxu0
    %v8267 = vadd.f32 0.0, %v8266
    %v8268 = vpop.f32.mrb[0].mxu0
    %v8269 = vadd.f32 0.0, %v8268
    %v8270 = vpop.f32.mrb[0].mxu0
    %v8271 = vadd.f32 0.0, %v8270
    %v8272 = vpop.f32.mrb[0].mxu0
    %v8273 = vadd.f32 0.0, %v8272
    %8274 = vdwg.mxu0
    %8275 = vmatprep.subr.bf16.mxu0 %v7938
    %8276 = vmatpush1.bf16.msra.mxu0 %v7937
    %8277 = vmatprep.subr.bf16.mxu0 %v7946
    %8278 = vmatpush1.bf16.msra.mxu0 %v7945
    %8279 = vmatprep.subr.bf16.mxu0 0
    %8280 = vmatpush1.bf16.msra.mxu0 0
    %8281 = vmatprep.subr.bf16.mxu0 0
    %8282 = vmatpush1.bf16.msra.mxu0 0
    %8283 = vmatprep.subr.bf16.mxu0 0
    %8284 = vmatpush1.bf16.msra.mxu0 0
    %8285 = vmatprep.subr.bf16.mxu0 0
    %8286 = vmatpush1.bf16.msra.mxu0 0
    %8287 = vmatprep.subr.bf16.mxu0 0
    %8288 = vmatpush1.bf16.msra.mxu0 0
    %8289 = vmatprep.subr.bf16.mxu0 0
    %8290 = vmatpush1.bf16.msra.mxu0 0
    %8291 = vmatprep.subr.bf16.mxu0 0
    %8292 = vmatpush1.bf16.msra.mxu0 0
    %8293 = vmatprep.subr.bf16.mxu0 0
    %8294 = vmatpush1.bf16.msra.mxu0 0
    %8295 = vmatprep.subr.bf16.mxu0 0
    %8296 = vmatpush1.bf16.msra.mxu0 0
    %8297 = vmatprep.subr.bf16.mxu0 0
    %8298 = vmatpush1.bf16.msra.mxu0 0
    %8299 = vmatprep.subr.bf16.mxu0 0
    %8300 = vmatpush1.bf16.msra.mxu0 0
    %8301 = vmatprep.subr.bf16.mxu0 0
    %8302 = vmatpush1.bf16.msra.mxu0 0
    %8303 = vmatprep.subr.bf16.mxu0 0
    %8304 = vmatpush1.bf16.msra.mxu0 0
    %8305 = vmatprep.subr.bf16.mxu0 0
    %8306 = vmatpush1.bf16.msra.mxu0 0
    %8307 = vmatprep.mubr.bf16.mxu0 0
    %8308 = vmatmul.mubr.bf16.gmra.mrb[0].mxu0 %v7972
    %v8309 = vpop.f32.mrb[0].mxu0
    %v8310 = vadd.f32 %v8267, %v8309
    %v8311 = vpop.f32.mrb[0].mxu0
    %v8312 = vadd.f32 %v8269, %v8311
    %v8313 = vpop.f32.mrb[0].mxu0
    %v8314 = vadd.f32 %v8271, %v8313
    %v8315 = vpop.f32.mrb[0].mxu0
    %v8316 = vadd.f32 %v8273, %v8315
    %8317 = vdwg.mxu0
    %v8318 = vadd.f32 %v7785, %v8052
    %v8319 = vadd.f32 %v7786, %v8054
    %v8320 = vadd.f32 %v7787, %v8138
    %v8321 = vadd.f32 %v7788, %v8140
    %v8322 = vadd.f32 %v7789, %v8224
    %v8323 = vadd.f32 %v7790, %v8226
    %v8324 = vadd.f32 %v7791, %v8310
    %v8325 = vadd.f32 %v7792, %v8312
    %v8326 = vadd.f32 %v7793, %v8056
    %v8327 = vadd.f32 %v7794, %v8058
    %v8328 = vadd.f32 %v7795, %v8142
    %v8329 = vadd.f32 %v7796, %v8144
    %v8330 = vadd.f32 %v7797, %v8228
    %v8331 = vadd.f32 %v7798, %v8230
    %v8332 = vadd.f32 %v7799, %v8314
    %v8333 = vadd.f32 %v7800, %v8316
    %s8334 = sshll.u32 %s4136, 4
    %8335 = dma.done %s376, %s8334
    %v8336 = vld [vmem:[%s375] sm:$0xff]
    %v8337 = vld [vmem:[%s375 + $0x8] sm:$0xff]
    %v8338 = vld [vmem:[%s375 + $0x10] sm:$0xff]
    %v8339 = vld [vmem:[%s375 + $0x18] sm:$0xff]
    %v8340 = vld [vmem:[%s375 + $0x20] sm:$0xff]
    %v8341 = vld [vmem:[%s375 + $0x28] sm:$0xff]
    %v8342 = vld [vmem:[%s375 + $0x30] sm:$0xff]
    %v8343 = vld [vmem:[%s375 + $0x38] sm:$0xff]
    %v8344 = vld [vmem:[%s375 + $0x40] sm:$0xff]
    %v8345 = vld [vmem:[%s375 + $0x48] sm:$0xff]
    %v8346 = vld [vmem:[%s375 + $0x50] sm:$0xff]
    %v8347 = vld [vmem:[%s375 + $0x58] sm:$0xff]
    %v8348 = vld [vmem:[%s375 + $0x60] sm:$0xff]
    %v8349 = vld [vmem:[%s375 + $0x68] sm:$0xff]
    %v8350 = vld [vmem:[%s375 + $0x70] sm:$0xff]
    %v8351 = vld [vmem:[%s375 + $0x78] sm:$0xff]
    %v8352 = vld [vmem:[%s375 + $0x80] sm:$0xff]
    %v8353 = vld [vmem:[%s375 + $0x88] sm:$0xff]
    %v8354 = vld [vmem:[%s375 + $0x90] sm:$0xff]
    %v8355 = vld [vmem:[%s375 + $0x98] sm:$0xff]
    %v8356 = vld [vmem:[%s375 + $0xa0] sm:$0xff]
    %v8357 = vld [vmem:[%s375 + $0xa8] sm:$0xff]
    %v8358 = vld [vmem:[%s375 + $0xb0] sm:$0xff]
    %v8359 = vld [vmem:[%s375 + $0xb8] sm:$0xff]
    %v8360 = vld [vmem:[%s375 + $0xc0] sm:$0xff]
    %v8361 = vld [vmem:[%s375 + $0xc8] sm:$0xff]
    %v8362 = vld [vmem:[%s375 + $0xd0] sm:$0xff]
    %v8363 = vld [vmem:[%s375 + $0xd8] sm:$0xff]
    %v8364 = vld [vmem:[%s375 + $0xe0] sm:$0xff]
    %v8365 = vld [vmem:[%s375 + $0xe8] sm:$0xff]
    %v8366 = vld [vmem:[%s375 + $0xf0] sm:$0xff]
    %v8367 = vld [vmem:[%s375 + $0xf8] sm:$0xff]
    %v8368 = vld [vmem:[%s375 + $0x100] sm:$0xff]
    %v8369 = vld [vmem:[%s375 + $0x108] sm:$0xff]
    %v8370 = vld [vmem:[%s375 + $0x110] sm:$0xff]
    %v8371 = vld [vmem:[%s375 + $0x118] sm:$0xff]
    %v8372 = vld [vmem:[%s375 + $0x120] sm:$0xff]
    %v8373 = vld [vmem:[%s375 + $0x128] sm:$0xff]
    %v8374 = vld [vmem:[%s375 + $0x130] sm:$0xff]
    %v8375 = vld [vmem:[%s375 + $0x138] sm:$0xff]
    %v8376 = vld [vmem:[%s375 + $0x140] sm:$0xff]
    %v8377 = vld [vmem:[%s375 + $0x148] sm:$0xff]
    %v8378 = vld [vmem:[%s375 + $0x150] sm:$0xff]
    %v8379 = vld [vmem:[%s375 + $0x158] sm:$0xff]
    %v8380 = vld [vmem:[%s375 + $0x160] sm:$0xff]
    %v8381 = vld [vmem:[%s375 + $0x168] sm:$0xff]
    %v8382 = vld [vmem:[%s375 + $0x170] sm:$0xff]
    %v8383 = vld [vmem:[%s375 + $0x178] sm:$0xff]
    %v8384 = vld [vmem:[%s375 + $0x180] sm:$0xff]
    %v8385 = vld [vmem:[%s375 + $0x188] sm:$0xff]
    %v8386 = vld [vmem:[%s375 + $0x190] sm:$0xff]
    %v8387 = vld [vmem:[%s375 + $0x198] sm:$0xff]
    %v8388 = vld [vmem:[%s375 + $0x1a0] sm:$0xff]
    %v8389 = vld [vmem:[%s375 + $0x1a8] sm:$0xff]
    %v8390 = vld [vmem:[%s375 + $0x1b0] sm:$0xff]
    %v8391 = vld [vmem:[%s375 + $0x1b8] sm:$0xff]
    %v8392 = vld [vmem:[%s375 + $0x1c0] sm:$0xff]
    %v8393 = vld [vmem:[%s375 + $0x1c8] sm:$0xff]
    %v8394 = vld [vmem:[%s375 + $0x1d0] sm:$0xff]
    %v8395 = vld [vmem:[%s375 + $0x1d8] sm:$0xff]
    %v8396 = vld [vmem:[%s375 + $0x1e0] sm:$0xff]
    %v8397 = vld [vmem:[%s375 + $0x1e8] sm:$0xff]
    %v8398 = vld [vmem:[%s375 + $0x1f0] sm:$0xff]
    %v8399 = vld [vmem:[%s375 + $0x1f8] sm:$0xff]
    %v8400 = vld [vmem:[%s375 + $0x200] sm:$0xff]
    %v8401 = vld [vmem:[%s375 + $0x208] sm:$0xff]
    %v8402 = vld [vmem:[%s375 + $0x210] sm:$0xff]
    %v8403 = vld [vmem:[%s375 + $0x218] sm:$0xff]
    %v8404 = vld [vmem:[%s375 + $0x220] sm:$0xff]
    %v8405 = vld [vmem:[%s375 + $0x228] sm:$0xff]
    %v8406 = vld [vmem:[%s375 + $0x230] sm:$0xff]
    %v8407 = vld [vmem:[%s375 + $0x238] sm:$0xff]
    %v8408 = vld [vmem:[%s375 + $0x240] sm:$0xff]
    %v8409 = vld [vmem:[%s375 + $0x248] sm:$0xff]
    %v8410 = vld [vmem:[%s375 + $0x250] sm:$0xff]
    %v8411 = vld [vmem:[%s375 + $0x258] sm:$0xff]
    %v8412 = vld [vmem:[%s375 + $0x260] sm:$0xff]
    %v8413 = vld [vmem:[%s375 + $0x268] sm:$0xff]
    %v8414 = vld [vmem:[%s375 + $0x270] sm:$0xff]
    %v8415 = vld [vmem:[%s375 + $0x278] sm:$0xff]
    %v8416 = vld [vmem:[%s375 + $0x280] sm:$0xff]
    %v8417 = vld [vmem:[%s375 + $0x288] sm:$0xff]
    %v8418 = vld [vmem:[%s375 + $0x290] sm:$0xff]
    %v8419 = vld [vmem:[%s375 + $0x298] sm:$0xff]
    %v8420 = vld [vmem:[%s375 + $0x2a0] sm:$0xff]
    %v8421 = vld [vmem:[%s375 + $0x2a8] sm:$0xff]
    %v8422 = vld [vmem:[%s375 + $0x2b0] sm:$0xff]
    %v8423 = vld [vmem:[%s375 + $0x2b8] sm:$0xff]
    %v8424 = vld [vmem:[%s375 + $0x2c0] sm:$0xff]
    %v8425 = vld [vmem:[%s375 + $0x2c8] sm:$0xff]
    %v8426 = vld [vmem:[%s375 + $0x2d0] sm:$0xff]
    %v8427 = vld [vmem:[%s375 + $0x2d8] sm:$0xff]
    %v8428 = vld [vmem:[%s375 + $0x2e0] sm:$0xff]
    %v8429 = vld [vmem:[%s375 + $0x2e8] sm:$0xff]
    %v8430 = vld [vmem:[%s375 + $0x2f0] sm:$0xff]
    %v8431 = vld [vmem:[%s375 + $0x2f8] sm:$0xff]
    %v8432 = vld [vmem:[%s375 + $0x300] sm:$0xff]
    %v8433 = vld [vmem:[%s375 + $0x308] sm:$0xff]
    %v8434 = vld [vmem:[%s375 + $0x310] sm:$0xff]
    %v8435 = vld [vmem:[%s375 + $0x318] sm:$0xff]
    %v8436 = vld [vmem:[%s375 + $0x320] sm:$0xff]
    %v8437 = vld [vmem:[%s375 + $0x328] sm:$0xff]
    %v8438 = vld [vmem:[%s375 + $0x330] sm:$0xff]
    %v8439 = vld [vmem:[%s375 + $0x338] sm:$0xff]
    %v8440 = vld [vmem:[%s375 + $0x340] sm:$0xff]
    %v8441 = vld [vmem:[%s375 + $0x348] sm:$0xff]
    %v8442 = vld [vmem:[%s375 + $0x350] sm:$0xff]
    %v8443 = vld [vmem:[%s375 + $0x358] sm:$0xff]
    %v8444 = vld [vmem:[%s375 + $0x360] sm:$0xff]
    %v8445 = vld [vmem:[%s375 + $0x368] sm:$0xff]
    %v8446 = vld [vmem:[%s375 + $0x370] sm:$0xff]
    %v8447 = vld [vmem:[%s375 + $0x378] sm:$0xff]
    %v8448 = vld [vmem:[%s375 + $0x380] sm:$0xff]
    %v8449 = vld [vmem:[%s375 + $0x388] sm:$0xff]
    %v8450 = vld [vmem:[%s375 + $0x390] sm:$0xff]
    %v8451 = vld [vmem:[%s375 + $0x398] sm:$0xff]
    %v8452 = vld [vmem:[%s375 + $0x3a0] sm:$0xff]
    %v8453 = vld [vmem:[%s375 + $0x3a8] sm:$0xff]
    %v8454 = vld [vmem:[%s375 + $0x3b0] sm:$0xff]
    %v8455 = vld [vmem:[%s375 + $0x3b8] sm:$0xff]
    %v8456 = vld [vmem:[%s375 + $0x3c0] sm:$0xff]
    %v8457 = vld [vmem:[%s375 + $0x3c8] sm:$0xff]
    %v8458 = vld [vmem:[%s375 + $0x3d0] sm:$0xff]
    %v8459 = vld [vmem:[%s375 + $0x3d8] sm:$0xff]
    %v8460 = vld [vmem:[%s375 + $0x3e0] sm:$0xff]
    %v8461 = vld [vmem:[%s375 + $0x3e8] sm:$0xff]
    %v8462 = vld [vmem:[%s375 + $0x3f0] sm:$0xff]
    %v8463 = vld [vmem:[%s375 + $0x3f8] sm:$0xff]
    %v8464 = vld [vmem:[%s375 + $0x400] sm:$0xff]
    %v8465 = vld [vmem:[%s375 + $0x408] sm:$0xff]
    %v8466 = vld [vmem:[%s375 + $0x410] sm:$0xff]
    %v8467 = vld [vmem:[%s375 + $0x418] sm:$0xff]
    %v8468 = vld [vmem:[%s375 + $0x420] sm:$0xff]
    %v8469 = vld [vmem:[%s375 + $0x428] sm:$0xff]
    %v8470 = vld [vmem:[%s375 + $0x430] sm:$0xff]
    %v8471 = vld [vmem:[%s375 + $0x438] sm:$0xff]
    %v8472 = vld [vmem:[%s375 + $0x440] sm:$0xff]
    %v8473 = vld [vmem:[%s375 + $0x448] sm:$0xff]
    %v8474 = vld [vmem:[%s375 + $0x450] sm:$0xff]
    %v8475 = vld [vmem:[%s375 + $0x458] sm:$0xff]
    %v8476 = vld [vmem:[%s375 + $0x460] sm:$0xff]
    %v8477 = vld [vmem:[%s375 + $0x468] sm:$0xff]
    %v8478 = vld [vmem:[%s375 + $0x470] sm:$0xff]
    %v8479 = vld [vmem:[%s375 + $0x478] sm:$0xff]
    %vm8480 = vcmask 1043456
    %v8481 = vrot.slane %v4129, 4
    %v8482 = vrot.slane %v4132, 4
    %v8483 = vsel %vm8480, %v8481, %v8482
    %v8484 = vrot.slane %v4130, 4
    %v8485 = vrot.slane %v4133, 4
    %v8486 = vsel %vm8480, %v8484, %v8485
    %v8487 = vrot.slane %v4131, 4
    %v8488 = vrot.slane %v4134, 4
    %v8489 = vsel %vm8480, %v8487, %v8488
    %v8493 = vsel %vm4467, %v8489, 0
    %8495 = vmatprep.subr.bf16.mxu0 %v8337
    %8496 = vmatpush1.bf16.msra.mxu0 %v8336
    %8497 = vmatprep.subr.bf16.mxu0 %v8345
    %8498 = vmatpush1.bf16.msra.mxu0 %v8344
    %8499 = vmatprep.subr.bf16.mxu0 %v8353
    %8500 = vmatpush1.bf16.msra.mxu0 %v8352
    %8501 = vmatprep.subr.bf16.mxu0 %v8361
    %8502 = vmatpush1.bf16.msra.mxu0 %v8360
    %8503 = vmatprep.subr.bf16.mxu0 %v8369
    %8504 = vmatpush1.bf16.msra.mxu0 %v8368
    %8505 = vmatprep.subr.bf16.mxu0 %v8377
    %8506 = vmatpush1.bf16.msra.mxu0 %v8376
    %8507 = vmatprep.subr.bf16.mxu0 %v8385
    %8508 = vmatpush1.bf16.msra.mxu0 %v8384
    %8509 = vmatprep.subr.bf16.mxu0 %v8393
    %8510 = vmatpush1.bf16.msra.mxu0 %v8392
    %8511 = vmatprep.subr.bf16.mxu0 %v8401
    %8512 = vmatpush1.bf16.msra.mxu0 %v8400
    %8513 = vmatprep.subr.bf16.mxu0 %v8409
    %8514 = vmatpush1.bf16.msra.mxu0 %v8408
    %8515 = vmatprep.subr.bf16.mxu0 %v8417
    %8516 = vmatpush1.bf16.msra.mxu0 %v8416
    %8517 = vmatprep.subr.bf16.mxu0 %v8425
    %8518 = vmatpush1.bf16.msra.mxu0 %v8424
    %8519 = vmatprep.subr.bf16.mxu0 %v8433
    %8520 = vmatpush1.bf16.msra.mxu0 %v8432
    %8521 = vmatprep.subr.bf16.mxu0 %v8441
    %8522 = vmatpush1.bf16.msra.mxu0 %v8440
    %8523 = vmatprep.subr.bf16.mxu0 %v8449
    %8524 = vmatpush1.bf16.msra.mxu0 %v8448
    %8525 = vmatprep.subr.bf16.mxu0 %v8457
    %8526 = vmatpush1.bf16.msra.mxu0 %v8456
    %8527 = vmatprep.mubr.bf16.mxu0 %v8486
    %8528 = vmatmul.mubr.bf16.gmra.mrb[0].mxu0 %v8483
    %v8529 = vpop.f32.mrb[0].mxu0
    %v8530 = vadd.f32 0.0, %v8529
    %v8531 = vpop.f32.mrb[0].mxu0
    %v8532 = vadd.f32 0.0, %v8531
    %v8533 = vpop.f32.mrb[0].mxu0
    %v8534 = vadd.f32 0.0, %v8533
    %v8535 = vpop.f32.mrb[0].mxu0
    %v8536 = vadd.f32 0.0, %v8535
    %8537 = vdwg.mxu0
    %8538 = vmatprep.subr.bf16.mxu0 %v8465
    %8539 = vmatpush1.bf16.msra.mxu0 %v8464
    %8540 = vmatprep.subr.bf16.mxu0 %v8473
    %8541 = vmatpush1.bf16.msra.mxu0 %v8472
    %8542 = vmatprep.subr.bf16.mxu0 0
    %8543 = vmatpush1.bf16.msra.mxu0 0
    %8544 = vmatprep.subr.bf16.mxu0 0
    %8545 = vmatpush1.bf16.msra.mxu0 0
    %8546 = vmatprep.subr.bf16.mxu0 0
    %8547 = vmatpush1.bf16.msra.mxu0 0
    %8548 = vmatprep.subr.bf16.mxu0 0
    %8549 = vmatpush1.bf16.msra.mxu0 0
    %8550 = vmatprep.subr.bf16.mxu0 0
    %8551 = vmatpush1.bf16.msra.mxu0 0
    %8552 = vmatprep.subr.bf16.mxu0 0
    %8553 = vmatpush1.bf16.msra.mxu0 0
    %8554 = vmatprep.subr.bf16.mxu0 0
    %8555 = vmatpush1.bf16.msra.mxu0 0
    %8556 = vmatprep.subr.bf16.mxu0 0
    %8557 = vmatpush1.bf16.msra.mxu0 0
    %8558 = vmatprep.subr.bf16.mxu0 0
    %8559 = vmatpush1.bf16.msra.mxu0 0
    %8560 = vmatprep.subr.bf16.mxu0 0
    %8561 = vmatpush1.bf16.msra.mxu0 0
    %8562 = vmatprep.subr.bf16.mxu0 0
    %8563 = vmatpush1.bf16.msra.mxu0 0
    %8564 = vmatprep.subr.bf16.mxu0 0
    %8565 = vmatpush1.bf16.msra.mxu0 0
    %8566 = vmatprep.subr.bf16.mxu0 0
    %8567 = vmatpush1.bf16.msra.mxu0 0
    %8568 = vmatprep.subr.bf16.mxu0 0
    %8569 = vmatpush1.bf16.msra.mxu0 0
    %8570 = vmatprep.mubr.bf16.mxu0 0
    %8571 = vmatmul.mubr.bf16.gmra.mrb[0].mxu0 %v8493
    %v8572 = vpop.f32.mrb[0].mxu0
    %v8573 = vadd.f32 %v8530, %v8572
    %v8574 = vpop.f32.mrb[0].mxu0
    %v8575 = vadd.f32 %v8532, %v8574
    %v8576 = vpop.f32.mrb[0].mxu0
    %v8577 = vadd.f32 %v8534, %v8576
    %v8578 = vpop.f32.mrb[0].mxu0
    %v8579 = vadd.f32 %v8536, %v8578
    %8580 = vdwg.mxu0
    %8581 = vmatprep.subr.bf16.mxu0 %v8339
    %8582 = vmatpush1.bf16.msra.mxu0 %v8338
    %8583 = vmatprep.subr.bf16.mxu0 %v8347
    %8584 = vmatpush1.bf16.msra.mxu0 %v8346
    %8585 = vmatprep.subr.bf16.mxu0 %v8355
    %8586 = vmatpush1.bf16.msra.mxu0 %v8354
    %8587 = vmatprep.subr.bf16.mxu0 %v8363
    %8588 = vmatpush1.bf16.msra.mxu0 %v8362
    %8589 = vmatprep.subr.bf16.mxu0 %v8371
    %8590 = vmatpush1.bf16.msra.mxu0 %v8370
    %8591 = vmatprep.subr.bf16.mxu0 %v8379
    %8592 = vmatpush1.bf16.msra.mxu0 %v8378
    %8593 = vmatprep.subr.bf16.mxu0 %v8387
    %8594 = vmatpush1.bf16.msra.mxu0 %v8386
    %8595 = vmatprep.subr.bf16.mxu0 %v8395
    %8596 = vmatpush1.bf16.msra.mxu0 %v8394
    %8597 = vmatprep.subr.bf16.mxu0 %v8403
    %8598 = vmatpush1.bf16.msra.mxu0 %v8402
    %8599 = vmatprep.subr.bf16.mxu0 %v8411
    %8600 = vmatpush1.bf16.msra.mxu0 %v8410
    %8601 = vmatprep.subr.bf16.mxu0 %v8419
    %8602 = vmatpush1.bf16.msra.mxu0 %v8418
    %8603 = vmatprep.subr.bf16.mxu0 %v8427
    %8604 = vmatpush1.bf16.msra.mxu0 %v8426
    %8605 = vmatprep.subr.bf16.mxu0 %v8435
    %8606 = vmatpush1.bf16.msra.mxu0 %v8434
    %8607 = vmatprep.subr.bf16.mxu0 %v8443
    %8608 = vmatpush1.bf16.msra.mxu0 %v8442
    %8609 = vmatprep.subr.bf16.mxu0 %v8451
    %8610 = vmatpush1.bf16.msra.mxu0 %v8450
    %8611 = vmatprep.subr.bf16.mxu0 %v8459
    %8612 = vmatpush1.bf16.msra.mxu0 %v8458
    %8613 = vmatprep.mubr.bf16.mxu0 %v8486
    %8614 = vmatmul.mubr.bf16.gmra.mrb[0].mxu0 %v8483
    %v8615 = vpop.f32.mrb[0].mxu0
    %v8616 = vadd.f32 0.0, %v8615
    %v8617 = vpop.f32.mrb[0].mxu0
    %v8618 = vadd.f32 0.0, %v8617
    %v8619 = vpop.f32.mrb[0].mxu0
    %v8620 = vadd.f32 0.0, %v8619
    %v8621 = vpop.f32.mrb[0].mxu0
    %v8622 = vadd.f32 0.0, %v8621
    %8623 = vdwg.mxu0
    %8624 = vmatprep.subr.bf16.mxu0 %v8467
    %8625 = vmatpush1.bf16.msra.mxu0 %v8466
    %8626 = vmatprep.subr.bf16.mxu0 %v8475
    %8627 = vmatpush1.bf16.msra.mxu0 %v8474
    %8628 = vmatprep.subr.bf16.mxu0 0
    %8629 = vmatpush1.bf16.msra.mxu0 0
    %8630 = vmatprep.subr.bf16.mxu0 0
    %8631 = vmatpush1.bf16.msra.mxu0 0
    %8632 = vmatprep.subr.bf16.mxu0 0
    %8633 = vmatpush1.bf16.msra.mxu0 0
    %8634 = vmatprep.subr.bf16.mxu0 0
    %8635 = vmatpush1.bf16.msra.mxu0 0
    %8636 = vmatprep.subr.bf16.mxu0 0
    %8637 = vmatpush1.bf16.msra.mxu0 0
    %8638 = vmatprep.subr.bf16.mxu0 0
    %8639 = vmatpush1.bf16.msra.mxu0 0
    %8640 = vmatprep.subr.bf16.mxu0 0
    %8641 = vmatpush1.bf16.msra.mxu0 0
    %8642 = vmatprep.subr.bf16.mxu0 0
    %8643 = vmatpush1.bf16.msra.mxu0 0
    %8644 = vmatprep.subr.bf16.mxu0 0
    %8645 = vmatpush1.bf16.msra.mxu0 0
    %8646 = vmatprep.subr.bf16.mxu0 0
    %8647 = vmatpush1.bf16.msra.mxu0 0
    %8648 = vmatprep.subr.bf16.mxu0 0
    %8649 = vmatpush1.bf16.msra.mxu0 0
    %8650 = vmatprep.subr.bf16.mxu0 0
    %8651 = vmatpush1.bf16.msra.mxu0 0
    %8652 = vmatprep.subr.bf16.mxu0 0
    %8653 = vmatpush1.bf16.msra.mxu0 0
    %8654 = vmatprep.subr.bf16.mxu0 0
    %8655 = vmatpush1.bf16.msra.mxu0 0
    %8656 = vmatprep.mubr.bf16.mxu0 0
    %8657 = vmatmul.mubr.bf16.gmra.mrb[0].mxu0 %v8493
    %v8658 = vpop.f32.mrb[0].mxu0
    %v8659 = vadd.f32 %v8616, %v8658
    %v8660 = vpop.f32.mrb[0].mxu0
    %v8661 = vadd.f32 %v8618, %v8660
    %v8662 = vpop.f32.mrb[0].mxu0
    %v8663 = vadd.f32 %v8620, %v8662
    %v8664 = vpop.f32.mrb[0].mxu0
    %v8665 = vadd.f32 %v8622, %v8664
    %8666 = vdwg.mxu0
    %8667 = vmatprep.subr.bf16.mxu0 %v8341
    %8668 = vmatpush1.bf16.msra.mxu0 %v8340
    %8669 = vmatprep.subr.bf16.mxu0 %v8349
    %8670 = vmatpush1.bf16.msra.mxu0 %v8348
    %8671 = vmatprep.subr.bf16.mxu0 %v8357
    %8672 = vmatpush1.bf16.msra.mxu0 %v8356
    %8673 = vmatprep.subr.bf16.mxu0 %v8365
    %8674 = vmatpush1.bf16.msra.mxu0 %v8364
    %8675 = vmatprep.subr.bf16.mxu0 %v8373
    %8676 = vmatpush1.bf16.msra.mxu0 %v8372
    %8677 = vmatprep.subr.bf16.mxu0 %v8381
    %8678 = vmatpush1.bf16.msra.mxu0 %v8380
    %8679 = vmatprep.subr.bf16.mxu0 %v8389
    %8680 = vmatpush1.bf16.msra.mxu0 %v8388
    %8681 = vmatprep.subr.bf16.mxu0 %v8397
    %8682 = vmatpush1.bf16.msra.mxu0 %v8396
    %8683 = vmatprep.subr.bf16.mxu0 %v8405
    %8684 = vmatpush1.bf16.msra.mxu0 %v8404
    %8685 = vmatprep.subr.bf16.mxu0 %v8413
    %8686 = vmatpush1.bf16.msra.mxu0 %v8412
    %8687 = vmatprep.subr.bf16.mxu0 %v8421
    %8688 = vmatpush1.bf16.msra.mxu0 %v8420
    %8689 = vmatprep.subr.bf16.mxu0 %v8429
    %8690 = vmatpush1.bf16.msra.mxu0 %v8428
    %8691 = vmatprep.subr.bf16.mxu0 %v8437
    %8692 = vmatpush1.bf16.msra.mxu0 %v8436
    %8693 = vmatprep.subr.bf16.mxu0 %v8445
    %8694 = vmatpush1.bf16.msra.mxu0 %v8444
    %8695 = vmatprep.subr.bf16.mxu0 %v8453
    %8696 = vmatpush1.bf16.msra.mxu0 %v8452
    %8697 = vmatprep.subr.bf16.mxu0 %v8461
    %8698 = vmatpush1.bf16.msra.mxu0 %v8460
    %8699 = vmatprep.mubr.bf16.mxu0 %v8486
    %8700 = vmatmul.mubr.bf16.gmra.mrb[0].mxu0 %v8483
    %v8701 = vpop.f32.mrb[0].mxu0
    %v8702 = vadd.f32 0.0, %v8701
    %v8703 = vpop.f32.mrb[0].mxu0
    %v8704 = vadd.f32 0.0, %v8703
    %v8705 = vpop.f32.mrb[0].mxu0
    %v8706 = vadd.f32 0.0, %v8705
    %v8707 = vpop.f32.mrb[0].mxu0
    %v8708 = vadd.f32 0.0, %v8707
    %8709 = vdwg.mxu0
    %8710 = vmatprep.subr.bf16.mxu0 %v8469
    %8711 = vmatpush1.bf16.msra.mxu0 %v8468
    %8712 = vmatprep.subr.bf16.mxu0 %v8477
    %8713 = vmatpush1.bf16.msra.mxu0 %v8476
    %8714 = vmatprep.subr.bf16.mxu0 0
    %8715 = vmatpush1.bf16.msra.mxu0 0
    %8716 = vmatprep.subr.bf16.mxu0 0
    %8717 = vmatpush1.bf16.msra.mxu0 0
    %8718 = vmatprep.subr.bf16.mxu0 0
    %8719 = vmatpush1.bf16.msra.mxu0 0
    %8720 = vmatprep.subr.bf16.mxu0 0
    %8721 = vmatpush1.bf16.msra.mxu0 0
    %8722 = vmatprep.subr.bf16.mxu0 0
    %8723 = vmatpush1.bf16.msra.mxu0 0
    %8724 = vmatprep.subr.bf16.mxu0 0
    %8725 = vmatpush1.bf16.msra.mxu0 0
    %8726 = vmatprep.subr.bf16.mxu0 0
    %8727 = vmatpush1.bf16.msra.mxu0 0
    %8728 = vmatprep.subr.bf16.mxu0 0
    %8729 = vmatpush1.bf16.msra.mxu0 0
    %8730 = vmatprep.subr.bf16.mxu0 0
    %8731 = vmatpush1.bf16.msra.mxu0 0
    %8732 = vmatprep.subr.bf16.mxu0 0
    %8733 = vmatpush1.bf16.msra.mxu0 0
    %8734 = vmatprep.subr.bf16.mxu0 0
    %8735 = vmatpush1.bf16.msra.mxu0 0
    %8736 = vmatprep.subr.bf16.mxu0 0
    %8737 = vmatpush1.bf16.msra.mxu0 0
    %8738 = vmatprep.subr.bf16.mxu0 0
    %8739 = vmatpush1.bf16.msra.mxu0 0
    %8740 = vmatprep.subr.bf16.mxu0 0
    %8741 = vmatpush1.bf16.msra.mxu0 0
    %8742 = vmatprep.mubr.bf16.mxu0 0
    %8743 = vmatmul.mubr.bf16.gmra.mrb[0].mxu0 %v8493
    %v8744 = vpop.f32.mrb[0].mxu0
    %v8745 = vadd.f32 %v8702, %v8744
    %v8746 = vpop.f32.mrb[0].mxu0
    %v8747 = vadd.f32 %v8704, %v8746
    %v8748 = vpop.f32.mrb[0].mxu0
    %v8749 = vadd.f32 %v8706, %v8748
    %v8750 = vpop.f32.mrb[0].mxu0
    %v8751 = vadd.f32 %v8708, %v8750
    %8752 = vdwg.mxu0
    %8753 = vmatprep.subr.bf16.mxu0 %v8343
    %8754 = vmatpush1.bf16.msra.mxu0 %v8342
    %8755 = vmatprep.subr.bf16.mxu0 %v8351
    %8756 = vmatpush1.bf16.msra.mxu0 %v8350
    %8757 = vmatprep.subr.bf16.mxu0 %v8359
    %8758 = vmatpush1.bf16.msra.mxu0 %v8358
    %8759 = vmatprep.subr.bf16.mxu0 %v8367
    %8760 = vmatpush1.bf16.msra.mxu0 %v8366
    %8761 = vmatprep.subr.bf16.mxu0 %v8375
    %8762 = vmatpush1.bf16.msra.mxu0 %v8374
    %8763 = vmatprep.subr.bf16.mxu0 %v8383
    %8764 = vmatpush1.bf16.msra.mxu0 %v8382
    %8765 = vmatprep.subr.bf16.mxu0 %v8391
    %8766 = vmatpush1.bf16.msra.mxu0 %v8390
    %8767 = vmatprep.subr.bf16.mxu0 %v8399
    %8768 = vmatpush1.bf16.msra.mxu0 %v8398
    %8769 = vmatprep.subr.bf16.mxu0 %v8407
    %8770 = vmatpush1.bf16.msra.mxu0 %v8406
    %8771 = vmatprep.subr.bf16.mxu0 %v8415
    %8772 = vmatpush1.bf16.msra.mxu0 %v8414
    %8773 = vmatprep.subr.bf16.mxu0 %v8423
    %8774 = vmatpush1.bf16.msra.mxu0 %v8422
    %8775 = vmatprep.subr.bf16.mxu0 %v8431
    %8776 = vmatpush1.bf16.msra.mxu0 %v8430
    %8777 = vmatprep.subr.bf16.mxu0 %v8439
    %8778 = vmatpush1.bf16.msra.mxu0 %v8438
    %8779 = vmatprep.subr.bf16.mxu0 %v8447
    %8780 = vmatpush1.bf16.msra.mxu0 %v8446
    %8781 = vmatprep.subr.bf16.mxu0 %v8455
    %8782 = vmatpush1.bf16.msra.mxu0 %v8454
    %8783 = vmatprep.subr.bf16.mxu0 %v8463
    %8784 = vmatpush1.bf16.msra.mxu0 %v8462
    %8785 = vmatprep.mubr.bf16.mxu0 %v8486
    %8786 = vmatmul.mubr.bf16.gmra.mrb[0].mxu0 %v8483
    %v8787 = vpop.f32.mrb[0].mxu0
    %v8788 = vadd.f32 0.0, %v8787
    %v8789 = vpop.f32.mrb[0].mxu0
    %v8790 = vadd.f32 0.0, %v8789
    %v8791 = vpop.f32.mrb[0].mxu0
    %v8792 = vadd.f32 0.0, %v8791
    %v8793 = vpop.f32.mrb[0].mxu0
    %v8794 = vadd.f32 0.0, %v8793
    %8795 = vdwg.mxu0
    %8796 = vmatprep.subr.bf16.mxu0 %v8471
    %8797 = vmatpush1.bf16.msra.mxu0 %v8470
    %8798 = vmatprep.subr.bf16.mxu0 %v8479
    %8799 = vmatpush1.bf16.msra.mxu0 %v8478
    %8800 = vmatprep.subr.bf16.mxu0 0
    %8801 = vmatpush1.bf16.msra.mxu0 0
    %8802 = vmatprep.subr.bf16.mxu0 0
    %8803 = vmatpush1.bf16.msra.mxu0 0
    %8804 = vmatprep.subr.bf16.mxu0 0
    %8805 = vmatpush1.bf16.msra.mxu0 0
    %8806 = vmatprep.subr.bf16.mxu0 0
    %8807 = vmatpush1.bf16.msra.mxu0 0
    %8808 = vmatprep.subr.bf16.mxu0 0
    %8809 = vmatpush1.bf16.msra.mxu0 0
    %8810 = vmatprep.subr.bf16.mxu0 0
    %8811 = vmatpush1.bf16.msra.mxu0 0
    %8812 = vmatprep.subr.bf16.mxu0 0
    %8813 = vmatpush1.bf16.msra.mxu0 0
    %8814 = vmatprep.subr.bf16.mxu0 0
    %8815 = vmatpush1.bf16.msra.mxu0 0
    %8816 = vmatprep.subr.bf16.mxu0 0
    %8817 = vmatpush1.bf16.msra.mxu0 0
    %8818 = vmatprep.subr.bf16.mxu0 0
    %8819 = vmatpush1.bf16.msra.mxu0 0
    %8820 = vmatprep.subr.bf16.mxu0 0
    %8821 = vmatpush1.bf16.msra.mxu0 0
    %8822 = vmatprep.subr.bf16.mxu0 0
    %8823 = vmatpush1.bf16.msra.mxu0 0
    %8824 = vmatprep.subr.bf16.mxu0 0
    %8825 = vmatpush1.bf16.msra.mxu0 0
    %8826 = vmatprep.subr.bf16.mxu0 0
    %8827 = vmatpush1.bf16.msra.mxu0 0
    %8828 = vmatprep.mubr.bf16.mxu0 0
    %8829 = vmatmul.mubr.bf16.gmra.mrb[0].mxu0 %v8493
    %v8830 = vpop.f32.mrb[0].mxu0
    %v8831 = vadd.f32 %v8788, %v8830
    %v8832 = vpop.f32.mrb[0].mxu0
    %v8833 = vadd.f32 %v8790, %v8832
    %v8834 = vpop.f32.mrb[0].mxu0
    %v8835 = vadd.f32 %v8792, %v8834
    %v8836 = vpop.f32.mrb[0].mxu0
    %v8837 = vadd.f32 %v8794, %v8836
    %8838 = vdwg.mxu0
    %v8839 = vadd.f32 %v8318, %v8573
    %v8840 = vadd.f32 %v8319, %v8575
    %v8841 = vadd.f32 %v8320, %v8659
    %v8842 = vadd.f32 %v8321, %v8661
    %v8843 = vadd.f32 %v8322, %v8745
    %v8844 = vadd.f32 %v8323, %v8747
    %v8845 = vadd.f32 %v8324, %v8831
    %v8846 = vadd.f32 %v8325, %v8833
    %v8847 = vadd.f32 %v8326, %v8577
    %v8848 = vadd.f32 %v8327, %v8579
    %v8849 = vadd.f32 %v8328, %v8663
    %v8850 = vadd.f32 %v8329, %v8665
    %v8851 = vadd.f32 %v8330, %v8749
    %v8852 = vadd.f32 %v8331, %v8751
    %v8853 = vadd.f32 %v8332, %v8835
    %v8854 = vadd.f32 %v8333, %v8837
    %s8855 = sld [smem:[#allocation6]]
    %v8856 = vstv %s8855
    %v8857 = vmul.f32 %v8856, %v466
    %v8859 = vlaneseq
    %v8860 = vshrl.u32 %v8859, 7
    %v8861 = vsub.s32 0, %v8860
    %v8862 = vrot.slane %v8857, %v8861
    %v8863 = vlaneseq
    %v8864 = vshrl.u32 %v8863, 7
    %v8865 = vsub.s32 1, %v8864
    %v8866 = vrot.slane %v8857, %v8865
    %v8867 = vlaneseq
    %v8868 = vshrl.u32 %v8867, 7
    %v8869 = vsub.s32 2, %v8868
    %v8870 = vrot.slane %v8857, %v8869
    %v8871 = vlaneseq
    %v8872 = vshrl.u32 %v8871, 7
    %v8873 = vsub.s32 3, %v8872
    %v8874 = vrot.slane %v8857, %v8873
    %v8875 = vlaneseq
    %v8876 = vshrl.u32 %v8875, 7
    %v8877 = vsub.s32 4, %v8876
    %v8878 = vrot.slane %v8857, %v8877
    %v8879 = vlaneseq
    %v8880 = vshrl.u32 %v8879, 7
    %v8881 = vsub.s32 5, %v8880
    %v8882 = vrot.slane %v8857, %v8881
    %v8883 = vlaneseq
    %v8884 = vshrl.u32 %v8883, 7
    %v8885 = vsub.s32 6, %v8884
    %v8886 = vrot.slane %v8857, %v8885
    %v8887 = vlaneseq
    %v8888 = vshrl.u32 %v8887, 7
    %v8889 = vsub.s32 7, %v8888
    %v8890 = vrot.slane %v8857, %v8889
    %v8899 = vadd.f32 %v8839, %v8862
    %v8900 = vadd.f32 %v8840, %v8866
    %v8901 = vadd.f32 %v8841, %v8870
    %v8902 = vadd.f32 %v8842, %v8874
    %v8903 = vadd.f32 %v8843, %v8878
    %v8904 = vadd.f32 %v8844, %v8882
    %v8905 = vadd.f32 %v8845, %v8886
    %v8906 = vadd.f32 %v8846, %v8890
    %v8908 = vlaneseq
    %v8909 = vshrl.u32 %v8908, 7
    %v8910 = vsub.s32 0, %v8909
    %v8911 = vrot.slane %v470, %v8910
    %v8912 = vlaneseq
    %v8913 = vshrl.u32 %v8912, 7
    %v8914 = vsub.s32 1, %v8913
    %v8915 = vrot.slane %v470, %v8914
    %v8916 = vlaneseq
    %v8917 = vshrl.u32 %v8916, 7
    %v8918 = vsub.s32 2, %v8917
    %v8919 = vrot.slane %v470, %v8918
    %v8920 = vlaneseq
    %v8921 = vshrl.u32 %v8920, 7
    %v8922 = vsub.s32 3, %v8921
    %v8923 = vrot.slane %v470, %v8922
    %v8924 = vlaneseq
    %v8925 = vshrl.u32 %v8924, 7
    %v8926 = vsub.s32 4, %v8925
    %v8927 = vrot.slane %v470, %v8926
    %v8928 = vlaneseq
    %v8929 = vshrl.u32 %v8928, 7
    %v8930 = vsub.s32 5, %v8929
    %v8931 = vrot.slane %v470, %v8930
    %v8932 = vlaneseq
    %v8933 = vshrl.u32 %v8932, 7
    %v8934 = vsub.s32 6, %v8933
    %v8935 = vrot.slane %v470, %v8934
    %v8936 = vlaneseq
    %v8937 = vshrl.u32 %v8936, 7
    %v8938 = vsub.s32 7, %v8937
    %v8939 = vrot.slane %v470, %v8938
    %v8948 = vadd.f32 %v8899, %v8911
    %v8949 = vadd.f32 %v8900, %v8915
    %v8950 = vadd.f32 %v8901, %v8919
    %v8951 = vadd.f32 %v8902, %v8923
    %v8952 = vadd.f32 %v8903, %v8927
    %v8953 = vadd.f32 %v8904, %v8931
    %v8954 = vadd.f32 %v8905, %v8935
    %v8955 = vadd.f32 %v8906, %v8939
    %s8956 = sld [smem:[#allocation6 + $0x80]]
    %v8957 = vstv %s8956
    %v8958 = vmul.f32 %v8957, %v466
    %v8960 = vlaneseq
    %v8961 = vshrl.u32 %v8960, 7
    %v8962 = vsub.s32 0, %v8961
    %v8963 = vrot.slane %v8958, %v8962
    %v8964 = vlaneseq
    %v8965 = vshrl.u32 %v8964, 7
    %v8966 = vsub.s32 1, %v8965
    %v8967 = vrot.slane %v8958, %v8966
    %v8968 = vlaneseq
    %v8969 = vshrl.u32 %v8968, 7
    %v8970 = vsub.s32 2, %v8969
    %v8971 = vrot.slane %v8958, %v8970
    %v8972 = vlaneseq
    %v8973 = vshrl.u32 %v8972, 7
    %v8974 = vsub.s32 3, %v8973
    %v8975 = vrot.slane %v8958, %v8974
    %v8976 = vlaneseq
    %v8977 = vshrl.u32 %v8976, 7
    %v8978 = vsub.s32 4, %v8977
    %v8979 = vrot.slane %v8958, %v8978
    %v8980 = vlaneseq
    %v8981 = vshrl.u32 %v8980, 7
    %v8982 = vsub.s32 5, %v8981
    %v8983 = vrot.slane %v8958, %v8982
    %v8984 = vlaneseq
    %v8985 = vshrl.u32 %v8984, 7
    %v8986 = vsub.s32 6, %v8985
    %v8987 = vrot.slane %v8958, %v8986
    %v8988 = vlaneseq
    %v8989 = vshrl.u32 %v8988, 7
    %v8990 = vsub.s32 7, %v8989
    %v8991 = vrot.slane %v8958, %v8990
    %v9000 = vadd.f32 %v8847, %v8963
    %v9001 = vadd.f32 %v8848, %v8967
    %v9002 = vadd.f32 %v8849, %v8971
    %v9003 = vadd.f32 %v8850, %v8975
    %v9004 = vadd.f32 %v8851, %v8979
    %v9005 = vadd.f32 %v8852, %v8983
    %v9006 = vadd.f32 %v8853, %v8987
    %v9007 = vadd.f32 %v8854, %v8991
    %v9008 = vadd.f32 %v9000, %v8911
    %v9009 = vadd.f32 %v9001, %v8915
    %v9010 = vadd.f32 %v9002, %v8919
    %v9011 = vadd.f32 %v9003, %v8923
    %v9012 = vadd.f32 %v9004, %v8927
    %v9013 = vadd.f32 %v9005, %v8931
    %v9014 = vadd.f32 %v9006, %v8935
    %v9015 = vadd.f32 %v9007, %v8939
    %v9024 = vrot.slane %v9008, 6
    %v9025 = vrot.slane %v9009, 6
    %v9026 = vrot.slane %v9010, 6
    %v9027 = vrot.slane %v9011, 6
    %v9028 = vrot.slane %v9012, 6
    %v9029 = vrot.slane %v9013, 6
    %v9030 = vrot.slane %v9014, 6
    %v9031 = vrot.slane %v9015, 6
    %vm9040 = vcmask 1040384
    %v9041 = vsel %vm9040, %v8948, %v9024
    %v9042 = vsel %vm9040, %v8949, %v9025
    %v9043 = vsel %vm9040, %v8950, %v9026
    %v9044 = vsel %vm9040, %v8951, %v9027
    %v9045 = vsel %vm9040, %v8952, %v9028
    %v9046 = vsel %vm9040, %v8953, %v9029
    %v9047 = vsel %vm9040, %v8954, %v9030
    %v9048 = vsel %vm9040, %v8955, %v9031
    %v9049 = vmax.f32 %v9041, 0.0
    %v9050 = vmax.f32 %v9042, 0.0
    %v9051 = vmax.f32 %v9043, 0.0
    %v9052 = vmax.f32 %v9044, 0.0
    %v9053 = vmax.f32 %v9045, 0.0
    %v9054 = vmax.f32 %v9046, 0.0
    %v9055 = vmax.f32 %v9047, 0.0
    %v9056 = vmax.f32 %v9048, 0.0
    %s9057 = smul.u32 4, 128
    %s9058 = smul.u32 %s9057, 8
    %s9059 = sshll.u32 %s9058, 4
    %9060 = dma.done %s411, %s9059
    %v9061 = vpack.c.bf16 %v9049, %v9049
    %v9062 = vpack.c.bf16 %v9050, %v9050
    %v9063 = vpack.c.bf16 %v9051, %v9051
    %v9064 = vpack.c.bf16 %v9052, %v9052
    %v9065 = vpack.c.bf16 %v9053, %v9053
    %v9066 = vpack.c.bf16 %v9054, %v9054
    %v9067 = vpack.c.bf16 %v9055, %v9055
    %v9068 = vpack.c.bf16 %v9056, %v9056
    %v9069 = vld [vmem:[#allocation3] sm:$0xff]
    %v9070 = vld [vmem:[#allocation3 + $0x8] sm:$0xff]
    %v9071 = vld [vmem:[#allocation3 + $0x10] sm:$0xff]
    %v9072 = vld [vmem:[#allocation3 + $0x18] sm:$0xff]
    %v9073 = vld [vmem:[#allocation3 + $0x20] sm:$0xff]
    %v9074 = vld [vmem:[#allocation3 + $0x28] sm:$0xff]
    %v9075 = vld [vmem:[#allocation3 + $0x30] sm:$0xff]
    %v9076 = vld [vmem:[#allocation3 + $0x38] sm:$0xff]
    %v9077 = vld [vmem:[#allocation3 + $0x40] sm:$0xff]
    %v9078 = vld [vmem:[#allocation3 + $0x48] sm:$0xff]
    %v9079 = vld [vmem:[#allocation3 + $0x50] sm:$0xff]
    %v9080 = vld [vmem:[#allocation3 + $0x58] sm:$0xff]
    %v9081 = vld [vmem:[#allocation3 + $0x60] sm:$0xff]
    %v9082 = vld [vmem:[#allocation3 + $0x68] sm:$0xff]
    %v9083 = vld [vmem:[#allocation3 + $0x70] sm:$0xff]
    %v9084 = vld [vmem:[#allocation3 + $0x78] sm:$0xff]
    %v9085 = vld [vmem:[#allocation3 + $0x80] sm:$0xff]
    %v9086 = vld [vmem:[#allocation3 + $0x88] sm:$0xff]
    %v9087 = vld [vmem:[#allocation3 + $0x90] sm:$0xff]
    %v9088 = vld [vmem:[#allocation3 + $0x98] sm:$0xff]
    %v9089 = vld [vmem:[#allocation3 + $0xa0] sm:$0xff]
    %v9090 = vld [vmem:[#allocation3 + $0xa8] sm:$0xff]
    %v9091 = vld [vmem:[#allocation3 + $0xb0] sm:$0xff]
    %v9092 = vld [vmem:[#allocation3 + $0xb8] sm:$0xff]
    %v9093 = vld [vmem:[#allocation3 + $0xc0] sm:$0xff]
    %v9094 = vld [vmem:[#allocation3 + $0xc8] sm:$0xff]
    %v9095 = vld [vmem:[#allocation3 + $0xd0] sm:$0xff]
    %v9096 = vld [vmem:[#allocation3 + $0xd8] sm:$0xff]
    %v9097 = vld [vmem:[#allocation3 + $0xe0] sm:$0xff]
    %v9098 = vld [vmem:[#allocation3 + $0xe8] sm:$0xff]
    %v9099 = vld [vmem:[#allocation3 + $0xf0] sm:$0xff]
    %v9100 = vld [vmem:[#allocation3 + $0xf8] sm:$0xff]
    %v9101 = vld [vmem:[#allocation3 + $0x100] sm:$0xff]
    %v9102 = vld [vmem:[#allocation3 + $0x108] sm:$0xff]
    %v9103 = vld [vmem:[#allocation3 + $0x110] sm:$0xff]
    %v9104 = vld [vmem:[#allocation3 + $0x118] sm:$0xff]
    %v9105 = vld [vmem:[#allocation3 + $0x120] sm:$0xff]
    %v9106 = vld [vmem:[#allocation3 + $0x128] sm:$0xff]
    %v9107 = vld [vmem:[#allocation3 + $0x130] sm:$0xff]
    %v9108 = vld [vmem:[#allocation3 + $0x138] sm:$0xff]
    %v9109 = vld [vmem:[#allocation3 + $0x140] sm:$0xff]
    %v9110 = vld [vmem:[#allocation3 + $0x148] sm:$0xff]
    %v9111 = vld [vmem:[#allocation3 + $0x150] sm:$0xff]
    %v9112 = vld [vmem:[#allocation3 + $0x158] sm:$0xff]
    %v9113 = vld [vmem:[#allocation3 + $0x160] sm:$0xff]
    %v9114 = vld [vmem:[#allocation3 + $0x168] sm:$0xff]
    %v9115 = vld [vmem:[#allocation3 + $0x170] sm:$0xff]
    %v9116 = vld [vmem:[#allocation3 + $0x178] sm:$0xff]
    %v9117 = vld [vmem:[#allocation3 + $0x180] sm:$0xff]
    %v9118 = vld [vmem:[#allocation3 + $0x188] sm:$0xff]
    %v9119 = vld [vmem:[#allocation3 + $0x190] sm:$0xff]
    %v9120 = vld [vmem:[#allocation3 + $0x198] sm:$0xff]
    %v9121 = vld [vmem:[#allocation3 + $0x1a0] sm:$0xff]
    %v9122 = vld [vmem:[#allocation3 + $0x1a8] sm:$0xff]
    %v9123 = vld [vmem:[#allocation3 + $0x1b0] sm:$0xff]
    %v9124 = vld [vmem:[#allocation3 + $0x1b8] sm:$0xff]
    %v9125 = vld [vmem:[#allocation3 + $0x1c0] sm:$0xff]
    %v9126 = vld [vmem:[#allocation3 + $0x1c8] sm:$0xff]
    %v9127 = vld [vmem:[#allocation3 + $0x1d0] sm:$0xff]
    %v9128 = vld [vmem:[#allocation3 + $0x1d8] sm:$0xff]
    %v9129 = vld [vmem:[#allocation3 + $0x1e0] sm:$0xff]
    %v9130 = vld [vmem:[#allocation3 + $0x1e8] sm:$0xff]
    %v9131 = vld [vmem:[#allocation3 + $0x1f0] sm:$0xff]
    %v9132 = vld [vmem:[#allocation3 + $0x1f8] sm:$0xff]
    %v9133 = vld [vmem:[#allocation3 + $0x200] sm:$0xff]
    %v9134 = vld [vmem:[#allocation3 + $0x208] sm:$0xff]
    %v9135 = vld [vmem:[#allocation3 + $0x210] sm:$0xff]
    %v9136 = vld [vmem:[#allocation3 + $0x218] sm:$0xff]
    %v9137 = vld [vmem:[#allocation3 + $0x220] sm:$0xff]
    %v9138 = vld [vmem:[#allocation3 + $0x228] sm:$0xff]
    %v9139 = vld [vmem:[#allocation3 + $0x230] sm:$0xff]
    %v9140 = vld [vmem:[#allocation3 + $0x238] sm:$0xff]
    %v9141 = vld [vmem:[#allocation3 + $0x240] sm:$0xff]
    %v9142 = vld [vmem:[#allocation3 + $0x248] sm:$0xff]
    %v9143 = vld [vmem:[#allocation3 + $0x250] sm:$0xff]
    %v9144 = vld [vmem:[#allocation3 + $0x258] sm:$0xff]
    %v9145 = vld [vmem:[#allocation3 + $0x260] sm:$0xff]
    %v9146 = vld [vmem:[#allocation3 + $0x268] sm:$0xff]
    %v9147 = vld [vmem:[#allocation3 + $0x270] sm:$0xff]
    %v9148 = vld [vmem:[#allocation3 + $0x278] sm:$0xff]
    %v9149 = vld [vmem:[#allocation3 + $0x280] sm:$0xff]
    %v9150 = vld [vmem:[#allocation3 + $0x288] sm:$0xff]
    %v9151 = vld [vmem:[#allocation3 + $0x290] sm:$0xff]
    %v9152 = vld [vmem:[#allocation3 + $0x298] sm:$0xff]
    %v9153 = vld [vmem:[#allocation3 + $0x2a0] sm:$0xff]
    %v9154 = vld [vmem:[#allocation3 + $0x2a8] sm:$0xff]
    %v9155 = vld [vmem:[#allocation3 + $0x2b0] sm:$0xff]
    %v9156 = vld [vmem:[#allocation3 + $0x2b8] sm:$0xff]
    %v9157 = vld [vmem:[#allocation3 + $0x2c0] sm:$0xff]
    %v9158 = vld [vmem:[#allocation3 + $0x2c8] sm:$0xff]
    %v9159 = vld [vmem:[#allocation3 + $0x2d0] sm:$0xff]
    %v9160 = vld [vmem:[#allocation3 + $0x2d8] sm:$0xff]
    %v9161 = vld [vmem:[#allocation3 + $0x2e0] sm:$0xff]
    %v9162 = vld [vmem:[#allocation3 + $0x2e8] sm:$0xff]
    %v9163 = vld [vmem:[#allocation3 + $0x2f0] sm:$0xff]
    %v9164 = vld [vmem:[#allocation3 + $0x2f8] sm:$0xff]
    %v9165 = vld [vmem:[#allocation3 + $0x300] sm:$0xff]
    %v9166 = vld [vmem:[#allocation3 + $0x308] sm:$0xff]
    %v9167 = vld [vmem:[#allocation3 + $0x310] sm:$0xff]
    %v9168 = vld [vmem:[#allocation3 + $0x318] sm:$0xff]
    %v9169 = vld [vmem:[#allocation3 + $0x320] sm:$0xff]
    %v9170 = vld [vmem:[#allocation3 + $0x328] sm:$0xff]
    %v9171 = vld [vmem:[#allocation3 + $0x330] sm:$0xff]
    %v9172 = vld [vmem:[#allocation3 + $0x338] sm:$0xff]
    %v9173 = vld [vmem:[#allocation3 + $0x340] sm:$0xff]
    %v9174 = vld [vmem:[#allocation3 + $0x348] sm:$0xff]
    %v9175 = vld [vmem:[#allocation3 + $0x350] sm:$0xff]
    %v9176 = vld [vmem:[#allocation3 + $0x358] sm:$0xff]
    %v9177 = vld [vmem:[#allocation3 + $0x360] sm:$0xff]
    %v9178 = vld [vmem:[#allocation3 + $0x368] sm:$0xff]
    %v9179 = vld [vmem:[#allocation3 + $0x370] sm:$0xff]
    %v9180 = vld [vmem:[#allocation3 + $0x378] sm:$0xff]
    %v9181 = vld [vmem:[#allocation3 + $0x380] sm:$0xff]
    %v9182 = vld [vmem:[#allocation3 + $0x388] sm:$0xff]
    %v9183 = vld [vmem:[#allocation3 + $0x390] sm:$0xff]
    %v9184 = vld [vmem:[#allocation3 + $0x398] sm:$0xff]
    %v9185 = vld [vmem:[#allocation3 + $0x3a0] sm:$0xff]
    %v9186 = vld [vmem:[#allocation3 + $0x3a8] sm:$0xff]
    %v9187 = vld [vmem:[#allocation3 + $0x3b0] sm:$0xff]
    %v9188 = vld [vmem:[#allocation3 + $0x3b8] sm:$0xff]
    %v9189 = vld [vmem:[#allocation3 + $0x3c0] sm:$0xff]
    %v9190 = vld [vmem:[#allocation3 + $0x3c8] sm:$0xff]
    %v9191 = vld [vmem:[#allocation3 + $0x3d0] sm:$0xff]
    %v9192 = vld [vmem:[#allocation3 + $0x3d8] sm:$0xff]
    %v9193 = vld [vmem:[#allocation3 + $0x3e0] sm:$0xff]
    %v9194 = vld [vmem:[#allocation3 + $0x3e8] sm:$0xff]
    %v9195 = vld [vmem:[#allocation3 + $0x3f0] sm:$0xff]
    %v9196 = vld [vmem:[#allocation3 + $0x3f8] sm:$0xff]
    %v9197 = vld [vmem:[#allocation3 + $0x400] sm:$0xff]
    %v9198 = vld [vmem:[#allocation3 + $0x408] sm:$0xff]
    %v9199 = vld [vmem:[#allocation3 + $0x410] sm:$0xff]
    %v9200 = vld [vmem:[#allocation3 + $0x418] sm:$0xff]
    %v9201 = vld [vmem:[#allocation3 + $0x420] sm:$0xff]
    %v9202 = vld [vmem:[#allocation3 + $0x428] sm:$0xff]
    %v9203 = vld [vmem:[#allocation3 + $0x430] sm:$0xff]
    %v9204 = vld [vmem:[#allocation3 + $0x438] sm:$0xff]
    %v9205 = vld [vmem:[#allocation3 + $0x440] sm:$0xff]
    %v9206 = vld [vmem:[#allocation3 + $0x448] sm:$0xff]
    %v9207 = vld [vmem:[#allocation3 + $0x450] sm:$0xff]
    %v9208 = vld [vmem:[#allocation3 + $0x458] sm:$0xff]
    %v9209 = vld [vmem:[#allocation3 + $0x460] sm:$0xff]
    %v9210 = vld [vmem:[#allocation3 + $0x468] sm:$0xff]
    %v9211 = vld [vmem:[#allocation3 + $0x470] sm:$0xff]
    %v9212 = vld [vmem:[#allocation3 + $0x478] sm:$0xff]
    %v9213 = vld [vmem:[#allocation3 + $0x480] sm:$0xff]
    %v9214 = vld [vmem:[#allocation3 + $0x488] sm:$0xff]
    %v9215 = vld [vmem:[#allocation3 + $0x490] sm:$0xff]
    %v9216 = vld [vmem:[#allocation3 + $0x498] sm:$0xff]
    %v9217 = vld [vmem:[#allocation3 + $0x4a0] sm:$0xff]
    %v9218 = vld [vmem:[#allocation3 + $0x4a8] sm:$0xff]
    %v9219 = vld [vmem:[#allocation3 + $0x4b0] sm:$0xff]
    %v9220 = vld [vmem:[#allocation3 + $0x4b8] sm:$0xff]
    %v9221 = vld [vmem:[#allocation3 + $0x4c0] sm:$0xff]
    %v9222 = vld [vmem:[#allocation3 + $0x4c8] sm:$0xff]
    %v9223 = vld [vmem:[#allocation3 + $0x4d0] sm:$0xff]
    %v9224 = vld [vmem:[#allocation3 + $0x4d8] sm:$0xff]
    %v9225 = vld [vmem:[#allocation3 + $0x4e0] sm:$0xff]
    %v9226 = vld [vmem:[#allocation3 + $0x4e8] sm:$0xff]
    %v9227 = vld [vmem:[#allocation3 + $0x4f0] sm:$0xff]
    %v9228 = vld [vmem:[#allocation3 + $0x4f8] sm:$0xff]
    %v9229 = vld [vmem:[#allocation3 + $0x500] sm:$0xff]
    %v9230 = vld [vmem:[#allocation3 + $0x508] sm:$0xff]
    %v9231 = vld [vmem:[#allocation3 + $0x510] sm:$0xff]
    %v9232 = vld [vmem:[#allocation3 + $0x518] sm:$0xff]
    %v9233 = vld [vmem:[#allocation3 + $0x520] sm:$0xff]
    %v9234 = vld [vmem:[#allocation3 + $0x528] sm:$0xff]
    %v9235 = vld [vmem:[#allocation3 + $0x530] sm:$0xff]
    %v9236 = vld [vmem:[#allocation3 + $0x538] sm:$0xff]
    %v9237 = vld [vmem:[#allocation3 + $0x540] sm:$0xff]
    %v9238 = vld [vmem:[#allocation3 + $0x548] sm:$0xff]
    %v9239 = vld [vmem:[#allocation3 + $0x550] sm:$0xff]
    %v9240 = vld [vmem:[#allocation3 + $0x558] sm:$0xff]
    %v9241 = vld [vmem:[#allocation3 + $0x560] sm:$0xff]
    %v9242 = vld [vmem:[#allocation3 + $0x568] sm:$0xff]
    %v9243 = vld [vmem:[#allocation3 + $0x570] sm:$0xff]
    %v9244 = vld [vmem:[#allocation3 + $0x578] sm:$0xff]
    %v9245 = vld [vmem:[#allocation3 + $0x580] sm:$0xff]
    %v9246 = vld [vmem:[#allocation3 + $0x588] sm:$0xff]
    %v9247 = vld [vmem:[#allocation3 + $0x590] sm:$0xff]
    %v9248 = vld [vmem:[#allocation3 + $0x598] sm:$0xff]
    %v9249 = vld [vmem:[#allocation3 + $0x5a0] sm:$0xff]
    %v9250 = vld [vmem:[#allocation3 + $0x5a8] sm:$0xff]
    %v9251 = vld [vmem:[#allocation3 + $0x5b0] sm:$0xff]
    %v9252 = vld [vmem:[#allocation3 + $0x5b8] sm:$0xff]
    %v9253 = vld [vmem:[#allocation3 + $0x5c0] sm:$0xff]
    %v9254 = vld [vmem:[#allocation3 + $0x5c8] sm:$0xff]
    %v9255 = vld [vmem:[#allocation3 + $0x5d0] sm:$0xff]
    %v9256 = vld [vmem:[#allocation3 + $0x5d8] sm:$0xff]
    %v9257 = vld [vmem:[#allocation3 + $0x5e0] sm:$0xff]
    %v9258 = vld [vmem:[#allocation3 + $0x5e8] sm:$0xff]
    %v9259 = vld [vmem:[#allocation3 + $0x5f0] sm:$0xff]
    %v9260 = vld [vmem:[#allocation3 + $0x5f8] sm:$0xff]
    %v9261 = vld [vmem:[#allocation3 + $0x600] sm:$0xff]
    %v9262 = vld [vmem:[#allocation3 + $0x608] sm:$0xff]
    %v9263 = vld [vmem:[#allocation3 + $0x610] sm:$0xff]
    %v9264 = vld [vmem:[#allocation3 + $0x618] sm:$0xff]
    %v9265 = vld [vmem:[#allocation3 + $0x620] sm:$0xff]
    %v9266 = vld [vmem:[#allocation3 + $0x628] sm:$0xff]
    %v9267 = vld [vmem:[#allocation3 + $0x630] sm:$0xff]
    %v9268 = vld [vmem:[#allocation3 + $0x638] sm:$0xff]
    %v9269 = vld [vmem:[#allocation3 + $0x640] sm:$0xff]
    %v9270 = vld [vmem:[#allocation3 + $0x648] sm:$0xff]
    %v9271 = vld [vmem:[#allocation3 + $0x650] sm:$0xff]
    %v9272 = vld [vmem:[#allocation3 + $0x658] sm:$0xff]
    %v9273 = vld [vmem:[#allocation3 + $0x660] sm:$0xff]
    %v9274 = vld [vmem:[#allocation3 + $0x668] sm:$0xff]
    %v9275 = vld [vmem:[#allocation3 + $0x670] sm:$0xff]
    %v9276 = vld [vmem:[#allocation3 + $0x678] sm:$0xff]
    %v9277 = vld [vmem:[#allocation3 + $0x680] sm:$0xff]
    %v9278 = vld [vmem:[#allocation3 + $0x688] sm:$0xff]
    %v9279 = vld [vmem:[#allocation3 + $0x690] sm:$0xff]
    %v9280 = vld [vmem:[#allocation3 + $0x698] sm:$0xff]
    %v9281 = vld [vmem:[#allocation3 + $0x6a0] sm:$0xff]
    %v9282 = vld [vmem:[#allocation3 + $0x6a8] sm:$0xff]
    %v9283 = vld [vmem:[#allocation3 + $0x6b0] sm:$0xff]
    %v9284 = vld [vmem:[#allocation3 + $0x6b8] sm:$0xff]
    %v9285 = vld [vmem:[#allocation3 + $0x6c0] sm:$0xff]
    %v9286 = vld [vmem:[#allocation3 + $0x6c8] sm:$0xff]
    %v9287 = vld [vmem:[#allocation3 + $0x6d0] sm:$0xff]
    %v9288 = vld [vmem:[#allocation3 + $0x6d8] sm:$0xff]
    %v9289 = vld [vmem:[#allocation3 + $0x6e0] sm:$0xff]
    %v9290 = vld [vmem:[#allocation3 + $0x6e8] sm:$0xff]
    %v9291 = vld [vmem:[#allocation3 + $0x6f0] sm:$0xff]
    %v9292 = vld [vmem:[#allocation3 + $0x6f8] sm:$0xff]
    %v9293 = vld [vmem:[#allocation3 + $0x700] sm:$0xff]
    %v9294 = vld [vmem:[#allocation3 + $0x708] sm:$0xff]
    %v9295 = vld [vmem:[#allocation3 + $0x710] sm:$0xff]
    %v9296 = vld [vmem:[#allocation3 + $0x718] sm:$0xff]
    %v9297 = vld [vmem:[#allocation3 + $0x720] sm:$0xff]
    %v9298 = vld [vmem:[#allocation3 + $0x728] sm:$0xff]
    %v9299 = vld [vmem:[#allocation3 + $0x730] sm:$0xff]
    %v9300 = vld [vmem:[#allocation3 + $0x738] sm:$0xff]
    %v9301 = vld [vmem:[#allocation3 + $0x740] sm:$0xff]
    %v9302 = vld [vmem:[#allocation3 + $0x748] sm:$0xff]
    %v9303 = vld [vmem:[#allocation3 + $0x750] sm:$0xff]
    %v9304 = vld [vmem:[#allocation3 + $0x758] sm:$0xff]
    %v9305 = vld [vmem:[#allocation3 + $0x760] sm:$0xff]
    %v9306 = vld [vmem:[#allocation3 + $0x768] sm:$0xff]
    %v9307 = vld [vmem:[#allocation3 + $0x770] sm:$0xff]
    %v9308 = vld [vmem:[#allocation3 + $0x778] sm:$0xff]
    %v9309 = vld [vmem:[#allocation3 + $0x780] sm:$0xff]
    %v9310 = vld [vmem:[#allocation3 + $0x788] sm:$0xff]
    %v9311 = vld [vmem:[#allocation3 + $0x790] sm:$0xff]
    %v9312 = vld [vmem:[#allocation3 + $0x798] sm:$0xff]
    %v9313 = vld [vmem:[#allocation3 + $0x7a0] sm:$0xff]
    %v9314 = vld [vmem:[#allocation3 + $0x7a8] sm:$0xff]
    %v9315 = vld [vmem:[#allocation3 + $0x7b0] sm:$0xff]
    %v9316 = vld [vmem:[#allocation3 + $0x7b8] sm:$0xff]
    %v9317 = vld [vmem:[#allocation3 + $0x7c0] sm:$0xff]
    %v9318 = vld [vmem:[#allocation3 + $0x7c8] sm:$0xff]
    %v9319 = vld [vmem:[#allocation3 + $0x7d0] sm:$0xff]
    %v9320 = vld [vmem:[#allocation3 + $0x7d8] sm:$0xff]
    %v9321 = vld [vmem:[#allocation3 + $0x7e0] sm:$0xff]
    %v9322 = vld [vmem:[#allocation3 + $0x7e8] sm:$0xff]
    %v9323 = vld [vmem:[#allocation3 + $0x7f0] sm:$0xff]
    %v9324 = vld [vmem:[#allocation3 + $0x7f8] sm:$0xff]
    %v9325 = vld [vmem:[#allocation3 + $0x800] sm:$0xff]
    %v9326 = vld [vmem:[#allocation3 + $0x808] sm:$0xff]
    %v9327 = vld [vmem:[#allocation3 + $0x810] sm:$0xff]
    %v9328 = vld [vmem:[#allocation3 + $0x818] sm:$0xff]
    %v9329 = vld [vmem:[#allocation3 + $0x820] sm:$0xff]
    %v9330 = vld [vmem:[#allocation3 + $0x828] sm:$0xff]
    %v9331 = vld [vmem:[#allocation3 + $0x830] sm:$0xff]
    %v9332 = vld [vmem:[#allocation3 + $0x838] sm:$0xff]
    %v9333 = vld [vmem:[#allocation3 + $0x840] sm:$0xff]
    %v9334 = vld [vmem:[#allocation3 + $0x848] sm:$0xff]
    %v9335 = vld [vmem:[#allocation3 + $0x850] sm:$0xff]
    %v9336 = vld [vmem:[#allocation3 + $0x858] sm:$0xff]
    %v9337 = vld [vmem:[#allocation3 + $0x860] sm:$0xff]
    %v9338 = vld [vmem:[#allocation3 + $0x868] sm:$0xff]
    %v9339 = vld [vmem:[#allocation3 + $0x870] sm:$0xff]
    %v9340 = vld [vmem:[#allocation3 + $0x878] sm:$0xff]
    %v9341 = vld [vmem:[#allocation3 + $0x880] sm:$0xff]
    %v9342 = vld [vmem:[#allocation3 + $0x888] sm:$0xff]
    %v9343 = vld [vmem:[#allocation3 + $0x890] sm:$0xff]
    %v9344 = vld [vmem:[#allocation3 + $0x898] sm:$0xff]
    %v9345 = vld [vmem:[#allocation3 + $0x8a0] sm:$0xff]
    %v9346 = vld [vmem:[#allocation3 + $0x8a8] sm:$0xff]
    %v9347 = vld [vmem:[#allocation3 + $0x8b0] sm:$0xff]
    %v9348 = vld [vmem:[#allocation3 + $0x8b8] sm:$0xff]
    %v9349 = vld [vmem:[#allocation3 + $0x8c0] sm:$0xff]
    %v9350 = vld [vmem:[#allocation3 + $0x8c8] sm:$0xff]
    %v9351 = vld [vmem:[#allocation3 + $0x8d0] sm:$0xff]
    %v9352 = vld [vmem:[#allocation3 + $0x8d8] sm:$0xff]
    %v9353 = vld [vmem:[#allocation3 + $0x8e0] sm:$0xff]
    %v9354 = vld [vmem:[#allocation3 + $0x8e8] sm:$0xff]
    %v9355 = vld [vmem:[#allocation3 + $0x8f0] sm:$0xff]
    %v9356 = vld [vmem:[#allocation3 + $0x8f8] sm:$0xff]
    %v9357 = vld [vmem:[#allocation3 + $0x900] sm:$0xff]
    %v9358 = vld [vmem:[#allocation3 + $0x908] sm:$0xff]
    %v9359 = vld [vmem:[#allocation3 + $0x910] sm:$0xff]
    %v9360 = vld [vmem:[#allocation3 + $0x918] sm:$0xff]
    %v9361 = vld [vmem:[#allocation3 + $0x920] sm:$0xff]
    %v9362 = vld [vmem:[#allocation3 + $0x928] sm:$0xff]
    %v9363 = vld [vmem:[#allocation3 + $0x930] sm:$0xff]
    %v9364 = vld [vmem:[#allocation3 + $0x938] sm:$0xff]
    %v9365 = vld [vmem:[#allocation3 + $0x940] sm:$0xff]
    %v9366 = vld [vmem:[#allocation3 + $0x948] sm:$0xff]
    %v9367 = vld [vmem:[#allocation3 + $0x950] sm:$0xff]
    %v9368 = vld [vmem:[#allocation3 + $0x958] sm:$0xff]
    %v9369 = vld [vmem:[#allocation3 + $0x960] sm:$0xff]
    %v9370 = vld [vmem:[#allocation3 + $0x968] sm:$0xff]
    %v9371 = vld [vmem:[#allocation3 + $0x970] sm:$0xff]
    %v9372 = vld [vmem:[#allocation3 + $0x978] sm:$0xff]
    %v9373 = vld [vmem:[#allocation3 + $0x980] sm:$0xff]
    %v9374 = vld [vmem:[#allocation3 + $0x988] sm:$0xff]
    %v9375 = vld [vmem:[#allocation3 + $0x990] sm:$0xff]
    %v9376 = vld [vmem:[#allocation3 + $0x998] sm:$0xff]
    %v9377 = vld [vmem:[#allocation3 + $0x9a0] sm:$0xff]
    %v9378 = vld [vmem:[#allocation3 + $0x9a8] sm:$0xff]
    %v9379 = vld [vmem:[#allocation3 + $0x9b0] sm:$0xff]
    %v9380 = vld [vmem:[#allocation3 + $0x9b8] sm:$0xff]
    %v9381 = vld [vmem:[#allocation3 + $0x9c0] sm:$0xff]
    %v9382 = vld [vmem:[#allocation3 + $0x9c8] sm:$0xff]
    %v9383 = vld [vmem:[#allocation3 + $0x9d0] sm:$0xff]
    %v9384 = vld [vmem:[#allocation3 + $0x9d8] sm:$0xff]
    %v9385 = vld [vmem:[#allocation3 + $0x9e0] sm:$0xff]
    %v9386 = vld [vmem:[#allocation3 + $0x9e8] sm:$0xff]
    %v9387 = vld [vmem:[#allocation3 + $0x9f0] sm:$0xff]
    %v9388 = vld [vmem:[#allocation3 + $0x9f8] sm:$0xff]
    %v9389 = vld [vmem:[#allocation3 + $0xa00] sm:$0xff]
    %v9390 = vld [vmem:[#allocation3 + $0xa08] sm:$0xff]
    %v9391 = vld [vmem:[#allocation3 + $0xa10] sm:$0xff]
    %v9392 = vld [vmem:[#allocation3 + $0xa18] sm:$0xff]
    %v9393 = vld [vmem:[#allocation3 + $0xa20] sm:$0xff]
    %v9394 = vld [vmem:[#allocation3 + $0xa28] sm:$0xff]
    %v9395 = vld [vmem:[#allocation3 + $0xa30] sm:$0xff]
    %v9396 = vld [vmem:[#allocation3 + $0xa38] sm:$0xff]
    %v9397 = vld [vmem:[#allocation3 + $0xa40] sm:$0xff]
    %v9398 = vld [vmem:[#allocation3 + $0xa48] sm:$0xff]
    %v9399 = vld [vmem:[#allocation3 + $0xa50] sm:$0xff]
    %v9400 = vld [vmem:[#allocation3 + $0xa58] sm:$0xff]
    %v9401 = vld [vmem:[#allocation3 + $0xa60] sm:$0xff]
    %v9402 = vld [vmem:[#allocation3 + $0xa68] sm:$0xff]
    %v9403 = vld [vmem:[#allocation3 + $0xa70] sm:$0xff]
    %v9404 = vld [vmem:[#allocation3 + $0xa78] sm:$0xff]
    %v9405 = vld [vmem:[#allocation3 + $0xa80] sm:$0xff]
    %v9406 = vld [vmem:[#allocation3 + $0xa88] sm:$0xff]
    %v9407 = vld [vmem:[#allocation3 + $0xa90] sm:$0xff]
    %v9408 = vld [vmem:[#allocation3 + $0xa98] sm:$0xff]
    %v9409 = vld [vmem:[#allocation3 + $0xaa0] sm:$0xff]
    %v9410 = vld [vmem:[#allocation3 + $0xaa8] sm:$0xff]
    %v9411 = vld [vmem:[#allocation3 + $0xab0] sm:$0xff]
    %v9412 = vld [vmem:[#allocation3 + $0xab8] sm:$0xff]
    %v9413 = vld [vmem:[#allocation3 + $0xac0] sm:$0xff]
    %v9414 = vld [vmem:[#allocation3 + $0xac8] sm:$0xff]
    %v9415 = vld [vmem:[#allocation3 + $0xad0] sm:$0xff]
    %v9416 = vld [vmem:[#allocation3 + $0xad8] sm:$0xff]
    %v9417 = vld [vmem:[#allocation3 + $0xae0] sm:$0xff]
    %v9418 = vld [vmem:[#allocation3 + $0xae8] sm:$0xff]
    %v9419 = vld [vmem:[#allocation3 + $0xaf0] sm:$0xff]
    %v9420 = vld [vmem:[#allocation3 + $0xaf8] sm:$0xff]
    %v9421 = vld [vmem:[#allocation3 + $0xb00] sm:$0xff]
    %v9422 = vld [vmem:[#allocation3 + $0xb08] sm:$0xff]
    %v9423 = vld [vmem:[#allocation3 + $0xb10] sm:$0xff]
    %v9424 = vld [vmem:[#allocation3 + $0xb18] sm:$0xff]
    %v9425 = vld [vmem:[#allocation3 + $0xb20] sm:$0xff]
    %v9426 = vld [vmem:[#allocation3 + $0xb28] sm:$0xff]
    %v9427 = vld [vmem:[#allocation3 + $0xb30] sm:$0xff]
    %v9428 = vld [vmem:[#allocation3 + $0xb38] sm:$0xff]
    %v9429 = vld [vmem:[#allocation3 + $0xb40] sm:$0xff]
    %v9430 = vld [vmem:[#allocation3 + $0xb48] sm:$0xff]
    %v9431 = vld [vmem:[#allocation3 + $0xb50] sm:$0xff]
    %v9432 = vld [vmem:[#allocation3 + $0xb58] sm:$0xff]
    %v9433 = vld [vmem:[#allocation3 + $0xb60] sm:$0xff]
    %v9434 = vld [vmem:[#allocation3 + $0xb68] sm:$0xff]
    %v9435 = vld [vmem:[#allocation3 + $0xb70] sm:$0xff]
    %v9436 = vld [vmem:[#allocation3 + $0xb78] sm:$0xff]
    %v9437 = vld [vmem:[#allocation3 + $0xb80] sm:$0xff]
    %v9438 = vld [vmem:[#allocation3 + $0xb88] sm:$0xff]
    %v9439 = vld [vmem:[#allocation3 + $0xb90] sm:$0xff]
    %v9440 = vld [vmem:[#allocation3 + $0xb98] sm:$0xff]
    %v9441 = vld [vmem:[#allocation3 + $0xba0] sm:$0xff]
    %v9442 = vld [vmem:[#allocation3 + $0xba8] sm:$0xff]
    %v9443 = vld [vmem:[#allocation3 + $0xbb0] sm:$0xff]
    %v9444 = vld [vmem:[#allocation3 + $0xbb8] sm:$0xff]
    %v9445 = vld [vmem:[#allocation3 + $0xbc0] sm:$0xff]
    %v9446 = vld [vmem:[#allocation3 + $0xbc8] sm:$0xff]
    %v9447 = vld [vmem:[#allocation3 + $0xbd0] sm:$0xff]
    %v9448 = vld [vmem:[#allocation3 + $0xbd8] sm:$0xff]
    %v9449 = vld [vmem:[#allocation3 + $0xbe0] sm:$0xff]
    %v9450 = vld [vmem:[#allocation3 + $0xbe8] sm:$0xff]
    %v9451 = vld [vmem:[#allocation3 + $0xbf0] sm:$0xff]
    %v9452 = vld [vmem:[#allocation3 + $0xbf8] sm:$0xff]
    %v9453 = vld [vmem:[#allocation3 + $0xc00] sm:$0xff]
    %v9454 = vld [vmem:[#allocation3 + $0xc08] sm:$0xff]
    %v9455 = vld [vmem:[#allocation3 + $0xc10] sm:$0xff]
    %v9456 = vld [vmem:[#allocation3 + $0xc18] sm:$0xff]
    %v9457 = vld [vmem:[#allocation3 + $0xc20] sm:$0xff]
    %v9458 = vld [vmem:[#allocation3 + $0xc28] sm:$0xff]
    %v9459 = vld [vmem:[#allocation3 + $0xc30] sm:$0xff]
    %v9460 = vld [vmem:[#allocation3 + $0xc38] sm:$0xff]
    %v9461 = vld [vmem:[#allocation3 + $0xc40] sm:$0xff]
    %v9462 = vld [vmem:[#allocation3 + $0xc48] sm:$0xff]
    %v9463 = vld [vmem:[#allocation3 + $0xc50] sm:$0xff]
    %v9464 = vld [vmem:[#allocation3 + $0xc58] sm:$0xff]
    %v9465 = vld [vmem:[#allocation3 + $0xc60] sm:$0xff]
    %v9466 = vld [vmem:[#allocation3 + $0xc68] sm:$0xff]
    %v9467 = vld [vmem:[#allocation3 + $0xc70] sm:$0xff]
    %v9468 = vld [vmem:[#allocation3 + $0xc78] sm:$0xff]
    %v9469 = vld [vmem:[#allocation3 + $0xc80] sm:$0xff]
    %v9470 = vld [vmem:[#allocation3 + $0xc88] sm:$0xff]
    %v9471 = vld [vmem:[#allocation3 + $0xc90] sm:$0xff]
    %v9472 = vld [vmem:[#allocation3 + $0xc98] sm:$0xff]
    %v9473 = vld [vmem:[#allocation3 + $0xca0] sm:$0xff]
    %v9474 = vld [vmem:[#allocation3 + $0xca8] sm:$0xff]
    %v9475 = vld [vmem:[#allocation3 + $0xcb0] sm:$0xff]
    %v9476 = vld [vmem:[#allocation3 + $0xcb8] sm:$0xff]
    %v9477 = vld [vmem:[#allocation3 + $0xcc0] sm:$0xff]
    %v9478 = vld [vmem:[#allocation3 + $0xcc8] sm:$0xff]
    %v9479 = vld [vmem:[#allocation3 + $0xcd0] sm:$0xff]
    %v9480 = vld [vmem:[#allocation3 + $0xcd8] sm:$0xff]
    %v9481 = vld [vmem:[#allocation3 + $0xce0] sm:$0xff]
    %v9482 = vld [vmem:[#allocation3 + $0xce8] sm:$0xff]
    %v9483 = vld [vmem:[#allocation3 + $0xcf0] sm:$0xff]
    %v9484 = vld [vmem:[#allocation3 + $0xcf8] sm:$0xff]
    %v9485 = vld [vmem:[#allocation3 + $0xd00] sm:$0xff]
    %v9486 = vld [vmem:[#allocation3 + $0xd08] sm:$0xff]
    %v9487 = vld [vmem:[#allocation3 + $0xd10] sm:$0xff]
    %v9488 = vld [vmem:[#allocation3 + $0xd18] sm:$0xff]
    %v9489 = vld [vmem:[#allocation3 + $0xd20] sm:$0xff]
    %v9490 = vld [vmem:[#allocation3 + $0xd28] sm:$0xff]
    %v9491 = vld [vmem:[#allocation3 + $0xd30] sm:$0xff]
    %v9492 = vld [vmem:[#allocation3 + $0xd38] sm:$0xff]
    %v9493 = vld [vmem:[#allocation3 + $0xd40] sm:$0xff]
    %v9494 = vld [vmem:[#allocation3 + $0xd48] sm:$0xff]
    %v9495 = vld [vmem:[#allocation3 + $0xd50] sm:$0xff]
    %v9496 = vld [vmem:[#allocation3 + $0xd58] sm:$0xff]
    %v9497 = vld [vmem:[#allocation3 + $0xd60] sm:$0xff]
    %v9498 = vld [vmem:[#allocation3 + $0xd68] sm:$0xff]
    %v9499 = vld [vmem:[#allocation3 + $0xd70] sm:$0xff]
    %v9500 = vld [vmem:[#allocation3 + $0xd78] sm:$0xff]
    %v9501 = vld [vmem:[#allocation3 + $0xd80] sm:$0xff]
    %v9502 = vld [vmem:[#allocation3 + $0xd88] sm:$0xff]
    %v9503 = vld [vmem:[#allocation3 + $0xd90] sm:$0xff]
    %v9504 = vld [vmem:[#allocation3 + $0xd98] sm:$0xff]
    %v9505 = vld [vmem:[#allocation3 + $0xda0] sm:$0xff]
    %v9506 = vld [vmem:[#allocation3 + $0xda8] sm:$0xff]
    %v9507 = vld [vmem:[#allocation3 + $0xdb0] sm:$0xff]
    %v9508 = vld [vmem:[#allocation3 + $0xdb8] sm:$0xff]
    %v9509 = vld [vmem:[#allocation3 + $0xdc0] sm:$0xff]
    %v9510 = vld [vmem:[#allocation3 + $0xdc8] sm:$0xff]
    %v9511 = vld [vmem:[#allocation3 + $0xdd0] sm:$0xff]
    %v9512 = vld [vmem:[#allocation3 + $0xdd8] sm:$0xff]
    %v9513 = vld [vmem:[#allocation3 + $0xde0] sm:$0xff]
    %v9514 = vld [vmem:[#allocation3 + $0xde8] sm:$0xff]
    %v9515 = vld [vmem:[#allocation3 + $0xdf0] sm:$0xff]
    %v9516 = vld [vmem:[#allocation3 + $0xdf8] sm:$0xff]
    %v9517 = vld [vmem:[#allocation3 + $0xe00] sm:$0xff]
    %v9518 = vld [vmem:[#allocation3 + $0xe08] sm:$0xff]
    %v9519 = vld [vmem:[#allocation3 + $0xe10] sm:$0xff]
    %v9520 = vld [vmem:[#allocation3 + $0xe18] sm:$0xff]
    %v9521 = vld [vmem:[#allocation3 + $0xe20] sm:$0xff]
    %v9522 = vld [vmem:[#allocation3 + $0xe28] sm:$0xff]
    %v9523 = vld [vmem:[#allocation3 + $0xe30] sm:$0xff]
    %v9524 = vld [vmem:[#allocation3 + $0xe38] sm:$0xff]
    %v9525 = vld [vmem:[#allocation3 + $0xe40] sm:$0xff]
    %v9526 = vld [vmem:[#allocation3 + $0xe48] sm:$0xff]
    %v9527 = vld [vmem:[#allocation3 + $0xe50] sm:$0xff]
    %v9528 = vld [vmem:[#allocation3 + $0xe58] sm:$0xff]
    %v9529 = vld [vmem:[#allocation3 + $0xe60] sm:$0xff]
    %v9530 = vld [vmem:[#allocation3 + $0xe68] sm:$0xff]
    %v9531 = vld [vmem:[#allocation3 + $0xe70] sm:$0xff]
    %v9532 = vld [vmem:[#allocation3 + $0xe78] sm:$0xff]
    %v9533 = vld [vmem:[#allocation3 + $0xe80] sm:$0xff]
    %v9534 = vld [vmem:[#allocation3 + $0xe88] sm:$0xff]
    %v9535 = vld [vmem:[#allocation3 + $0xe90] sm:$0xff]
    %v9536 = vld [vmem:[#allocation3 + $0xe98] sm:$0xff]
    %v9537 = vld [vmem:[#allocation3 + $0xea0] sm:$0xff]
    %v9538 = vld [vmem:[#allocation3 + $0xea8] sm:$0xff]
    %v9539 = vld [vmem:[#allocation3 + $0xeb0] sm:$0xff]
    %v9540 = vld [vmem:[#allocation3 + $0xeb8] sm:$0xff]
    %v9541 = vld [vmem:[#allocation3 + $0xec0] sm:$0xff]
    %v9542 = vld [vmem:[#allocation3 + $0xec8] sm:$0xff]
    %v9543 = vld [vmem:[#allocation3 + $0xed0] sm:$0xff]
    %v9544 = vld [vmem:[#allocation3 + $0xed8] sm:$0xff]
    %v9545 = vld [vmem:[#allocation3 + $0xee0] sm:$0xff]
    %v9546 = vld [vmem:[#allocation3 + $0xee8] sm:$0xff]
    %v9547 = vld [vmem:[#allocation3 + $0xef0] sm:$0xff]
    %v9548 = vld [vmem:[#allocation3 + $0xef8] sm:$0xff]
    %v9549 = vld [vmem:[#allocation3 + $0xf00] sm:$0xff]
    %v9550 = vld [vmem:[#allocation3 + $0xf08] sm:$0xff]
    %v9551 = vld [vmem:[#allocation3 + $0xf10] sm:$0xff]
    %v9552 = vld [vmem:[#allocation3 + $0xf18] sm:$0xff]
    %v9553 = vld [vmem:[#allocation3 + $0xf20] sm:$0xff]
    %v9554 = vld [vmem:[#allocation3 + $0xf28] sm:$0xff]
    %v9555 = vld [vmem:[#allocation3 + $0xf30] sm:$0xff]
    %v9556 = vld [vmem:[#allocation3 + $0xf38] sm:$0xff]
    %v9557 = vld [vmem:[#allocation3 + $0xf40] sm:$0xff]
    %v9558 = vld [vmem:[#allocation3 + $0xf48] sm:$0xff]
    %v9559 = vld [vmem:[#allocation3 + $0xf50] sm:$0xff]
    %v9560 = vld [vmem:[#allocation3 + $0xf58] sm:$0xff]
    %v9561 = vld [vmem:[#allocation3 + $0xf60] sm:$0xff]
    %v9562 = vld [vmem:[#allocation3 + $0xf68] sm:$0xff]
    %v9563 = vld [vmem:[#allocation3 + $0xf70] sm:$0xff]
    %v9564 = vld [vmem:[#allocation3 + $0xf78] sm:$0xff]
    %v9565 = vld [vmem:[#allocation3 + $0xf80] sm:$0xff]
    %v9566 = vld [vmem:[#allocation3 + $0xf88] sm:$0xff]
    %v9567 = vld [vmem:[#allocation3 + $0xf90] sm:$0xff]
    %v9568 = vld [vmem:[#allocation3 + $0xf98] sm:$0xff]
    %v9569 = vld [vmem:[#allocation3 + $0xfa0] sm:$0xff]
    %v9570 = vld [vmem:[#allocation3 + $0xfa8] sm:$0xff]
    %v9571 = vld [vmem:[#allocation3 + $0xfb0] sm:$0xff]
    %v9572 = vld [vmem:[#allocation3 + $0xfb8] sm:$0xff]
    %v9573 = vld [vmem:[#allocation3 + $0xfc0] sm:$0xff]
    %v9574 = vld [vmem:[#allocation3 + $0xfc8] sm:$0xff]
    %v9575 = vld [vmem:[#allocation3 + $0xfd0] sm:$0xff]
    %v9576 = vld [vmem:[#allocation3 + $0xfd8] sm:$0xff]
    %v9577 = vld [vmem:[#allocation3 + $0xfe0] sm:$0xff]
    %v9578 = vld [vmem:[#allocation3 + $0xfe8] sm:$0xff]
    %v9579 = vld [vmem:[#allocation3 + $0xff0] sm:$0xff]
    %v9580 = vld [vmem:[#allocation3 + $0xff8] sm:$0xff]
    %v9582 = vlaneseq
    %v9583 = vshrl.u32 %v9582, 7
    %v9584 = vsub.s32 0, %v9583
    %v9585 = vrot.slane %v474, %v9584
    %v9586 = vlaneseq
    %v9587 = vshrl.u32 %v9586, 7
    %v9588 = vsub.s32 1, %v9587
    %v9589 = vrot.slane %v474, %v9588
    %v9590 = vlaneseq
    %v9591 = vshrl.u32 %v9590, 7
    %v9592 = vsub.s32 2, %v9591
    %v9593 = vrot.slane %v474, %v9592
    %v9594 = vlaneseq
    %v9595 = vshrl.u32 %v9594, 7
    %v9596 = vsub.s32 3, %v9595
    %v9597 = vrot.slane %v474, %v9596
    %v9598 = vlaneseq
    %v9599 = vshrl.u32 %v9598, 7
    %v9600 = vsub.s32 4, %v9599
    %v9601 = vrot.slane %v474, %v9600
    %v9602 = vlaneseq
    %v9603 = vshrl.u32 %v9602, 7
    %v9604 = vsub.s32 5, %v9603
    %v9605 = vrot.slane %v474, %v9604
    %v9606 = vlaneseq
    %v9607 = vshrl.u32 %v9606, 7
    %v9608 = vsub.s32 6, %v9607
    %v9609 = vrot.slane %v474, %v9608
    %v9610 = vlaneseq
    %v9611 = vshrl.u32 %v9610, 7
    %v9612 = vsub.s32 7, %v9611
    %v9613 = vrot.slane %v474, %v9612
    %9622 = vmatprep.subr.bf16.mxu0 %v9070
    %9623 = vmatpush1.bf16.msra.mxu0 %v9069
    %9624 = vmatprep.subr.bf16.mxu0 %v9078
    %9625 = vmatpush1.bf16.msra.mxu0 %v9077
    %9626 = vmatprep.subr.bf16.mxu0 %v9086
    %9627 = vmatpush1.bf16.msra.mxu0 %v9085
    %9628 = vmatprep.subr.bf16.mxu0 %v9094
    %9629 = vmatpush1.bf16.msra.mxu0 %v9093
    %9630 = vmatprep.subr.bf16.mxu0 %v9102
    %9631 = vmatpush1.bf16.msra.mxu0 %v9101
    %9632 = vmatprep.subr.bf16.mxu0 %v9110
    %9633 = vmatpush1.bf16.msra.mxu0 %v9109
    %9634 = vmatprep.subr.bf16.mxu0 %v9118
    %9635 = vmatpush1.bf16.msra.mxu0 %v9117
    %9636 = vmatprep.subr.bf16.mxu0 %v9126
    %9637 = vmatpush1.bf16.msra.mxu0 %v9125
    %9638 = vmatprep.subr.bf16.mxu0 %v9134
    %9639 = vmatpush1.bf16.msra.mxu0 %v9133
    %9640 = vmatprep.subr.bf16.mxu0 %v9142
    %9641 = vmatpush1.bf16.msra.mxu0 %v9141
    %9642 = vmatprep.subr.bf16.mxu0 %v9150
    %9643 = vmatpush1.bf16.msra.mxu0 %v9149
    %9644 = vmatprep.subr.bf16.mxu0 %v9158
    %9645 = vmatpush1.bf16.msra.mxu0 %v9157
    %9646 = vmatprep.subr.bf16.mxu0 %v9166
    %9647 = vmatpush1.bf16.msra.mxu0 %v9165
    %9648 = vmatprep.subr.bf16.mxu0 %v9174
    %9649 = vmatpush1.bf16.msra.mxu0 %v9173
    %9650 = vmatprep.subr.bf16.mxu0 %v9182
    %9651 = vmatpush1.bf16.msra.mxu0 %v9181
    %9652 = vmatprep.subr.bf16.mxu0 %v9190
    %9653 = vmatpush1.bf16.msra.mxu0 %v9189
    %9654 = vmatprep.mubr.bf16.mxu0 %v9062
    %9655 = vmatmul.mubr.bf16.gmra.mrb[0].mxu0 %v9061
    %v9656 = vpop.f32.mrb[0].mxu0
    %v9657 = vadd.f32 %v9585, %v9656
    %v9658 = vpop.f32.mrb[0].mxu0
    %v9659 = vadd.f32 %v9589, %v9658
    %v9660 = vpop.f32.mrb[0].mxu0
    %v9661 = vpop.f32.mrb[0].mxu0
    %9662 = vdwg.mxu0
    %9663 = vmatprep.subr.bf16.mxu0 %v9198
    %9664 = vmatpush1.bf16.msra.mxu0 %v9197
    %9665 = vmatprep.subr.bf16.mxu0 %v9206
    %9666 = vmatpush1.bf16.msra.mxu0 %v9205
    %9667 = vmatprep.subr.bf16.mxu0 %v9214
    %9668 = vmatpush1.bf16.msra.mxu0 %v9213
    %9669 = vmatprep.subr.bf16.mxu0 %v9222
    %9670 = vmatpush1.bf16.msra.mxu0 %v9221
    %9671 = vmatprep.subr.bf16.mxu0 %v9230
    %9672 = vmatpush1.bf16.msra.mxu0 %v9229
    %9673 = vmatprep.subr.bf16.mxu0 %v9238
    %9674 = vmatpush1.bf16.msra.mxu0 %v9237
    %9675 = vmatprep.subr.bf16.mxu0 %v9246
    %9676 = vmatpush1.bf16.msra.mxu0 %v9245
    %9677 = vmatprep.subr.bf16.mxu0 %v9254
    %9678 = vmatpush1.bf16.msra.mxu0 %v9253
    %9679 = vmatprep.subr.bf16.mxu0 %v9262
    %9680 = vmatpush1.bf16.msra.mxu0 %v9261
    %9681 = vmatprep.subr.bf16.mxu0 %v9270
    %9682 = vmatpush1.bf16.msra.mxu0 %v9269
    %9683 = vmatprep.subr.bf16.mxu0 %v9278
    %9684 = vmatpush1.bf16.msra.mxu0 %v9277
    %9685 = vmatprep.subr.bf16.mxu0 %v9286
    %9686 = vmatpush1.bf16.msra.mxu0 %v9285
    %9687 = vmatprep.subr.bf16.mxu0 %v9294
    %9688 = vmatpush1.bf16.msra.mxu0 %v9293
    %9689 = vmatprep.subr.bf16.mxu0 %v9302
    %9690 = vmatpush1.bf16.msra.mxu0 %v9301
    %9691 = vmatprep.subr.bf16.mxu0 %v9310
    %9692 = vmatpush1.bf16.msra.mxu0 %v9309
    %9693 = vmatprep.subr.bf16.mxu0 %v9318
    %9694 = vmatpush1.bf16.msra.mxu0 %v9317
    %9695 = vmatprep.mubr.bf16.mxu0 %v9064
    %9696 = vmatmul.mubr.bf16.gmra.mrb[0].mxu0 %v9063
    %v9697 = vpop.f32.mrb[0].mxu0
    %v9698 = vadd.f32 %v9657, %v9697
    %v9699 = vpop.f32.mrb[0].mxu0
    %v9700 = vadd.f32 %v9659, %v9699
    %v9701 = vpop.f32.mrb[0].mxu0
    %v9702 = vpop.f32.mrb[0].mxu0
    %9703 = vdwg.mxu0
    %9704 = vmatprep.subr.bf16.mxu0 %v9326
    %9705 = vmatpush1.bf16.msra.mxu0 %v9325
    %9706 = vmatprep.subr.bf16.mxu0 %v9334
    %9707 = vmatpush1.bf16.msra.mxu0 %v9333
    %9708 = vmatprep.subr.bf16.mxu0 %v9342
    %9709 = vmatpush1.bf16.msra.mxu0 %v9341
    %9710 = vmatprep.subr.bf16.mxu0 %v9350
    %9711 = vmatpush1.bf16.msra.mxu0 %v9349
    %9712 = vmatprep.subr.bf16.mxu0 %v9358
    %9713 = vmatpush1.bf16.msra.mxu0 %v9357
    %9714 = vmatprep.subr.bf16.mxu0 %v9366
    %9715 = vmatpush1.bf16.msra.mxu0 %v9365
    %9716 = vmatprep.subr.bf16.mxu0 %v9374
    %9717 = vmatpush1.bf16.msra.mxu0 %v9373
    %9718 = vmatprep.subr.bf16.mxu0 %v9382
    %9719 = vmatpush1.bf16.msra.mxu0 %v9381
    %9720 = vmatprep.subr.bf16.mxu0 %v9390
    %9721 = vmatpush1.bf16.msra.mxu0 %v9389
    %9722 = vmatprep.subr.bf16.mxu0 %v9398
    %9723 = vmatpush1.bf16.msra.mxu0 %v9397
    %9724 = vmatprep.subr.bf16.mxu0 %v9406
    %9725 = vmatpush1.bf16.msra.mxu0 %v9405
    %9726 = vmatprep.subr.bf16.mxu0 %v9414
    %9727 = vmatpush1.bf16.msra.mxu0 %v9413
    %9728 = vmatprep.subr.bf16.mxu0 %v9422
    %9729 = vmatpush1.bf16.msra.mxu0 %v9421
    %9730 = vmatprep.subr.bf16.mxu0 %v9430
    %9731 = vmatpush1.bf16.msra.mxu0 %v9429
    %9732 = vmatprep.subr.bf16.mxu0 %v9438
    %9733 = vmatpush1.bf16.msra.mxu0 %v9437
    %9734 = vmatprep.subr.bf16.mxu0 %v9446
    %9735 = vmatpush1.bf16.msra.mxu0 %v9445
    %9736 = vmatprep.mubr.bf16.mxu0 %v9066
    %9737 = vmatmul.mubr.bf16.gmra.mrb[0].mxu0 %v9065
    %v9738 = vpop.f32.mrb[0].mxu0
    %v9739 = vadd.f32 %v9698, %v9738
    %v9740 = vpop.f32.mrb[0].mxu0
    %v9741 = vadd.f32 %v9700, %v9740
    %v9742 = vpop.f32.mrb[0].mxu0
    %v9743 = vpop.f32.mrb[0].mxu0
    %9744 = vdwg.mxu0
    %9745 = vmatprep.subr.bf16.mxu0 %v9454
    %9746 = vmatpush1.bf16.msra.mxu0 %v9453
    %9747 = vmatprep.subr.bf16.mxu0 %v9462
    %9748 = vmatpush1.bf16.msra.mxu0 %v9461
    %9749 = vmatprep.subr.bf16.mxu0 %v9470
    %9750 = vmatpush1.bf16.msra.mxu0 %v9469
    %9751 = vmatprep.subr.bf16.mxu0 %v9478
    %9752 = vmatpush1.bf16.msra.mxu0 %v9477
    %9753 = vmatprep.subr.bf16.mxu0 %v9486
    %9754 = vmatpush1.bf16.msra.mxu0 %v9485
    %9755 = vmatprep.subr.bf16.mxu0 %v9494
    %9756 = vmatpush1.bf16.msra.mxu0 %v9493
    %9757 = vmatprep.subr.bf16.mxu0 %v9502
    %9758 = vmatpush1.bf16.msra.mxu0 %v9501
    %9759 = vmatprep.subr.bf16.mxu0 %v9510
    %9760 = vmatpush1.bf16.msra.mxu0 %v9509
    %9761 = vmatprep.subr.bf16.mxu0 %v9518
    %9762 = vmatpush1.bf16.msra.mxu0 %v9517
    %9763 = vmatprep.subr.bf16.mxu0 %v9526
    %9764 = vmatpush1.bf16.msra.mxu0 %v9525
    %9765 = vmatprep.subr.bf16.mxu0 %v9534
    %9766 = vmatpush1.bf16.msra.mxu0 %v9533
    %9767 = vmatprep.subr.bf16.mxu0 %v9542
    %9768 = vmatpush1.bf16.msra.mxu0 %v9541
    %9769 = vmatprep.subr.bf16.mxu0 %v9550
    %9770 = vmatpush1.bf16.msra.mxu0 %v9549
    %9771 = vmatprep.subr.bf16.mxu0 %v9558
    %9772 = vmatpush1.bf16.msra.mxu0 %v9557
    %9773 = vmatprep.subr.bf16.mxu0 %v9566
    %9774 = vmatpush1.bf16.msra.mxu0 %v9565
    %9775 = vmatprep.subr.bf16.mxu0 %v9574
    %9776 = vmatpush1.bf16.msra.mxu0 %v9573
    %9777 = vmatprep.mubr.bf16.mxu0 %v9068
    %9778 = vmatmul.mubr.bf16.gmra.mrb[0].mxu0 %v9067
    %v9779 = vpop.f32.mrb[0].mxu0
    %v9780 = vadd.f32 %v9739, %v9779
    %v9781 = vpop.f32.mrb[0].mxu0
    %v9782 = vadd.f32 %v9741, %v9781
    %v9783 = vpop.f32.mrb[0].mxu0
    %v9784 = vpop.f32.mrb[0].mxu0
    %9785 = vdwg.mxu0
    %9786 = vmatprep.subr.bf16.mxu0 %v9072
    %9787 = vmatpush1.bf16.msra.mxu0 %v9071
    %9788 = vmatprep.subr.bf16.mxu0 %v9080
    %9789 = vmatpush1.bf16.msra.mxu0 %v9079
    %9790 = vmatprep.subr.bf16.mxu0 %v9088
    %9791 = vmatpush1.bf16.msra.mxu0 %v9087
    %9792 = vmatprep.subr.bf16.mxu0 %v9096
    %9793 = vmatpush1.bf16.msra.mxu0 %v9095
    %9794 = vmatprep.subr.bf16.mxu0 %v9104
    %9795 = vmatpush1.bf16.msra.mxu0 %v9103
    %9796 = vmatprep.subr.bf16.mxu0 %v9112
    %9797 = vmatpush1.bf16.msra.mxu0 %v9111
    %9798 = vmatprep.subr.bf16.mxu0 %v9120
    %9799 = vmatpush1.bf16.msra.mxu0 %v9119
    %9800 = vmatprep.subr.bf16.mxu0 %v9128
    %9801 = vmatpush1.bf16.msra.mxu0 %v9127
    %9802 = vmatprep.subr.bf16.mxu0 %v9136
    %9803 = vmatpush1.bf16.msra.mxu0 %v9135
    %9804 = vmatprep.subr.bf16.mxu0 %v9144
    %9805 = vmatpush1.bf16.msra.mxu0 %v9143
    %9806 = vmatprep.subr.bf16.mxu0 %v9152
    %9807 = vmatpush1.bf16.msra.mxu0 %v9151
    %9808 = vmatprep.subr.bf16.mxu0 %v9160
    %9809 = vmatpush1.bf16.msra.mxu0 %v9159
    %9810 = vmatprep.subr.bf16.mxu0 %v9168
    %9811 = vmatpush1.bf16.msra.mxu0 %v9167
    %9812 = vmatprep.subr.bf16.mxu0 %v9176
    %9813 = vmatpush1.bf16.msra.mxu0 %v9175
    %9814 = vmatprep.subr.bf16.mxu0 %v9184
    %9815 = vmatpush1.bf16.msra.mxu0 %v9183
    %9816 = vmatprep.subr.bf16.mxu0 %v9192
    %9817 = vmatpush1.bf16.msra.mxu0 %v9191
    %9818 = vmatprep.mubr.bf16.mxu0 %v9062
    %9819 = vmatmul.mubr.bf16.gmra.mrb[0].mxu0 %v9061
    %v9820 = vpop.f32.mrb[0].mxu0
    %v9821 = vadd.f32 %v9593, %v9820
    %v9822 = vpop.f32.mrb[0].mxu0
    %v9823 = vadd.f32 %v9597, %v9822
    %v9824 = vpop.f32.mrb[0].mxu0
    %v9825 = vpop.f32.mrb[0].mxu0
    %9826 = vdwg.mxu0
    %9827 = vmatprep.subr.bf16.mxu0 %v9200
    %9828 = vmatpush1.bf16.msra.mxu0 %v9199
    %9829 = vmatprep.subr.bf16.mxu0 %v9208
    %9830 = vmatpush1.bf16.msra.mxu0 %v9207
    %9831 = vmatprep.subr.bf16.mxu0 %v9216
    %9832 = vmatpush1.bf16.msra.mxu0 %v9215
    %9833 = vmatprep.subr.bf16.mxu0 %v9224
    %9834 = vmatpush1.bf16.msra.mxu0 %v9223
    %9835 = vmatprep.subr.bf16.mxu0 %v9232
    %9836 = vmatpush1.bf16.msra.mxu0 %v9231
    %9837 = vmatprep.subr.bf16.mxu0 %v9240
    %9838 = vmatpush1.bf16.msra.mxu0 %v9239
    %9839 = vmatprep.subr.bf16.mxu0 %v9248
    %9840 = vmatpush1.bf16.msra.mxu0 %v9247
    %9841 = vmatprep.subr.bf16.mxu0 %v9256
    %9842 = vmatpush1.bf16.msra.mxu0 %v9255
    %9843 = vmatprep.subr.bf16.mxu0 %v9264
    %9844 = vmatpush1.bf16.msra.mxu0 %v9263
    %9845 = vmatprep.subr.bf16.mxu0 %v9272
    %9846 = vmatpush1.bf16.msra.mxu0 %v9271
    %9847 = vmatprep.subr.bf16.mxu0 %v9280
    %9848 = vmatpush1.bf16.msra.mxu0 %v9279
    %9849 = vmatprep.subr.bf16.mxu0 %v9288
    %9850 = vmatpush1.bf16.msra.mxu0 %v9287
    %9851 = vmatprep.subr.bf16.mxu0 %v9296
    %9852 = vmatpush1.bf16.msra.mxu0 %v9295
    %9853 = vmatprep.subr.bf16.mxu0 %v9304
    %9854 = vmatpush1.bf16.msra.mxu0 %v9303
    %9855 = vmatprep.subr.bf16.mxu0 %v9312
    %9856 = vmatpush1.bf16.msra.mxu0 %v9311
    %9857 = vmatprep.subr.bf16.mxu0 %v9320
    %9858 = vmatpush1.bf16.msra.mxu0 %v9319
    %9859 = vmatprep.mubr.bf16.mxu0 %v9064
    %9860 = vmatmul.mubr.bf16.gmra.mrb[0].mxu0 %v9063
    %v9861 = vpop.f32.mrb[0].mxu0
    %v9862 = vadd.f32 %v9821, %v9861
    %v9863 = vpop.f32.mrb[0].mxu0
    %v9864 = vadd.f32 %v9823, %v9863
    %v9865 = vpop.f32.mrb[0].mxu0
    %v9866 = vpop.f32.mrb[0].mxu0
    %9867 = vdwg.mxu0
    %9868 = vmatprep.subr.bf16.mxu0 %v9328
    %9869 = vmatpush1.bf16.msra.mxu0 %v9327
    %9870 = vmatprep.subr.bf16.mxu0 %v9336
    %9871 = vmatpush1.bf16.msra.mxu0 %v9335
    %9872 = vmatprep.subr.bf16.mxu0 %v9344
    %9873 = vmatpush1.bf16.msra.mxu0 %v9343
    %9874 = vmatprep.subr.bf16.mxu0 %v9352
    %9875 = vmatpush1.bf16.msra.mxu0 %v9351
    %9876 = vmatprep.subr.bf16.mxu0 %v9360
    %9877 = vmatpush1.bf16.msra.mxu0 %v9359
    %9878 = vmatprep.subr.bf16.mxu0 %v9368
    %9879 = vmatpush1.bf16.msra.mxu0 %v9367
    %9880 = vmatprep.subr.bf16.mxu0 %v9376
    %9881 = vmatpush1.bf16.msra.mxu0 %v9375
    %9882 = vmatprep.subr.bf16.mxu0 %v9384
    %9883 = vmatpush1.bf16.msra.mxu0 %v9383
    %9884 = vmatprep.subr.bf16.mxu0 %v9392
    %9885 = vmatpush1.bf16.msra.mxu0 %v9391
    %9886 = vmatprep.subr.bf16.mxu0 %v9400
    %9887 = vmatpush1.bf16.msra.mxu0 %v9399
    %9888 = vmatprep.subr.bf16.mxu0 %v9408
    %9889 = vmatpush1.bf16.msra.mxu0 %v9407
    %9890 = vmatprep.subr.bf16.mxu0 %v9416
    %9891 = vmatpush1.bf16.msra.mxu0 %v9415
    %9892 = vmatprep.subr.bf16.mxu0 %v9424
    %9893 = vmatpush1.bf16.msra.mxu0 %v9423
    %9894 = vmatprep.subr.bf16.mxu0 %v9432
    %9895 = vmatpush1.bf16.msra.mxu0 %v9431
    %9896 = vmatprep.subr.bf16.mxu0 %v9440
    %9897 = vmatpush1.bf16.msra.mxu0 %v9439
    %9898 = vmatprep.subr.bf16.mxu0 %v9448
    %9899 = vmatpush1.bf16.msra.mxu0 %v9447
    %9900 = vmatprep.mubr.bf16.mxu0 %v9066
    %9901 = vmatmul.mubr.bf16.gmra.mrb[0].mxu0 %v9065
    %v9902 = vpop.f32.mrb[0].mxu0
    %v9903 = vadd.f32 %v9862, %v9902
    %v9904 = vpop.f32.mrb[0].mxu0
    %v9905 = vadd.f32 %v9864, %v9904
    %v9906 = vpop.f32.mrb[0].mxu0
    %v9907 = vpop.f32.mrb[0].mxu0
    %9908 = vdwg.mxu0
    %9909 = vmatprep.subr.bf16.mxu0 %v9456
    %9910 = vmatpush1.bf16.msra.mxu0 %v9455
    %9911 = vmatprep.subr.bf16.mxu0 %v9464
    %9912 = vmatpush1.bf16.msra.mxu0 %v9463
    %9913 = vmatprep.subr.bf16.mxu0 %v9472
    %9914 = vmatpush1.bf16.msra.mxu0 %v9471
    %9915 = vmatprep.subr.bf16.mxu0 %v9480
    %9916 = vmatpush1.bf16.msra.mxu0 %v9479
    %9917 = vmatprep.subr.bf16.mxu0 %v9488
    %9918 = vmatpush1.bf16.msra.mxu0 %v9487
    %9919 = vmatprep.subr.bf16.mxu0 %v9496
    %9920 = vmatpush1.bf16.msra.mxu0 %v9495
    %9921 = vmatprep.subr.bf16.mxu0 %v9504
    %9922 = vmatpush1.bf16.msra.mxu0 %v9503
    %9923 = vmatprep.subr.bf16.mxu0 %v9512
    %9924 = vmatpush1.bf16.msra.mxu0 %v9511
    %9925 = vmatprep.subr.bf16.mxu0 %v9520
    %9926 = vmatpush1.bf16.msra.mxu0 %v9519
    %9927 = vmatprep.subr.bf16.mxu0 %v9528
    %9928 = vmatpush1.bf16.msra.mxu0 %v9527
    %9929 = vmatprep.subr.bf16.mxu0 %v9536
    %9930 = vmatpush1.bf16.msra.mxu0 %v9535
    %9931 = vmatprep.subr.bf16.mxu0 %v9544
    %9932 = vmatpush1.bf16.msra.mxu0 %v9543
    %9933 = vmatprep.subr.bf16.mxu0 %v9552
    %9934 = vmatpush1.bf16.msra.mxu0 %v9551
    %9935 = vmatprep.subr.bf16.mxu0 %v9560
    %9936 = vmatpush1.bf16.msra.mxu0 %v9559
    %9937 = vmatprep.subr.bf16.mxu0 %v9568
    %9938 = vmatpush1.bf16.msra.mxu0 %v9567
    %9939 = vmatprep.subr.bf16.mxu0 %v9576
    %9940 = vmatpush1.bf16.msra.mxu0 %v9575
    %9941 = vmatprep.mubr.bf16.mxu0 %v9068
    %9942 = vmatmul.mubr.bf16.gmra.mrb[0].mxu0 %v9067
    %v9943 = vpop.f32.mrb[0].mxu0
    %v9944 = vadd.f32 %v9903, %v9943
    %v9945 = vpop.f32.mrb[0].mxu0
    %v9946 = vadd.f32 %v9905, %v9945
    %v9947 = vpop.f32.mrb[0].mxu0
    %v9948 = vpop.f32.mrb[0].mxu0
    %9949 = vdwg.mxu0
    %9950 = vmatprep.subr.bf16.mxu0 %v9074
    %9951 = vmatpush1.bf16.msra.mxu0 %v9073
    %9952 = vmatprep.subr.bf16.mxu0 %v9082
    %9953 = vmatpush1.bf16.msra.mxu0 %v9081
    %9954 = vmatprep.subr.bf16.mxu0 %v9090
    %9955 = vmatpush1.bf16.msra.mxu0 %v9089
    %9956 = vmatprep.subr.bf16.mxu0 %v9098
    %9957 = vmatpush1.bf16.msra.mxu0 %v9097
    %9958 = vmatprep.subr.bf16.mxu0 %v9106
    %9959 = vmatpush1.bf16.msra.mxu0 %v9105
    %9960 = vmatprep.subr.bf16.mxu0 %v9114
    %9961 = vmatpush1.bf16.msra.mxu0 %v9113
    %9962 = vmatprep.subr.bf16.mxu0 %v9122
    %9963 = vmatpush1.bf16.msra.mxu0 %v9121
    %9964 = vmatprep.subr.bf16.mxu0 %v9130
    %9965 = vmatpush1.bf16.msra.mxu0 %v9129
    %9966 = vmatprep.subr.bf16.mxu0 %v9138
    %9967 = vmatpush1.bf16.msra.mxu0 %v9137
    %9968 = vmatprep.subr.bf16.mxu0 %v9146
    %9969 = vmatpush1.bf16.msra.mxu0 %v9145
    %9970 = vmatprep.subr.bf16.mxu0 %v9154
    %9971 = vmatpush1.bf16.msra.mxu0 %v9153
    %9972 = vmatprep.subr.bf16.mxu0 %v9162
    %9973 = vmatpush1.bf16.msra.mxu0 %v9161
    %9974 = vmatprep.subr.bf16.mxu0 %v9170
    %9975 = vmatpush1.bf16.msra.mxu0 %v9169
    %9976 = vmatprep.subr.bf16.mxu0 %v9178
    %9977 = vmatpush1.bf16.msra.mxu0 %v9177
    %9978 = vmatprep.subr.bf16.mxu0 %v9186
    %9979 = vmatpush1.bf16.msra.mxu0 %v9185
    %9980 = vmatprep.subr.bf16.mxu0 %v9194
    %9981 = vmatpush1.bf16.msra.mxu0 %v9193
    %9982 = vmatprep.mubr.bf16.mxu0 %v9062
    %9983 = vmatmul.mubr.bf16.gmra.mrb[0].mxu0 %v9061
    %v9984 = vpop.f32.mrb[0].mxu0
    %v9985 = vadd.f32 %v9601, %v9984
    %v9986 = vpop.f32.mrb[0].mxu0
    %v9987 = vadd.f32 %v9605, %v9986
    %v9988 = vpop.f32.mrb[0].mxu0
    %v9989 = vpop.f32.mrb[0].mxu0
    %9990 = vdwg.mxu0
    %9991 = vmatprep.subr.bf16.mxu0 %v9202
    %9992 = vmatpush1.bf16.msra.mxu0 %v9201
    %9993 = vmatprep.subr.bf16.mxu0 %v9210
    %9994 = vmatpush1.bf16.msra.mxu0 %v9209
    %9995 = vmatprep.subr.bf16.mxu0 %v9218
    %9996 = vmatpush1.bf16.msra.mxu0 %v9217
    %9997 = vmatprep.subr.bf16.mxu0 %v9226
    %9998 = vmatpush1.bf16.msra.mxu0 %v9225
    %9999 = vmatprep.subr.bf16.mxu0 %v9234
    %10000 = vmatpush1.bf16.msra.mxu0 %v9233
    %10001 = vmatprep.subr.bf16.mxu0 %v9242
    %10002 = vmatpush1.bf16.msra.mxu0 %v9241
    %10003 = vmatprep.subr.bf16.mxu0 %v9250
    %10004 = vmatpush1.bf16.msra.mxu0 %v9249
    %10005 = vmatprep.subr.bf16.mxu0 %v9258
    %10006 = vmatpush1.bf16.msra.mxu0 %v9257
    %10007 = vmatprep.subr.bf16.mxu0 %v9266
    %10008 = vmatpush1.bf16.msra.mxu0 %v9265
    %10009 = vmatprep.subr.bf16.mxu0 %v9274
    %10010 = vmatpush1.bf16.msra.mxu0 %v9273
    %10011 = vmatprep.subr.bf16.mxu0 %v9282
    %10012 = vmatpush1.bf16.msra.mxu0 %v9281
    %10013 = vmatprep.subr.bf16.mxu0 %v9290
    %10014 = vmatpush1.bf16.msra.mxu0 %v9289
    %10015 = vmatprep.subr.bf16.mxu0 %v9298
    %10016 = vmatpush1.bf16.msra.mxu0 %v9297
    %10017 = vmatprep.subr.bf16.mxu0 %v9306
    %10018 = vmatpush1.bf16.msra.mxu0 %v9305
    %10019 = vmatprep.subr.bf16.mxu0 %v9314
    %10020 = vmatpush1.bf16.msra.mxu0 %v9313
    %10021 = vmatprep.subr.bf16.mxu0 %v9322
    %10022 = vmatpush1.bf16.msra.mxu0 %v9321
    %10023 = vmatprep.mubr.bf16.mxu0 %v9064
    %10024 = vmatmul.mubr.bf16.gmra.mrb[0].mxu0 %v9063
    %v10025 = vpop.f32.mrb[0].mxu0
    %v10026 = vadd.f32 %v9985, %v10025
    %v10027 = vpop.f32.mrb[0].mxu0
    %v10028 = vadd.f32 %v9987, %v10027
    %v10029 = vpop.f32.mrb[0].mxu0
    %v10030 = vpop.f32.mrb[0].mxu0
    %10031 = vdwg.mxu0
    %10032 = vmatprep.subr.bf16.mxu0 %v9330
    %10033 = vmatpush1.bf16.msra.mxu0 %v9329
    %10034 = vmatprep.subr.bf16.mxu0 %v9338
    %10035 = vmatpush1.bf16.msra.mxu0 %v9337
    %10036 = vmatprep.subr.bf16.mxu0 %v9346
    %10037 = vmatpush1.bf16.msra.mxu0 %v9345
    %10038 = vmatprep.subr.bf16.mxu0 %v9354
    %10039 = vmatpush1.bf16.msra.mxu0 %v9353
    %10040 = vmatprep.subr.bf16.mxu0 %v9362
    %10041 = vmatpush1.bf16.msra.mxu0 %v9361
    %10042 = vmatprep.subr.bf16.mxu0 %v9370
    %10043 = vmatpush1.bf16.msra.mxu0 %v9369
    %10044 = vmatprep.subr.bf16.mxu0 %v9378
    %10045 = vmatpush1.bf16.msra.mxu0 %v9377
    %10046 = vmatprep.subr.bf16.mxu0 %v9386
    %10047 = vmatpush1.bf16.msra.mxu0 %v9385
    %10048 = vmatprep.subr.bf16.mxu0 %v9394
    %10049 = vmatpush1.bf16.msra.mxu0 %v9393
    %10050 = vmatprep.subr.bf16.mxu0 %v9402
    %10051 = vmatpush1.bf16.msra.mxu0 %v9401
    %10052 = vmatprep.subr.bf16.mxu0 %v9410
    %10053 = vmatpush1.bf16.msra.mxu0 %v9409
    %10054 = vmatprep.subr.bf16.mxu0 %v9418
    %10055 = vmatpush1.bf16.msra.mxu0 %v9417
    %10056 = vmatprep.subr.bf16.mxu0 %v9426
    %10057 = vmatpush1.bf16.msra.mxu0 %v9425
    %10058 = vmatprep.subr.bf16.mxu0 %v9434
    %10059 = vmatpush1.bf16.msra.mxu0 %v9433
    %10060 = vmatprep.subr.bf16.mxu0 %v9442
    %10061 = vmatpush1.bf16.msra.mxu0 %v9441
    %10062 = vmatprep.subr.bf16.mxu0 %v9450
    %10063 = vmatpush1.bf16.msra.mxu0 %v9449
    %10064 = vmatprep.mubr.bf16.mxu0 %v9066
    %10065 = vmatmul.mubr.bf16.gmra.mrb[0].mxu0 %v9065
    %v10066 = vpop.f32.mrb[0].mxu0
    %v10067 = vadd.f32 %v10026, %v10066
    %v10068 = vpop.f32.mrb[0].mxu0
    %v10069 = vadd.f32 %v10028, %v10068
    %v10070 = vpop.f32.mrb[0].mxu0
    %v10071 = vpop.f32.mrb[0].mxu0
    %10072 = vdwg.mxu0
    %10073 = vmatprep.subr.bf16.mxu0 %v9458
    %10074 = vmatpush1.bf16.msra.mxu0 %v9457
    %10075 = vmatprep.subr.bf16.mxu0 %v9466
    %10076 = vmatpush1.bf16.msra.mxu0 %v9465
    %10077 = vmatprep.subr.bf16.mxu0 %v9474
    %10078 = vmatpush1.bf16.msra.mxu0 %v9473
    %10079 = vmatprep.subr.bf16.mxu0 %v9482
    %10080 = vmatpush1.bf16.msra.mxu0 %v9481
    %10081 = vmatprep.subr.bf16.mxu0 %v9490
    %10082 = vmatpush1.bf16.msra.mxu0 %v9489
    %10083 = vmatprep.subr.bf16.mxu0 %v9498
    %10084 = vmatpush1.bf16.msra.mxu0 %v9497
    %10085 = vmatprep.subr.bf16.mxu0 %v9506
    %10086 = vmatpush1.bf16.msra.mxu0 %v9505
    %10087 = vmatprep.subr.bf16.mxu0 %v9514
    %10088 = vmatpush1.bf16.msra.mxu0 %v9513
    %10089 = vmatprep.subr.bf16.mxu0 %v9522
    %10090 = vmatpush1.bf16.msra.mxu0 %v9521
    %10091 = vmatprep.subr.bf16.mxu0 %v9530
    %10092 = vmatpush1.bf16.msra.mxu0 %v9529
    %10093 = vmatprep.subr.bf16.mxu0 %v9538
    %10094 = vmatpush1.bf16.msra.mxu0 %v9537
    %10095 = vmatprep.subr.bf16.mxu0 %v9546
    %10096 = vmatpush1.bf16.msra.mxu0 %v9545
    %10097 = vmatprep.subr.bf16.mxu0 %v9554
    %10098 = vmatpush1.bf16.msra.mxu0 %v9553
    %10099 = vmatprep.subr.bf16.mxu0 %v9562
    %10100 = vmatpush1.bf16.msra.mxu0 %v9561
    %10101 = vmatprep.subr.bf16.mxu0 %v9570
    %10102 = vmatpush1.bf16.msra.mxu0 %v9569
    %10103 = vmatprep.subr.bf16.mxu0 %v9578
    %10104 = vmatpush1.bf16.msra.mxu0 %v9577
    %10105 = vmatprep.mubr.bf16.mxu0 %v9068
    %10106 = vmatmul.mubr.bf16.gmra.mrb[0].mxu0 %v9067
    %v10107 = vpop.f32.mrb[0].mxu0
    %v10108 = vadd.f32 %v10067, %v10107
    %v10109 = vpop.f32.mrb[0].mxu0
    %v10110 = vadd.f32 %v10069, %v10109
    %v10111 = vpop.f32.mrb[0].mxu0
    %v10112 = vpop.f32.mrb[0].mxu0
    %10113 = vdwg.mxu0
    %10114 = vmatprep.subr.bf16.mxu0 %v9076
    %10115 = vmatpush1.bf16.msra.mxu0 %v9075
    %10116 = vmatprep.subr.bf16.mxu0 %v9084
    %10117 = vmatpush1.bf16.msra.mxu0 %v9083
    %10118 = vmatprep.subr.bf16.mxu0 %v9092
    %10119 = vmatpush1.bf16.msra.mxu0 %v9091
    %10120 = vmatprep.subr.bf16.mxu0 %v9100
    %10121 = vmatpush1.bf16.msra.mxu0 %v9099
    %10122 = vmatprep.subr.bf16.mxu0 %v9108
    %10123 = vmatpush1.bf16.msra.mxu0 %v9107
    %10124 = vmatprep.subr.bf16.mxu0 %v9116
    %10125 = vmatpush1.bf16.msra.mxu0 %v9115
    %10126 = vmatprep.subr.bf16.mxu0 %v9124
    %10127 = vmatpush1.bf16.msra.mxu0 %v9123
    %10128 = vmatprep.subr.bf16.mxu0 %v9132
    %10129 = vmatpush1.bf16.msra.mxu0 %v9131
    %10130 = vmatprep.subr.bf16.mxu0 %v9140
    %10131 = vmatpush1.bf16.msra.mxu0 %v9139
    %10132 = vmatprep.subr.bf16.mxu0 %v9148
    %10133 = vmatpush1.bf16.msra.mxu0 %v9147
    %10134 = vmatprep.subr.bf16.mxu0 %v9156
    %10135 = vmatpush1.bf16.msra.mxu0 %v9155
    %10136 = vmatprep.subr.bf16.mxu0 %v9164
    %10137 = vmatpush1.bf16.msra.mxu0 %v9163
    %10138 = vmatprep.subr.bf16.mxu0 %v9172
    %10139 = vmatpush1.bf16.msra.mxu0 %v9171
    %10140 = vmatprep.subr.bf16.mxu0 %v9180
    %10141 = vmatpush1.bf16.msra.mxu0 %v9179
    %10142 = vmatprep.subr.bf16.mxu0 %v9188
    %10143 = vmatpush1.bf16.msra.mxu0 %v9187
    %10144 = vmatprep.subr.bf16.mxu0 %v9196
    %10145 = vmatpush1.bf16.msra.mxu0 %v9195
    %10146 = vmatprep.mubr.bf16.mxu0 %v9062
    %10147 = vmatmul.mubr.bf16.gmra.mrb[0].mxu0 %v9061
    %v10148 = vpop.f32.mrb[0].mxu0
    %v10149 = vadd.f32 %v9609, %v10148
    %v10150 = vpop.f32.mrb[0].mxu0
    %v10151 = vadd.f32 %v9613, %v10150
    %v10152 = vpop.f32.mrb[0].mxu0
    %v10153 = vpop.f32.mrb[0].mxu0
    %10154 = vdwg.mxu0
    %10155 = vmatprep.subr.bf16.mxu0 %v9204
    %10156 = vmatpush1.bf16.msra.mxu0 %v9203
    %10157 = vmatprep.subr.bf16.mxu0 %v9212
    %10158 = vmatpush1.bf16.msra.mxu0 %v9211
    %10159 = vmatprep.subr.bf16.mxu0 %v9220
    %10160 = vmatpush1.bf16.msra.mxu0 %v9219
    %10161 = vmatprep.subr.bf16.mxu0 %v9228
    %10162 = vmatpush1.bf16.msra.mxu0 %v9227
    %10163 = vmatprep.subr.bf16.mxu0 %v9236
    %10164 = vmatpush1.bf16.msra.mxu0 %v9235
    %10165 = vmatprep.subr.bf16.mxu0 %v9244
    %10166 = vmatpush1.bf16.msra.mxu0 %v9243
    %10167 = vmatprep.subr.bf16.mxu0 %v9252
    %10168 = vmatpush1.bf16.msra.mxu0 %v9251
    %10169 = vmatprep.subr.bf16.mxu0 %v9260
    %10170 = vmatpush1.bf16.msra.mxu0 %v9259
    %10171 = vmatprep.subr.bf16.mxu0 %v9268
    %10172 = vmatpush1.bf16.msra.mxu0 %v9267
    %10173 = vmatprep.subr.bf16.mxu0 %v9276
    %10174 = vmatpush1.bf16.msra.mxu0 %v9275
    %10175 = vmatprep.subr.bf16.mxu0 %v9284
    %10176 = vmatpush1.bf16.msra.mxu0 %v9283
    %10177 = vmatprep.subr.bf16.mxu0 %v9292
    %10178 = vmatpush1.bf16.msra.mxu0 %v9291
    %10179 = vmatprep.subr.bf16.mxu0 %v9300
    %10180 = vmatpush1.bf16.msra.mxu0 %v9299
    %10181 = vmatprep.subr.bf16.mxu0 %v9308
    %10182 = vmatpush1.bf16.msra.mxu0 %v9307
    %10183 = vmatprep.subr.bf16.mxu0 %v9316
    %10184 = vmatpush1.bf16.msra.mxu0 %v9315
    %10185 = vmatprep.subr.bf16.mxu0 %v9324
    %10186 = vmatpush1.bf16.msra.mxu0 %v9323
    %10187 = vmatprep.mubr.bf16.mxu0 %v9064
    %10188 = vmatmul.mubr.bf16.gmra.mrb[0].mxu0 %v9063
    %v10189 = vpop.f32.mrb[0].mxu0
    %v10190 = vadd.f32 %v10149, %v10189
    %v10191 = vpop.f32.mrb[0].mxu0
    %v10192 = vadd.f32 %v10151, %v10191
    %v10193 = vpop.f32.mrb[0].mxu0
    %v10194 = vpop.f32.mrb[0].mxu0
    %10195 = vdwg.mxu0
    %10196 = vmatprep.subr.bf16.mxu0 %v9332
    %10197 = vmatpush1.bf16.msra.mxu0 %v9331
    %10198 = vmatprep.subr.bf16.mxu0 %v9340
    %10199 = vmatpush1.bf16.msra.mxu0 %v9339
    %10200 = vmatprep.subr.bf16.mxu0 %v9348
    %10201 = vmatpush1.bf16.msra.mxu0 %v9347
    %10202 = vmatprep.subr.bf16.mxu0 %v9356
    %10203 = vmatpush1.bf16.msra.mxu0 %v9355
    %10204 = vmatprep.subr.bf16.mxu0 %v9364
    %10205 = vmatpush1.bf16.msra.mxu0 %v9363
    %10206 = vmatprep.subr.bf16.mxu0 %v9372
    %10207 = vmatpush1.bf16.msra.mxu0 %v9371
    %10208 = vmatprep.subr.bf16.mxu0 %v9380
    %10209 = vmatpush1.bf16.msra.mxu0 %v9379
    %10210 = vmatprep.subr.bf16.mxu0 %v9388
    %10211 = vmatpush1.bf16.msra.mxu0 %v9387
    %10212 = vmatprep.subr.bf16.mxu0 %v9396
    %10213 = vmatpush1.bf16.msra.mxu0 %v9395
    %10214 = vmatprep.subr.bf16.mxu0 %v9404
    %10215 = vmatpush1.bf16.msra.mxu0 %v9403
    %10216 = vmatprep.subr.bf16.mxu0 %v9412
    %10217 = vmatpush1.bf16.msra.mxu0 %v9411
    %10218 = vmatprep.subr.bf16.mxu0 %v9420
    %10219 = vmatpush1.bf16.msra.mxu0 %v9419
    %10220 = vmatprep.subr.bf16.mxu0 %v9428
    %10221 = vmatpush1.bf16.msra.mxu0 %v9427
    %10222 = vmatprep.subr.bf16.mxu0 %v9436
    %10223 = vmatpush1.bf16.msra.mxu0 %v9435
    %10224 = vmatprep.subr.bf16.mxu0 %v9444
    %10225 = vmatpush1.bf16.msra.mxu0 %v9443
    %10226 = vmatprep.subr.bf16.mxu0 %v9452
    %10227 = vmatpush1.bf16.msra.mxu0 %v9451
    %10228 = vmatprep.mubr.bf16.mxu0 %v9066
    %10229 = vmatmul.mubr.bf16.gmra.mrb[0].mxu0 %v9065
    %v10230 = vpop.f32.mrb[0].mxu0
    %v10231 = vadd.f32 %v10190, %v10230
    %v10232 = vpop.f32.mrb[0].mxu0
    %v10233 = vadd.f32 %v10192, %v10232
    %v10234 = vpop.f32.mrb[0].mxu0
    %v10235 = vpop.f32.mrb[0].mxu0
    %10236 = vdwg.mxu0
    %10237 = vmatprep.subr.bf16.mxu0 %v9460
    %10238 = vmatpush1.bf16.msra.mxu0 %v9459
    %10239 = vmatprep.subr.bf16.mxu0 %v9468
    %10240 = vmatpush1.bf16.msra.mxu0 %v9467
    %10241 = vmatprep.subr.bf16.mxu0 %v9476
    %10242 = vmatpush1.bf16.msra.mxu0 %v9475
    %10243 = vmatprep.subr.bf16.mxu0 %v9484
    %10244 = vmatpush1.bf16.msra.mxu0 %v9483
    %10245 = vmatprep.subr.bf16.mxu0 %v9492
    %10246 = vmatpush1.bf16.msra.mxu0 %v9491
    %10247 = vmatprep.subr.bf16.mxu0 %v9500
    %10248 = vmatpush1.bf16.msra.mxu0 %v9499
    %10249 = vmatprep.subr.bf16.mxu0 %v9508
    %10250 = vmatpush1.bf16.msra.mxu0 %v9507
    %10251 = vmatprep.subr.bf16.mxu0 %v9516
    %10252 = vmatpush1.bf16.msra.mxu0 %v9515
    %10253 = vmatprep.subr.bf16.mxu0 %v9524
    %10254 = vmatpush1.bf16.msra.mxu0 %v9523
    %10255 = vmatprep.subr.bf16.mxu0 %v9532
    %10256 = vmatpush1.bf16.msra.mxu0 %v9531
    %10257 = vmatprep.subr.bf16.mxu0 %v9540
    %10258 = vmatpush1.bf16.msra.mxu0 %v9539
    %10259 = vmatprep.subr.bf16.mxu0 %v9548
    %10260 = vmatpush1.bf16.msra.mxu0 %v9547
    %10261 = vmatprep.subr.bf16.mxu0 %v9556
    %10262 = vmatpush1.bf16.msra.mxu0 %v9555
    %10263 = vmatprep.subr.bf16.mxu0 %v9564
    %10264 = vmatpush1.bf16.msra.mxu0 %v9563
    %10265 = vmatprep.subr.bf16.mxu0 %v9572
    %10266 = vmatpush1.bf16.msra.mxu0 %v9571
    %10267 = vmatprep.subr.bf16.mxu0 %v9580
    %10268 = vmatpush1.bf16.msra.mxu0 %v9579
    %10269 = vmatprep.mubr.bf16.mxu0 %v9068
    %10270 = vmatmul.mubr.bf16.gmra.mrb[0].mxu0 %v9067
    %v10271 = vpop.f32.mrb[0].mxu0
    %v10272 = vadd.f32 %v10231, %v10271
    %v10273 = vpop.f32.mrb[0].mxu0
    %v10274 = vadd.f32 %v10233, %v10273
    %v10275 = vpop.f32.mrb[0].mxu0
    %v10276 = vpop.f32.mrb[0].mxu0
    %10277 = vdwg.mxu0
    %v10278 = vmax.f32 %v9780, 0.0
    %v10279 = vmax.f32 %v9782, 0.0
    %v10280 = vmax.f32 %v9944, 0.0
    %v10281 = vmax.f32 %v9946, 0.0
    %v10282 = vmax.f32 %v10108, 0.0
    %v10283 = vmax.f32 %v10110, 0.0
    %v10284 = vmax.f32 %v10272, 0.0
    %v10285 = vmax.f32 %v10274, 0.0
    %s10286 = smul.u32 %s9057, 1
    %s10287 = sshll.u32 %s10286, 4
    %10288 = dma.done %s446, %s10287
    %v10289 = vpack.c.bf16 %v10278, %v10278
    %v10290 = vpack.c.bf16 %v10279, %v10279
    %v10291 = vpack.c.bf16 %v10280, %v10280
    %v10292 = vpack.c.bf16 %v10281, %v10281
    %v10293 = vpack.c.bf16 %v10282, %v10282
    %v10294 = vpack.c.bf16 %v10283, %v10283
    %v10295 = vpack.c.bf16 %v10284, %v10284
    %v10296 = vpack.c.bf16 %v10285, %v10285
    %v10297 = vld [vmem:[#allocation4] sm:$0xff]
    %v10298 = vld [vmem:[#allocation4 + $0x8] sm:$0xff]
    %v10299 = vld [vmem:[#allocation4 + $0x10] sm:$0xff]
    %v10300 = vld [vmem:[#allocation4 + $0x18] sm:$0xff]
    %v10301 = vld [vmem:[#allocation4 + $0x20] sm:$0xff]
    %v10302 = vld [vmem:[#allocation4 + $0x28] sm:$0xff]
    %v10303 = vld [vmem:[#allocation4 + $0x30] sm:$0xff]
    %v10304 = vld [vmem:[#allocation4 + $0x38] sm:$0xff]
    %v10305 = vld [vmem:[#allocation4 + $0x40] sm:$0xff]
    %v10306 = vld [vmem:[#allocation4 + $0x48] sm:$0xff]
    %v10307 = vld [vmem:[#allocation4 + $0x50] sm:$0xff]
    %v10308 = vld [vmem:[#allocation4 + $0x58] sm:$0xff]
    %v10309 = vld [vmem:[#allocation4 + $0x60] sm:$0xff]
    %v10310 = vld [vmem:[#allocation4 + $0x68] sm:$0xff]
    %v10311 = vld [vmem:[#allocation4 + $0x70] sm:$0xff]
    %v10312 = vld [vmem:[#allocation4 + $0x78] sm:$0xff]
    %v10313 = vld [vmem:[#allocation4 + $0x80] sm:$0xff]
    %v10314 = vld [vmem:[#allocation4 + $0x88] sm:$0xff]
    %v10315 = vld [vmem:[#allocation4 + $0x90] sm:$0xff]
    %v10316 = vld [vmem:[#allocation4 + $0x98] sm:$0xff]
    %v10317 = vld [vmem:[#allocation4 + $0xa0] sm:$0xff]
    %v10318 = vld [vmem:[#allocation4 + $0xa8] sm:$0xff]
    %v10319 = vld [vmem:[#allocation4 + $0xb0] sm:$0xff]
    %v10320 = vld [vmem:[#allocation4 + $0xb8] sm:$0xff]
    %v10321 = vld [vmem:[#allocation4 + $0xc0] sm:$0xff]
    %v10322 = vld [vmem:[#allocation4 + $0xc8] sm:$0xff]
    %v10323 = vld [vmem:[#allocation4 + $0xd0] sm:$0xff]
    %v10324 = vld [vmem:[#allocation4 + $0xd8] sm:$0xff]
    %v10325 = vld [vmem:[#allocation4 + $0xe0] sm:$0xff]
    %v10326 = vld [vmem:[#allocation4 + $0xe8] sm:$0xff]
    %v10327 = vld [vmem:[#allocation4 + $0xf0] sm:$0xff]
    %v10328 = vld [vmem:[#allocation4 + $0xf8] sm:$0xff]
    %v10329 = vld [vmem:[#allocation4 + $0x100] sm:$0xff]
    %v10330 = vld [vmem:[#allocation4 + $0x108] sm:$0xff]
    %v10331 = vld [vmem:[#allocation4 + $0x110] sm:$0xff]
    %v10332 = vld [vmem:[#allocation4 + $0x118] sm:$0xff]
    %v10333 = vld [vmem:[#allocation4 + $0x120] sm:$0xff]
    %v10334 = vld [vmem:[#allocation4 + $0x128] sm:$0xff]
    %v10335 = vld [vmem:[#allocation4 + $0x130] sm:$0xff]
    %v10336 = vld [vmem:[#allocation4 + $0x138] sm:$0xff]
    %v10337 = vld [vmem:[#allocation4 + $0x140] sm:$0xff]
    %v10338 = vld [vmem:[#allocation4 + $0x148] sm:$0xff]
    %v10339 = vld [vmem:[#allocation4 + $0x150] sm:$0xff]
    %v10340 = vld [vmem:[#allocation4 + $0x158] sm:$0xff]
    %v10341 = vld [vmem:[#allocation4 + $0x160] sm:$0xff]
    %v10342 = vld [vmem:[#allocation4 + $0x168] sm:$0xff]
    %v10343 = vld [vmem:[#allocation4 + $0x170] sm:$0xff]
    %v10344 = vld [vmem:[#allocation4 + $0x178] sm:$0xff]
    %v10345 = vld [vmem:[#allocation4 + $0x180] sm:$0xff]
    %v10346 = vld [vmem:[#allocation4 + $0x188] sm:$0xff]
    %v10347 = vld [vmem:[#allocation4 + $0x190] sm:$0xff]
    %v10348 = vld [vmem:[#allocation4 + $0x198] sm:$0xff]
    %v10349 = vld [vmem:[#allocation4 + $0x1a0] sm:$0xff]
    %v10350 = vld [vmem:[#allocation4 + $0x1a8] sm:$0xff]
    %v10351 = vld [vmem:[#allocation4 + $0x1b0] sm:$0xff]
    %v10352 = vld [vmem:[#allocation4 + $0x1b8] sm:$0xff]
    %v10353 = vld [vmem:[#allocation4 + $0x1c0] sm:$0xff]
    %v10354 = vld [vmem:[#allocation4 + $0x1c8] sm:$0xff]
    %v10355 = vld [vmem:[#allocation4 + $0x1d0] sm:$0xff]
    %v10356 = vld [vmem:[#allocation4 + $0x1d8] sm:$0xff]
    %v10357 = vld [vmem:[#allocation4 + $0x1e0] sm:$0xff]
    %v10358 = vld [vmem:[#allocation4 + $0x1e8] sm:$0xff]
    %v10359 = vld [vmem:[#allocation4 + $0x1f0] sm:$0xff]
    %v10360 = vld [vmem:[#allocation4 + $0x1f8] sm:$0xff]
    %10361 = vmatprep.subr.bf16.mxu0 0
    %10362 = vmatpush1.bf16.msra.mxu0 %v10297
    %10363 = vmatprep.subr.bf16.mxu0 0
    %10364 = vmatpush1.bf16.msra.mxu0 %v10298
    %10365 = vmatprep.subr.bf16.mxu0 0
    %10366 = vmatpush1.bf16.msra.mxu0 %v10299
    %10367 = vmatprep.subr.bf16.mxu0 0
    %10368 = vmatpush1.bf16.msra.mxu0 %v10300
    %10369 = vmatprep.subr.bf16.mxu0 0
    %10370 = vmatpush1.bf16.msra.mxu0 %v10301
    %10371 = vmatprep.subr.bf16.mxu0 0
    %10372 = vmatpush1.bf16.msra.mxu0 %v10302
    %10373 = vmatprep.subr.bf16.mxu0 0
    %10374 = vmatpush1.bf16.msra.mxu0 %v10303
    %10375 = vmatprep.subr.bf16.mxu0 0
    %10376 = vmatpush1.bf16.msra.mxu0 %v10304
    %10377 = vmatprep.subr.bf16.mxu0 0
    %10378 = vmatpush1.bf16.msra.mxu0 %v10305
    %10379 = vmatprep.subr.bf16.mxu0 0
    %10380 = vmatpush1.bf16.msra.mxu0 %v10306
    %10381 = vmatprep.subr.bf16.mxu0 0
    %10382 = vmatpush1.bf16.msra.mxu0 %v10307
    %10383 = vmatprep.subr.bf16.mxu0 0
    %10384 = vmatpush1.bf16.msra.mxu0 %v10308
    %10385 = vmatprep.subr.bf16.mxu0 0
    %10386 = vmatpush1.bf16.msra.mxu0 %v10309
    %10387 = vmatprep.subr.bf16.mxu0 0
    %10388 = vmatpush1.bf16.msra.mxu0 %v10310
    %10389 = vmatprep.subr.bf16.mxu0 0
    %10390 = vmatpush1.bf16.msra.mxu0 %v10311
    %10391 = vmatprep.subr.bf16.mxu0 0
    %10392 = vmatpush1.bf16.msra.mxu0 %v10312
    %10393 = vmatprep.mubr.bf16.mxu0 %v10290
    %10394 = vmatmul.mubr.bf16.gmra.mrb[0].mxu0 %v10289
    %v10395 = vpop.f32.mrb[0].mxu0
    %v10396 = vadd.f32 %v475, %v10395
    %v10397 = vpop.f32.mrb[0].mxu0
    %v10398 = vpop.f32.mrb[0].mxu0
    %v10399 = vpop.f32.mrb[0].mxu0
    %10400 = vdwg.mxu0
    %10401 = vmatprep.subr.bf16.mxu0 0
    %10402 = vmatpush1.bf16.msra.mxu0 %v10313
    %10403 = vmatprep.subr.bf16.mxu0 0
    %10404 = vmatpush1.bf16.msra.mxu0 %v10314
    %10405 = vmatprep.subr.bf16.mxu0 0
    %10406 = vmatpush1.bf16.msra.mxu0 %v10315
    %10407 = vmatprep.subr.bf16.mxu0 0
    %10408 = vmatpush1.bf16.msra.mxu0 %v10316
    %10409 = vmatprep.subr.bf16.mxu0 0
    %10410 = vmatpush1.bf16.msra.mxu0 %v10317
    %10411 = vmatprep.subr.bf16.mxu0 0
    %10412 = vmatpush1.bf16.msra.mxu0 %v10318
    %10413 = vmatprep.subr.bf16.mxu0 0
    %10414 = vmatpush1.bf16.msra.mxu0 %v10319
    %10415 = vmatprep.subr.bf16.mxu0 0
    %10416 = vmatpush1.bf16.msra.mxu0 %v10320
    %10417 = vmatprep.subr.bf16.mxu0 0
    %10418 = vmatpush1.bf16.msra.mxu0 %v10321
    %10419 = vmatprep.subr.bf16.mxu0 0
    %10420 = vmatpush1.bf16.msra.mxu0 %v10322
    %10421 = vmatprep.subr.bf16.mxu0 0
    %10422 = vmatpush1.bf16.msra.mxu0 %v10323
    %10423 = vmatprep.subr.bf16.mxu0 0
    %10424 = vmatpush1.bf16.msra.mxu0 %v10324
    %10425 = vmatprep.subr.bf16.mxu0 0
    %10426 = vmatpush1.bf16.msra.mxu0 %v10325
    %10427 = vmatprep.subr.bf16.mxu0 0
    %10428 = vmatpush1.bf16.msra.mxu0 %v10326
    %10429 = vmatprep.subr.bf16.mxu0 0
    %10430 = vmatpush1.bf16.msra.mxu0 %v10327
    %10431 = vmatprep.subr.bf16.mxu0 0
    %10432 = vmatpush1.bf16.msra.mxu0 %v10328
    %10433 = vmatprep.mubr.bf16.mxu0 %v10292
    %10434 = vmatmul.mubr.bf16.gmra.mrb[0].mxu0 %v10291
    %v10435 = vpop.f32.mrb[0].mxu0
    %v10436 = vadd.f32 %v10396, %v10435
    %v10437 = vpop.f32.mrb[0].mxu0
    %v10438 = vpop.f32.mrb[0].mxu0
    %v10439 = vpop.f32.mrb[0].mxu0
    %10440 = vdwg.mxu0
    %10441 = vmatprep.subr.bf16.mxu0 0
    %10442 = vmatpush1.bf16.msra.mxu0 %v10329
    %10443 = vmatprep.subr.bf16.mxu0 0
    %10444 = vmatpush1.bf16.msra.mxu0 %v10330
    %10445 = vmatprep.subr.bf16.mxu0 0
    %10446 = vmatpush1.bf16.msra.mxu0 %v10331
    %10447 = vmatprep.subr.bf16.mxu0 0
    %10448 = vmatpush1.bf16.msra.mxu0 %v10332
    %10449 = vmatprep.subr.bf16.mxu0 0
    %10450 = vmatpush1.bf16.msra.mxu0 %v10333
    %10451 = vmatprep.subr.bf16.mxu0 0
    %10452 = vmatpush1.bf16.msra.mxu0 %v10334
    %10453 = vmatprep.subr.bf16.mxu0 0
    %10454 = vmatpush1.bf16.msra.mxu0 %v10335
    %10455 = vmatprep.subr.bf16.mxu0 0
    %10456 = vmatpush1.bf16.msra.mxu0 %v10336
    %10457 = vmatprep.subr.bf16.mxu0 0
    %10458 = vmatpush1.bf16.msra.mxu0 %v10337
    %10459 = vmatprep.subr.bf16.mxu0 0
    %10460 = vmatpush1.bf16.msra.mxu0 %v10338
    %10461 = vmatprep.subr.bf16.mxu0 0
    %10462 = vmatpush1.bf16.msra.mxu0 %v10339
    %10463 = vmatprep.subr.bf16.mxu0 0
    %10464 = vmatpush1.bf16.msra.mxu0 %v10340
    %10465 = vmatprep.subr.bf16.mxu0 0
    %10466 = vmatpush1.bf16.msra.mxu0 %v10341
    %10467 = vmatprep.subr.bf16.mxu0 0
    %10468 = vmatpush1.bf16.msra.mxu0 %v10342
    %10469 = vmatprep.subr.bf16.mxu0 0
    %10470 = vmatpush1.bf16.msra.mxu0 %v10343
    %10471 = vmatprep.subr.bf16.mxu0 0
    %10472 = vmatpush1.bf16.msra.mxu0 %v10344
    %10473 = vmatprep.mubr.bf16.mxu0 %v10294
    %10474 = vmatmul.mubr.bf16.gmra.mrb[0].mxu0 %v10293
    %v10475 = vpop.f32.mrb[0].mxu0
    %v10476 = vadd.f32 %v10436, %v10475
    %v10477 = vpop.f32.mrb[0].mxu0
    %v10478 = vpop.f32.mrb[0].mxu0
    %v10479 = vpop.f32.mrb[0].mxu0
    %10480 = vdwg.mxu0
    %10481 = vmatprep.subr.bf16.mxu0 0
    %10482 = vmatpush1.bf16.msra.mxu0 %v10345
    %10483 = vmatprep.subr.bf16.mxu0 0
    %10484 = vmatpush1.bf16.msra.mxu0 %v10346
    %10485 = vmatprep.subr.bf16.mxu0 0
    %10486 = vmatpush1.bf16.msra.mxu0 %v10347
    %10487 = vmatprep.subr.bf16.mxu0 0
    %10488 = vmatpush1.bf16.msra.mxu0 %v10348
    %10489 = vmatprep.subr.bf16.mxu0 0
    %10490 = vmatpush1.bf16.msra.mxu0 %v10349
    %10491 = vmatprep.subr.bf16.mxu0 0
    %10492 = vmatpush1.bf16.msra.mxu0 %v10350
    %10493 = vmatprep.subr.bf16.mxu0 0
    %10494 = vmatpush1.bf16.msra.mxu0 %v10351
    %10495 = vmatprep.subr.bf16.mxu0 0
    %10496 = vmatpush1.bf16.msra.mxu0 %v10352
    %10497 = vmatprep.subr.bf16.mxu0 0
    %10498 = vmatpush1.bf16.msra.mxu0 %v10353
    %10499 = vmatprep.subr.bf16.mxu0 0
    %10500 = vmatpush1.bf16.msra.mxu0 %v10354
    %10501 = vmatprep.subr.bf16.mxu0 0
    %10502 = vmatpush1.bf16.msra.mxu0 %v10355
    %10503 = vmatprep.subr.bf16.mxu0 0
    %10504 = vmatpush1.bf16.msra.mxu0 %v10356
    %10505 = vmatprep.subr.bf16.mxu0 0
    %10506 = vmatpush1.bf16.msra.mxu0 %v10357
    %10507 = vmatprep.subr.bf16.mxu0 0
    %10508 = vmatpush1.bf16.msra.mxu0 %v10358
    %10509 = vmatprep.subr.bf16.mxu0 0
    %10510 = vmatpush1.bf16.msra.mxu0 %v10359
    %10511 = vmatprep.subr.bf16.mxu0 0
    %10512 = vmatpush1.bf16.msra.mxu0 %v10360
    %10513 = vmatprep.mubr.bf16.mxu0 %v10296
    %10514 = vmatmul.mubr.bf16.gmra.mrb[0].mxu0 %v10295
    %v10515 = vpop.f32.mrb[0].mxu0
    %v10516 = vadd.f32 %v10476, %v10515
    %v10517 = vpop.f32.mrb[0].mxu0
    %v10518 = vpop.f32.mrb[0].mxu0
    %v10519 = vpop.f32.mrb[0].mxu0
    %10520 = vdwg.mxu0
    %10521 = vst [vmem:[#allocation14] sm:$0x3] %v10516
    // Predicated region
    $region46: #{bombnet_forward.1} parent=1 // pred_check
      _
    $region47: #{bombnet_forward.1} parent=1 // pred_check_branch
      %10523 = sbr.rel (0) target = $region49
    $region48: #{bombnet_forward.1} parent=1 // pred_region
      %s10525 = ssub.s32 32, 32
      %10526 = vsyncadd [#allocation8], %s10525
      %s10528 = sshll.u32 [#allocation14], 4
      %s10529 = int_to_ptr.vmem [resolvable:$true] %s10528
      %10531 = dma.vmem_to_hbm [thread:$0]  %s10529, 32, %s9, [#allocation8]
    $region49: #{bombnet_forward.1} parent=1 // pred_fallthru
      _
    // Predicated region
    $region50: #{bombnet_forward.1} parent=1 // pred_check
      _
    $region51: #{bombnet_forward.1} parent=1 // pred_check_branch
      %10533 = sbr.rel (0) target = $region53
    $region52: #{bombnet_forward.1} parent=1 // pred_region
      %10534 = dma.done [#allocation8], 32
    $region53: #{bombnet_forward.1} parent=1 // pred_fallthru
      _
    %10535 = vsyncpa [#allocation7], 1
    %10536 = vsyncpa [#allocation12], 1
    %10537 = vsyncpa [#allocation8], 1
    %10538 = vsyncpa [#allocation9], 1
  %10539 = vsyncmov [#allocation5]
  %s10540 = vpop.sfrf %10539
  %p10541 = scmp.eq.s32.totalorder %s10540, 0
  %p10542 = pneg %p10541
  %10544 = shalt.err (%p10542)
  %s10545 = scalar_lea.sflag [#allocation5], 1
  %10546 = vsyncmov %s10545
  %s10547 = vpop.sfrf %10546
  %p10548 = scmp.eq.s32.totalorder %s10547, 0
  %p10549 = pneg %p10548
  %10551 = shalt.err (%p10549)
  %s10552 = scalar_lea.sflag [#allocation5], 2
  %10553 = vsyncmov %s10552
  %s10554 = vpop.sfrf %10553
  %p10555 = scmp.eq.s32.totalorder %s10554, 0
  %p10556 = pneg %p10555
  %10558 = shalt.err (%p10556)
  %s10559 = scalar_lea.sflag [#allocation5], 3
  %10560 = vsyncmov %s10559
  %s10561 = vpop.sfrf %10560
  %p10562 = scmp.eq.s32.totalorder %s10561, 0
  %p10563 = pneg %p10562
  %10565 = shalt.err (%p10563)
  %s10566 = scalar_lea.sflag [#allocation5], 4
  %10567 = vsyncmov %s10566
  %s10568 = vpop.sfrf %10567
  %p10569 = scmp.eq.s32.totalorder %s10568, 0
  %p10570 = pneg %p10569
  %10572 = shalt.err (%p10570)
  %s10573 = scalar_lea.sflag [#allocation5], 5
  %10574 = vsyncmov %s10573
  %s10575 = vpop.sfrf %10574
  %p10576 = scmp.eq.s32.totalorder %s10575, 0
  %p10577 = pneg %p10576
  %10579 = shalt.err (%p10577)
  %s10580 = scalar_lea.sflag [#allocation5], 6
  %10581 = vsyncmov %s10580
  %s10582 = vpop.sfrf %10581
  %p10583 = scmp.eq.s32.totalorder %s10582, 0
  %p10584 = pneg %p10583
  %10586 = shalt.err (%p10584)
  %s10587 = scalar_lea.sflag [#allocation5], 7
  %10588 = vsyncmov %s10587
  %s10589 = vpop.sfrf %10588
  %p10590 = scmp.eq.s32.totalorder %s10589, 0
  %p10591 = pneg %p10590
  %10593 = shalt.err (%p10591)
  %s10594 = scalar_lea.sflag [#allocation5], 8
  %10595 = vsyncmov %s10594
  %s10596 = vpop.sfrf %10595
  %p10597 = scmp.eq.s32.totalorder %s10596, 0
  %p10598 = pneg %p10597
  %10600 = shalt.err (%p10598)
  %s10601 = scalar_lea.sflag [#allocation5], 9
  %10602 = vsyncmov %s10601
  %s10603 = vpop.sfrf %10602
  %p10604 = scmp.eq.s32.totalorder %s10603, 0
  %p10605 = pneg %p10604
  %10607 = shalt.err (%p10605)
  %s10608 = scalar_lea.sflag [#allocation5], 10
  %10609 = vsyncmov %s10608
  %s10610 = vpop.sfrf %10609
  %p10611 = scmp.eq.s32.totalorder %s10610, 0
  %p10612 = pneg %p10611
  %10614 = shalt.err (%p10612)

</llo_original>
